<compile_context>
chip_gen: v5e
topology: v5e:2x2
jax: 0.10.0
libtpu: 0.0.40
codegen_flags: <defaults>
</compile_context>

<pallas_src>
import functools

import jax
import jax.numpy as jnp
from jax.experimental import pallas as pl
from jax.experimental.pallas import tpu as pltpu


# ---------------------------------------------------------------------------
# Fixed QNetwork geometry (84x84 Atari-style input, hard-coded by fc1=64*7*7)
# ---------------------------------------------------------------------------
H_IN, C_IN = 84, 4
S2D = 4                         # space-to-depth factor for conv1 (its stride)
U = H_IN // S2D                 # 21
D0 = S2D * S2D * C_IN           # 64  (s2d(4) channels, order (p, q, c))

C1 = 32                         # conv1 out channels
OH1, W1S = 20, U                # conv1 output 20x20, stored with row stride 21
A1_ROWS = (OH1 - 1) * W1S + OH1            # 419

P_H = 10                        # conv1 output space-to-depth(2) -> 10x10
P_C = 4 * C1                    # 128 packed channels, order (iq, jq, c)

C2 = 64                         # conv2 out channels
OH2, W2S = 9, P_H               # conv2 output 9x9, stored with row stride 10
A2_ROWS = (OH2 - 1) * W2S + OH2            # 89

C3 = 64                         # conv3 out channels
OH3 = 7                         # conv3 output 7x7, stored with row stride 10
A3_ROWS = (OH3 - 1) * W2S + OH3            # 67

FC1_IN = OH3 * OH3 * C3         # 3136
FC1_OUT = 512


# ---------------------------------------------------------------------------
# Fused kernel: one grid step == one batch element, everything stays in VMEM
# ---------------------------------------------------------------------------
def _qnet_kernel(x_ref, w1_ref, b1_ref, w2_ref, b2_ref, w3_ref, b3_ref,
                 wf1_ref, bf1_ref, wf2_ref, bf2_ref, out_ref,
                 a1_ref, a1p_ref, xfc_ref):
    f32, bf16 = jnp.float32, jnp.bfloat16

    # ---- conv1: on the space-to-depth(4) input it is a 2x2, stride-1 conv --
    # x_ref block (1, 441, 64); row = u*21 + v, channel = p*16 + q*4 + c.
    acc1 = jnp.zeros((A1_ROWS, C1), f32)
    for t, (i, j) in enumerate(((0, 0), (0, 1), (1, 0), (1, 1))):
        off = i * U + j
        lhs = x_ref[0, off:off + A1_ROWS, :].astype(bf16)
        rhs = w1_ref[t * D0:(t + 1) * D0, :]
        acc1 = acc1 + jnp.dot(lhs, rhs, preferred_element_type=f32)
    a1_ref[...] = jnp.maximum(acc1 + b1_ref[...], 0.0)

    # ---- repack conv1 output into space-to-depth(2) layout for conv2 -------
    # a1p[Y*10 + X, (iq*2+jq)*32 + c] = a1[(2Y+iq)*21 + 2X+jq, c]
    for iq in range(2):
        for jq in range(2):
            col = (iq * 2 + jq) * C1
            for Y in range(P_H):
                src = (2 * Y + iq) * W1S + jq
                a1p_ref[Y * P_H:(Y + 1) * P_H, col:col + C1] = (
                    a1_ref[pl.ds(src, P_H, stride=2), :])

    # ---- conv2: on the packed layout it is a 2x2, stride-1 conv ------------
    acc2 = jnp.zeros((A2_ROWS, C2), f32)
    for t, (i, j) in enumerate(((0, 0), (0, 1), (1, 0), (1, 1))):
        off = i * P_H + j
        lhs = a1p_ref[off:off + A2_ROWS, :].astype(bf16)
        rhs = w2_ref[t * P_C:(t + 1) * P_C, :]
        acc2 = acc2 + jnp.dot(lhs, rhs, preferred_element_type=f32)
    a2 = jnp.maximum(acc2 + b2_ref[...], 0.0)          # (89, 64), rows oy*10+ox

    # ---- conv3: 3x3, stride-1 conv on the (row = oy*10 + ox) layout --------
    acc3 = jnp.zeros((A3_ROWS, C3), f32)
    for t in range(9):
        i, j = t // 3, t % 3
        off = i * W2S + j
        lhs = a2[off:off + A3_ROWS, :].astype(bf16)
        rhs = w3_ref[t * C2:(t + 1) * C2, :]
        acc3 = acc3 + jnp.dot(lhs, rhs, preferred_element_type=f32)
    a3 = jnp.maximum(acc3 + b3_ref[...], 0.0)          # (67, 64), rows oy*10+ox

    # ---- flatten the valid 7x7x64 block into one (1, 3136) row in VMEM -----
    for oy in range(OH3):
        for ox in range(OH3):
            dst = (oy * OH3 + ox) * C3
            src = oy * W2S + ox
            xfc_ref[0:1, dst:dst + C3] = a3[src:src + 1, :]

    # ---- fc1 -> ReLU -> fc2 (hidden activation never leaves VMEM) ----------
    xf = xfc_ref[...].astype(bf16)                                   # (1, 3136)
    h = jnp.dot(xf, wf1_ref[...], preferred_element_type=f32) + bf1_ref[...]
    h = jnp.maximum(h, 0.0).astype(bf16)                             # (1, 512)
    q = jnp.dot(h, wf2_ref[...], preferred_element_type=f32) + bf2_ref[...]
    out_ref[0, :, :] = q


# ---------------------------------------------------------------------------
# Forward pass (mirror of QNetwork.forward)
# ---------------------------------------------------------------------------
@jax.jit
def qnetwork_forward(params, x):
    B = x.shape[0]
    A = params["fc2_b"].shape[-1]

    # NCHW -> space-to-depth(4) rows: (B, 441, 64); row = u*21+v, ch = (p,q,c).
    # Pure transpose/reshape of the raw input (no expansion), done once.
    xs = x.reshape(B, C_IN, U, S2D, U, S2D)
    xs = jnp.transpose(xs, (0, 2, 4, 3, 5, 1)).reshape(B, U * U, D0)

    out = pl.pallas_call(
        _qnet_kernel,
        out_shape=jax.ShapeDtypeStruct((B, 1, A), jnp.float32),
        grid_spec=pltpu.PrefetchScalarGridSpec(
            num_scalar_prefetch=0,
            grid=(B,),
            in_specs=[
                pl.BlockSpec((1, U * U, D0), lambda b: (b, 0, 0)),      # x
                pl.BlockSpec((4 * D0, C1), lambda b: (0, 0)),           # w1
                pl.BlockSpec((1, C1), lambda b: (0, 0)),                # b1
                pl.BlockSpec((4 * P_C, C2), lambda b: (0, 0)),          # w2
                pl.BlockSpec((1, C2), lambda b: (0, 0)),                # b2
                pl.BlockSpec((9 * C2, C3), lambda b: (0, 0)),           # w3
                pl.BlockSpec((1, C3), lambda b: (0, 0)),                # b3
                pl.BlockSpec((FC1_IN, FC1_OUT), lambda b: (0, 0)),      # fc1 w
                pl.BlockSpec((1, FC1_OUT), lambda b: (0, 0)),           # fc1 b
                pl.BlockSpec((FC1_OUT, A), lambda b: (0, 0)),           # fc2 w
                pl.BlockSpec((1, A), lambda b: (0, 0)),                 # fc2 b
            ],
            out_specs=pl.BlockSpec((1, 1, A), lambda b: (b, 0, 0)),
            scratch_shapes=[
                pltpu.VMEM((A1_ROWS, C1), jnp.float32),      # conv1 out
                pltpu.VMEM((P_H * P_H, P_C), jnp.float32),   # s2d(2) repack
                pltpu.VMEM((1, FC1_IN), jnp.float32),        # flattened fc1 in
            ],
        ),
        compiler_params=pltpu.CompilerParams(
            dimension_semantics=("parallel",)),
    )(xs,
      params["conv1_w"], params["conv1_b"],
      params["conv2_w"], params["conv2_b"],
      params["conv3_w"], params["conv3_b"],
      params["fc1_w"], params["fc1_b"],
      params["fc2_w"], params["fc2_b"])
    return out[:, 0, :]


# ---------------------------------------------------------------------------
# Parameters
# ---------------------------------------------------------------------------
def init_torch_params(key, action_size):
    """Deterministic synthetic params in PyTorch's native layouts/shapes."""
    ks = jax.random.split(key, 10)

    def w(k, shape, fan_in):
        return jax.random.normal(k, shape, jnp.float32) / jnp.sqrt(float(fan_in))

    return {
        "conv1_w": w(ks[0], (32, 4, 8, 8), 4 * 8 * 8),
        "conv1_b": w(ks[1], (32,), 4 * 8 * 8),
        "conv2_w": w(ks[2], (64, 32, 4, 4), 32 * 4 * 4),
        "conv2_b": w(ks[3], (64,), 32 * 4 * 4),
        "conv3_w": w(ks[4], (64, 64, 3, 3), 64 * 3 * 3),
        "conv3_b": w(ks[5], (64,), 64 * 3 * 3),
        "fc1_w": w(ks[6], (512, 64 * 7 * 7), 64 * 7 * 7),   # torch (out, in)
        "fc1_b": w(ks[7], (512,), 64 * 7 * 7),
        "fc2_w": w(ks[8], (action_size, 512), 512),          # torch (out, in)
        "fc2_b": w(ks[9], (action_size,), 512),
    }


def prepare_params(tp):
    """Torch-layout params -> device layout (bf16 weights, f32 biases).
    Runs ONCE; nothing on the forward path."""
    bf16, f32 = jnp.bfloat16, jnp.float32
    dev = {}

    # conv1: (OC,C,8,8) -> taps (I,J) of the s2d(4) 2x2 conv, rows (I,J,p,q,c)
    w = jnp.transpose(tp["conv1_w"], (2, 3, 1, 0))          # (8, 8, 4, 32)
    w = w.reshape(2, S2D, 2, S2D, C_IN, C1)                 # (I, p, J, q, c, oc)
    w = jnp.transpose(w, (0, 2, 1, 3, 4, 5))                # (I, J, p, q, c, oc)
    dev["conv1_w"] = w.reshape(4 * D0, C1).astype(bf16)
    dev["conv1_b"] = tp["conv1_b"].reshape(1, C1).astype(f32)

    # conv2: (OC,C,4,4) -> taps (ih,jh) on the s2d(2) packed input,
    # rows within a tap ordered (iq, jq, c) to match the in-kernel repack.
    w = jnp.transpose(tp["conv2_w"], (2, 3, 1, 0))          # (4, 4, 32, 64)
    w = w.reshape(2, 2, 2, 2, C1, C2)                       # (ih, iq, jh, jq, c, oc)
    w = jnp.transpose(w, (0, 2, 1, 3, 4, 5))                # (ih, jh, iq, jq, c, oc)
    dev["conv2_w"] = w.reshape(4 * P_C, C2).astype(bf16)
    dev["conv2_b"] = tp["conv2_b"].reshape(1, C2).astype(f32)

    # conv3: (OC,C,3,3) -> rows (i, j, c)
    w = jnp.transpose(tp["conv3_w"], (2, 3, 1, 0))          # (3, 3, 64, 64)
    dev["conv3_w"] = w.reshape(9 * C2, C3).astype(bf16)
    dev["conv3_b"] = tp["conv3_b"].reshape(1, C3).astype(f32)

    # fc1: torch columns are (c, oy, ox) (NCHW flatten); the kernel flattens
    # as (oy, ox, c) -> permute columns once, transpose to (in, out).
    f1 = tp["fc1_w"].reshape(FC1_OUT, C3, OH3, OH3)         # (out, c, oy, ox)
    f1 = jnp.transpose(f1, (2, 3, 1, 0)).reshape(FC1_IN, FC1_OUT)
    dev["fc1_w"] = f1.astype(bf16)
    dev["fc1_b"] = tp["fc1_b"].reshape(1, FC1_OUT).astype(f32)

    a = tp["fc2_w"].shape[0]
    dev["fc2_w"] = tp["fc2_w"].T.astype(bf16)               # (512, A)
    dev["fc2_b"] = tp["fc2_b"].reshape(1, a).astype(f32)
    return dev


if __name__ == "__main__":
    key = jax.random.PRNGKey(0)
    pkey, xkey = jax.random.split(key)

    action_size = 6
    torch_params = init_torch_params(pkey, action_size)
    params = prepare_params(torch_params)   # one-time weight repack / bf16 cast

    # Spatial size must be 84x84 because fc1 hard-codes 64*7*7 input features.
    x = jax.random.normal(xkey, (2, 4, 84, 84), jnp.float32)

    out = qnetwork_forward(params, x)
    out = jax.block_until_ready(out)
    assert out.shape == (2, action_size)
    assert bool(jnp.all(jnp.isfinite(out)))
    print("KERNEL_OK")
</pallas_src>

<mosaic_0001>
module attributes {stable_mosaic.version = 11 : i64} {
  func.func @_qnet_kernel(%arg0: i32, %arg1: memref<1x441x64xf32, #tpu.memory_space<vmem>>, %arg2: memref<256x32xbf16, #tpu.memory_space<vmem>>, %arg3: memref<1x32xf32, #tpu.memory_space<vmem>>, %arg4: memref<512x64xbf16, #tpu.memory_space<vmem>>, %arg5: memref<1x64xf32, #tpu.memory_space<vmem>>, %arg6: memref<576x64xbf16, #tpu.memory_space<vmem>>, %arg7: memref<1x64xf32, #tpu.memory_space<vmem>>, %arg8: memref<3136x512xbf16, #tpu.memory_space<vmem>>, %arg9: memref<1x512xf32, #tpu.memory_space<vmem>>, %arg10: memref<512x6xbf16, #tpu.memory_space<vmem>>, %arg11: memref<1x6xf32, #tpu.memory_space<vmem>>, %arg12: memref<1x1x6xf32, #tpu.memory_space<vmem>>, %arg13: memref<419x32xf32, #tpu.memory_space<vmem>>, %arg14: memref<100x128xf32, #tpu.memory_space<vmem>>, %arg15: memref<1x3136xf32, #tpu.memory_space<vmem>>) attributes {dimension_semantics = [#tpu.dimension_semantics<parallel>], iteration_bounds = array<i64: 2>, scalar_prefetch = 0 : i64, scratch_operands = 3 : i64, tpu.core_type = #tpu.core_type<tc>, window_params = [{transform_indices = @transform_0, window_bounds = array<i64: 1, 441, 64>}, {pipeline_mode = #tpu.pipeline_mode<synchronous>, transform_indices = @transform_1, window_bounds = array<i64: 256, 32>}, {pipeline_mode = #tpu.pipeline_mode<synchronous>, transform_indices = @transform_2, window_bounds = array<i64: 1, 32>}, {pipeline_mode = #tpu.pipeline_mode<synchronous>, transform_indices = @transform_3, window_bounds = array<i64: 512, 64>}, {pipeline_mode = #tpu.pipeline_mode<synchronous>, transform_indices = @transform_4, window_bounds = array<i64: 1, 64>}, {pipeline_mode = #tpu.pipeline_mode<synchronous>, transform_indices = @transform_5, window_bounds = array<i64: 576, 64>}, {pipeline_mode = #tpu.pipeline_mode<synchronous>, transform_indices = @transform_6, window_bounds = array<i64: 1, 64>}, {pipeline_mode = #tpu.pipeline_mode<synchronous>, transform_indices = @transform_7, window_bounds = array<i64: 3136, 512>}, {pipeline_mode = #tpu.pipeline_mode<synchronous>, transform_indices = @transform_8, window_bounds = array<i64: 1, 512>}, {pipeline_mode = #tpu.pipeline_mode<synchronous>, transform_indices = @transform_9, window_bounds = array<i64: 512, 6>}, {pipeline_mode = #tpu.pipeline_mode<synchronous>, transform_indices = @transform_10, window_bounds = array<i64: 1, 6>}, {transform_indices = @transform_11, window_bounds = array<i64: 1, 1, 6>}]} {
    %cst = arith.constant 0.000000e+00 : f32
    %0 = vector.broadcast %cst : f32 to vector<419x32xf32>
    %c0 = arith.constant 0 : index
    %c0_0 = arith.constant 0 : index
    %c0_1 = arith.constant 0 : index
    %1 = vector.load %arg1[%c0, %c0_0, %c0_1] : memref<1x441x64xf32, #tpu.memory_space<vmem>>, vector<1x419x64xf32>
    %2 = vector.shape_cast %1 : vector<1x419x64xf32> to vector<419x64xf32>
    %3 = arith.truncf %2 : vector<419x64xf32> to vector<419x64xbf16>
    %c0_2 = arith.constant 0 : index
    %c0_3 = arith.constant 0 : index
    %4 = vector.load %arg2[%c0_2, %c0_3] : memref<256x32xbf16, #tpu.memory_space<vmem>>, vector<64x32xbf16>
    %cst_4 = arith.constant dense<0.000000e+00> : vector<419x32xf32>
    %5 = tpu.matmul %3, %4, %cst_4 {dimension_numbers = #tpu.dot_dimension_numbers<[1], [0], [0], [1], [0, 0, 1, 1], [], []>} : vector<419x64xbf16>, vector<64x32xbf16>, vector<419x32xf32> -> vector<419x32xf32>
    %6 = arith.addf %0, %5 : vector<419x32xf32>
    %c0_5 = arith.constant 0 : index
    %c1 = arith.constant 1 : index
    %c0_6 = arith.constant 0 : index
    %7 = vector.load %arg1[%c0_5, %c1, %c0_6] : memref<1x441x64xf32, #tpu.memory_space<vmem>>, vector<1x419x64xf32>
    %8 = vector.shape_cast %7 : vector<1x419x64xf32> to vector<419x64xf32>
    %9 = arith.truncf %8 : vector<419x64xf32> to vector<419x64xbf16>
    %c64 = arith.constant 64 : index
    %c0_7 = arith.constant 0 : index
    %10 = vector.load %arg2[%c64, %c0_7] : memref<256x32xbf16, #tpu.memory_space<vmem>>, vector<64x32xbf16>
    %cst_8 = arith.constant dense<0.000000e+00> : vector<419x32xf32>
    %11 = tpu.matmul %9, %10, %cst_8 {dimension_numbers = #tpu.dot_dimension_numbers<[1], [0], [0], [1], [0, 0, 1, 1], [], []>} : vector<419x64xbf16>, vector<64x32xbf16>, vector<419x32xf32> -> vector<419x32xf32>
    %12 = arith.addf %6, %11 : vector<419x32xf32>
    %c0_9 = arith.constant 0 : index
    %c21 = arith.constant 21 : index
    %c0_10 = arith.constant 0 : index
    %13 = vector.load %arg1[%c0_9, %c21, %c0_10] : memref<1x441x64xf32, #tpu.memory_space<vmem>>, vector<1x419x64xf32>
    %14 = vector.shape_cast %13 : vector<1x419x64xf32> to vector<419x64xf32>
    %15 = arith.truncf %14 : vector<419x64xf32> to vector<419x64xbf16>
    %c128 = arith.constant 128 : index
    %c0_11 = arith.constant 0 : index
    %16 = vector.load %arg2[%c128, %c0_11] : memref<256x32xbf16, #tpu.memory_space<vmem>>, vector<64x32xbf16>
    %cst_12 = arith.constant dense<0.000000e+00> : vector<419x32xf32>
    %17 = tpu.matmul %15, %16, %cst_12 {dimension_numbers = #tpu.dot_dimension_numbers<[1], [0], [0], [1], [0, 0, 1, 1], [], []>} : vector<419x64xbf16>, vector<64x32xbf16>, vector<419x32xf32> -> vector<419x32xf32>
    %18 = arith.addf %12, %17 : vector<419x32xf32>
    %c0_13 = arith.constant 0 : index
    %c22 = arith.constant 22 : index
    %c0_14 = arith.constant 0 : index
    %19 = vector.load %arg1[%c0_13, %c22, %c0_14] : memref<1x441x64xf32, #tpu.memory_space<vmem>>, vector<1x419x64xf32>
    %20 = vector.shape_cast %19 : vector<1x419x64xf32> to vector<419x64xf32>
    %21 = arith.truncf %20 : vector<419x64xf32> to vector<419x64xbf16>
    %c192 = arith.constant 192 : index
    %c0_15 = arith.constant 0 : index
    %22 = vector.load %arg2[%c192, %c0_15] : memref<256x32xbf16, #tpu.memory_space<vmem>>, vector<64x32xbf16>
    %cst_16 = arith.constant dense<0.000000e+00> : vector<419x32xf32>
    %23 = tpu.matmul %21, %22, %cst_16 {dimension_numbers = #tpu.dot_dimension_numbers<[1], [0], [0], [1], [0, 0, 1, 1], [], []>} : vector<419x64xbf16>, vector<64x32xbf16>, vector<419x32xf32> -> vector<419x32xf32>
    %24 = arith.addf %18, %23 : vector<419x32xf32>
    %c0_17 = arith.constant 0 : index
    %c0_18 = arith.constant 0 : index
    %25 = vector.load %arg3[%c0_17, %c0_18] : memref<1x32xf32, #tpu.memory_space<vmem>>, vector<1x32xf32>
    %26 = vector.broadcast %25 : vector<1x32xf32> to vector<419x32xf32>
    %27 = arith.addf %24, %26 : vector<419x32xf32>
    %cst_19 = arith.constant 0.000000e+00 : f32
    %28 = vector.broadcast %cst_19 : f32 to vector<419x32xf32>
    %29 = arith.maximumf %27, %28 : vector<419x32xf32>
    %c0_20 = arith.constant 0 : index
    %c0_21 = arith.constant 0 : index
    %30 = vector.load %arg13[%c0_20, %c0_21] : memref<419x32xf32, #tpu.memory_space<vmem>>, vector<419x32xf32>
    tpu.vector_store %arg13[%c0_20, %c0_21], %29 {strides = array<i32>} : memref<419x32xf32, #tpu.memory_space<vmem>>, vector<419x32xf32>,
    %c0_22 = arith.constant 0 : index
    %c0_23 = arith.constant 0 : index
    %31 = tpu.strided_load %arg13[%c0_22, %c0_23] {strides = array<i32: 2, 1>} : memref<419x32xf32, #tpu.memory_space<vmem>>, vector<10x32xf32>
    %c0_24 = arith.constant 0 : index
    %c0_25 = arith.constant 0 : index
    %32 = vector.load %arg14[%c0_24, %c0_25] : memref<100x128xf32, #tpu.memory_space<vmem>>, vector<10x32xf32>
    tpu.vector_store %arg14[%c0_24, %c0_25], %31 {strides = array<i32>} : memref<100x128xf32, #tpu.memory_space<vmem>>, vector<10x32xf32>,
    %c42 = arith.constant 42 : index
    %c0_26 = arith.constant 0 : index
    %33 = tpu.strided_load %arg13[%c42, %c0_26] {strides = array<i32: 2, 1>} : memref<419x32xf32, #tpu.memory_space<vmem>>, vector<10x32xf32>
    %c10 = arith.constant 10 : index
    %c0_27 = arith.constant 0 : index
    %34 = vector.load %arg14[%c10, %c0_27] : memref<100x128xf32, #tpu.memory_space<vmem>>, vector<10x32xf32>
    tpu.vector_store %arg14[%c10, %c0_27], %33 {strides = array<i32>} : memref<100x128xf32, #tpu.memory_space<vmem>>, vector<10x32xf32>,
    %c84 = arith.constant 84 : index
    %c0_28 = arith.constant 0 : index
    %35 = tpu.strided_load %arg13[%c84, %c0_28] {strides = array<i32: 2, 1>} : memref<419x32xf32, #tpu.memory_space<vmem>>, vector<10x32xf32>
    %c20 = arith.constant 20 : index
    %c0_29 = arith.constant 0 : index
    %36 = vector.load %arg14[%c20, %c0_29] : memref<100x128xf32, #tpu.memory_space<vmem>>, vector<10x32xf32>
    tpu.vector_store %arg14[%c20, %c0_29], %35 {strides = array<i32>} : memref<100x128xf32, #tpu.memory_space<vmem>>, vector<10x32xf32>,
    %c126 = arith.constant 126 : index
    %c0_30 = arith.constant 0 : index
    %37 = tpu.strided_load %arg13[%c126, %c0_30] {strides = array<i32: 2, 1>} : memref<419x32xf32, #tpu.memory_space<vmem>>, vector<10x32xf32>
    %c30 = arith.constant 30 : index
    %c0_31 = arith.constant 0 : index
    %38 = vector.load %arg14[%c30, %c0_31] : memref<100x128xf32, #tpu.memory_space<vmem>>, vector<10x32xf32>
    tpu.vector_store %arg14[%c30, %c0_31], %37 {strides = array<i32>} : memref<100x128xf32, #tpu.memory_space<vmem>>, vector<10x32xf32>,
    %c168 = arith.constant 168 : index
    %c0_32 = arith.constant 0 : index
    %39 = tpu.strided_load %arg13[%c168, %c0_32] {strides = array<i32: 2, 1>} : memref<419x32xf32, #tpu.memory_space<vmem>>, vector<10x32xf32>
    %c40 = arith.constant 40 : index
    %c0_33 = arith.constant 0 : index
    %40 = vector.load %arg14[%c40, %c0_33] : memref<100x128xf32, #tpu.memory_space<vmem>>, vector<10x32xf32>
    tpu.vector_store %arg14[%c40, %c0_33], %39 {strides = array<i32>} : memref<100x128xf32, #tpu.memory_space<vmem>>, vector<10x32xf32>,
    %c210 = arith.constant 210 : index
    %c0_34 = arith.constant 0 : index
    %41 = tpu.strided_load %arg13[%c210, %c0_34] {strides = array<i32: 2, 1>} : memref<419x32xf32, #tpu.memory_space<vmem>>, vector<10x32xf32>
    %c50 = arith.constant 50 : index
    %c0_35 = arith.constant 0 : index
    %42 = vector.load %arg14[%c50, %c0_35] : memref<100x128xf32, #tpu.memory_space<vmem>>, vector<10x32xf32>
    tpu.vector_store %arg14[%c50, %c0_35], %41 {strides = array<i32>} : memref<100x128xf32, #tpu.memory_space<vmem>>, vector<10x32xf32>,
    %c252 = arith.constant 252 : index
    %c0_36 = arith.constant 0 : index
    %43 = tpu.strided_load %arg13[%c252, %c0_36] {strides = array<i32: 2, 1>} : memref<419x32xf32, #tpu.memory_space<vmem>>, vector<10x32xf32>
    %c60 = arith.constant 60 : index
    %c0_37 = arith.constant 0 : index
    %44 = vector.load %arg14[%c60, %c0_37] : memref<100x128xf32, #tpu.memory_space<vmem>>, vector<10x32xf32>
    tpu.vector_store %arg14[%c60, %c0_37], %43 {strides = array<i32>} : memref<100x128xf32, #tpu.memory_space<vmem>>, vector<10x32xf32>,
    %c294 = arith.constant 294 : index
    %c0_38 = arith.constant 0 : index
    %45 = tpu.strided_load %arg13[%c294, %c0_38] {strides = array<i32: 2, 1>} : memref<419x32xf32, #tpu.memory_space<vmem>>, vector<10x32xf32>
    %c70 = arith.constant 70 : index
    %c0_39 = arith.constant 0 : index
    %46 = vector.load %arg14[%c70, %c0_39] : memref<100x128xf32, #tpu.memory_space<vmem>>, vector<10x32xf32>
    tpu.vector_store %arg14[%c70, %c0_39], %45 {strides = array<i32>} : memref<100x128xf32, #tpu.memory_space<vmem>>, vector<10x32xf32>,
    %c336 = arith.constant 336 : index
    %c0_40 = arith.constant 0 : index
    %47 = tpu.strided_load %arg13[%c336, %c0_40] {strides = array<i32: 2, 1>} : memref<419x32xf32, #tpu.memory_space<vmem>>, vector<10x32xf32>
    %c80 = arith.constant 80 : index
    %c0_41 = arith.constant 0 : index
    %48 = vector.load %arg14[%c80, %c0_41] : memref<100x128xf32, #tpu.memory_space<vmem>>, vector<10x32xf32>
    tpu.vector_store %arg14[%c80, %c0_41], %47 {strides = array<i32>} : memref<100x128xf32, #tpu.memory_space<vmem>>, vector<10x32xf32>,
    %c378 = arith.constant 378 : index
    %c0_42 = arith.constant 0 : index
    %49 = tpu.strided_load %arg13[%c378, %c0_42] {strides = array<i32: 2, 1>} : memref<419x32xf32, #tpu.memory_space<vmem>>, vector<10x32xf32>
    %c90 = arith.constant 90 : index
    %c0_43 = arith.constant 0 : index
    %50 = vector.load %arg14[%c90, %c0_43] : memref<100x128xf32, #tpu.memory_space<vmem>>, vector<10x32xf32>
    tpu.vector_store %arg14[%c90, %c0_43], %49 {strides = array<i32>} : memref<100x128xf32, #tpu.memory_space<vmem>>, vector<10x32xf32>,
    %c1_44 = arith.constant 1 : index
    %c0_45 = arith.constant 0 : index
    %51 = tpu.strided_load %arg13[%c1_44, %c0_45] {strides = array<i32: 2, 1>} : memref<419x32xf32, #tpu.memory_space<vmem>>, vector<10x32xf32>
    %c0_46 = arith.constant 0 : index
    %c32 = arith.constant 32 : index
    %52 = vector.load %arg14[%c0_46, %c32] : memref<100x128xf32, #tpu.memory_space<vmem>>, vector<10x32xf32>
    tpu.vector_store %arg14[%c0_46, %c32], %51 {strides = array<i32>} : memref<100x128xf32, #tpu.memory_space<vmem>>, vector<10x32xf32>,
    %c43 = arith.constant 43 : index
    %c0_47 = arith.constant 0 : index
    %53 = tpu.strided_load %arg13[%c43, %c0_47] {strides = array<i32: 2, 1>} : memref<419x32xf32, #tpu.memory_space<vmem>>, vector<10x32xf32>
    %c10_48 = arith.constant 10 : index
    %c32_49 = arith.constant 32 : index
    %54 = vector.load %arg14[%c10_48, %c32_49] : memref<100x128xf32, #tpu.memory_space<vmem>>, vector<10x32xf32>
    tpu.vector_store %arg14[%c10_48, %c32_49], %53 {strides = array<i32>} : memref<100x128xf32, #tpu.memory_space<vmem>>, vector<10x32xf32>,
    %c85 = arith.constant 85 : index
    %c0_50 = arith.constant 0 : index
    %55 = tpu.strided_load %arg13[%c85, %c0_50] {strides = array<i32: 2, 1>} : memref<419x32xf32, #tpu.memory_space<vmem>>, vector<10x32xf32>
    %c20_51 = arith.constant 20 : index
    %c32_52 = arith.constant 32 : index
    %56 = vector.load %arg14[%c20_51, %c32_52] : memref<100x128xf32, #tpu.memory_space<vmem>>, vector<10x32xf32>
    tpu.vector_store %arg14[%c20_51, %c32_52], %55 {strides = array<i32>} : memref<100x128xf32, #tpu.memory_space<vmem>>, vector<10x32xf32>,
    %c127 = arith.constant 127 : index
    %c0_53 = arith.constant 0 : index
    %57 = tpu.strided_load %arg13[%c127, %c0_53] {strides = array<i32: 2, 1>} : memref<419x32xf32, #tpu.memory_space<vmem>>, vector<10x32xf32>
    %c30_54 = arith.constant 30 : index
    %c32_55 = arith.constant 32 : index
    %58 = vector.load %arg14[%c30_54, %c32_55] : memref<100x128xf32, #tpu.memory_space<vmem>>, vector<10x32xf32>
    tpu.vector_store %arg14[%c30_54, %c32_55], %57 {strides = array<i32>} : memref<100x128xf32, #tpu.memory_space<vmem>>, vector<10x32xf32>,
    %c169 = arith.constant 169 : index
    %c0_56 = arith.constant 0 : index
    %59 = tpu.strided_load %arg13[%c169, %c0_56] {strides = array<i32: 2, 1>} : memref<419x32xf32, #tpu.memory_space<vmem>>, vector<10x32xf32>
    %c40_57 = arith.constant 40 : index
    %c32_58 = arith.constant 32 : index
    %60 = vector.load %arg14[%c40_57, %c32_58] : memref<100x128xf32, #tpu.memory_space<vmem>>, vector<10x32xf32>
    tpu.vector_store %arg14[%c40_57, %c32_58], %59 {strides = array<i32>} : memref<100x128xf32, #tpu.memory_space<vmem>>, vector<10x32xf32>,
    %c211 = arith.constant 211 : index
    %c0_59 = arith.constant 0 : index
    %61 = tpu.strided_load %arg13[%c211, %c0_59] {strides = array<i32: 2, 1>} : memref<419x32xf32, #tpu.memory_space<vmem>>, vector<10x32xf32>
    %c50_60 = arith.constant 50 : index
    %c32_61 = arith.constant 32 : index
    %62 = vector.load %arg14[%c50_60, %c32_61] : memref<100x128xf32, #tpu.memory_space<vmem>>, vector<10x32xf32>
    tpu.vector_store %arg14[%c50_60, %c32_61], %61 {strides = array<i32>} : memref<100x128xf32, #tpu.memory_space<vmem>>, vector<10x32xf32>,
    %c253 = arith.constant 253 : index
    %c0_62 = arith.constant 0 : index
    %63 = tpu.strided_load %arg13[%c253, %c0_62] {strides = array<i32: 2, 1>} : memref<419x32xf32, #tpu.memory_space<vmem>>, vector<10x32xf32>
    %c60_63 = arith.constant 60 : index
    %c32_64 = arith.constant 32 : index
    %64 = vector.load %arg14[%c60_63, %c32_64] : memref<100x128xf32, #tpu.memory_space<vmem>>, vector<10x32xf32>
    tpu.vector_store %arg14[%c60_63, %c32_64], %63 {strides = array<i32>} : memref<100x128xf32, #tpu.memory_space<vmem>>, vector<10x32xf32>,
    %c295 = arith.constant 295 : index
    %c0_65 = arith.constant 0 : index
    %65 = tpu.strided_load %arg13[%c295, %c0_65] {strides = array<i32: 2, 1>} : memref<419x32xf32, #tpu.memory_space<vmem>>, vector<10x32xf32>
    %c70_66 = arith.constant 70 : index
    %c32_67 = arith.constant 32 : index
    %66 = vector.load %arg14[%c70_66, %c32_67] : memref<100x128xf32, #tpu.memory_space<vmem>>, vector<10x32xf32>
    tpu.vector_store %arg14[%c70_66, %c32_67], %65 {strides = array<i32>} : memref<100x128xf32, #tpu.memory_space<vmem>>, vector<10x32xf32>,
    %c337 = arith.constant 337 : index
    %c0_68 = arith.constant 0 : index
    %67 = tpu.strided_load %arg13[%c337, %c0_68] {strides = array<i32: 2, 1>} : memref<419x32xf32, #tpu.memory_space<vmem>>, vector<10x32xf32>
    %c80_69 = arith.constant 80 : index
    %c32_70 = arith.constant 32 : index
    %68 = vector.load %arg14[%c80_69, %c32_70] : memref<100x128xf32, #tpu.memory_space<vmem>>, vector<10x32xf32>
    tpu.vector_store %arg14[%c80_69, %c32_70], %67 {strides = array<i32>} : memref<100x128xf32, #tpu.memory_space<vmem>>, vector<10x32xf32>,
    %c379 = arith.constant 379 : index
    %c0_71 = arith.constant 0 : index
    %69 = tpu.strided_load %arg13[%c379, %c0_71] {strides = array<i32: 2, 1>} : memref<419x32xf32, #tpu.memory_space<vmem>>, vector<10x32xf32>
    %c90_72 = arith.constant 90 : index
    %c32_73 = arith.constant 32 : index
    %70 = vector.load %arg14[%c90_72, %c32_73] : memref<100x128xf32, #tpu.memory_space<vmem>>, vector<10x32xf32>
    tpu.vector_store %arg14[%c90_72, %c32_73], %69 {strides = array<i32>} : memref<100x128xf32, #tpu.memory_space<vmem>>, vector<10x32xf32>,
    %c21_74 = arith.constant 21 : index
    %c0_75 = arith.constant 0 : index
    %71 = tpu.strided_load %arg13[%c21_74, %c0_75] {strides = array<i32: 2, 1>} : memref<419x32xf32, #tpu.memory_space<vmem>>, vector<10x32xf32>
    %c0_76 = arith.constant 0 : index
    %c64_77 = arith.constant 64 : index
    %72 = vector.load %arg14[%c0_76, %c64_77] : memref<100x128xf32, #tpu.memory_space<vmem>>, vector<10x32xf32>
    tpu.vector_store %arg14[%c0_76, %c64_77], %71 {strides = array<i32>} : memref<100x128xf32, #tpu.memory_space<vmem>>, vector<10x32xf32>,
    %c63 = arith.constant 63 : index
    %c0_78 = arith.constant 0 : index
    %73 = tpu.strided_load %arg13[%c63, %c0_78] {strides = array<i32: 2, 1>} : memref<419x32xf32, #tpu.memory_space<vmem>>, vector<10x32xf32>
    %c10_79 = arith.constant 10 : index
    %c64_80 = arith.constant 64 : index
    %74 = vector.load %arg14[%c10_79, %c64_80] : memref<100x128xf32, #tpu.memory_space<vmem>>, vector<10x32xf32>
    tpu.vector_store %arg14[%c10_79, %c64_80], %73 {strides = array<i32>} : memref<100x128xf32, #tpu.memory_space<vmem>>, vector<10x32xf32>,
    %c105 = arith.constant 105 : index
    %c0_81 = arith.constant 0 : index
    %75 = tpu.strided_load %arg13[%c105, %c0_81] {strides = array<i32: 2, 1>} : memref<419x32xf32, #tpu.memory_space<vmem>>, vector<10x32xf32>
    %c20_82 = arith.constant 20 : index
    %c64_83 = arith.constant 64 : index
    %76 = vector.load %arg14[%c20_82, %c64_83] : memref<100x128xf32, #tpu.memory_space<vmem>>, vector<10x32xf32>
    tpu.vector_store %arg14[%c20_82, %c64_83], %75 {strides = array<i32>} : memref<100x128xf32, #tpu.memory_space<vmem>>, vector<10x32xf32>,
    %c147 = arith.constant 147 : index
    %c0_84 = arith.constant 0 : index
    %77 = tpu.strided_load %arg13[%c147, %c0_84] {strides = array<i32: 2, 1>} : memref<419x32xf32, #tpu.memory_space<vmem>>, vector<10x32xf32>
    %c30_85 = arith.constant 30 : index
    %c64_86 = arith.constant 64 : index
    %78 = vector.load %arg14[%c30_85, %c64_86] : memref<100x128xf32, #tpu.memory_space<vmem>>, vector<10x32xf32>
    tpu.vector_store %arg14[%c30_85, %c64_86], %77 {strides = array<i32>} : memref<100x128xf32, #tpu.memory_space<vmem>>, vector<10x32xf32>,
    %c189 = arith.constant 189 : index
    %c0_87 = arith.constant 0 : index
    %79 = tpu.strided_load %arg13[%c189, %c0_87] {strides = array<i32: 2, 1>} : memref<419x32xf32, #tpu.memory_space<vmem>>, vector<10x32xf32>
    %c40_88 = arith.constant 40 : index
    %c64_89 = arith.constant 64 : index
    %80 = vector.load %arg14[%c40_88, %c64_89] : memref<100x128xf32, #tpu.memory_space<vmem>>, vector<10x32xf32>
    tpu.vector_store %arg14[%c40_88, %c64_89], %79 {strides = array<i32>} : memref<100x128xf32, #tpu.memory_space<vmem>>, vector<10x32xf32>,
    %c231 = arith.constant 231 : index
    %c0_90 = arith.constant 0 : index
    %81 = tpu.strided_load %arg13[%c231, %c0_90] {strides = array<i32: 2, 1>} : memref<419x32xf32, #tpu.memory_space<vmem>>, vector<10x32xf32>
    %c50_91 = arith.constant 50 : index
    %c64_92 = arith.constant 64 : index
    %82 = vector.load %arg14[%c50_91, %c64_92] : memref<100x128xf32, #tpu.memory_space<vmem>>, vector<10x32xf32>
    tpu.vector_store %arg14[%c50_91, %c64_92], %81 {strides = array<i32>} : memref<100x128xf32, #tpu.memory_space<vmem>>, vector<10x32xf32>,
    %c273 = arith.constant 273 : index
    %c0_93 = arith.constant 0 : index
    %83 = tpu.strided_load %arg13[%c273, %c0_93] {strides = array<i32: 2, 1>} : memref<419x32xf32, #tpu.memory_space<vmem>>, vector<10x32xf32>
    %c60_94 = arith.constant 60 : index
    %c64_95 = arith.constant 64 : index
    %84 = vector.load %arg14[%c60_94, %c64_95] : memref<100x128xf32, #tpu.memory_space<vmem>>, vector<10x32xf32>
    tpu.vector_store %arg14[%c60_94, %c64_95], %83 {strides = array<i32>} : memref<100x128xf32, #tpu.memory_space<vmem>>, vector<10x32xf32>,
    %c315 = arith.constant 315 : index
    %c0_96 = arith.constant 0 : index
    %85 = tpu.strided_load %arg13[%c315, %c0_96] {strides = array<i32: 2, 1>} : memref<419x32xf32, #tpu.memory_space<vmem>>, vector<10x32xf32>
    %c70_97 = arith.constant 70 : index
    %c64_98 = arith.constant 64 : index
    %86 = vector.load %arg14[%c70_97, %c64_98] : memref<100x128xf32, #tpu.memory_space<vmem>>, vector<10x32xf32>
    tpu.vector_store %arg14[%c70_97, %c64_98], %85 {strides = array<i32>} : memref<100x128xf32, #tpu.memory_space<vmem>>, vector<10x32xf32>,
    %c357 = arith.constant 357 : index
    %c0_99 = arith.constant 0 : index
    %87 = tpu.strided_load %arg13[%c357, %c0_99] {strides = array<i32: 2, 1>} : memref<419x32xf32, #tpu.memory_space<vmem>>, vector<10x32xf32>
    %c80_100 = arith.constant 80 : index
    %c64_101 = arith.constant 64 : index
    %88 = vector.load %arg14[%c80_100, %c64_101] : memref<100x128xf32, #tpu.memory_space<vmem>>, vector<10x32xf32>
    tpu.vector_store %arg14[%c80_100, %c64_101], %87 {strides = array<i32>} : memref<100x128xf32, #tpu.memory_space<vmem>>, vector<10x32xf32>,
    %c399 = arith.constant 399 : index
    %c0_102 = arith.constant 0 : index
    %89 = tpu.strided_load %arg13[%c399, %c0_102] {strides = array<i32: 2, 1>} : memref<419x32xf32, #tpu.memory_space<vmem>>, vector<10x32xf32>
    %c90_103 = arith.constant 90 : index
    %c64_104 = arith.constant 64 : index
    %90 = vector.load %arg14[%c90_103, %c64_104] : memref<100x128xf32, #tpu.memory_space<vmem>>, vector<10x32xf32>
    tpu.vector_store %arg14[%c90_103, %c64_104], %89 {strides = array<i32>} : memref<100x128xf32, #tpu.memory_space<vmem>>, vector<10x32xf32>,
    %c22_105 = arith.constant 22 : index
    %c0_106 = arith.constant 0 : index
    %91 = tpu.strided_load %arg13[%c22_105, %c0_106] {strides = array<i32: 2, 1>} : memref<419x32xf32, #tpu.memory_space<vmem>>, vector<10x32xf32>
    %c0_107 = arith.constant 0 : index
    %c96 = arith.constant 96 : index
    %92 = vector.load %arg14[%c0_107, %c96] : memref<100x128xf32, #tpu.memory_space<vmem>>, vector<10x32xf32>
    tpu.vector_store %arg14[%c0_107, %c96], %91 {strides = array<i32>} : memref<100x128xf32, #tpu.memory_space<vmem>>, vector<10x32xf32>,
    %c64_108 = arith.constant 64 : index
    %c0_109 = arith.constant 0 : index
    %93 = tpu.strided_load %arg13[%c64_108, %c0_109] {strides = array<i32: 2, 1>} : memref<419x32xf32, #tpu.memory_space<vmem>>, vector<10x32xf32>
    %c10_110 = arith.constant 10 : index
    %c96_111 = arith.constant 96 : index
    %94 = vector.load %arg14[%c10_110, %c96_111] : memref<100x128xf32, #tpu.memory_space<vmem>>, vector<10x32xf32>
    tpu.vector_store %arg14[%c10_110, %c96_111], %93 {strides = array<i32>} : memref<100x128xf32, #tpu.memory_space<vmem>>, vector<10x32xf32>,
    %c106 = arith.constant 106 : index
    %c0_112 = arith.constant 0 : index
    %95 = tpu.strided_load %arg13[%c106, %c0_112] {strides = array<i32: 2, 1>} : memref<419x32xf32, #tpu.memory_space<vmem>>, vector<10x32xf32>
    %c20_113 = arith.constant 20 : index
    %c96_114 = arith.constant 96 : index
    %96 = vector.load %arg14[%c20_113, %c96_114] : memref<100x128xf32, #tpu.memory_space<vmem>>, vector<10x32xf32>
    tpu.vector_store %arg14[%c20_113, %c96_114], %95 {strides = array<i32>} : memref<100x128xf32, #tpu.memory_space<vmem>>, vector<10x32xf32>,
    %c148 = arith.constant 148 : index
    %c0_115 = arith.constant 0 : index
    %97 = tpu.strided_load %arg13[%c148, %c0_115] {strides = array<i32: 2, 1>} : memref<419x32xf32, #tpu.memory_space<vmem>>, vector<10x32xf32>
    %c30_116 = arith.constant 30 : index
    %c96_117 = arith.constant 96 : index
    %98 = vector.load %arg14[%c30_116, %c96_117] : memref<100x128xf32, #tpu.memory_space<vmem>>, vector<10x32xf32>
    tpu.vector_store %arg14[%c30_116, %c96_117], %97 {strides = array<i32>} : memref<100x128xf32, #tpu.memory_space<vmem>>, vector<10x32xf32>,
    %c190 = arith.constant 190 : index
    %c0_118 = arith.constant 0 : index
    %99 = tpu.strided_load %arg13[%c190, %c0_118] {strides = array<i32: 2, 1>} : memref<419x32xf32, #tpu.memory_space<vmem>>, vector<10x32xf32>
    %c40_119 = arith.constant 40 : index
    %c96_120 = arith.constant 96 : index
    %100 = vector.load %arg14[%c40_119, %c96_120] : memref<100x128xf32, #tpu.memory_space<vmem>>, vector<10x32xf32>
    tpu.vector_store %arg14[%c40_119, %c96_120], %99 {strides = array<i32>} : memref<100x128xf32, #tpu.memory_space<vmem>>, vector<10x32xf32>,
    %c232 = arith.constant 232 : index
    %c0_121 = arith.constant 0 : index
    %101 = tpu.strided_load %arg13[%c232, %c0_121] {strides = array<i32: 2, 1>} : memref<419x32xf32, #tpu.memory_space<vmem>>, vector<10x32xf32>
    %c50_122 = arith.constant 50 : index
    %c96_123 = arith.constant 96 : index
    %102 = vector.load %arg14[%c50_122, %c96_123] : memref<100x128xf32, #tpu.memory_space<vmem>>, vector<10x32xf32>
    tpu.vector_store %arg14[%c50_122, %c96_123], %101 {strides = array<i32>} : memref<100x128xf32, #tpu.memory_space<vmem>>, vector<10x32xf32>,
    %c274 = arith.constant 274 : index
    %c0_124 = arith.constant 0 : index
    %103 = tpu.strided_load %arg13[%c274, %c0_124] {strides = array<i32: 2, 1>} : memref<419x32xf32, #tpu.memory_space<vmem>>, vector<10x32xf32>
    %c60_125 = arith.constant 60 : index
    %c96_126 = arith.constant 96 : index
    %104 = vector.load %arg14[%c60_125, %c96_126] : memref<100x128xf32, #tpu.memory_space<vmem>>, vector<10x32xf32>
    tpu.vector_store %arg14[%c60_125, %c96_126], %103 {strides = array<i32>} : memref<100x128xf32, #tpu.memory_space<vmem>>, vector<10x32xf32>,
    %c316 = arith.constant 316 : index
    %c0_127 = arith.constant 0 : index
    %105 = tpu.strided_load %arg13[%c316, %c0_127] {strides = array<i32: 2, 1>} : memref<419x32xf32, #tpu.memory_space<vmem>>, vector<10x32xf32>
    %c70_128 = arith.constant 70 : index
    %c96_129 = arith.constant 96 : index
    %106 = vector.load %arg14[%c70_128, %c96_129] : memref<100x128xf32, #tpu.memory_space<vmem>>, vector<10x32xf32>
    tpu.vector_store %arg14[%c70_128, %c96_129], %105 {strides = array<i32>} : memref<100x128xf32, #tpu.memory_space<vmem>>, vector<10x32xf32>,
    %c358 = arith.constant 358 : index
    %c0_130 = arith.constant 0 : index
    %107 = tpu.strided_load %arg13[%c358, %c0_130] {strides = array<i32: 2, 1>} : memref<419x32xf32, #tpu.memory_space<vmem>>, vector<10x32xf32>
    %c80_131 = arith.constant 80 : index
    %c96_132 = arith.constant 96 : index
    %108 = vector.load %arg14[%c80_131, %c96_132] : memref<100x128xf32, #tpu.memory_space<vmem>>, vector<10x32xf32>
    tpu.vector_store %arg14[%c80_131, %c96_132], %107 {strides = array<i32>} : memref<100x128xf32, #tpu.memory_space<vmem>>, vector<10x32xf32>,
    %c400 = arith.constant 400 : index
    %c0_133 = arith.constant 0 : index
    %109 = tpu.strided_load %arg13[%c400, %c0_133] {strides = array<i32: 2, 1>} : memref<419x32xf32, #tpu.memory_space<vmem>>, vector<10x32xf32>
    %c90_134 = arith.constant 90 : index
    %c96_135 = arith.constant 96 : index
    %110 = vector.load %arg14[%c90_134, %c96_135] : memref<100x128xf32, #tpu.memory_space<vmem>>, vector<10x32xf32>
    tpu.vector_store %arg14[%c90_134, %c96_135], %109 {strides = array<i32>} : memref<100x128xf32, #tpu.memory_space<vmem>>, vector<10x32xf32>,
    %cst_136 = arith.constant 0.000000e+00 : f32
    %111 = vector.broadcast %cst_136 : f32 to vector<89x64xf32>
    %c0_137 = arith.constant 0 : index
    %c0_138 = arith.constant 0 : index
    %112 = vector.load %arg14[%c0_137, %c0_138] : memref<100x128xf32, #tpu.memory_space<vmem>>, vector<89x128xf32>
    %113 = arith.truncf %112 : vector<89x128xf32> to vector<89x128xbf16>
    %c0_139 = arith.constant 0 : index
    %c0_140 = arith.constant 0 : index
    %114 = vector.load %arg4[%c0_139, %c0_140] : memref<512x64xbf16, #tpu.memory_space<vmem>>, vector<128x64xbf16>
    %cst_141 = arith.constant dense<0.000000e+00> : vector<89x64xf32>
    %115 = tpu.matmul %113, %114, %cst_141 {dimension_numbers = #tpu.dot_dimension_numbers<[1], [0], [0], [1], [0, 0, 1, 1], [], []>} : vector<89x128xbf16>, vector<128x64xbf16>, vector<89x64xf32> -> vector<89x64xf32>
    %116 = arith.addf %111, %115 : vector<89x64xf32>
    %c1_142 = arith.constant 1 : index
    %c0_143 = arith.constant 0 : index
    %117 = vector.load %arg14[%c1_142, %c0_143] : memref<100x128xf32, #tpu.memory_space<vmem>>, vector<89x128xf32>
    %118 = arith.truncf %117 : vector<89x128xf32> to vector<89x128xbf16>
    %c128_144 = arith.constant 128 : index
    %c0_145 = arith.constant 0 : index
    %119 = vector.load %arg4[%c128_144, %c0_145] : memref<512x64xbf16, #tpu.memory_space<vmem>>, vector<128x64xbf16>
    %cst_146 = arith.constant dense<0.000000e+00> : vector<89x64xf32>
    %120 = tpu.matmul %118, %119, %cst_146 {dimension_numbers = #tpu.dot_dimension_numbers<[1], [0], [0], [1], [0, 0, 1, 1], [], []>} : vector<89x128xbf16>, vector<128x64xbf16>, vector<89x64xf32> -> vector<89x64xf32>
    %121 = arith.addf %116, %120 : vector<89x64xf32>
    %c10_147 = arith.constant 10 : index
    %c0_148 = arith.constant 0 : index
    %122 = vector.load %arg14[%c10_147, %c0_148] : memref<100x128xf32, #tpu.memory_space<vmem>>, vector<89x128xf32>
    %123 = arith.truncf %122 : vector<89x128xf32> to vector<89x128xbf16>
    %c256 = arith.constant 256 : index
    %c0_149 = arith.constant 0 : index
    %124 = vector.load %arg4[%c256, %c0_149] : memref<512x64xbf16, #tpu.memory_space<vmem>>, vector<128x64xbf16>
    %cst_150 = arith.constant dense<0.000000e+00> : vector<89x64xf32>
    %125 = tpu.matmul %123, %124, %cst_150 {dimension_numbers = #tpu.dot_dimension_numbers<[1], [0], [0], [1], [0, 0, 1, 1], [], []>} : vector<89x128xbf16>, vector<128x64xbf16>, vector<89x64xf32> -> vector<89x64xf32>
    %126 = arith.addf %121, %125 : vector<89x64xf32>
    %c11 = arith.constant 11 : index
    %c0_151 = arith.constant 0 : index
    %127 = vector.load %arg14[%c11, %c0_151] : memref<100x128xf32, #tpu.memory_space<vmem>>, vector<89x128xf32>
    %128 = arith.truncf %127 : vector<89x128xf32> to vector<89x128xbf16>
    %c384 = arith.constant 384 : index
    %c0_152 = arith.constant 0 : index
    %129 = vector.load %arg4[%c384, %c0_152] : memref<512x64xbf16, #tpu.memory_space<vmem>>, vector<128x64xbf16>
    %cst_153 = arith.constant dense<0.000000e+00> : vector<89x64xf32>
    %130 = tpu.matmul %128, %129, %cst_153 {dimension_numbers = #tpu.dot_dimension_numbers<[1], [0], [0], [1], [0, 0, 1, 1], [], []>} : vector<89x128xbf16>, vector<128x64xbf16>, vector<89x64xf32> -> vector<89x64xf32>
    %131 = arith.addf %126, %130 : vector<89x64xf32>
    %c0_154 = arith.constant 0 : index
    %c0_155 = arith.constant 0 : index
    %132 = vector.load %arg5[%c0_154, %c0_155] : memref<1x64xf32, #tpu.memory_space<vmem>>, vector<1x64xf32>
    %133 = vector.broadcast %132 : vector<1x64xf32> to vector<89x64xf32>
    %134 = arith.addf %131, %133 : vector<89x64xf32>
    %cst_156 = arith.constant 0.000000e+00 : f32
    %135 = vector.broadcast %cst_156 : f32 to vector<89x64xf32>
    %136 = arith.maximumf %134, %135 : vector<89x64xf32>
    %cst_157 = arith.constant 0.000000e+00 : f32
    %137 = vector.broadcast %cst_157 : f32 to vector<67x64xf32>
    %138 = vector.extract_strided_slice %136 {offsets = [0, 0], sizes = [67, 64], strides = [1, 1]} : vector<89x64xf32> to vector<67x64xf32>
    %139 = arith.truncf %138 : vector<67x64xf32> to vector<67x64xbf16>
    %c0_158 = arith.constant 0 : index
    %c0_159 = arith.constant 0 : index
    %140 = vector.load %arg6[%c0_158, %c0_159] : memref<576x64xbf16, #tpu.memory_space<vmem>>, vector<64x64xbf16>
    %cst_160 = arith.constant dense<0.000000e+00> : vector<67x64xf32>
    %141 = tpu.matmul %139, %140, %cst_160 {dimension_numbers = #tpu.dot_dimension_numbers<[1], [0], [0], [1], [0, 0, 1, 1], [], []>} : vector<67x64xbf16>, vector<64x64xbf16>, vector<67x64xf32> -> vector<67x64xf32>
    %142 = arith.addf %137, %141 : vector<67x64xf32>
    %143 = vector.extract_strided_slice %136 {offsets = [1, 0], sizes = [67, 64], strides = [1, 1]} : vector<89x64xf32> to vector<67x64xf32>
    %144 = arith.truncf %143 : vector<67x64xf32> to vector<67x64xbf16>
    %c64_161 = arith.constant 64 : index
    %c0_162 = arith.constant 0 : index
    %145 = vector.load %arg6[%c64_161, %c0_162] : memref<576x64xbf16, #tpu.memory_space<vmem>>, vector<64x64xbf16>
    %cst_163 = arith.constant dense<0.000000e+00> : vector<67x64xf32>
    %146 = tpu.matmul %144, %145, %cst_163 {dimension_numbers = #tpu.dot_dimension_numbers<[1], [0], [0], [1], [0, 0, 1, 1], [], []>} : vector<67x64xbf16>, vector<64x64xbf16>, vector<67x64xf32> -> vector<67x64xf32>
    %147 = arith.addf %142, %146 : vector<67x64xf32>
    %148 = vector.extract_strided_slice %136 {offsets = [2, 0], sizes = [67, 64], strides = [1, 1]} : vector<89x64xf32> to vector<67x64xf32>
    %149 = arith.truncf %148 : vector<67x64xf32> to vector<67x64xbf16>
    %c128_164 = arith.constant 128 : index
    %c0_165 = arith.constant 0 : index
    %150 = vector.load %arg6[%c128_164, %c0_165] : memref<576x64xbf16, #tpu.memory_space<vmem>>, vector<64x64xbf16>
    %cst_166 = arith.constant dense<0.000000e+00> : vector<67x64xf32>
    %151 = tpu.matmul %149, %150, %cst_166 {dimension_numbers = #tpu.dot_dimension_numbers<[1], [0], [0], [1], [0, 0, 1, 1], [], []>} : vector<67x64xbf16>, vector<64x64xbf16>, vector<67x64xf32> -> vector<67x64xf32>
    %152 = arith.addf %147, %151 : vector<67x64xf32>
    %153 = vector.extract_strided_slice %136 {offsets = [10, 0], sizes = [67, 64], strides = [1, 1]} : vector<89x64xf32> to vector<67x64xf32>
    %154 = arith.truncf %153 : vector<67x64xf32> to vector<67x64xbf16>
    %c192_167 = arith.constant 192 : index
    %c0_168 = arith.constant 0 : index
    %155 = vector.load %arg6[%c192_167, %c0_168] : memref<576x64xbf16, #tpu.memory_space<vmem>>, vector<64x64xbf16>
    %cst_169 = arith.constant dense<0.000000e+00> : vector<67x64xf32>
    %156 = tpu.matmul %154, %155, %cst_169 {dimension_numbers = #tpu.dot_dimension_numbers<[1], [0], [0], [1], [0, 0, 1, 1], [], []>} : vector<67x64xbf16>, vector<64x64xbf16>, vector<67x64xf32> -> vector<67x64xf32>
    %157 = arith.addf %152, %156 : vector<67x64xf32>
    %158 = vector.extract_strided_slice %136 {offsets = [11, 0], sizes = [67, 64], strides = [1, 1]} : vector<89x64xf32> to vector<67x64xf32>
    %159 = arith.truncf %158 : vector<67x64xf32> to vector<67x64xbf16>
    %c256_170 = arith.constant 256 : index
    %c0_171 = arith.constant 0 : index
    %160 = vector.load %arg6[%c256_170, %c0_171] : memref<576x64xbf16, #tpu.memory_space<vmem>>, vector<64x64xbf16>
    %cst_172 = arith.constant dense<0.000000e+00> : vector<67x64xf32>
    %161 = tpu.matmul %159, %160, %cst_172 {dimension_numbers = #tpu.dot_dimension_numbers<[1], [0], [0], [1], [0, 0, 1, 1], [], []>} : vector<67x64xbf16>, vector<64x64xbf16>, vector<67x64xf32> -> vector<67x64xf32>
    %162 = arith.addf %157, %161 : vector<67x64xf32>
    %163 = vector.extract_strided_slice %136 {offsets = [12, 0], sizes = [67, 64], strides = [1, 1]} : vector<89x64xf32> to vector<67x64xf32>
    %164 = arith.truncf %163 : vector<67x64xf32> to vector<67x64xbf16>
    %c320 = arith.constant 320 : index
    %c0_173 = arith.constant 0 : index
    %165 = vector.load %arg6[%c320, %c0_173] : memref<576x64xbf16, #tpu.memory_space<vmem>>, vector<64x64xbf16>
    %cst_174 = arith.constant dense<0.000000e+00> : vector<67x64xf32>
    %166 = tpu.matmul %164, %165, %cst_174 {dimension_numbers = #tpu.dot_dimension_numbers<[1], [0], [0], [1], [0, 0, 1, 1], [], []>} : vector<67x64xbf16>, vector<64x64xbf16>, vector<67x64xf32> -> vector<67x64xf32>
    %167 = arith.addf %162, %166 : vector<67x64xf32>
    %168 = vector.extract_strided_slice %136 {offsets = [20, 0], sizes = [67, 64], strides = [1, 1]} : vector<89x64xf32> to vector<67x64xf32>
    %169 = arith.truncf %168 : vector<67x64xf32> to vector<67x64xbf16>
    %c384_175 = arith.constant 384 : index
    %c0_176 = arith.constant 0 : index
    %170 = vector.load %arg6[%c384_175, %c0_176] : memref<576x64xbf16, #tpu.memory_space<vmem>>, vector<64x64xbf16>
    %cst_177 = arith.constant dense<0.000000e+00> : vector<67x64xf32>
    %171 = tpu.matmul %169, %170, %cst_177 {dimension_numbers = #tpu.dot_dimension_numbers<[1], [0], [0], [1], [0, 0, 1, 1], [], []>} : vector<67x64xbf16>, vector<64x64xbf16>, vector<67x64xf32> -> vector<67x64xf32>
    %172 = arith.addf %167, %171 : vector<67x64xf32>
    %173 = vector.extract_strided_slice %136 {offsets = [21, 0], sizes = [67, 64], strides = [1, 1]} : vector<89x64xf32> to vector<67x64xf32>
    %174 = arith.truncf %173 : vector<67x64xf32> to vector<67x64xbf16>
    %c448 = arith.constant 448 : index
    %c0_178 = arith.constant 0 : index
    %175 = vector.load %arg6[%c448, %c0_178] : memref<576x64xbf16, #tpu.memory_space<vmem>>, vector<64x64xbf16>
    %cst_179 = arith.constant dense<0.000000e+00> : vector<67x64xf32>
    %176 = tpu.matmul %174, %175, %cst_179 {dimension_numbers = #tpu.dot_dimension_numbers<[1], [0], [0], [1], [0, 0, 1, 1], [], []>} : vector<67x64xbf16>, vector<64x64xbf16>, vector<67x64xf32> -> vector<67x64xf32>
    %177 = arith.addf %172, %176 : vector<67x64xf32>
    %178 = vector.extract_strided_slice %136 {offsets = [22, 0], sizes = [67, 64], strides = [1, 1]} : vector<89x64xf32> to vector<67x64xf32>
    %179 = arith.truncf %178 : vector<67x64xf32> to vector<67x64xbf16>
    %c512 = arith.constant 512 : index
    %c0_180 = arith.constant 0 : index
    %180 = vector.load %arg6[%c512, %c0_180] : memref<576x64xbf16, #tpu.memory_space<vmem>>, vector<64x64xbf16>
    %cst_181 = arith.constant dense<0.000000e+00> : vector<67x64xf32>
    %181 = tpu.matmul %179, %180, %cst_181 {dimension_numbers = #tpu.dot_dimension_numbers<[1], [0], [0], [1], [0, 0, 1, 1], [], []>} : vector<67x64xbf16>, vector<64x64xbf16>, vector<67x64xf32> -> vector<67x64xf32>
    %182 = arith.addf %177, %181 : vector<67x64xf32>
    %c0_182 = arith.constant 0 : index
    %c0_183 = arith.constant 0 : index
    %183 = vector.load %arg7[%c0_182, %c0_183] : memref<1x64xf32, #tpu.memory_space<vmem>>, vector<1x64xf32>
    %184 = vector.broadcast %183 : vector<1x64xf32> to vector<67x64xf32>
    %185 = arith.addf %182, %184 : vector<67x64xf32>
    %cst_184 = arith.constant 0.000000e+00 : f32
    %186 = vector.broadcast %cst_184 : f32 to vector<67x64xf32>
    %187 = arith.maximumf %185, %186 : vector<67x64xf32>
    %188 = vector.extract_strided_slice %187 {offsets = [0, 0], sizes = [1, 64], strides = [1, 1]} : vector<67x64xf32> to vector<1x64xf32>
    %c0_185 = arith.constant 0 : index
    %c0_186 = arith.constant 0 : index
    %189 = vector.load %arg15[%c0_185, %c0_186] : memref<1x3136xf32, #tpu.memory_space<vmem>>, vector<1x64xf32>
    tpu.vector_store %arg15[%c0_185, %c0_186], %188 {strides = array<i32>} : memref<1x3136xf32, #tpu.memory_space<vmem>>, vector<1x64xf32>,
    %190 = vector.extract_strided_slice %187 {offsets = [1, 0], sizes = [1, 64], strides = [1, 1]} : vector<67x64xf32> to vector<1x64xf32>
    %c0_187 = arith.constant 0 : index
    %c64_188 = arith.constant 64 : index
    %191 = vector.load %arg15[%c0_187, %c64_188] : memref<1x3136xf32, #tpu.memory_space<vmem>>, vector<1x64xf32>
    tpu.vector_store %arg15[%c0_187, %c64_188], %190 {strides = array<i32>} : memref<1x3136xf32, #tpu.memory_space<vmem>>, vector<1x64xf32>,
    %192 = vector.extract_strided_slice %187 {offsets = [2, 0], sizes = [1, 64], strides = [1, 1]} : vector<67x64xf32> to vector<1x64xf32>
    %c0_189 = arith.constant 0 : index
    %c128_190 = arith.constant 128 : index
    %193 = vector.load %arg15[%c0_189, %c128_190] : memref<1x3136xf32, #tpu.memory_space<vmem>>, vector<1x64xf32>
    tpu.vector_store %arg15[%c0_189, %c128_190], %192 {strides = array<i32>} : memref<1x3136xf32, #tpu.memory_space<vmem>>, vector<1x64xf32>,
    %194 = vector.extract_strided_slice %187 {offsets = [3, 0], sizes = [1, 64], strides = [1, 1]} : vector<67x64xf32> to vector<1x64xf32>
    %c0_191 = arith.constant 0 : index
    %c192_192 = arith.constant 192 : index
    %195 = vector.load %arg15[%c0_191, %c192_192] : memref<1x3136xf32, #tpu.memory_space<vmem>>, vector<1x64xf32>
    tpu.vector_store %arg15[%c0_191, %c192_192], %194 {strides = array<i32>} : memref<1x3136xf32, #tpu.memory_space<vmem>>, vector<1x64xf32>,
    %196 = vector.extract_strided_slice %187 {offsets = [4, 0], sizes = [1, 64], strides = [1, 1]} : vector<67x64xf32> to vector<1x64xf32>
    %c0_193 = arith.constant 0 : index
    %c256_194 = arith.constant 256 : index
    %197 = vector.load %arg15[%c0_193, %c256_194] : memref<1x3136xf32, #tpu.memory_space<vmem>>, vector<1x64xf32>
    tpu.vector_store %arg15[%c0_193, %c256_194], %196 {strides = array<i32>} : memref<1x3136xf32, #tpu.memory_space<vmem>>, vector<1x64xf32>,
    %198 = vector.extract_strided_slice %187 {offsets = [5, 0], sizes = [1, 64], strides = [1, 1]} : vector<67x64xf32> to vector<1x64xf32>
    %c0_195 = arith.constant 0 : index
    %c320_196 = arith.constant 320 : index
    %199 = vector.load %arg15[%c0_195, %c320_196] : memref<1x3136xf32, #tpu.memory_space<vmem>>, vector<1x64xf32>
    tpu.vector_store %arg15[%c0_195, %c320_196], %198 {strides = array<i32>} : memref<1x3136xf32, #tpu.memory_space<vmem>>, vector<1x64xf32>,
    %200 = vector.extract_strided_slice %187 {offsets = [6, 0], sizes = [1, 64], strides = [1, 1]} : vector<67x64xf32> to vector<1x64xf32>
    %c0_197 = arith.constant 0 : index
    %c384_198 = arith.constant 384 : index
    %201 = vector.load %arg15[%c0_197, %c384_198] : memref<1x3136xf32, #tpu.memory_space<vmem>>, vector<1x64xf32>
    tpu.vector_store %arg15[%c0_197, %c384_198], %200 {strides = array<i32>} : memref<1x3136xf32, #tpu.memory_space<vmem>>, vector<1x64xf32>,
    %202 = vector.extract_strided_slice %187 {offsets = [10, 0], sizes = [1, 64], strides = [1, 1]} : vector<67x64xf32> to vector<1x64xf32>
    %c0_199 = arith.constant 0 : index
    %c448_200 = arith.constant 448 : index
    %203 = vector.load %arg15[%c0_199, %c448_200] : memref<1x3136xf32, #tpu.memory_space<vmem>>, vector<1x64xf32>
    tpu.vector_store %arg15[%c0_199, %c448_200], %202 {strides = array<i32>} : memref<1x3136xf32, #tpu.memory_space<vmem>>, vector<1x64xf32>,
    %204 = vector.extract_strided_slice %187 {offsets = [11, 0], sizes = [1, 64], strides = [1, 1]} : vector<67x64xf32> to vector<1x64xf32>
    %c0_201 = arith.constant 0 : index
    %c512_202 = arith.constant 512 : index
    %205 = vector.load %arg15[%c0_201, %c512_202] : memref<1x3136xf32, #tpu.memory_space<vmem>>, vector<1x64xf32>
    tpu.vector_store %arg15[%c0_201, %c512_202], %204 {strides = array<i32>} : memref<1x3136xf32, #tpu.memory_space<vmem>>, vector<1x64xf32>,
    %206 = vector.extract_strided_slice %187 {offsets = [12, 0], sizes = [1, 64], strides = [1, 1]} : vector<67x64xf32> to vector<1x64xf32>
    %c0_203 = arith.constant 0 : index
    %c576 = arith.constant 576 : index
    %207 = vector.load %arg15[%c0_203, %c576] : memref<1x3136xf32, #tpu.memory_space<vmem>>, vector<1x64xf32>
    tpu.vector_store %arg15[%c0_203, %c576], %206 {strides = array<i32>} : memref<1x3136xf32, #tpu.memory_space<vmem>>, vector<1x64xf32>,
    %208 = vector.extract_strided_slice %187 {offsets = [13, 0], sizes = [1, 64], strides = [1, 1]} : vector<67x64xf32> to vector<1x64xf32>
    %c0_204 = arith.constant 0 : index
    %c640 = arith.constant 640 : index
    %209 = vector.load %arg15[%c0_204, %c640] : memref<1x3136xf32, #tpu.memory_space<vmem>>, vector<1x64xf32>
    tpu.vector_store %arg15[%c0_204, %c640], %208 {strides = array<i32>} : memref<1x3136xf32, #tpu.memory_space<vmem>>, vector<1x64xf32>,
    %210 = vector.extract_strided_slice %187 {offsets = [14, 0], sizes = [1, 64], strides = [1, 1]} : vector<67x64xf32> to vector<1x64xf32>
    %c0_205 = arith.constant 0 : index
    %c704 = arith.constant 704 : index
    %211 = vector.load %arg15[%c0_205, %c704] : memref<1x3136xf32, #tpu.memory_space<vmem>>, vector<1x64xf32>
    tpu.vector_store %arg15[%c0_205, %c704], %210 {strides = array<i32>} : memref<1x3136xf32, #tpu.memory_space<vmem>>, vector<1x64xf32>,
    %212 = vector.extract_strided_slice %187 {offsets = [15, 0], sizes = [1, 64], strides = [1, 1]} : vector<67x64xf32> to vector<1x64xf32>
    %c0_206 = arith.constant 0 : index
    %c768 = arith.constant 768 : index
    %213 = vector.load %arg15[%c0_206, %c768] : memref<1x3136xf32, #tpu.memory_space<vmem>>, vector<1x64xf32>
    tpu.vector_store %arg15[%c0_206, %c768], %212 {strides = array<i32>} : memref<1x3136xf32, #tpu.memory_space<vmem>>, vector<1x64xf32>,
    %214 = vector.extract_strided_slice %187 {offsets = [16, 0], sizes = [1, 64], strides = [1, 1]} : vector<67x64xf32> to vector<1x64xf32>
    %c0_207 = arith.constant 0 : index
    %c832 = arith.constant 832 : index
    %215 = vector.load %arg15[%c0_207, %c832] : memref<1x3136xf32, #tpu.memory_space<vmem>>, vector<1x64xf32>
    tpu.vector_store %arg15[%c0_207, %c832], %214 {strides = array<i32>} : memref<1x3136xf32, #tpu.memory_space<vmem>>, vector<1x64xf32>,
    %216 = vector.extract_strided_slice %187 {offsets = [20, 0], sizes = [1, 64], strides = [1, 1]} : vector<67x64xf32> to vector<1x64xf32>
    %c0_208 = arith.constant 0 : index
    %c896 = arith.constant 896 : index
    %217 = vector.load %arg15[%c0_208, %c896] : memref<1x3136xf32, #tpu.memory_space<vmem>>, vector<1x64xf32>
    tpu.vector_store %arg15[%c0_208, %c896], %216 {strides = array<i32>} : memref<1x3136xf32, #tpu.memory_space<vmem>>, vector<1x64xf32>,
    %218 = vector.extract_strided_slice %187 {offsets = [21, 0], sizes = [1, 64], strides = [1, 1]} : vector<67x64xf32> to vector<1x64xf32>
    %c0_209 = arith.constant 0 : index
    %c960 = arith.constant 960 : index
    %219 = vector.load %arg15[%c0_209, %c960] : memref<1x3136xf32, #tpu.memory_space<vmem>>, vector<1x64xf32>
    tpu.vector_store %arg15[%c0_209, %c960], %218 {strides = array<i32>} : memref<1x3136xf32, #tpu.memory_space<vmem>>, vector<1x64xf32>,
    %220 = vector.extract_strided_slice %187 {offsets = [22, 0], sizes = [1, 64], strides = [1, 1]} : vector<67x64xf32> to vector<1x64xf32>
    %c0_210 = arith.constant 0 : index
    %c1024 = arith.constant 1024 : index
    %221 = vector.load %arg15[%c0_210, %c1024] : memref<1x3136xf32, #tpu.memory_space<vmem>>, vector<1x64xf32>
    tpu.vector_store %arg15[%c0_210, %c1024], %220 {strides = array<i32>} : memref<1x3136xf32, #tpu.memory_space<vmem>>, vector<1x64xf32>,
    %222 = vector.extract_strided_slice %187 {offsets = [23, 0], sizes = [1, 64], strides = [1, 1]} : vector<67x64xf32> to vector<1x64xf32>
    %c0_211 = arith.constant 0 : index
    %c1088 = arith.constant 1088 : index
    %223 = vector.load %arg15[%c0_211, %c1088] : memref<1x3136xf32, #tpu.memory_space<vmem>>, vector<1x64xf32>
    tpu.vector_store %arg15[%c0_211, %c1088], %222 {strides = array<i32>} : memref<1x3136xf32, #tpu.memory_space<vmem>>, vector<1x64xf32>,
    %224 = vector.extract_strided_slice %187 {offsets = [24, 0], sizes = [1, 64], strides = [1, 1]} : vector<67x64xf32> to vector<1x64xf32>
    %c0_212 = arith.constant 0 : index
    %c1152 = arith.constant 1152 : index
    %225 = vector.load %arg15[%c0_212, %c1152] : memref<1x3136xf32, #tpu.memory_space<vmem>>, vector<1x64xf32>
    tpu.vector_store %arg15[%c0_212, %c1152], %224 {strides = array<i32>} : memref<1x3136xf32, #tpu.memory_space<vmem>>, vector<1x64xf32>,
    %226 = vector.extract_strided_slice %187 {offsets = [25, 0], sizes = [1, 64], strides = [1, 1]} : vector<67x64xf32> to vector<1x64xf32>
    %c0_213 = arith.constant 0 : index
    %c1216 = arith.constant 1216 : index
    %227 = vector.load %arg15[%c0_213, %c1216] : memref<1x3136xf32, #tpu.memory_space<vmem>>, vector<1x64xf32>
    tpu.vector_store %arg15[%c0_213, %c1216], %226 {strides = array<i32>} : memref<1x3136xf32, #tpu.memory_space<vmem>>, vector<1x64xf32>,
    %228 = vector.extract_strided_slice %187 {offsets = [26, 0], sizes = [1, 64], strides = [1, 1]} : vector<67x64xf32> to vector<1x64xf32>
    %c0_214 = arith.constant 0 : index
    %c1280 = arith.constant 1280 : index
    %229 = vector.load %arg15[%c0_214, %c1280] : memref<1x3136xf32, #tpu.memory_space<vmem>>, vector<1x64xf32>
    tpu.vector_store %arg15[%c0_214, %c1280], %228 {strides = array<i32>} : memref<1x3136xf32, #tpu.memory_space<vmem>>, vector<1x64xf32>,
    %230 = vector.extract_strided_slice %187 {offsets = [30, 0], sizes = [1, 64], strides = [1, 1]} : vector<67x64xf32> to vector<1x64xf32>
    %c0_215 = arith.constant 0 : index
    %c1344 = arith.constant 1344 : index
    %231 = vector.load %arg15[%c0_215, %c1344] : memref<1x3136xf32, #tpu.memory_space<vmem>>, vector<1x64xf32>
    tpu.vector_store %arg15[%c0_215, %c1344], %230 {strides = array<i32>} : memref<1x3136xf32, #tpu.memory_space<vmem>>, vector<1x64xf32>,
    %232 = vector.extract_strided_slice %187 {offsets = [31, 0], sizes = [1, 64], strides = [1, 1]} : vector<67x64xf32> to vector<1x64xf32>
    %c0_216 = arith.constant 0 : index
    %c1408 = arith.constant 1408 : index
    %233 = vector.load %arg15[%c0_216, %c1408] : memref<1x3136xf32, #tpu.memory_space<vmem>>, vector<1x64xf32>
    tpu.vector_store %arg15[%c0_216, %c1408], %232 {strides = array<i32>} : memref<1x3136xf32, #tpu.memory_space<vmem>>, vector<1x64xf32>,
    %234 = vector.extract_strided_slice %187 {offsets = [32, 0], sizes = [1, 64], strides = [1, 1]} : vector<67x64xf32> to vector<1x64xf32>
    %c0_217 = arith.constant 0 : index
    %c1472 = arith.constant 1472 : index
    %235 = vector.load %arg15[%c0_217, %c1472] : memref<1x3136xf32, #tpu.memory_space<vmem>>, vector<1x64xf32>
    tpu.vector_store %arg15[%c0_217, %c1472], %234 {strides = array<i32>} : memref<1x3136xf32, #tpu.memory_space<vmem>>, vector<1x64xf32>,
    %236 = vector.extract_strided_slice %187 {offsets = [33, 0], sizes = [1, 64], strides = [1, 1]} : vector<67x64xf32> to vector<1x64xf32>
    %c0_218 = arith.constant 0 : index
    %c1536 = arith.constant 1536 : index
    %237 = vector.load %arg15[%c0_218, %c1536] : memref<1x3136xf32, #tpu.memory_space<vmem>>, vector<1x64xf32>
    tpu.vector_store %arg15[%c0_218, %c1536], %236 {strides = array<i32>} : memref<1x3136xf32, #tpu.memory_space<vmem>>, vector<1x64xf32>,
    %238 = vector.extract_strided_slice %187 {offsets = [34, 0], sizes = [1, 64], strides = [1, 1]} : vector<67x64xf32> to vector<1x64xf32>
    %c0_219 = arith.constant 0 : index
    %c1600 = arith.constant 1600 : index
    %239 = vector.load %arg15[%c0_219, %c1600] : memref<1x3136xf32, #tpu.memory_space<vmem>>, vector<1x64xf32>
    tpu.vector_store %arg15[%c0_219, %c1600], %238 {strides = array<i32>} : memref<1x3136xf32, #tpu.memory_space<vmem>>, vector<1x64xf32>,
    %240 = vector.extract_strided_slice %187 {offsets = [35, 0], sizes = [1, 64], strides = [1, 1]} : vector<67x64xf32> to vector<1x64xf32>
    %c0_220 = arith.constant 0 : index
    %c1664 = arith.constant 1664 : index
    %241 = vector.load %arg15[%c0_220, %c1664] : memref<1x3136xf32, #tpu.memory_space<vmem>>, vector<1x64xf32>
    tpu.vector_store %arg15[%c0_220, %c1664], %240 {strides = array<i32>} : memref<1x3136xf32, #tpu.memory_space<vmem>>, vector<1x64xf32>,
    %242 = vector.extract_strided_slice %187 {offsets = [36, 0], sizes = [1, 64], strides = [1, 1]} : vector<67x64xf32> to vector<1x64xf32>
    %c0_221 = arith.constant 0 : index
    %c1728 = arith.constant 1728 : index
    %243 = vector.load %arg15[%c0_221, %c1728] : memref<1x3136xf32, #tpu.memory_space<vmem>>, vector<1x64xf32>
    tpu.vector_store %arg15[%c0_221, %c1728], %242 {strides = array<i32>} : memref<1x3136xf32, #tpu.memory_space<vmem>>, vector<1x64xf32>,
    %244 = vector.extract_strided_slice %187 {offsets = [40, 0], sizes = [1, 64], strides = [1, 1]} : vector<67x64xf32> to vector<1x64xf32>
    %c0_222 = arith.constant 0 : index
    %c1792 = arith.constant 1792 : index
    %245 = vector.load %arg15[%c0_222, %c1792] : memref<1x3136xf32, #tpu.memory_space<vmem>>, vector<1x64xf32>
    tpu.vector_store %arg15[%c0_222, %c1792], %244 {strides = array<i32>} : memref<1x3136xf32, #tpu.memory_space<vmem>>, vector<1x64xf32>,
    %246 = vector.extract_strided_slice %187 {offsets = [41, 0], sizes = [1, 64], strides = [1, 1]} : vector<67x64xf32> to vector<1x64xf32>
    %c0_223 = arith.constant 0 : index
    %c1856 = arith.constant 1856 : index
    %247 = vector.load %arg15[%c0_223, %c1856] : memref<1x3136xf32, #tpu.memory_space<vmem>>, vector<1x64xf32>
    tpu.vector_store %arg15[%c0_223, %c1856], %246 {strides = array<i32>} : memref<1x3136xf32, #tpu.memory_space<vmem>>, vector<1x64xf32>,
    %248 = vector.extract_strided_slice %187 {offsets = [42, 0], sizes = [1, 64], strides = [1, 1]} : vector<67x64xf32> to vector<1x64xf32>
    %c0_224 = arith.constant 0 : index
    %c1920 = arith.constant 1920 : index
    %249 = vector.load %arg15[%c0_224, %c1920] : memref<1x3136xf32, #tpu.memory_space<vmem>>, vector<1x64xf32>
    tpu.vector_store %arg15[%c0_224, %c1920], %248 {strides = array<i32>} : memref<1x3136xf32, #tpu.memory_space<vmem>>, vector<1x64xf32>,
    %250 = vector.extract_strided_slice %187 {offsets = [43, 0], sizes = [1, 64], strides = [1, 1]} : vector<67x64xf32> to vector<1x64xf32>
    %c0_225 = arith.constant 0 : index
    %c1984 = arith.constant 1984 : index
    %251 = vector.load %arg15[%c0_225, %c1984] : memref<1x3136xf32, #tpu.memory_space<vmem>>, vector<1x64xf32>
    tpu.vector_store %arg15[%c0_225, %c1984], %250 {strides = array<i32>} : memref<1x3136xf32, #tpu.memory_space<vmem>>, vector<1x64xf32>,
    %252 = vector.extract_strided_slice %187 {offsets = [44, 0], sizes = [1, 64], strides = [1, 1]} : vector<67x64xf32> to vector<1x64xf32>
    %c0_226 = arith.constant 0 : index
    %c2048 = arith.constant 2048 : index
    %253 = vector.load %arg15[%c0_226, %c2048] : memref<1x3136xf32, #tpu.memory_space<vmem>>, vector<1x64xf32>
    tpu.vector_store %arg15[%c0_226, %c2048], %252 {strides = array<i32>} : memref<1x3136xf32, #tpu.memory_space<vmem>>, vector<1x64xf32>,
    %254 = vector.extract_strided_slice %187 {offsets = [45, 0], sizes = [1, 64], strides = [1, 1]} : vector<67x64xf32> to vector<1x64xf32>
    %c0_227 = arith.constant 0 : index
    %c2112 = arith.constant 2112 : index
    %255 = vector.load %arg15[%c0_227, %c2112] : memref<1x3136xf32, #tpu.memory_space<vmem>>, vector<1x64xf32>
    tpu.vector_store %arg15[%c0_227, %c2112], %254 {strides = array<i32>} : memref<1x3136xf32, #tpu.memory_space<vmem>>, vector<1x64xf32>,
    %256 = vector.extract_strided_slice %187 {offsets = [46, 0], sizes = [1, 64], strides = [1, 1]} : vector<67x64xf32> to vector<1x64xf32>
    %c0_228 = arith.constant 0 : index
    %c2176 = arith.constant 2176 : index
    %257 = vector.load %arg15[%c0_228, %c2176] : memref<1x3136xf32, #tpu.memory_space<vmem>>, vector<1x64xf32>
    tpu.vector_store %arg15[%c0_228, %c2176], %256 {strides = array<i32>} : memref<1x3136xf32, #tpu.memory_space<vmem>>, vector<1x64xf32>,
    %258 = vector.extract_strided_slice %187 {offsets = [50, 0], sizes = [1, 64], strides = [1, 1]} : vector<67x64xf32> to vector<1x64xf32>
    %c0_229 = arith.constant 0 : index
    %c2240 = arith.constant 2240 : index
    %259 = vector.load %arg15[%c0_229, %c2240] : memref<1x3136xf32, #tpu.memory_space<vmem>>, vector<1x64xf32>
    tpu.vector_store %arg15[%c0_229, %c2240], %258 {strides = array<i32>} : memref<1x3136xf32, #tpu.memory_space<vmem>>, vector<1x64xf32>,
    %260 = vector.extract_strided_slice %187 {offsets = [51, 0], sizes = [1, 64], strides = [1, 1]} : vector<67x64xf32> to vector<1x64xf32>
    %c0_230 = arith.constant 0 : index
    %c2304 = arith.constant 2304 : index
    %261 = vector.load %arg15[%c0_230, %c2304] : memref<1x3136xf32, #tpu.memory_space<vmem>>, vector<1x64xf32>
    tpu.vector_store %arg15[%c0_230, %c2304], %260 {strides = array<i32>} : memref<1x3136xf32, #tpu.memory_space<vmem>>, vector<1x64xf32>,
    %262 = vector.extract_strided_slice %187 {offsets = [52, 0], sizes = [1, 64], strides = [1, 1]} : vector<67x64xf32> to vector<1x64xf32>
    %c0_231 = arith.constant 0 : index
    %c2368 = arith.constant 2368 : index
    %263 = vector.load %arg15[%c0_231, %c2368] : memref<1x3136xf32, #tpu.memory_space<vmem>>, vector<1x64xf32>
    tpu.vector_store %arg15[%c0_231, %c2368], %262 {strides = array<i32>} : memref<1x3136xf32, #tpu.memory_space<vmem>>, vector<1x64xf32>,
    %264 = vector.extract_strided_slice %187 {offsets = [53, 0], sizes = [1, 64], strides = [1, 1]} : vector<67x64xf32> to vector<1x64xf32>
    %c0_232 = arith.constant 0 : index
    %c2432 = arith.constant 2432 : index
    %265 = vector.load %arg15[%c0_232, %c2432] : memref<1x3136xf32, #tpu.memory_space<vmem>>, vector<1x64xf32>
    tpu.vector_store %arg15[%c0_232, %c2432], %264 {strides = array<i32>} : memref<1x3136xf32, #tpu.memory_space<vmem>>, vector<1x64xf32>,
    %266 = vector.extract_strided_slice %187 {offsets = [54, 0], sizes = [1, 64], strides = [1, 1]} : vector<67x64xf32> to vector<1x64xf32>
    %c0_233 = arith.constant 0 : index
    %c2496 = arith.constant 2496 : index
    %267 = vector.load %arg15[%c0_233, %c2496] : memref<1x3136xf32, #tpu.memory_space<vmem>>, vector<1x64xf32>
    tpu.vector_store %arg15[%c0_233, %c2496], %266 {strides = array<i32>} : memref<1x3136xf32, #tpu.memory_space<vmem>>, vector<1x64xf32>,
    %268 = vector.extract_strided_slice %187 {offsets = [55, 0], sizes = [1, 64], strides = [1, 1]} : vector<67x64xf32> to vector<1x64xf32>
    %c0_234 = arith.constant 0 : index
    %c2560 = arith.constant 2560 : index
    %269 = vector.load %arg15[%c0_234, %c2560] : memref<1x3136xf32, #tpu.memory_space<vmem>>, vector<1x64xf32>
    tpu.vector_store %arg15[%c0_234, %c2560], %268 {strides = array<i32>} : memref<1x3136xf32, #tpu.memory_space<vmem>>, vector<1x64xf32>,
    %270 = vector.extract_strided_slice %187 {offsets = [56, 0], sizes = [1, 64], strides = [1, 1]} : vector<67x64xf32> to vector<1x64xf32>
    %c0_235 = arith.constant 0 : index
    %c2624 = arith.constant 2624 : index
    %271 = vector.load %arg15[%c0_235, %c2624] : memref<1x3136xf32, #tpu.memory_space<vmem>>, vector<1x64xf32>
    tpu.vector_store %arg15[%c0_235, %c2624], %270 {strides = array<i32>} : memref<1x3136xf32, #tpu.memory_space<vmem>>, vector<1x64xf32>,
    %272 = vector.extract_strided_slice %187 {offsets = [60, 0], sizes = [1, 64], strides = [1, 1]} : vector<67x64xf32> to vector<1x64xf32>
    %c0_236 = arith.constant 0 : index
    %c2688 = arith.constant 2688 : index
    %273 = vector.load %arg15[%c0_236, %c2688] : memref<1x3136xf32, #tpu.memory_space<vmem>>, vector<1x64xf32>
    tpu.vector_store %arg15[%c0_236, %c2688], %272 {strides = array<i32>} : memref<1x3136xf32, #tpu.memory_space<vmem>>, vector<1x64xf32>,
    %274 = vector.extract_strided_slice %187 {offsets = [61, 0], sizes = [1, 64], strides = [1, 1]} : vector<67x64xf32> to vector<1x64xf32>
    %c0_237 = arith.constant 0 : index
    %c2752 = arith.constant 2752 : index
    %275 = vector.load %arg15[%c0_237, %c2752] : memref<1x3136xf32, #tpu.memory_space<vmem>>, vector<1x64xf32>
    tpu.vector_store %arg15[%c0_237, %c2752], %274 {strides = array<i32>} : memref<1x3136xf32, #tpu.memory_space<vmem>>, vector<1x64xf32>,
    %276 = vector.extract_strided_slice %187 {offsets = [62, 0], sizes = [1, 64], strides = [1, 1]} : vector<67x64xf32> to vector<1x64xf32>
    %c0_238 = arith.constant 0 : index
    %c2816 = arith.constant 2816 : index
    %277 = vector.load %arg15[%c0_238, %c2816] : memref<1x3136xf32, #tpu.memory_space<vmem>>, vector<1x64xf32>
    tpu.vector_store %arg15[%c0_238, %c2816], %276 {strides = array<i32>} : memref<1x3136xf32, #tpu.memory_space<vmem>>, vector<1x64xf32>,
    %278 = vector.extract_strided_slice %187 {offsets = [63, 0], sizes = [1, 64], strides = [1, 1]} : vector<67x64xf32> to vector<1x64xf32>
    %c0_239 = arith.constant 0 : index
    %c2880 = arith.constant 2880 : index
    %279 = vector.load %arg15[%c0_239, %c2880] : memref<1x3136xf32, #tpu.memory_space<vmem>>, vector<1x64xf32>
    tpu.vector_store %arg15[%c0_239, %c2880], %278 {strides = array<i32>} : memref<1x3136xf32, #tpu.memory_space<vmem>>, vector<1x64xf32>,
    %280 = vector.extract_strided_slice %187 {offsets = [64, 0], sizes = [1, 64], strides = [1, 1]} : vector<67x64xf32> to vector<1x64xf32>
    %c0_240 = arith.constant 0 : index
    %c2944 = arith.constant 2944 : index
    %281 = vector.load %arg15[%c0_240, %c2944] : memref<1x3136xf32, #tpu.memory_space<vmem>>, vector<1x64xf32>
    tpu.vector_store %arg15[%c0_240, %c2944], %280 {strides = array<i32>} : memref<1x3136xf32, #tpu.memory_space<vmem>>, vector<1x64xf32>,
    %282 = vector.extract_strided_slice %187 {offsets = [65, 0], sizes = [1, 64], strides = [1, 1]} : vector<67x64xf32> to vector<1x64xf32>
    %c0_241 = arith.constant 0 : index
    %c3008 = arith.constant 3008 : index
    %283 = vector.load %arg15[%c0_241, %c3008] : memref<1x3136xf32, #tpu.memory_space<vmem>>, vector<1x64xf32>
    tpu.vector_store %arg15[%c0_241, %c3008], %282 {strides = array<i32>} : memref<1x3136xf32, #tpu.memory_space<vmem>>, vector<1x64xf32>,
    %284 = vector.extract_strided_slice %187 {offsets = [66, 0], sizes = [1, 64], strides = [1, 1]} : vector<67x64xf32> to vector<1x64xf32>
    %c0_242 = arith.constant 0 : index
    %c3072 = arith.constant 3072 : index
    %285 = vector.load %arg15[%c0_242, %c3072] : memref<1x3136xf32, #tpu.memory_space<vmem>>, vector<1x64xf32>
    tpu.vector_store %arg15[%c0_242, %c3072], %284 {strides = array<i32>} : memref<1x3136xf32, #tpu.memory_space<vmem>>, vector<1x64xf32>,
    %c0_243 = arith.constant 0 : index
    %c0_244 = arith.constant 0 : index
    %286 = vector.load %arg15[%c0_243, %c0_244] : memref<1x3136xf32, #tpu.memory_space<vmem>>, vector<1x3136xf32>
    %287 = arith.truncf %286 : vector<1x3136xf32> to vector<1x3136xbf16>
    %c0_245 = arith.constant 0 : index
    %c0_246 = arith.constant 0 : index
    %288 = vector.load %arg8[%c0_245, %c0_246] : memref<3136x512xbf16, #tpu.memory_space<vmem>>, vector<3136x512xbf16>
    %cst_247 = arith.constant dense<0.000000e+00> : vector<1x512xf32>
    %289 = tpu.matmul %287, %288, %cst_247 {dimension_numbers = #tpu.dot_dimension_numbers<[1], [0], [0], [1], [0, 0, 1, 1], [], []>} : vector<1x3136xbf16>, vector<3136x512xbf16>, vector<1x512xf32> -> vector<1x512xf32>
    %c0_248 = arith.constant 0 : index
    %c0_249 = arith.constant 0 : index
    %290 = vector.load %arg9[%c0_248, %c0_249] : memref<1x512xf32, #tpu.memory_space<vmem>>, vector<1x512xf32>
    %291 = arith.addf %289, %290 : vector<1x512xf32>
    %cst_250 = arith.constant 0.000000e+00 : f32
    %292 = vector.broadcast %cst_250 : f32 to vector<1x512xf32>
    %293 = arith.maximumf %291, %292 : vector<1x512xf32>
    %294 = arith.truncf %293 : vector<1x512xf32> to vector<1x512xbf16>
    %c0_251 = arith.constant 0 : index
    %c0_252 = arith.constant 0 : index
    %295 = vector.load %arg10[%c0_251, %c0_252] : memref<512x6xbf16, #tpu.memory_space<vmem>>, vector<512x6xbf16>
    %cst_253 = arith.constant dense<0.000000e+00> : vector<1x6xf32>
    %296 = tpu.matmul %294, %295, %cst_253 {dimension_numbers = #tpu.dot_dimension_numbers<[1], [0], [0], [1], [0, 0, 1, 1], [], []>} : vector<1x512xbf16>, vector<512x6xbf16>, vector<1x6xf32> -> vector<1x6xf32>
    %c0_254 = arith.constant 0 : index
    %c0_255 = arith.constant 0 : index
    %297 = vector.load %arg11[%c0_254, %c0_255] : memref<1x6xf32, #tpu.memory_space<vmem>>, vector<1x6xf32>
    %298 = arith.addf %296, %297 : vector<1x6xf32>
    %c0_256 = arith.constant 0 : index
    %c0_257 = arith.constant 0 : index
    %c0_258 = arith.constant 0 : index
    %299 = vector.load %arg12[%c0_256, %c0_257, %c0_258] : memref<1x1x6xf32, #tpu.memory_space<vmem>>, vector<1x1x6xf32>
    %300 = vector.shape_cast %299 : vector<1x1x6xf32> to vector<1x6xf32>
    %301 = vector.shape_cast %298 : vector<1x6xf32> to vector<1x1x6xf32>
    tpu.vector_store %arg12[%c0_256, %c0_257, %c0_258], %301 {strides = array<i32>} : memref<1x1x6xf32, #tpu.memory_space<vmem>>, vector<1x1x6xf32>,
    return
  }
  func.func @transform_0(%arg0: i32) -> (i32, i32, i32) {
    %c0_i32 = arith.constant 0 : i32
    %c0_i32_0 = arith.constant 0 : i32
    %c0_i32_1 = arith.constant 0 : i32
    return %arg0, %c0_i32, %c0_i32_0 : i32, i32, i32
  }
  func.func @transform_1(%arg0: i32) -> (i32, i32) {
    %c0_i32 = arith.constant 0 : i32
    %c0_i32_0 = arith.constant 0 : i32
    %c0_i32_1 = arith.constant 0 : i32
    return %c0_i32, %c0_i32_0 : i32, i32
  }
  func.func @transform_2(%arg0: i32) -> (i32, i32) {
    %c0_i32 = arith.constant 0 : i32
    %c0_i32_0 = arith.constant 0 : i32
    %c0_i32_1 = arith.constant 0 : i32
    return %c0_i32, %c0_i32_0 : i32, i32
  }
  func.func @transform_3(%arg0: i32) -> (i32, i32) {
    %c0_i32 = arith.constant 0 : i32
    %c0_i32_0 = arith.constant 0 : i32
    %c0_i32_1 = arith.constant 0 : i32
    return %c0_i32, %c0_i32_0 : i32, i32
  }
  func.func @transform_4(%arg0: i32) -> (i32, i32) {
    %c0_i32 = arith.constant 0 : i32
    %c0_i32_0 = arith.constant 0 : i32
    %c0_i32_1 = arith.constant 0 : i32
    return %c0_i32, %c0_i32_0 : i32, i32
  }
  func.func @transform_5(%arg0: i32) -> (i32, i32) {
    %c0_i32 = arith.constant 0 : i32
    %c0_i32_0 = arith.constant 0 : i32
    %c0_i32_1 = arith.constant 0 : i32
    return %c0_i32, %c0_i32_0 : i32, i32
  }
  func.func @transform_6(%arg0: i32) -> (i32, i32) {
    %c0_i32 = arith.constant 0 : i32
    %c0_i32_0 = arith.constant 0 : i32
    %c0_i32_1 = arith.constant 0 : i32
    return %c0_i32, %c0_i32_0 : i32, i32
  }
  func.func @transform_7(%arg0: i32) -> (i32, i32) {
    %c0_i32 = arith.constant 0 : i32
    %c0_i32_0 = arith.constant 0 : i32
    %c0_i32_1 = arith.constant 0 : i32
    return %c0_i32, %c0_i32_0 : i32, i32
  }
  func.func @transform_8(%arg0: i32) -> (i32, i32) {
    %c0_i32 = arith.constant 0 : i32
    %c0_i32_0 = arith.constant 0 : i32
    %c0_i32_1 = arith.constant 0 : i32
    return %c0_i32, %c0_i32_0 : i32, i32
  }
  func.func @transform_9(%arg0: i32) -> (i32, i32) {
    %c0_i32 = arith.constant 0 : i32
    %c0_i32_0 = arith.constant 0 : i32
    %c0_i32_1 = arith.constant 0 : i32
    return %c0_i32, %c0_i32_0 : i32, i32
  }
  func.func @transform_10(%arg0: i32) -> (i32, i32) {
    %c0_i32 = arith.constant 0 : i32
    %c0_i32_0 = arith.constant 0 : i32
    %c0_i32_1 = arith.constant 0 : i32
    return %c0_i32, %c0_i32_0 : i32, i32
  }
  func.func @transform_11(%arg0: i32) -> (i32, i32, i32) {
    %c0_i32 = arith.constant 0 : i32
    %c0_i32_0 = arith.constant 0 : i32
    %c0_i32_1 = arith.constant 0 : i32
    return %arg0, %c0_i32, %c0_i32_0 : i32, i32, i32
  }
}

</mosaic_0001>

<llo_original>
// kernel: qnetwork_forward.1
$region0: #{qnetwork_forward.1}
  #allocation0 [shape = 'u32[]', space=smem, size = 0x4, offset = 0x4, fixed_abs, tag = 'smem constant byte address 0x4 - core index']
  #allocation1 [shape = 'u32[72,128]{1,0:T(1,128)}', space=vmem, size = 0x9000, scoped, tag = 'internal scratch']
  #allocation2 [shape = 'f32[419,32]{1,0:T(8,128)}', space=vmem, size = 0x35000, scoped, tag = 'scratch operand']
  #allocation3 [shape = 'f32[100,128]{1,0:T(8,128)}', space=vmem, size = 0xd000, scoped, tag = 'scratch operand']
  #allocation4 [shape = 'f32[1,3136]{1,0:T(1,128)}', space=vmem, size = 0x3200, scoped, tag = 'scratch operand']
  %s0 = inlined_call_operand.vmem [shape: f32[2,441,64], index: 0, kind: input, shape index: {}]
  %s1 = inlined_call_operand.vmem [shape: bf16[256,32], index: 1, kind: input, shape index: {}]
  %s2 = inlined_call_operand.vmem [shape: f32[1,32], index: 2, kind: input, shape index: {}]
  %s3 = inlined_call_operand.vmem [shape: bf16[512,64], index: 3, kind: input, shape index: {}]
  %s4 = inlined_call_operand.vmem [shape: f32[1,64], index: 4, kind: input, shape index: {}]
  %s5 = inlined_call_operand.vmem [shape: bf16[576,64], index: 5, kind: input, shape index: {}]
  %s6 = inlined_call_operand.vmem [shape: f32[1,64], index: 6, kind: input, shape index: {}]
  %s7 = inlined_call_operand.vmem [shape: bf16[3136,512], index: 7, kind: input, shape index: {}]
  %s8 = inlined_call_operand.vmem [shape: f32[1,512], index: 8, kind: input, shape index: {}]
  %s9 = inlined_call_operand.vmem [shape: bf16[512,6], index: 9, kind: input, shape index: {}]
  %s10 = inlined_call_operand.vmem [shape: f32[1,6], index: 10, kind: input, shape index: {}]
  %s11 = inlined_call_operand.hbm [shape: f32[2,1,6], index: 11, kind: output, shape index: {}]
  %s12 = sld [smem:[#allocation0]]
  $region77: #{qnetwork_forward.1} parent=0
    _
  %s14 = ssub.s32 1, %s12
  %s15 = scalar_select 0, %s14, %s12
  $region1: #{qnetwork_forward.1} parent=0
    #allocation5 [shape = 'u8[1024]{0}', space=vmem, size = 0x400, scoped, tag = 'output window, operand 0']
    #allocation6 [shape = 's32[2]{0}', space=sflag, size = 0x8, scoped, tag = 'scoped memory for qnetwork_forward.1']
    %16 = vsyncpa [#allocation6], 0
    %s17 = scalar_lea.sflag [#allocation6], 1
    %18 = vsyncpa %s17, 0
    loop: start=0, step=1, limit=4
    $region2: #{qnetwork_forward.1} parent=1 // loop_pre_header
      _
    $region3: #{qnetwork_forward.1} parent=1 // loop_header
      %s20 = sphi 0, %s24
      %p21 = scmp.ge.s32.totalorder %s20, 4
      %s30 = sphi 0, %s32
      %s33 = sphi 0, %s30
      %s34 = sphi 0, %s33
      %s50 = sphi 0, %s34
      %s54 = sphi 0, %s54
      %s56 = sphi 0, %s54
      %s57 = sphi 0, %s56
      %s71 = sphi 0, %s57
      %s75 = sphi 0, %s75
      %s77 = sphi 0, %s75
      %s78 = sphi 0, %s77
      %s92 = sphi 0, %s78
      %s96 = sphi 0, %s96
      %s98 = sphi 0, %s96
      %s99 = sphi 0, %s98
      %s113 = sphi 0, %s99
      %s117 = sphi 0, %s117
      %s119 = sphi 0, %s117
      %s120 = sphi 0, %s119
      %s134 = sphi 0, %s120
      %s138 = sphi 0, %s138
      %s140 = sphi 0, %s138
      %s141 = sphi 0, %s140
      %s155 = sphi 0, %s141
      %s159 = sphi 0, %s159
      %s161 = sphi 0, %s159
      %s162 = sphi 0, %s161
      %s176 = sphi 0, %s162
      %s180 = sphi 0, %s180
      %s182 = sphi 0, %s180
      %s183 = sphi 0, %s182
      %s197 = sphi 0, %s183
      %s201 = sphi 0, %s201
      %s203 = sphi 0, %s201
      %s204 = sphi 0, %s203
      %s218 = sphi 0, %s204
      %s222 = sphi 0, %s222
      %s224 = sphi 0, %s222
      %s225 = sphi 0, %s224
      %s239 = sphi 0, %s225
      %s243 = sphi 0, %s243
      %s245 = sphi 0, %s243
      %s246 = sphi 0, %s245
      %s260 = sphi 0, %s246
      %s266 = sphi 0, %s268
      %s269 = sphi 0, %s266
      %s270 = sphi 0, %s269
      %s286 = sphi 0, %s270
    $region4: #{qnetwork_forward.1} parent=1 // loop_header_branch
      %23 = sbr.rel (%p21) target = $region8
    $region5: #{qnetwork_forward.1} parent=1 // loop_body
      %s25 = ssub.s32 %s20, 1
      %s26 = ssub.s32 %s20, 2
      %s27 = sadd.s32 %s20, 1
      %s28 = ssub.s32 %s20, %s27
      %p29 = scmp.eq.s32.totalorder %s28, 0
      %s31 = sadd.s32 %s30, 1
      %s32 = scalar_select %p29, %s30, %s31
      %p35 = pneg %p29
      %p36 = scmp.eq.s32.totalorder %s20, 1
      %p37 = por %p35, %p36
      %p38 = scmp.ne.s32.totalorder %s30, %s33
      %p39 = scmp.eq.s32.totalorder %s20, 0
      %p40 = por %p38, %p39
      %p41 = scmp.ne.s32.totalorder %s30, %s33
      %p42 = scmp.eq.s32.totalorder %s25, 1
      %p43 = por %p41, %p42
      %p44 = scmp.ne.s32.totalorder %s33, %s34
      %p45 = scmp.eq.s32.totalorder %s25, 0
      %p46 = por %p44, %p45
      %p47 = scmp.ne.s32.totalorder %s33, %s34
      %p48 = scmp.eq.s32.totalorder %s26, 1
      %p49 = por %p47, %p48
      %p51 = scmp.ne.s32.totalorder %s34, %s50
      %p52 = scmp.eq.s32.totalorder %s26, 0
      %p53 = por %p51, %p52
      %s55 = sadd.s32 %s54, 1
      %p58 = scmp.eq.s32.totalorder %s20, 1
      %p59 = scmp.ne.s32.totalorder %s54, %s56
      %p60 = scmp.eq.s32.totalorder %s20, 0
      %p61 = por %p59, %p60
      %p62 = scmp.ne.s32.totalorder %s54, %s56
      %p63 = scmp.eq.s32.totalorder %s25, 1
      %p64 = por %p62, %p63
      %p65 = scmp.ne.s32.totalorder %s56, %s57
      %p66 = scmp.eq.s32.totalorder %s25, 0
      %p67 = por %p65, %p66
      %p68 = scmp.ne.s32.totalorder %s56, %s57
      %p69 = scmp.eq.s32.totalorder %s26, 1
      %p70 = por %p68, %p69
      %p72 = scmp.ne.s32.totalorder %s57, %s71
      %p73 = scmp.eq.s32.totalorder %s26, 0
      %p74 = por %p72, %p73
      %s76 = sadd.s32 %s75, 1
      %p79 = scmp.eq.s32.totalorder %s20, 1
      %p80 = scmp.ne.s32.totalorder %s75, %s77
      %p81 = scmp.eq.s32.totalorder %s20, 0
      %p82 = por %p80, %p81
      %p83 = scmp.ne.s32.totalorder %s75, %s77
      %p84 = scmp.eq.s32.totalorder %s25, 1
      %p85 = por %p83, %p84
      %p86 = scmp.ne.s32.totalorder %s77, %s78
      %p87 = scmp.eq.s32.totalorder %s25, 0
      %p88 = por %p86, %p87
      %p89 = scmp.ne.s32.totalorder %s77, %s78
      %p90 = scmp.eq.s32.totalorder %s26, 1
      %p91 = por %p89, %p90
      %p93 = scmp.ne.s32.totalorder %s78, %s92
      %p94 = scmp.eq.s32.totalorder %s26, 0
      %p95 = por %p93, %p94
      %s97 = sadd.s32 %s96, 1
      %p100 = scmp.eq.s32.totalorder %s20, 1
      %p101 = scmp.ne.s32.totalorder %s96, %s98
      %p102 = scmp.eq.s32.totalorder %s20, 0
      %p103 = por %p101, %p102
      %p104 = scmp.ne.s32.totalorder %s96, %s98
      %p105 = scmp.eq.s32.totalorder %s25, 1
      %p106 = por %p104, %p105
      %p107 = scmp.ne.s32.totalorder %s98, %s99
      %p108 = scmp.eq.s32.totalorder %s25, 0
      %p109 = por %p107, %p108
      %p110 = scmp.ne.s32.totalorder %s98, %s99
      %p111 = scmp.eq.s32.totalorder %s26, 1
      %p112 = por %p110, %p111
      %p114 = scmp.ne.s32.totalorder %s99, %s113
      %p115 = scmp.eq.s32.totalorder %s26, 0
      %p116 = por %p114, %p115
      %s118 = sadd.s32 %s117, 1
      %p121 = scmp.eq.s32.totalorder %s20, 1
      %p122 = scmp.ne.s32.totalorder %s117, %s119
      %p123 = scmp.eq.s32.totalorder %s20, 0
      %p124 = por %p122, %p123
      %p125 = scmp.ne.s32.totalorder %s117, %s119
      %p126 = scmp.eq.s32.totalorder %s25, 1
      %p127 = por %p125, %p126
      %p128 = scmp.ne.s32.totalorder %s119, %s120
      %p129 = scmp.eq.s32.totalorder %s25, 0
      %p130 = por %p128, %p129
      %p131 = scmp.ne.s32.totalorder %s119, %s120
      %p132 = scmp.eq.s32.totalorder %s26, 1
      %p133 = por %p131, %p132
      %p135 = scmp.ne.s32.totalorder %s120, %s134
      %p136 = scmp.eq.s32.totalorder %s26, 0
      %p137 = por %p135, %p136
      %s139 = sadd.s32 %s138, 1
      %p142 = scmp.eq.s32.totalorder %s20, 1
      %p143 = scmp.ne.s32.totalorder %s138, %s140
      %p144 = scmp.eq.s32.totalorder %s20, 0
      %p145 = por %p143, %p144
      %p146 = scmp.ne.s32.totalorder %s138, %s140
      %p147 = scmp.eq.s32.totalorder %s25, 1
      %p148 = por %p146, %p147
      %p149 = scmp.ne.s32.totalorder %s140, %s141
      %p150 = scmp.eq.s32.totalorder %s25, 0
      %p151 = por %p149, %p150
      %p152 = scmp.ne.s32.totalorder %s140, %s141
      %p153 = scmp.eq.s32.totalorder %s26, 1
      %p154 = por %p152, %p153
      %p156 = scmp.ne.s32.totalorder %s141, %s155
      %p157 = scmp.eq.s32.totalorder %s26, 0
      %p158 = por %p156, %p157
      %s160 = sadd.s32 %s159, 1
      %p163 = scmp.eq.s32.totalorder %s20, 1
      %p164 = scmp.ne.s32.totalorder %s159, %s161
      %p165 = scmp.eq.s32.totalorder %s20, 0
      %p166 = por %p164, %p165
      %p167 = scmp.ne.s32.totalorder %s159, %s161
      %p168 = scmp.eq.s32.totalorder %s25, 1
      %p169 = por %p167, %p168
      %p170 = scmp.ne.s32.totalorder %s161, %s162
      %p171 = scmp.eq.s32.totalorder %s25, 0
      %p172 = por %p170, %p171
      %p173 = scmp.ne.s32.totalorder %s161, %s162
      %p174 = scmp.eq.s32.totalorder %s26, 1
      %p175 = por %p173, %p174
      %p177 = scmp.ne.s32.totalorder %s162, %s176
      %p178 = scmp.eq.s32.totalorder %s26, 0
      %p179 = por %p177, %p178
      %s181 = sadd.s32 %s180, 1
      %p184 = scmp.eq.s32.totalorder %s20, 1
      %p185 = scmp.ne.s32.totalorder %s180, %s182
      %p186 = scmp.eq.s32.totalorder %s20, 0
      %p187 = por %p185, %p186
      %p188 = scmp.ne.s32.totalorder %s180, %s182
      %p189 = scmp.eq.s32.totalorder %s25, 1
      %p190 = por %p188, %p189
      %p191 = scmp.ne.s32.totalorder %s182, %s183
      %p192 = scmp.eq.s32.totalorder %s25, 0
      %p193 = por %p191, %p192
      %p194 = scmp.ne.s32.totalorder %s182, %s183
      %p195 = scmp.eq.s32.totalorder %s26, 1
      %p196 = por %p194, %p195
      %p198 = scmp.ne.s32.totalorder %s183, %s197
      %p199 = scmp.eq.s32.totalorder %s26, 0
      %p200 = por %p198, %p199
      %s202 = sadd.s32 %s201, 1
      %p205 = scmp.eq.s32.totalorder %s20, 1
      %p206 = scmp.ne.s32.totalorder %s201, %s203
      %p207 = scmp.eq.s32.totalorder %s20, 0
      %p208 = por %p206, %p207
      %p209 = scmp.ne.s32.totalorder %s201, %s203
      %p210 = scmp.eq.s32.totalorder %s25, 1
      %p211 = por %p209, %p210
      %p212 = scmp.ne.s32.totalorder %s203, %s204
      %p213 = scmp.eq.s32.totalorder %s25, 0
      %p214 = por %p212, %p213
      %p215 = scmp.ne.s32.totalorder %s203, %s204
      %p216 = scmp.eq.s32.totalorder %s26, 1
      %p217 = por %p215, %p216
      %p219 = scmp.ne.s32.totalorder %s204, %s218
      %p220 = scmp.eq.s32.totalorder %s26, 0
      %p221 = por %p219, %p220
      %s223 = sadd.s32 %s222, 1
      %p226 = scmp.eq.s32.totalorder %s20, 1
      %p227 = scmp.ne.s32.totalorder %s222, %s224
      %p228 = scmp.eq.s32.totalorder %s20, 0
      %p229 = por %p227, %p228
      %p230 = scmp.ne.s32.totalorder %s222, %s224
      %p231 = scmp.eq.s32.totalorder %s25, 1
      %p232 = por %p230, %p231
      %p233 = scmp.ne.s32.totalorder %s224, %s225
      %p234 = scmp.eq.s32.totalorder %s25, 0
      %p235 = por %p233, %p234
      %p236 = scmp.ne.s32.totalorder %s224, %s225
      %p237 = scmp.eq.s32.totalorder %s26, 1
      %p238 = por %p236, %p237
      %p240 = scmp.ne.s32.totalorder %s225, %s239
      %p241 = scmp.eq.s32.totalorder %s26, 0
      %p242 = por %p240, %p241
      %s244 = sadd.s32 %s243, 1
      %p247 = scmp.eq.s32.totalorder %s20, 1
      %p248 = scmp.ne.s32.totalorder %s243, %s245
      %p249 = scmp.eq.s32.totalorder %s20, 0
      %p250 = por %p248, %p249
      %p251 = scmp.ne.s32.totalorder %s243, %s245
      %p252 = scmp.eq.s32.totalorder %s25, 1
      %p253 = por %p251, %p252
      %p254 = scmp.ne.s32.totalorder %s245, %s246
      %p255 = scmp.eq.s32.totalorder %s25, 0
      %p256 = por %p254, %p255
      %p257 = scmp.ne.s32.totalorder %s245, %s246
      %p258 = scmp.eq.s32.totalorder %s26, 1
      %p259 = por %p257, %p258
      %p261 = scmp.ne.s32.totalorder %s246, %s260
      %p262 = scmp.eq.s32.totalorder %s26, 0
      %p263 = por %p261, %p262
      %s264 = ssub.s32 %s20, %s27
      %p265 = scmp.eq.s32.totalorder %s264, 0
      %s267 = sadd.s32 %s266, 1
      %s268 = scalar_select %p265, %s266, %s267
      %p271 = pneg %p265
      %p272 = scmp.eq.s32.totalorder %s20, 1
      %p273 = por %p271, %p272
      %p274 = scmp.ne.s32.totalorder %s266, %s269
      %p275 = scmp.eq.s32.totalorder %s20, 0
      %p276 = por %p274, %p275
      %p277 = scmp.ne.s32.totalorder %s266, %s269
      %p278 = scmp.eq.s32.totalorder %s25, 1
      %p279 = por %p277, %p278
      %p280 = scmp.ne.s32.totalorder %s269, %s270
      %p281 = scmp.eq.s32.totalorder %s25, 0
      %p282 = por %p280, %p281
      %p283 = scmp.ne.s32.totalorder %s269, %s270
      %p284 = scmp.eq.s32.totalorder %s26, 1
      %p285 = por %p283, %p284
      %p287 = scmp.ne.s32.totalorder %s270, %s286
      %p288 = scmp.eq.s32.totalorder %s26, 0
      %p289 = por %p287, %p288
      %p290 = scmp.le.s32.totalorder 1, %s20
      %p291 = scmp.lt.s32.totalorder %s20, 3
      %p292 = pnand %p290, %p291
      %p293 = pneg %p292
      // Predicated region
      $region9: #{qnetwork_forward.1} parent=5 // pred_check
        _
      $region10: #{qnetwork_forward.1} parent=5 // pred_check_branch
        %295 = sbr.rel (%p292) target = $region12
      $region11: #{qnetwork_forward.1} parent=5 // pred_region
        %s296 = ssub.s32 %s20, 1
        // Predicated region
        $region13: #{qnetwork_forward.1} parent=11 // pred_check
          %p297 = pneg %p67
        $region14: #{qnetwork_forward.1} parent=11 // pred_check_branch
          %299 = sbr.rel (%p297) target = $region16
        $region15: #{qnetwork_forward.1} parent=11 // pred_region
          _
        $region16: #{qnetwork_forward.1} parent=11 // pred_fallthru
          _
        // Predicated region
        $region17: #{qnetwork_forward.1} parent=11 // pred_check
          %p300 = pneg %p88
        $region18: #{qnetwork_forward.1} parent=11 // pred_check_branch
          %302 = sbr.rel (%p300) target = $region20
        $region19: #{qnetwork_forward.1} parent=11 // pred_region
          _
        $region20: #{qnetwork_forward.1} parent=11 // pred_fallthru
          _
        // Predicated region
        $region21: #{qnetwork_forward.1} parent=11 // pred_check
          %p303 = pneg %p109
        $region22: #{qnetwork_forward.1} parent=11 // pred_check_branch
          %305 = sbr.rel (%p303) target = $region24
        $region23: #{qnetwork_forward.1} parent=11 // pred_region
          _
        $region24: #{qnetwork_forward.1} parent=11 // pred_fallthru
          _
        // Predicated region
        $region25: #{qnetwork_forward.1} parent=11 // pred_check
          %p306 = pneg %p130
        $region26: #{qnetwork_forward.1} parent=11 // pred_check_branch
          %308 = sbr.rel (%p306) target = $region28
        $region27: #{qnetwork_forward.1} parent=11 // pred_region
          _
        $region28: #{qnetwork_forward.1} parent=11 // pred_fallthru
          _
        // Predicated region
        $region29: #{qnetwork_forward.1} parent=11 // pred_check
          %p309 = pneg %p151
        $region30: #{qnetwork_forward.1} parent=11 // pred_check_branch
          %311 = sbr.rel (%p309) target = $region32
        $region31: #{qnetwork_forward.1} parent=11 // pred_region
          _
        $region32: #{qnetwork_forward.1} parent=11 // pred_fallthru
          _
        // Predicated region
        $region33: #{qnetwork_forward.1} parent=11 // pred_check
          %p312 = pneg %p172
        $region34: #{qnetwork_forward.1} parent=11 // pred_check_branch
          %314 = sbr.rel (%p312) target = $region36
        $region35: #{qnetwork_forward.1} parent=11 // pred_region
          _
        $region36: #{qnetwork_forward.1} parent=11 // pred_fallthru
          _
        // Predicated region
        $region37: #{qnetwork_forward.1} parent=11 // pred_check
          %p315 = pneg %p193
        $region38: #{qnetwork_forward.1} parent=11 // pred_check_branch
          %317 = sbr.rel (%p315) target = $region40
        $region39: #{qnetwork_forward.1} parent=11 // pred_region
          _
        $region40: #{qnetwork_forward.1} parent=11 // pred_fallthru
          _
        // Predicated region
        $region41: #{qnetwork_forward.1} parent=11 // pred_check
          %p318 = pneg %p214
        $region42: #{qnetwork_forward.1} parent=11 // pred_check_branch
          %320 = sbr.rel (%p318) target = $region44
        $region43: #{qnetwork_forward.1} parent=11 // pred_region
          _
        $region44: #{qnetwork_forward.1} parent=11 // pred_fallthru
          _
        // Predicated region
        $region45: #{qnetwork_forward.1} parent=11 // pred_check
          %p321 = pneg %p235
        $region46: #{qnetwork_forward.1} parent=11 // pred_check_branch
          %323 = sbr.rel (%p321) target = $region48
        $region47: #{qnetwork_forward.1} parent=11 // pred_region
          _
        $region48: #{qnetwork_forward.1} parent=11 // pred_fallthru
          _
        // Predicated region
        $region49: #{qnetwork_forward.1} parent=11 // pred_check
          %p324 = pneg %p256
        $region50: #{qnetwork_forward.1} parent=11 // pred_check_branch
          %326 = sbr.rel (%p324) target = $region52
        $region51: #{qnetwork_forward.1} parent=11 // pred_region
          _
        $region52: #{qnetwork_forward.1} parent=11 // pred_fallthru
          _
      $region12: #{qnetwork_forward.1} parent=5 // pred_fallthru
        _
      %p327 = scmp.lt.s32.totalorder %s20, 2
      // Predicated region
      $region53: #{qnetwork_forward.1} parent=5 // pred_check
        %p328 = pneg %p327
      $region54: #{qnetwork_forward.1} parent=5 // pred_check_branch
        %330 = sbr.rel (%p328) target = $region56
      $region55: #{qnetwork_forward.1} parent=5 // pred_region
        // Predicated region
        $region57: #{qnetwork_forward.1} parent=55 // pred_check
          %p331 = pneg %p40
        $region58: #{qnetwork_forward.1} parent=55 // pred_check_branch
          %333 = sbr.rel (%p331) target = $region60
        $region59: #{qnetwork_forward.1} parent=55 // pred_region
          %p334 = scmp.lt.s32.totalorder %s20, 1
          %s335 = scalar_select %p334, %s20, 1
          %s336 = smul.addr %s335, 56
          %s337 = smul.addr %s336, 8
          %s338 = scalar_lea.vmem %s0, %s337
        $region60: #{qnetwork_forward.1} parent=55 // pred_fallthru
          _
      $region56: #{qnetwork_forward.1} parent=5 // pred_fallthru
        _
      %p339 = scmp.le.s32.totalorder 1, %s20
      %p340 = scmp.lt.s32.totalorder %s20, 3
      %p341 = pnand %p339, %p340
      %p342 = pneg %p341
      // Predicated region
      $region61: #{qnetwork_forward.1} parent=5 // pred_check
        _
      $region62: #{qnetwork_forward.1} parent=5 // pred_check_branch
        %344 = sbr.rel (%p341) target = $region64
      $region63: #{qnetwork_forward.1} parent=5 // pred_region
        %s345 = ssub.s32 %s20, 1
        %p346 = scmp.lt.s32.totalorder %s25, 1
        %s347 = scalar_select %p346, %s25, 1
        %s348 = smul.addr %s347, 56
        %s349 = smul.addr %s348, 8
        %s350 = scalar_lea.vmem %s0, %s349
        %p351 = pneg %p46
        %p352 = pneg %p43
        %p353 = pneg %p67
        %p354 = pneg %p64
        %p355 = pneg %p88
        %p356 = pneg %p85
        %p357 = pneg %p109
        %p358 = pneg %p106
        %p359 = pneg %p130
        %p360 = pneg %p127
        %p361 = pneg %p151
        %p362 = pneg %p148
        %p363 = pneg %p172
        %p364 = pneg %p169
        %p365 = pneg %p193
        %p366 = pneg %p190
        %p367 = pneg %p214
        %p368 = pneg %p211
        %p369 = pneg %p235
        %p370 = pneg %p232
        %p371 = pneg %p256
        %p372 = pneg %p253
        %p373 = pneg %p282
        %p374 = pneg %p279
        %s375 = sand.u32 %s269, 1
        %s376 = scalar_lea.sflag [#allocation6], %s375
        %s377 = sand.u32 %s269, 1
        %s378 = scalar_lea.vmem [#allocation5], %s377
        %p379 = scmp.lt.s32.totalorder %s25, 1
        %s380 = scalar_select %p379, %s25, 1
        %s381 = smul.addr %s380, 56
        %s382 = smul.addr %s381, 8
        %s383 = scalar_lea.vmem %s0, %s382
        %v385 = vld [vmem:[%s383] sm:$0xff]
        %v386 = vld [vmem:[%s383 + $0x8] sm:$0xff]
        %v387 = vld [vmem:[%s383 + $0x10] sm:$0xff]
        %v388 = vld [vmem:[%s383 + $0x18] sm:$0xff]
        %v389 = vld [vmem:[%s383 + $0x20] sm:$0xff]
        %v390 = vld [vmem:[%s383 + $0x28] sm:$0xff]
        %v391 = vld [vmem:[%s383 + $0x30] sm:$0xff]
        %v392 = vld [vmem:[%s383 + $0x38] sm:$0xff]
        %v393 = vld [vmem:[%s383 + $0x40] sm:$0xff]
        %v394 = vld [vmem:[%s383 + $0x48] sm:$0xff]
        %v395 = vld [vmem:[%s383 + $0x50] sm:$0xff]
        %v396 = vld [vmem:[%s383 + $0x58] sm:$0xff]
        %v397 = vld [vmem:[%s383 + $0x60] sm:$0xff]
        %v398 = vld [vmem:[%s383 + $0x68] sm:$0xff]
        %v399 = vld [vmem:[%s383 + $0x70] sm:$0xff]
        %v400 = vld [vmem:[%s383 + $0x78] sm:$0xff]
        %v401 = vld [vmem:[%s383 + $0x80] sm:$0xff]
        %v402 = vld [vmem:[%s383 + $0x88] sm:$0xff]
        %v403 = vld [vmem:[%s383 + $0x90] sm:$0xff]
        %v404 = vld [vmem:[%s383 + $0x98] sm:$0xff]
        %v405 = vld [vmem:[%s383 + $0xa0] sm:$0xff]
        %v406 = vld [vmem:[%s383 + $0xa8] sm:$0xff]
        %v407 = vld [vmem:[%s383 + $0xb0] sm:$0xff]
        %v408 = vld [vmem:[%s383 + $0xb8] sm:$0xff]
        %v409 = vld [vmem:[%s383 + $0xc0] sm:$0xff]
        %v410 = vld [vmem:[%s383 + $0xc8] sm:$0xff]
        %v411 = vld [vmem:[%s383 + $0xd0] sm:$0xff]
        %v412 = vld [vmem:[%s383 + $0xd8] sm:$0xff]
        %v413 = vld [vmem:[%s383 + $0xe0] sm:$0xff]
        %v414 = vld [vmem:[%s383 + $0xe8] sm:$0xff]
        %v415 = vld [vmem:[%s383 + $0xf0] sm:$0xff]
        %v416 = vld [vmem:[%s383 + $0xf8] sm:$0xff]
        %v417 = vld [vmem:[%s383 + $0x100] sm:$0xff]
        %v418 = vld [vmem:[%s383 + $0x108] sm:$0xff]
        %v419 = vld [vmem:[%s383 + $0x110] sm:$0xff]
        %v420 = vld [vmem:[%s383 + $0x118] sm:$0xff]
        %v421 = vld [vmem:[%s383 + $0x120] sm:$0xff]
        %v422 = vld [vmem:[%s383 + $0x128] sm:$0xff]
        %v423 = vld [vmem:[%s383 + $0x130] sm:$0xff]
        %v424 = vld [vmem:[%s383 + $0x138] sm:$0xff]
        %v425 = vld [vmem:[%s383 + $0x140] sm:$0xff]
        %v426 = vld [vmem:[%s383 + $0x148] sm:$0xff]
        %v427 = vld [vmem:[%s383 + $0x150] sm:$0xff]
        %v428 = vld [vmem:[%s383 + $0x158] sm:$0xff]
        %v429 = vld [vmem:[%s383 + $0x160] sm:$0xff]
        %v430 = vld [vmem:[%s383 + $0x168] sm:$0xff]
        %v431 = vld [vmem:[%s383 + $0x170] sm:$0xff]
        %v432 = vld [vmem:[%s383 + $0x178] sm:$0xff]
        %v433 = vld [vmem:[%s383 + $0x180] sm:$0xff]
        %v434 = vld [vmem:[%s383 + $0x188] sm:$0xff]
        %v435 = vld [vmem:[%s383 + $0x190] sm:$0xff]
        %v436 = vld [vmem:[%s383 + $0x198] sm:$0xff]
        %v437 = vld [vmem:[%s383 + $0x1a0] sm:$0x7]
        %v438 = vpack.c.bf16 %v386, %v385
        %v439 = vpack.c.bf16 %v388, %v387
        %v440 = vpack.c.bf16 %v390, %v389
        %v441 = vpack.c.bf16 %v392, %v391
        %v442 = vpack.c.bf16 %v394, %v393
        %v443 = vpack.c.bf16 %v396, %v395
        %v444 = vpack.c.bf16 %v398, %v397
        %v445 = vpack.c.bf16 %v400, %v399
        %v446 = vpack.c.bf16 %v402, %v401
        %v447 = vpack.c.bf16 %v404, %v403
        %v448 = vpack.c.bf16 %v406, %v405
        %v449 = vpack.c.bf16 %v408, %v407
        %v450 = vpack.c.bf16 %v410, %v409
        %v451 = vpack.c.bf16 %v412, %v411
        %v452 = vpack.c.bf16 %v414, %v413
        %v453 = vpack.c.bf16 %v416, %v415
        %v454 = vpack.c.bf16 %v418, %v417
        %v455 = vpack.c.bf16 %v420, %v419
        %v456 = vpack.c.bf16 %v422, %v421
        %v457 = vpack.c.bf16 %v424, %v423
        %v458 = vpack.c.bf16 %v426, %v425
        %v459 = vpack.c.bf16 %v428, %v427
        %v460 = vpack.c.bf16 %v430, %v429
        %v461 = vpack.c.bf16 %v432, %v431
        %v462 = vpack.c.bf16 %v434, %v433
        %v463 = vpack.c.bf16 %v436, %v435
        %v464 = vpack.c.bf16 %v437, %v437
        %v465 = vld [vmem:[%s1] sm:$0xf]
        %v466 = vld [vmem:[%s1 + $0x4] sm:$0xf]
        %v467 = vld [vmem:[%s1 + $0x8] sm:$0xf]
        %v468 = vld [vmem:[%s1 + $0xc] sm:$0xf]
        %v469 = vld [vmem:[%s1 + $0x10] sm:$0xf]
        %v470 = vld [vmem:[%s1 + $0x14] sm:$0xf]
        %v471 = vld [vmem:[%s1 + $0x18] sm:$0xf]
        %v472 = vld [vmem:[%s1 + $0x1c] sm:$0xf]
        %v473 = vld [vmem:[%s383 + $0x1] sm:$0xff]
        %v474 = vld [vmem:[%s383 + $0x9] sm:$0xff]
        %v475 = vld [vmem:[%s383 + $0x11] sm:$0xff]
        %v476 = vld [vmem:[%s383 + $0x19] sm:$0xff]
        %v477 = vld [vmem:[%s383 + $0x21] sm:$0xff]
        %v478 = vld [vmem:[%s383 + $0x29] sm:$0xff]
        %v479 = vld [vmem:[%s383 + $0x31] sm:$0xff]
        %v480 = vld [vmem:[%s383 + $0x39] sm:$0xff]
        %v481 = vld [vmem:[%s383 + $0x41] sm:$0xff]
        %v482 = vld [vmem:[%s383 + $0x49] sm:$0xff]
        %v483 = vld [vmem:[%s383 + $0x51] sm:$0xff]
        %v484 = vld [vmem:[%s383 + $0x59] sm:$0xff]
        %v485 = vld [vmem:[%s383 + $0x61] sm:$0xff]
        %v486 = vld [vmem:[%s383 + $0x69] sm:$0xff]
        %v487 = vld [vmem:[%s383 + $0x71] sm:$0xff]
        %v488 = vld [vmem:[%s383 + $0x79] sm:$0xff]
        %v489 = vld [vmem:[%s383 + $0x81] sm:$0xff]
        %v490 = vld [vmem:[%s383 + $0x89] sm:$0xff]
        %v491 = vld [vmem:[%s383 + $0x91] sm:$0xff]
        %v492 = vld [vmem:[%s383 + $0x99] sm:$0xff]
        %v493 = vld [vmem:[%s383 + $0xa1] sm:$0xff]
        %v494 = vld [vmem:[%s383 + $0xa9] sm:$0xff]
        %v495 = vld [vmem:[%s383 + $0xb1] sm:$0xff]
        %v496 = vld [vmem:[%s383 + $0xb9] sm:$0xff]
        %v497 = vld [vmem:[%s383 + $0xc1] sm:$0xff]
        %v498 = vld [vmem:[%s383 + $0xc9] sm:$0xff]
        %v499 = vld [vmem:[%s383 + $0xd1] sm:$0xff]
        %v500 = vld [vmem:[%s383 + $0xd9] sm:$0xff]
        %v501 = vld [vmem:[%s383 + $0xe1] sm:$0xff]
        %v502 = vld [vmem:[%s383 + $0xe9] sm:$0xff]
        %v503 = vld [vmem:[%s383 + $0xf1] sm:$0xff]
        %v504 = vld [vmem:[%s383 + $0xf9] sm:$0xff]
        %v505 = vld [vmem:[%s383 + $0x101] sm:$0xff]
        %v506 = vld [vmem:[%s383 + $0x109] sm:$0xff]
        %v507 = vld [vmem:[%s383 + $0x111] sm:$0xff]
        %v508 = vld [vmem:[%s383 + $0x119] sm:$0xff]
        %v509 = vld [vmem:[%s383 + $0x121] sm:$0xff]
        %v510 = vld [vmem:[%s383 + $0x129] sm:$0xff]
        %v511 = vld [vmem:[%s383 + $0x131] sm:$0xff]
        %v512 = vld [vmem:[%s383 + $0x139] sm:$0xff]
        %v513 = vld [vmem:[%s383 + $0x141] sm:$0xff]
        %v514 = vld [vmem:[%s383 + $0x149] sm:$0xff]
        %v515 = vld [vmem:[%s383 + $0x151] sm:$0xff]
        %v516 = vld [vmem:[%s383 + $0x159] sm:$0xff]
        %v517 = vld [vmem:[%s383 + $0x161] sm:$0xff]
        %v518 = vld [vmem:[%s383 + $0x169] sm:$0xff]
        %v519 = vld [vmem:[%s383 + $0x171] sm:$0xff]
        %v520 = vld [vmem:[%s383 + $0x179] sm:$0xff]
        %v521 = vld [vmem:[%s383 + $0x181] sm:$0xff]
        %v522 = vld [vmem:[%s383 + $0x189] sm:$0xff]
        %v523 = vld [vmem:[%s383 + $0x191] sm:$0xff]
        %v524 = vld [vmem:[%s383 + $0x199] sm:$0xff]
        %v525 = vld [vmem:[%s383 + $0x1a1] sm:$0x7]
        %v526 = vpack.c.bf16 %v474, %v473
        %v527 = vpack.c.bf16 %v476, %v475
        %v528 = vpack.c.bf16 %v478, %v477
        %v529 = vpack.c.bf16 %v480, %v479
        %v530 = vpack.c.bf16 %v482, %v481
        %v531 = vpack.c.bf16 %v484, %v483
        %v532 = vpack.c.bf16 %v486, %v485
        %v533 = vpack.c.bf16 %v488, %v487
        %v534 = vpack.c.bf16 %v490, %v489
        %v535 = vpack.c.bf16 %v492, %v491
        %v536 = vpack.c.bf16 %v494, %v493
        %v537 = vpack.c.bf16 %v496, %v495
        %v538 = vpack.c.bf16 %v498, %v497
        %v539 = vpack.c.bf16 %v500, %v499
        %v540 = vpack.c.bf16 %v502, %v501
        %v541 = vpack.c.bf16 %v504, %v503
        %v542 = vpack.c.bf16 %v506, %v505
        %v543 = vpack.c.bf16 %v508, %v507
        %v544 = vpack.c.bf16 %v510, %v509
        %v545 = vpack.c.bf16 %v512, %v511
        %v546 = vpack.c.bf16 %v514, %v513
        %v547 = vpack.c.bf16 %v516, %v515
        %v548 = vpack.c.bf16 %v518, %v517
        %v549 = vpack.c.bf16 %v520, %v519
        %v550 = vpack.c.bf16 %v522, %v521
        %v551 = vpack.c.bf16 %v524, %v523
        %v552 = vpack.c.bf16 %v525, %v525
        %v553 = vld [vmem:[%s1 + $0x20] sm:$0xf]
        %v554 = vld [vmem:[%s1 + $0x24] sm:$0xf]
        %v555 = vld [vmem:[%s1 + $0x28] sm:$0xf]
        %v556 = vld [vmem:[%s1 + $0x2c] sm:$0xf]
        %v557 = vld [vmem:[%s1 + $0x30] sm:$0xf]
        %v558 = vld [vmem:[%s1 + $0x34] sm:$0xf]
        %v559 = vld [vmem:[%s1 + $0x38] sm:$0xf]
        %v560 = vld [vmem:[%s1 + $0x3c] sm:$0xf]
        %v569 = vunpack.c.l.b16 %v553
        %v570 = vunpack.c.l.b16 %v554
        %v571 = vunpack.c.l.b16 %v555
        %v572 = vunpack.c.l.b16 %v556
        %v573 = vunpack.c.l.b16 %v557
        %v574 = vunpack.c.l.b16 %v558
        %v575 = vunpack.c.l.b16 %v559
        %v576 = vunpack.c.l.b16 %v560
        %v577 = vpack.c.b16 %v570, %v569
        %v578 = vpack.c.b16 %v572, %v571
        %v579 = vpack.c.b16 %v574, %v573
        %v580 = vpack.c.b16 %v576, %v575
        %vm585 = vcmask 523264
        %v587 = vsel %vm585, %v526, 0
        %v590 = vsel %vm585, %v527, 0
        %v593 = vsel %vm585, %v528, 0
        %v596 = vsel %vm585, %v529, 0
        %v599 = vsel %vm585, %v530, 0
        %v602 = vsel %vm585, %v531, 0
        %v605 = vsel %vm585, %v532, 0
        %v608 = vsel %vm585, %v533, 0
        %v611 = vsel %vm585, %v534, 0
        %v614 = vsel %vm585, %v535, 0
        %v617 = vsel %vm585, %v536, 0
        %v620 = vsel %vm585, %v537, 0
        %v623 = vsel %vm585, %v538, 0
        %v626 = vsel %vm585, %v539, 0
        %v629 = vsel %vm585, %v540, 0
        %v632 = vsel %vm585, %v541, 0
        %v635 = vsel %vm585, %v542, 0
        %v638 = vsel %vm585, %v543, 0
        %v641 = vsel %vm585, %v544, 0
        %v644 = vsel %vm585, %v545, 0
        %v647 = vsel %vm585, %v546, 0
        %v650 = vsel %vm585, %v547, 0
        %v653 = vsel %vm585, %v548, 0
        %v656 = vsel %vm585, %v549, 0
        %v659 = vsel %vm585, %v550, 0
        %v662 = vsel %vm585, %v551, 0
        %v665 = vsel %vm585, %v552, 0
        %667 = vmatpush.bf16.msra.mxu0 0
        %668 = vmatpush.bf16.msra.mxu0 0
        %669 = vmatpush.bf16.msra.mxu0 0
        %670 = vmatpush.bf16.msra.mxu0 0
        %671 = vmatpush.bf16.msra.mxu0 %v580
        %672 = vmatpush.bf16.msra.mxu0 %v579
        %673 = vmatpush.bf16.msra.mxu0 %v578
        %674 = vmatpush.bf16.msra.mxu0 %v577
        %675 = vmatmul.bf16.gmra.mxu0 %v587
        %v676 = vpop.f32.mrf.mxu0
        %v677 = vadd.f32 0.0, %v676
        %v678 = vpop.f32.mrf.mxu0
        %v679 = vadd.f32 0.0, %v678
        %680 = vmatmul.bf16.gmra.mxu0 %v590
        %v681 = vpop.f32.mrf.mxu0
        %v682 = vadd.f32 0.0, %v681
        %v683 = vpop.f32.mrf.mxu0
        %v684 = vadd.f32 0.0, %v683
        %685 = vmatmul.bf16.gmra.mxu0 %v593
        %v686 = vpop.f32.mrf.mxu0
        %v687 = vadd.f32 0.0, %v686
        %v688 = vpop.f32.mrf.mxu0
        %v689 = vadd.f32 0.0, %v688
        %690 = vmatmul.bf16.gmra.mxu0 %v596
        %v691 = vpop.f32.mrf.mxu0
        %v692 = vadd.f32 0.0, %v691
        %v693 = vpop.f32.mrf.mxu0
        %v694 = vadd.f32 0.0, %v693
        %695 = vmatmul.bf16.gmra.mxu0 %v599
        %v696 = vpop.f32.mrf.mxu0
        %v697 = vadd.f32 0.0, %v696
        %v698 = vpop.f32.mrf.mxu0
        %v699 = vadd.f32 0.0, %v698
        %700 = vmatmul.bf16.gmra.mxu0 %v602
        %v701 = vpop.f32.mrf.mxu0
        %v702 = vadd.f32 0.0, %v701
        %v703 = vpop.f32.mrf.mxu0
        %v704 = vadd.f32 0.0, %v703
        %705 = vmatmul.bf16.gmra.mxu0 %v605
        %v706 = vpop.f32.mrf.mxu0
        %v707 = vadd.f32 0.0, %v706
        %v708 = vpop.f32.mrf.mxu0
        %v709 = vadd.f32 0.0, %v708
        %710 = vmatmul.bf16.gmra.mxu0 %v608
        %v711 = vpop.f32.mrf.mxu0
        %v712 = vadd.f32 0.0, %v711
        %v713 = vpop.f32.mrf.mxu0
        %v714 = vadd.f32 0.0, %v713
        %715 = vmatmul.bf16.gmra.mxu0 %v611
        %v716 = vpop.f32.mrf.mxu0
        %v717 = vadd.f32 0.0, %v716
        %v718 = vpop.f32.mrf.mxu0
        %v719 = vadd.f32 0.0, %v718
        %720 = vmatmul.bf16.gmra.mxu0 %v614
        %v721 = vpop.f32.mrf.mxu0
        %v722 = vadd.f32 0.0, %v721
        %v723 = vpop.f32.mrf.mxu0
        %v724 = vadd.f32 0.0, %v723
        %725 = vmatmul.bf16.gmra.mxu0 %v617
        %v726 = vpop.f32.mrf.mxu0
        %v727 = vadd.f32 0.0, %v726
        %v728 = vpop.f32.mrf.mxu0
        %v729 = vadd.f32 0.0, %v728
        %730 = vmatmul.bf16.gmra.mxu0 %v620
        %v731 = vpop.f32.mrf.mxu0
        %v732 = vadd.f32 0.0, %v731
        %v733 = vpop.f32.mrf.mxu0
        %v734 = vadd.f32 0.0, %v733
        %735 = vmatmul.bf16.gmra.mxu0 %v623
        %v736 = vpop.f32.mrf.mxu0
        %v737 = vadd.f32 0.0, %v736
        %v738 = vpop.f32.mrf.mxu0
        %v739 = vadd.f32 0.0, %v738
        %740 = vmatmul.bf16.gmra.mxu0 %v626
        %v741 = vpop.f32.mrf.mxu0
        %v742 = vadd.f32 0.0, %v741
        %v743 = vpop.f32.mrf.mxu0
        %v744 = vadd.f32 0.0, %v743
        %745 = vmatmul.bf16.gmra.mxu0 %v629
        %v746 = vpop.f32.mrf.mxu0
        %v747 = vadd.f32 0.0, %v746
        %v748 = vpop.f32.mrf.mxu0
        %v749 = vadd.f32 0.0, %v748
        %750 = vmatmul.bf16.gmra.mxu0 %v632
        %v751 = vpop.f32.mrf.mxu0
        %v752 = vadd.f32 0.0, %v751
        %v753 = vpop.f32.mrf.mxu0
        %v754 = vadd.f32 0.0, %v753
        %755 = vmatmul.bf16.gmra.mxu0 %v635
        %v756 = vpop.f32.mrf.mxu0
        %v757 = vadd.f32 0.0, %v756
        %v758 = vpop.f32.mrf.mxu0
        %v759 = vadd.f32 0.0, %v758
        %760 = vmatmul.bf16.gmra.mxu0 %v638
        %v761 = vpop.f32.mrf.mxu0
        %v762 = vadd.f32 0.0, %v761
        %v763 = vpop.f32.mrf.mxu0
        %v764 = vadd.f32 0.0, %v763
        %765 = vmatmul.bf16.gmra.mxu0 %v641
        %v766 = vpop.f32.mrf.mxu0
        %v767 = vadd.f32 0.0, %v766
        %v768 = vpop.f32.mrf.mxu0
        %v769 = vadd.f32 0.0, %v768
        %770 = vmatmul.bf16.gmra.mxu0 %v644
        %v771 = vpop.f32.mrf.mxu0
        %v772 = vadd.f32 0.0, %v771
        %v773 = vpop.f32.mrf.mxu0
        %v774 = vadd.f32 0.0, %v773
        %775 = vmatmul.bf16.gmra.mxu0 %v647
        %v776 = vpop.f32.mrf.mxu0
        %v777 = vadd.f32 0.0, %v776
        %v778 = vpop.f32.mrf.mxu0
        %v779 = vadd.f32 0.0, %v778
        %780 = vmatmul.bf16.gmra.mxu0 %v650
        %v781 = vpop.f32.mrf.mxu0
        %v782 = vadd.f32 0.0, %v781
        %v783 = vpop.f32.mrf.mxu0
        %v784 = vadd.f32 0.0, %v783
        %785 = vmatmul.bf16.gmra.mxu0 %v653
        %v786 = vpop.f32.mrf.mxu0
        %v787 = vadd.f32 0.0, %v786
        %v788 = vpop.f32.mrf.mxu0
        %v789 = vadd.f32 0.0, %v788
        %790 = vmatmul.bf16.gmra.mxu0 %v656
        %v791 = vpop.f32.mrf.mxu0
        %v792 = vadd.f32 0.0, %v791
        %v793 = vpop.f32.mrf.mxu0
        %v794 = vadd.f32 0.0, %v793
        %795 = vmatmul.bf16.gmra.mxu0 %v659
        %v796 = vpop.f32.mrf.mxu0
        %v797 = vadd.f32 0.0, %v796
        %v798 = vpop.f32.mrf.mxu0
        %v799 = vadd.f32 0.0, %v798
        %800 = vmatmul.bf16.gmra.mxu0 %v662
        %v801 = vpop.f32.mrf.mxu0
        %v802 = vadd.f32 0.0, %v801
        %v803 = vpop.f32.mrf.mxu0
        %v804 = vadd.f32 0.0, %v803
        %805 = vmatmul.bf16.gmra.mxu0 %v665
        %v806 = vpop.f32.mrf.mxu0
        %v807 = vadd.f32 0.0, %v806
        %v808 = vpop.f32.mrf.mxu0
        %809 = vdwg.mxu0
        %v818 = vunpack.c.l.b16 %v465
        %v819 = vunpack.c.l.b16 %v466
        %v820 = vunpack.c.l.b16 %v467
        %v821 = vunpack.c.l.b16 %v468
        %v822 = vunpack.c.l.b16 %v469
        %v823 = vunpack.c.l.b16 %v470
        %v824 = vunpack.c.l.b16 %v471
        %v825 = vunpack.c.l.b16 %v472
        %v826 = vpack.c.b16 %v819, %v818
        %v827 = vpack.c.b16 %v821, %v820
        %v828 = vpack.c.b16 %v823, %v822
        %v829 = vpack.c.b16 %v825, %v824
        %v835 = vsel %vm585, %v438, 0
        %v838 = vsel %vm585, %v439, 0
        %v841 = vsel %vm585, %v440, 0
        %v844 = vsel %vm585, %v441, 0
        %v847 = vsel %vm585, %v442, 0
        %v850 = vsel %vm585, %v443, 0
        %v853 = vsel %vm585, %v444, 0
        %v856 = vsel %vm585, %v445, 0
        %v859 = vsel %vm585, %v446, 0
        %v862 = vsel %vm585, %v447, 0
        %v865 = vsel %vm585, %v448, 0
        %v868 = vsel %vm585, %v449, 0
        %v871 = vsel %vm585, %v450, 0
        %v874 = vsel %vm585, %v451, 0
        %v877 = vsel %vm585, %v452, 0
        %v880 = vsel %vm585, %v453, 0
        %v883 = vsel %vm585, %v454, 0
        %v886 = vsel %vm585, %v455, 0
        %v889 = vsel %vm585, %v456, 0
        %v892 = vsel %vm585, %v457, 0
        %v895 = vsel %vm585, %v458, 0
        %v898 = vsel %vm585, %v459, 0
        %v901 = vsel %vm585, %v460, 0
        %v904 = vsel %vm585, %v461, 0
        %v907 = vsel %vm585, %v462, 0
        %v910 = vsel %vm585, %v463, 0
        %v913 = vsel %vm585, %v464, 0
        %915 = vmatpush.bf16.msra.mxu0 0
        %916 = vmatpush.bf16.msra.mxu0 0
        %917 = vmatpush.bf16.msra.mxu0 0
        %918 = vmatpush.bf16.msra.mxu0 0
        %919 = vmatpush.bf16.msra.mxu0 %v829
        %920 = vmatpush.bf16.msra.mxu0 %v828
        %921 = vmatpush.bf16.msra.mxu0 %v827
        %922 = vmatpush.bf16.msra.mxu0 %v826
        %923 = vmatmul.bf16.gmra.mxu0 %v835
        %v924 = vpop.f32.mrf.mxu0
        %v925 = vadd.f32 %v677, %v924
        %v926 = vpop.f32.mrf.mxu0
        %v927 = vadd.f32 %v679, %v926
        %928 = vmatmul.bf16.gmra.mxu0 %v838
        %v929 = vpop.f32.mrf.mxu0
        %v930 = vadd.f32 %v682, %v929
        %v931 = vpop.f32.mrf.mxu0
        %v932 = vadd.f32 %v684, %v931
        %933 = vmatmul.bf16.gmra.mxu0 %v841
        %v934 = vpop.f32.mrf.mxu0
        %v935 = vadd.f32 %v687, %v934
        %v936 = vpop.f32.mrf.mxu0
        %v937 = vadd.f32 %v689, %v936
        %938 = vmatmul.bf16.gmra.mxu0 %v844
        %v939 = vpop.f32.mrf.mxu0
        %v940 = vadd.f32 %v692, %v939
        %v941 = vpop.f32.mrf.mxu0
        %v942 = vadd.f32 %v694, %v941
        %943 = vmatmul.bf16.gmra.mxu0 %v847
        %v944 = vpop.f32.mrf.mxu0
        %v945 = vadd.f32 %v697, %v944
        %v946 = vpop.f32.mrf.mxu0
        %v947 = vadd.f32 %v699, %v946
        %948 = vmatmul.bf16.gmra.mxu0 %v850
        %v949 = vpop.f32.mrf.mxu0
        %v950 = vadd.f32 %v702, %v949
        %v951 = vpop.f32.mrf.mxu0
        %v952 = vadd.f32 %v704, %v951
        %953 = vmatmul.bf16.gmra.mxu0 %v853
        %v954 = vpop.f32.mrf.mxu0
        %v955 = vadd.f32 %v707, %v954
        %v956 = vpop.f32.mrf.mxu0
        %v957 = vadd.f32 %v709, %v956
        %958 = vmatmul.bf16.gmra.mxu0 %v856
        %v959 = vpop.f32.mrf.mxu0
        %v960 = vadd.f32 %v712, %v959
        %v961 = vpop.f32.mrf.mxu0
        %v962 = vadd.f32 %v714, %v961
        %963 = vmatmul.bf16.gmra.mxu0 %v859
        %v964 = vpop.f32.mrf.mxu0
        %v965 = vadd.f32 %v717, %v964
        %v966 = vpop.f32.mrf.mxu0
        %v967 = vadd.f32 %v719, %v966
        %968 = vmatmul.bf16.gmra.mxu0 %v862
        %v969 = vpop.f32.mrf.mxu0
        %v970 = vadd.f32 %v722, %v969
        %v971 = vpop.f32.mrf.mxu0
        %v972 = vadd.f32 %v724, %v971
        %973 = vmatmul.bf16.gmra.mxu0 %v865
        %v974 = vpop.f32.mrf.mxu0
        %v975 = vadd.f32 %v727, %v974
        %v976 = vpop.f32.mrf.mxu0
        %v977 = vadd.f32 %v729, %v976
        %978 = vmatmul.bf16.gmra.mxu0 %v868
        %v979 = vpop.f32.mrf.mxu0
        %v980 = vadd.f32 %v732, %v979
        %v981 = vpop.f32.mrf.mxu0
        %v982 = vadd.f32 %v734, %v981
        %983 = vmatmul.bf16.gmra.mxu0 %v871
        %v984 = vpop.f32.mrf.mxu0
        %v985 = vadd.f32 %v737, %v984
        %v986 = vpop.f32.mrf.mxu0
        %v987 = vadd.f32 %v739, %v986
        %988 = vmatmul.bf16.gmra.mxu0 %v874
        %v989 = vpop.f32.mrf.mxu0
        %v990 = vadd.f32 %v742, %v989
        %v991 = vpop.f32.mrf.mxu0
        %v992 = vadd.f32 %v744, %v991
        %993 = vmatmul.bf16.gmra.mxu0 %v877
        %v994 = vpop.f32.mrf.mxu0
        %v995 = vadd.f32 %v747, %v994
        %v996 = vpop.f32.mrf.mxu0
        %v997 = vadd.f32 %v749, %v996
        %998 = vmatmul.bf16.gmra.mxu0 %v880
        %v999 = vpop.f32.mrf.mxu0
        %v1000 = vadd.f32 %v752, %v999
        %v1001 = vpop.f32.mrf.mxu0
        %v1002 = vadd.f32 %v754, %v1001
        %1003 = vmatmul.bf16.gmra.mxu0 %v883
        %v1004 = vpop.f32.mrf.mxu0
        %v1005 = vadd.f32 %v757, %v1004
        %v1006 = vpop.f32.mrf.mxu0
        %v1007 = vadd.f32 %v759, %v1006
        %1008 = vmatmul.bf16.gmra.mxu0 %v886
        %v1009 = vpop.f32.mrf.mxu0
        %v1010 = vadd.f32 %v762, %v1009
        %v1011 = vpop.f32.mrf.mxu0
        %v1012 = vadd.f32 %v764, %v1011
        %1013 = vmatmul.bf16.gmra.mxu0 %v889
        %v1014 = vpop.f32.mrf.mxu0
        %v1015 = vadd.f32 %v767, %v1014
        %v1016 = vpop.f32.mrf.mxu0
        %v1017 = vadd.f32 %v769, %v1016
        %1018 = vmatmul.bf16.gmra.mxu0 %v892
        %v1019 = vpop.f32.mrf.mxu0
        %v1020 = vadd.f32 %v772, %v1019
        %v1021 = vpop.f32.mrf.mxu0
        %v1022 = vadd.f32 %v774, %v1021
        %1023 = vmatmul.bf16.gmra.mxu0 %v895
        %v1024 = vpop.f32.mrf.mxu0
        %v1025 = vadd.f32 %v777, %v1024
        %v1026 = vpop.f32.mrf.mxu0
        %v1027 = vadd.f32 %v779, %v1026
        %1028 = vmatmul.bf16.gmra.mxu0 %v898
        %v1029 = vpop.f32.mrf.mxu0
        %v1030 = vadd.f32 %v782, %v1029
        %v1031 = vpop.f32.mrf.mxu0
        %v1032 = vadd.f32 %v784, %v1031
        %1033 = vmatmul.bf16.gmra.mxu0 %v901
        %v1034 = vpop.f32.mrf.mxu0
        %v1035 = vadd.f32 %v787, %v1034
        %v1036 = vpop.f32.mrf.mxu0
        %v1037 = vadd.f32 %v789, %v1036
        %1038 = vmatmul.bf16.gmra.mxu0 %v904
        %v1039 = vpop.f32.mrf.mxu0
        %v1040 = vadd.f32 %v792, %v1039
        %v1041 = vpop.f32.mrf.mxu0
        %v1042 = vadd.f32 %v794, %v1041
        %1043 = vmatmul.bf16.gmra.mxu0 %v907
        %v1044 = vpop.f32.mrf.mxu0
        %v1045 = vadd.f32 %v797, %v1044
        %v1046 = vpop.f32.mrf.mxu0
        %v1047 = vadd.f32 %v799, %v1046
        %1048 = vmatmul.bf16.gmra.mxu0 %v910
        %v1049 = vpop.f32.mrf.mxu0
        %v1050 = vadd.f32 %v802, %v1049
        %v1051 = vpop.f32.mrf.mxu0
        %v1052 = vadd.f32 %v804, %v1051
        %1053 = vmatmul.bf16.gmra.mxu0 %v913
        %v1054 = vpop.f32.mrf.mxu0
        %v1055 = vadd.f32 %v807, %v1054
        %v1056 = vpop.f32.mrf.mxu0
        %1057 = vdwg.mxu0
        %v1058 = vld [vmem:[%s383 + $0x15] sm:$0xff]
        %v1059 = vld [vmem:[%s383 + $0x1d] sm:$0xff]
        %v1060 = vld [vmem:[%s383 + $0x25] sm:$0xff]
        %v1061 = vld [vmem:[%s383 + $0x2d] sm:$0xff]
        %v1062 = vld [vmem:[%s383 + $0x35] sm:$0xff]
        %v1063 = vld [vmem:[%s383 + $0x3d] sm:$0xff]
        %v1064 = vld [vmem:[%s383 + $0x45] sm:$0xff]
        %v1065 = vld [vmem:[%s383 + $0x4d] sm:$0xff]
        %v1066 = vld [vmem:[%s383 + $0x55] sm:$0xff]
        %v1067 = vld [vmem:[%s383 + $0x5d] sm:$0xff]
        %v1068 = vld [vmem:[%s383 + $0x65] sm:$0xff]
        %v1069 = vld [vmem:[%s383 + $0x6d] sm:$0xff]
        %v1070 = vld [vmem:[%s383 + $0x75] sm:$0xff]
        %v1071 = vld [vmem:[%s383 + $0x7d] sm:$0xff]
        %v1072 = vld [vmem:[%s383 + $0x85] sm:$0xff]
        %v1073 = vld [vmem:[%s383 + $0x8d] sm:$0xff]
        %v1074 = vld [vmem:[%s383 + $0x95] sm:$0xff]
        %v1075 = vld [vmem:[%s383 + $0x9d] sm:$0xff]
        %v1076 = vld [vmem:[%s383 + $0xa5] sm:$0xff]
        %v1077 = vld [vmem:[%s383 + $0xad] sm:$0xff]
        %v1078 = vld [vmem:[%s383 + $0xb5] sm:$0xff]
        %v1079 = vld [vmem:[%s383 + $0xbd] sm:$0xff]
        %v1080 = vld [vmem:[%s383 + $0xc5] sm:$0xff]
        %v1081 = vld [vmem:[%s383 + $0xcd] sm:$0xff]
        %v1082 = vld [vmem:[%s383 + $0xd5] sm:$0xff]
        %v1083 = vld [vmem:[%s383 + $0xdd] sm:$0xff]
        %v1084 = vld [vmem:[%s383 + $0xe5] sm:$0xff]
        %v1085 = vld [vmem:[%s383 + $0xed] sm:$0xff]
        %v1086 = vld [vmem:[%s383 + $0xf5] sm:$0xff]
        %v1087 = vld [vmem:[%s383 + $0xfd] sm:$0xff]
        %v1088 = vld [vmem:[%s383 + $0x105] sm:$0xff]
        %v1089 = vld [vmem:[%s383 + $0x10d] sm:$0xff]
        %v1090 = vld [vmem:[%s383 + $0x115] sm:$0xff]
        %v1091 = vld [vmem:[%s383 + $0x11d] sm:$0xff]
        %v1092 = vld [vmem:[%s383 + $0x125] sm:$0xff]
        %v1093 = vld [vmem:[%s383 + $0x12d] sm:$0xff]
        %v1094 = vld [vmem:[%s383 + $0x135] sm:$0xff]
        %v1095 = vld [vmem:[%s383 + $0x13d] sm:$0xff]
        %v1096 = vld [vmem:[%s383 + $0x145] sm:$0xff]
        %v1097 = vld [vmem:[%s383 + $0x14d] sm:$0xff]
        %v1098 = vld [vmem:[%s383 + $0x155] sm:$0xff]
        %v1099 = vld [vmem:[%s383 + $0x15d] sm:$0xff]
        %v1100 = vld [vmem:[%s383 + $0x165] sm:$0xff]
        %v1101 = vld [vmem:[%s383 + $0x16d] sm:$0xff]
        %v1102 = vld [vmem:[%s383 + $0x175] sm:$0xff]
        %v1103 = vld [vmem:[%s383 + $0x17d] sm:$0xff]
        %v1104 = vld [vmem:[%s383 + $0x185] sm:$0xff]
        %v1105 = vld [vmem:[%s383 + $0x18d] sm:$0xff]
        %v1106 = vld [vmem:[%s383 + $0x195] sm:$0xff]
        %v1107 = vld [vmem:[%s383 + $0x19d] sm:$0xff]
        %v1108 = vld [vmem:[%s383 + $0x1a5] sm:$0xff]
        %v1109 = vld [vmem:[%s383 + $0x1ad] sm:$0xff]
        %v1110 = vld [vmem:[%s383 + $0x1b5] sm:$0x7]
        %v1111 = vpack.c.bf16 %v1059, %v1058
        %v1112 = vpack.c.bf16 %v1061, %v1060
        %v1113 = vpack.c.bf16 %v1063, %v1062
        %v1114 = vpack.c.bf16 %v1065, %v1064
        %v1115 = vpack.c.bf16 %v1067, %v1066
        %v1116 = vpack.c.bf16 %v1069, %v1068
        %v1117 = vpack.c.bf16 %v1071, %v1070
        %v1118 = vpack.c.bf16 %v1073, %v1072
        %v1119 = vpack.c.bf16 %v1075, %v1074
        %v1120 = vpack.c.bf16 %v1077, %v1076
        %v1121 = vpack.c.bf16 %v1079, %v1078
        %v1122 = vpack.c.bf16 %v1081, %v1080
        %v1123 = vpack.c.bf16 %v1083, %v1082
        %v1124 = vpack.c.bf16 %v1085, %v1084
        %v1125 = vpack.c.bf16 %v1087, %v1086
        %v1126 = vpack.c.bf16 %v1089, %v1088
        %v1127 = vpack.c.bf16 %v1091, %v1090
        %v1128 = vpack.c.bf16 %v1093, %v1092
        %v1129 = vpack.c.bf16 %v1095, %v1094
        %v1130 = vpack.c.bf16 %v1097, %v1096
        %v1131 = vpack.c.bf16 %v1099, %v1098
        %v1132 = vpack.c.bf16 %v1101, %v1100
        %v1133 = vpack.c.bf16 %v1103, %v1102
        %v1134 = vpack.c.bf16 %v1105, %v1104
        %v1135 = vpack.c.bf16 %v1107, %v1106
        %v1136 = vpack.c.bf16 %v1109, %v1108
        %v1137 = vpack.c.bf16 %v1110, %v1110
        %v1138 = vld [vmem:[%s1 + $0x40] sm:$0xf]
        %v1139 = vld [vmem:[%s1 + $0x44] sm:$0xf]
        %v1140 = vld [vmem:[%s1 + $0x48] sm:$0xf]
        %v1141 = vld [vmem:[%s1 + $0x4c] sm:$0xf]
        %v1142 = vld [vmem:[%s1 + $0x50] sm:$0xf]
        %v1143 = vld [vmem:[%s1 + $0x54] sm:$0xf]
        %v1144 = vld [vmem:[%s1 + $0x58] sm:$0xf]
        %v1145 = vld [vmem:[%s1 + $0x5c] sm:$0xf]
        %v1154 = vunpack.c.l.b16 %v1138
        %v1155 = vunpack.c.l.b16 %v1139
        %v1156 = vunpack.c.l.b16 %v1140
        %v1157 = vunpack.c.l.b16 %v1141
        %v1158 = vunpack.c.l.b16 %v1142
        %v1159 = vunpack.c.l.b16 %v1143
        %v1160 = vunpack.c.l.b16 %v1144
        %v1161 = vunpack.c.l.b16 %v1145
        %v1162 = vpack.c.b16 %v1155, %v1154
        %v1163 = vpack.c.b16 %v1157, %v1156
        %v1164 = vpack.c.b16 %v1159, %v1158
        %v1165 = vpack.c.b16 %v1161, %v1160
        %v1171 = vsel %vm585, %v1111, 0
        %v1174 = vsel %vm585, %v1112, 0
        %v1177 = vsel %vm585, %v1113, 0
        %v1180 = vsel %vm585, %v1114, 0
        %v1183 = vsel %vm585, %v1115, 0
        %v1186 = vsel %vm585, %v1116, 0
        %v1189 = vsel %vm585, %v1117, 0
        %v1192 = vsel %vm585, %v1118, 0
        %v1195 = vsel %vm585, %v1119, 0
        %v1198 = vsel %vm585, %v1120, 0
        %v1201 = vsel %vm585, %v1121, 0
        %v1204 = vsel %vm585, %v1122, 0
        %v1207 = vsel %vm585, %v1123, 0
        %v1210 = vsel %vm585, %v1124, 0
        %v1213 = vsel %vm585, %v1125, 0
        %v1216 = vsel %vm585, %v1126, 0
        %v1219 = vsel %vm585, %v1127, 0
        %v1222 = vsel %vm585, %v1128, 0
        %v1225 = vsel %vm585, %v1129, 0
        %v1228 = vsel %vm585, %v1130, 0
        %v1231 = vsel %vm585, %v1131, 0
        %v1234 = vsel %vm585, %v1132, 0
        %v1237 = vsel %vm585, %v1133, 0
        %v1240 = vsel %vm585, %v1134, 0
        %v1243 = vsel %vm585, %v1135, 0
        %v1246 = vsel %vm585, %v1136, 0
        %v1249 = vsel %vm585, %v1137, 0
        %1251 = vmatpush.bf16.msra.mxu0 0
        %1252 = vmatpush.bf16.msra.mxu0 0
        %1253 = vmatpush.bf16.msra.mxu0 0
        %1254 = vmatpush.bf16.msra.mxu0 0
        %1255 = vmatpush.bf16.msra.mxu0 %v1165
        %1256 = vmatpush.bf16.msra.mxu0 %v1164
        %1257 = vmatpush.bf16.msra.mxu0 %v1163
        %1258 = vmatpush.bf16.msra.mxu0 %v1162
        %1259 = vmatmul.bf16.gmra.mxu0 %v1171
        %v1260 = vpop.f32.mrf.mxu0
        %v1261 = vadd.f32 0.0, %v1260
        %v1262 = vpop.f32.mrf.mxu0
        %v1263 = vadd.f32 0.0, %v1262
        %1264 = vmatmul.bf16.gmra.mxu0 %v1174
        %v1265 = vpop.f32.mrf.mxu0
        %v1266 = vadd.f32 0.0, %v1265
        %v1267 = vpop.f32.mrf.mxu0
        %v1268 = vadd.f32 0.0, %v1267
        %1269 = vmatmul.bf16.gmra.mxu0 %v1177
        %v1270 = vpop.f32.mrf.mxu0
        %v1271 = vadd.f32 0.0, %v1270
        %v1272 = vpop.f32.mrf.mxu0
        %v1273 = vadd.f32 0.0, %v1272
        %1274 = vmatmul.bf16.gmra.mxu0 %v1180
        %v1275 = vpop.f32.mrf.mxu0
        %v1276 = vadd.f32 0.0, %v1275
        %v1277 = vpop.f32.mrf.mxu0
        %v1278 = vadd.f32 0.0, %v1277
        %1279 = vmatmul.bf16.gmra.mxu0 %v1183
        %v1280 = vpop.f32.mrf.mxu0
        %v1281 = vadd.f32 0.0, %v1280
        %v1282 = vpop.f32.mrf.mxu0
        %v1283 = vadd.f32 0.0, %v1282
        %1284 = vmatmul.bf16.gmra.mxu0 %v1186
        %v1285 = vpop.f32.mrf.mxu0
        %v1286 = vadd.f32 0.0, %v1285
        %v1287 = vpop.f32.mrf.mxu0
        %v1288 = vadd.f32 0.0, %v1287
        %1289 = vmatmul.bf16.gmra.mxu0 %v1189
        %v1290 = vpop.f32.mrf.mxu0
        %v1291 = vadd.f32 0.0, %v1290
        %v1292 = vpop.f32.mrf.mxu0
        %v1293 = vadd.f32 0.0, %v1292
        %1294 = vmatmul.bf16.gmra.mxu0 %v1192
        %v1295 = vpop.f32.mrf.mxu0
        %v1296 = vadd.f32 0.0, %v1295
        %v1297 = vpop.f32.mrf.mxu0
        %v1298 = vadd.f32 0.0, %v1297
        %1299 = vmatmul.bf16.gmra.mxu0 %v1195
        %v1300 = vpop.f32.mrf.mxu0
        %v1301 = vadd.f32 0.0, %v1300
        %v1302 = vpop.f32.mrf.mxu0
        %v1303 = vadd.f32 0.0, %v1302
        %1304 = vmatmul.bf16.gmra.mxu0 %v1198
        %v1305 = vpop.f32.mrf.mxu0
        %v1306 = vadd.f32 0.0, %v1305
        %v1307 = vpop.f32.mrf.mxu0
        %v1308 = vadd.f32 0.0, %v1307
        %1309 = vmatmul.bf16.gmra.mxu0 %v1201
        %v1310 = vpop.f32.mrf.mxu0
        %v1311 = vadd.f32 0.0, %v1310
        %v1312 = vpop.f32.mrf.mxu0
        %v1313 = vadd.f32 0.0, %v1312
        %1314 = vmatmul.bf16.gmra.mxu0 %v1204
        %v1315 = vpop.f32.mrf.mxu0
        %v1316 = vadd.f32 0.0, %v1315
        %v1317 = vpop.f32.mrf.mxu0
        %v1318 = vadd.f32 0.0, %v1317
        %1319 = vmatmul.bf16.gmra.mxu0 %v1207
        %v1320 = vpop.f32.mrf.mxu0
        %v1321 = vadd.f32 0.0, %v1320
        %v1322 = vpop.f32.mrf.mxu0
        %v1323 = vadd.f32 0.0, %v1322
        %1324 = vmatmul.bf16.gmra.mxu0 %v1210
        %v1325 = vpop.f32.mrf.mxu0
        %v1326 = vadd.f32 0.0, %v1325
        %v1327 = vpop.f32.mrf.mxu0
        %v1328 = vadd.f32 0.0, %v1327
        %1329 = vmatmul.bf16.gmra.mxu0 %v1213
        %v1330 = vpop.f32.mrf.mxu0
        %v1331 = vadd.f32 0.0, %v1330
        %v1332 = vpop.f32.mrf.mxu0
        %v1333 = vadd.f32 0.0, %v1332
        %1334 = vmatmul.bf16.gmra.mxu0 %v1216
        %v1335 = vpop.f32.mrf.mxu0
        %v1336 = vadd.f32 0.0, %v1335
        %v1337 = vpop.f32.mrf.mxu0
        %v1338 = vadd.f32 0.0, %v1337
        %1339 = vmatmul.bf16.gmra.mxu0 %v1219
        %v1340 = vpop.f32.mrf.mxu0
        %v1341 = vadd.f32 0.0, %v1340
        %v1342 = vpop.f32.mrf.mxu0
        %v1343 = vadd.f32 0.0, %v1342
        %1344 = vmatmul.bf16.gmra.mxu0 %v1222
        %v1345 = vpop.f32.mrf.mxu0
        %v1346 = vadd.f32 0.0, %v1345
        %v1347 = vpop.f32.mrf.mxu0
        %v1348 = vadd.f32 0.0, %v1347
        %1349 = vmatmul.bf16.gmra.mxu0 %v1225
        %v1350 = vpop.f32.mrf.mxu0
        %v1351 = vadd.f32 0.0, %v1350
        %v1352 = vpop.f32.mrf.mxu0
        %v1353 = vadd.f32 0.0, %v1352
        %1354 = vmatmul.bf16.gmra.mxu0 %v1228
        %v1355 = vpop.f32.mrf.mxu0
        %v1356 = vadd.f32 0.0, %v1355
        %v1357 = vpop.f32.mrf.mxu0
        %v1358 = vadd.f32 0.0, %v1357
        %1359 = vmatmul.bf16.gmra.mxu0 %v1231
        %v1360 = vpop.f32.mrf.mxu0
        %v1361 = vadd.f32 0.0, %v1360
        %v1362 = vpop.f32.mrf.mxu0
        %v1363 = vadd.f32 0.0, %v1362
        %1364 = vmatmul.bf16.gmra.mxu0 %v1234
        %v1365 = vpop.f32.mrf.mxu0
        %v1366 = vadd.f32 0.0, %v1365
        %v1367 = vpop.f32.mrf.mxu0
        %v1368 = vadd.f32 0.0, %v1367
        %1369 = vmatmul.bf16.gmra.mxu0 %v1237
        %v1370 = vpop.f32.mrf.mxu0
        %v1371 = vadd.f32 0.0, %v1370
        %v1372 = vpop.f32.mrf.mxu0
        %v1373 = vadd.f32 0.0, %v1372
        %1374 = vmatmul.bf16.gmra.mxu0 %v1240
        %v1375 = vpop.f32.mrf.mxu0
        %v1376 = vadd.f32 0.0, %v1375
        %v1377 = vpop.f32.mrf.mxu0
        %v1378 = vadd.f32 0.0, %v1377
        %1379 = vmatmul.bf16.gmra.mxu0 %v1243
        %v1380 = vpop.f32.mrf.mxu0
        %v1381 = vadd.f32 0.0, %v1380
        %v1382 = vpop.f32.mrf.mxu0
        %v1383 = vadd.f32 0.0, %v1382
        %1384 = vmatmul.bf16.gmra.mxu0 %v1246
        %v1385 = vpop.f32.mrf.mxu0
        %v1386 = vadd.f32 0.0, %v1385
        %v1387 = vpop.f32.mrf.mxu0
        %v1388 = vadd.f32 0.0, %v1387
        %1389 = vmatmul.bf16.gmra.mxu0 %v1249
        %v1390 = vpop.f32.mrf.mxu0
        %v1391 = vadd.f32 0.0, %v1390
        %v1392 = vpop.f32.mrf.mxu0
        %1393 = vdwg.mxu0
        %v1394 = vadd.f32 %v925, %v1261
        %v1395 = vadd.f32 %v927, %v1263
        %v1396 = vadd.f32 %v930, %v1266
        %v1397 = vadd.f32 %v932, %v1268
        %v1398 = vadd.f32 %v935, %v1271
        %v1399 = vadd.f32 %v937, %v1273
        %v1400 = vadd.f32 %v940, %v1276
        %v1401 = vadd.f32 %v942, %v1278
        %v1402 = vadd.f32 %v945, %v1281
        %v1403 = vadd.f32 %v947, %v1283
        %v1404 = vadd.f32 %v950, %v1286
        %v1405 = vadd.f32 %v952, %v1288
        %v1406 = vadd.f32 %v955, %v1291
        %v1407 = vadd.f32 %v957, %v1293
        %v1408 = vadd.f32 %v960, %v1296
        %v1409 = vadd.f32 %v962, %v1298
        %v1410 = vadd.f32 %v965, %v1301
        %v1411 = vadd.f32 %v967, %v1303
        %v1412 = vadd.f32 %v970, %v1306
        %v1413 = vadd.f32 %v972, %v1308
        %v1414 = vadd.f32 %v975, %v1311
        %v1415 = vadd.f32 %v977, %v1313
        %v1416 = vadd.f32 %v980, %v1316
        %v1417 = vadd.f32 %v982, %v1318
        %v1418 = vadd.f32 %v985, %v1321
        %v1419 = vadd.f32 %v987, %v1323
        %v1420 = vadd.f32 %v990, %v1326
        %v1421 = vadd.f32 %v992, %v1328
        %v1422 = vadd.f32 %v995, %v1331
        %v1423 = vadd.f32 %v997, %v1333
        %v1424 = vadd.f32 %v1000, %v1336
        %v1425 = vadd.f32 %v1002, %v1338
        %v1426 = vadd.f32 %v1005, %v1341
        %v1427 = vadd.f32 %v1007, %v1343
        %v1428 = vadd.f32 %v1010, %v1346
        %v1429 = vadd.f32 %v1012, %v1348
        %v1430 = vadd.f32 %v1015, %v1351
        %v1431 = vadd.f32 %v1017, %v1353
        %v1432 = vadd.f32 %v1020, %v1356
        %v1433 = vadd.f32 %v1022, %v1358
        %v1434 = vadd.f32 %v1025, %v1361
        %v1435 = vadd.f32 %v1027, %v1363
        %v1436 = vadd.f32 %v1030, %v1366
        %v1437 = vadd.f32 %v1032, %v1368
        %v1438 = vadd.f32 %v1035, %v1371
        %v1439 = vadd.f32 %v1037, %v1373
        %v1440 = vadd.f32 %v1040, %v1376
        %v1441 = vadd.f32 %v1042, %v1378
        %v1442 = vadd.f32 %v1045, %v1381
        %v1443 = vadd.f32 %v1047, %v1383
        %v1444 = vadd.f32 %v1050, %v1386
        %v1445 = vadd.f32 %v1052, %v1388
        %v1446 = vadd.f32 %v1055, %v1391
        %v1447 = vld [vmem:[%s383 + $0x16] sm:$0xff]
        %v1448 = vld [vmem:[%s383 + $0x1e] sm:$0xff]
        %v1449 = vld [vmem:[%s383 + $0x26] sm:$0xff]
        %v1450 = vld [vmem:[%s383 + $0x2e] sm:$0xff]
        %v1451 = vld [vmem:[%s383 + $0x36] sm:$0xff]
        %v1452 = vld [vmem:[%s383 + $0x3e] sm:$0xff]
        %v1453 = vld [vmem:[%s383 + $0x46] sm:$0xff]
        %v1454 = vld [vmem:[%s383 + $0x4e] sm:$0xff]
        %v1455 = vld [vmem:[%s383 + $0x56] sm:$0xff]
        %v1456 = vld [vmem:[%s383 + $0x5e] sm:$0xff]
        %v1457 = vld [vmem:[%s383 + $0x66] sm:$0xff]
        %v1458 = vld [vmem:[%s383 + $0x6e] sm:$0xff]
        %v1459 = vld [vmem:[%s383 + $0x76] sm:$0xff]
        %v1460 = vld [vmem:[%s383 + $0x7e] sm:$0xff]
        %v1461 = vld [vmem:[%s383 + $0x86] sm:$0xff]
        %v1462 = vld [vmem:[%s383 + $0x8e] sm:$0xff]
        %v1463 = vld [vmem:[%s383 + $0x96] sm:$0xff]
        %v1464 = vld [vmem:[%s383 + $0x9e] sm:$0xff]
        %v1465 = vld [vmem:[%s383 + $0xa6] sm:$0xff]
        %v1466 = vld [vmem:[%s383 + $0xae] sm:$0xff]
        %v1467 = vld [vmem:[%s383 + $0xb6] sm:$0xff]
        %v1468 = vld [vmem:[%s383 + $0xbe] sm:$0xff]
        %v1469 = vld [vmem:[%s383 + $0xc6] sm:$0xff]
        %v1470 = vld [vmem:[%s383 + $0xce] sm:$0xff]
        %v1471 = vld [vmem:[%s383 + $0xd6] sm:$0xff]
        %v1472 = vld [vmem:[%s383 + $0xde] sm:$0xff]
        %v1473 = vld [vmem:[%s383 + $0xe6] sm:$0xff]
        %v1474 = vld [vmem:[%s383 + $0xee] sm:$0xff]
        %v1475 = vld [vmem:[%s383 + $0xf6] sm:$0xff]
        %v1476 = vld [vmem:[%s383 + $0xfe] sm:$0xff]
        %v1477 = vld [vmem:[%s383 + $0x106] sm:$0xff]
        %v1478 = vld [vmem:[%s383 + $0x10e] sm:$0xff]
        %v1479 = vld [vmem:[%s383 + $0x116] sm:$0xff]
        %v1480 = vld [vmem:[%s383 + $0x11e] sm:$0xff]
        %v1481 = vld [vmem:[%s383 + $0x126] sm:$0xff]
        %v1482 = vld [vmem:[%s383 + $0x12e] sm:$0xff]
        %v1483 = vld [vmem:[%s383 + $0x136] sm:$0xff]
        %v1484 = vld [vmem:[%s383 + $0x13e] sm:$0xff]
        %v1485 = vld [vmem:[%s383 + $0x146] sm:$0xff]
        %v1486 = vld [vmem:[%s383 + $0x14e] sm:$0xff]
        %v1487 = vld [vmem:[%s383 + $0x156] sm:$0xff]
        %v1488 = vld [vmem:[%s383 + $0x15e] sm:$0xff]
        %v1489 = vld [vmem:[%s383 + $0x166] sm:$0xff]
        %v1490 = vld [vmem:[%s383 + $0x16e] sm:$0xff]
        %v1491 = vld [vmem:[%s383 + $0x176] sm:$0xff]
        %v1492 = vld [vmem:[%s383 + $0x17e] sm:$0xff]
        %v1493 = vld [vmem:[%s383 + $0x186] sm:$0xff]
        %v1494 = vld [vmem:[%s383 + $0x18e] sm:$0xff]
        %v1495 = vld [vmem:[%s383 + $0x196] sm:$0xff]
        %v1496 = vld [vmem:[%s383 + $0x19e] sm:$0xff]
        %v1497 = vld [vmem:[%s383 + $0x1a6] sm:$0xff]
        %v1498 = vld [vmem:[%s383 + $0x1ae] sm:$0xff]
        %v1499 = vld [vmem:[%s383 + $0x1b6] sm:$0x7]
        %v1500 = vpack.c.bf16 %v1448, %v1447
        %v1501 = vpack.c.bf16 %v1450, %v1449
        %v1502 = vpack.c.bf16 %v1452, %v1451
        %v1503 = vpack.c.bf16 %v1454, %v1453
        %v1504 = vpack.c.bf16 %v1456, %v1455
        %v1505 = vpack.c.bf16 %v1458, %v1457
        %v1506 = vpack.c.bf16 %v1460, %v1459
        %v1507 = vpack.c.bf16 %v1462, %v1461
        %v1508 = vpack.c.bf16 %v1464, %v1463
        %v1509 = vpack.c.bf16 %v1466, %v1465
        %v1510 = vpack.c.bf16 %v1468, %v1467
        %v1511 = vpack.c.bf16 %v1470, %v1469
        %v1512 = vpack.c.bf16 %v1472, %v1471
        %v1513 = vpack.c.bf16 %v1474, %v1473
        %v1514 = vpack.c.bf16 %v1476, %v1475
        %v1515 = vpack.c.bf16 %v1478, %v1477
        %v1516 = vpack.c.bf16 %v1480, %v1479
        %v1517 = vpack.c.bf16 %v1482, %v1481
        %v1518 = vpack.c.bf16 %v1484, %v1483
        %v1519 = vpack.c.bf16 %v1486, %v1485
        %v1520 = vpack.c.bf16 %v1488, %v1487
        %v1521 = vpack.c.bf16 %v1490, %v1489
        %v1522 = vpack.c.bf16 %v1492, %v1491
        %v1523 = vpack.c.bf16 %v1494, %v1493
        %v1524 = vpack.c.bf16 %v1496, %v1495
        %v1525 = vpack.c.bf16 %v1498, %v1497
        %v1526 = vpack.c.bf16 %v1499, %v1499
        %v1527 = vld [vmem:[%s1 + $0x60] sm:$0xf]
        %v1528 = vld [vmem:[%s1 + $0x64] sm:$0xf]
        %v1529 = vld [vmem:[%s1 + $0x68] sm:$0xf]
        %v1530 = vld [vmem:[%s1 + $0x6c] sm:$0xf]
        %v1531 = vld [vmem:[%s1 + $0x70] sm:$0xf]
        %v1532 = vld [vmem:[%s1 + $0x74] sm:$0xf]
        %v1533 = vld [vmem:[%s1 + $0x78] sm:$0xf]
        %v1534 = vld [vmem:[%s1 + $0x7c] sm:$0xf]
        %v1543 = vunpack.c.l.b16 %v1527
        %v1544 = vunpack.c.l.b16 %v1528
        %v1545 = vunpack.c.l.b16 %v1529
        %v1546 = vunpack.c.l.b16 %v1530
        %v1547 = vunpack.c.l.b16 %v1531
        %v1548 = vunpack.c.l.b16 %v1532
        %v1549 = vunpack.c.l.b16 %v1533
        %v1550 = vunpack.c.l.b16 %v1534
        %v1551 = vpack.c.b16 %v1544, %v1543
        %v1552 = vpack.c.b16 %v1546, %v1545
        %v1553 = vpack.c.b16 %v1548, %v1547
        %v1554 = vpack.c.b16 %v1550, %v1549
        %v1560 = vsel %vm585, %v1500, 0
        %v1563 = vsel %vm585, %v1501, 0
        %v1566 = vsel %vm585, %v1502, 0
        %v1569 = vsel %vm585, %v1503, 0
        %v1572 = vsel %vm585, %v1504, 0
        %v1575 = vsel %vm585, %v1505, 0
        %v1578 = vsel %vm585, %v1506, 0
        %v1581 = vsel %vm585, %v1507, 0
        %v1584 = vsel %vm585, %v1508, 0
        %v1587 = vsel %vm585, %v1509, 0
        %v1590 = vsel %vm585, %v1510, 0
        %v1593 = vsel %vm585, %v1511, 0
        %v1596 = vsel %vm585, %v1512, 0
        %v1599 = vsel %vm585, %v1513, 0
        %v1602 = vsel %vm585, %v1514, 0
        %v1605 = vsel %vm585, %v1515, 0
        %v1608 = vsel %vm585, %v1516, 0
        %v1611 = vsel %vm585, %v1517, 0
        %v1614 = vsel %vm585, %v1518, 0
        %v1617 = vsel %vm585, %v1519, 0
        %v1620 = vsel %vm585, %v1520, 0
        %v1623 = vsel %vm585, %v1521, 0
        %v1626 = vsel %vm585, %v1522, 0
        %v1629 = vsel %vm585, %v1523, 0
        %v1632 = vsel %vm585, %v1524, 0
        %v1635 = vsel %vm585, %v1525, 0
        %v1638 = vsel %vm585, %v1526, 0
        %1640 = vmatpush.bf16.msra.mxu0 0
        %1641 = vmatpush.bf16.msra.mxu0 0
        %1642 = vmatpush.bf16.msra.mxu0 0
        %1643 = vmatpush.bf16.msra.mxu0 0
        %1644 = vmatpush.bf16.msra.mxu0 %v1554
        %1645 = vmatpush.bf16.msra.mxu0 %v1553
        %1646 = vmatpush.bf16.msra.mxu0 %v1552
        %1647 = vmatpush.bf16.msra.mxu0 %v1551
        %1648 = vmatmul.bf16.gmra.mxu0 %v1560
        %v1649 = vpop.f32.mrf.mxu0
        %v1650 = vadd.f32 0.0, %v1649
        %v1651 = vpop.f32.mrf.mxu0
        %v1652 = vadd.f32 0.0, %v1651
        %1653 = vmatmul.bf16.gmra.mxu0 %v1563
        %v1654 = vpop.f32.mrf.mxu0
        %v1655 = vadd.f32 0.0, %v1654
        %v1656 = vpop.f32.mrf.mxu0
        %v1657 = vadd.f32 0.0, %v1656
        %1658 = vmatmul.bf16.gmra.mxu0 %v1566
        %v1659 = vpop.f32.mrf.mxu0
        %v1660 = vadd.f32 0.0, %v1659
        %v1661 = vpop.f32.mrf.mxu0
        %v1662 = vadd.f32 0.0, %v1661
        %1663 = vmatmul.bf16.gmra.mxu0 %v1569
        %v1664 = vpop.f32.mrf.mxu0
        %v1665 = vadd.f32 0.0, %v1664
        %v1666 = vpop.f32.mrf.mxu0
        %v1667 = vadd.f32 0.0, %v1666
        %1668 = vmatmul.bf16.gmra.mxu0 %v1572
        %v1669 = vpop.f32.mrf.mxu0
        %v1670 = vadd.f32 0.0, %v1669
        %v1671 = vpop.f32.mrf.mxu0
        %v1672 = vadd.f32 0.0, %v1671
        %1673 = vmatmul.bf16.gmra.mxu0 %v1575
        %v1674 = vpop.f32.mrf.mxu0
        %v1675 = vadd.f32 0.0, %v1674
        %v1676 = vpop.f32.mrf.mxu0
        %v1677 = vadd.f32 0.0, %v1676
        %1678 = vmatmul.bf16.gmra.mxu0 %v1578
        %v1679 = vpop.f32.mrf.mxu0
        %v1680 = vadd.f32 0.0, %v1679
        %v1681 = vpop.f32.mrf.mxu0
        %v1682 = vadd.f32 0.0, %v1681
        %1683 = vmatmul.bf16.gmra.mxu0 %v1581
        %v1684 = vpop.f32.mrf.mxu0
        %v1685 = vadd.f32 0.0, %v1684
        %v1686 = vpop.f32.mrf.mxu0
        %v1687 = vadd.f32 0.0, %v1686
        %1688 = vmatmul.bf16.gmra.mxu0 %v1584
        %v1689 = vpop.f32.mrf.mxu0
        %v1690 = vadd.f32 0.0, %v1689
        %v1691 = vpop.f32.mrf.mxu0
        %v1692 = vadd.f32 0.0, %v1691
        %1693 = vmatmul.bf16.gmra.mxu0 %v1587
        %v1694 = vpop.f32.mrf.mxu0
        %v1695 = vadd.f32 0.0, %v1694
        %v1696 = vpop.f32.mrf.mxu0
        %v1697 = vadd.f32 0.0, %v1696
        %1698 = vmatmul.bf16.gmra.mxu0 %v1590
        %v1699 = vpop.f32.mrf.mxu0
        %v1700 = vadd.f32 0.0, %v1699
        %v1701 = vpop.f32.mrf.mxu0
        %v1702 = vadd.f32 0.0, %v1701
        %1703 = vmatmul.bf16.gmra.mxu0 %v1593
        %v1704 = vpop.f32.mrf.mxu0
        %v1705 = vadd.f32 0.0, %v1704
        %v1706 = vpop.f32.mrf.mxu0
        %v1707 = vadd.f32 0.0, %v1706
        %1708 = vmatmul.bf16.gmra.mxu0 %v1596
        %v1709 = vpop.f32.mrf.mxu0
        %v1710 = vadd.f32 0.0, %v1709
        %v1711 = vpop.f32.mrf.mxu0
        %v1712 = vadd.f32 0.0, %v1711
        %1713 = vmatmul.bf16.gmra.mxu0 %v1599
        %v1714 = vpop.f32.mrf.mxu0
        %v1715 = vadd.f32 0.0, %v1714
        %v1716 = vpop.f32.mrf.mxu0
        %v1717 = vadd.f32 0.0, %v1716
        %1718 = vmatmul.bf16.gmra.mxu0 %v1602
        %v1719 = vpop.f32.mrf.mxu0
        %v1720 = vadd.f32 0.0, %v1719
        %v1721 = vpop.f32.mrf.mxu0
        %v1722 = vadd.f32 0.0, %v1721
        %1723 = vmatmul.bf16.gmra.mxu0 %v1605
        %v1724 = vpop.f32.mrf.mxu0
        %v1725 = vadd.f32 0.0, %v1724
        %v1726 = vpop.f32.mrf.mxu0
        %v1727 = vadd.f32 0.0, %v1726
        %1728 = vmatmul.bf16.gmra.mxu0 %v1608
        %v1729 = vpop.f32.mrf.mxu0
        %v1730 = vadd.f32 0.0, %v1729
        %v1731 = vpop.f32.mrf.mxu0
        %v1732 = vadd.f32 0.0, %v1731
        %1733 = vmatmul.bf16.gmra.mxu0 %v1611
        %v1734 = vpop.f32.mrf.mxu0
        %v1735 = vadd.f32 0.0, %v1734
        %v1736 = vpop.f32.mrf.mxu0
        %v1737 = vadd.f32 0.0, %v1736
        %1738 = vmatmul.bf16.gmra.mxu0 %v1614
        %v1739 = vpop.f32.mrf.mxu0
        %v1740 = vadd.f32 0.0, %v1739
        %v1741 = vpop.f32.mrf.mxu0
        %v1742 = vadd.f32 0.0, %v1741
        %1743 = vmatmul.bf16.gmra.mxu0 %v1617
        %v1744 = vpop.f32.mrf.mxu0
        %v1745 = vadd.f32 0.0, %v1744
        %v1746 = vpop.f32.mrf.mxu0
        %v1747 = vadd.f32 0.0, %v1746
        %1748 = vmatmul.bf16.gmra.mxu0 %v1620
        %v1749 = vpop.f32.mrf.mxu0
        %v1750 = vadd.f32 0.0, %v1749
        %v1751 = vpop.f32.mrf.mxu0
        %v1752 = vadd.f32 0.0, %v1751
        %1753 = vmatmul.bf16.gmra.mxu0 %v1623
        %v1754 = vpop.f32.mrf.mxu0
        %v1755 = vadd.f32 0.0, %v1754
        %v1756 = vpop.f32.mrf.mxu0
        %v1757 = vadd.f32 0.0, %v1756
        %1758 = vmatmul.bf16.gmra.mxu0 %v1626
        %v1759 = vpop.f32.mrf.mxu0
        %v1760 = vadd.f32 0.0, %v1759
        %v1761 = vpop.f32.mrf.mxu0
        %v1762 = vadd.f32 0.0, %v1761
        %1763 = vmatmul.bf16.gmra.mxu0 %v1629
        %v1764 = vpop.f32.mrf.mxu0
        %v1765 = vadd.f32 0.0, %v1764
        %v1766 = vpop.f32.mrf.mxu0
        %v1767 = vadd.f32 0.0, %v1766
        %1768 = vmatmul.bf16.gmra.mxu0 %v1632
        %v1769 = vpop.f32.mrf.mxu0
        %v1770 = vadd.f32 0.0, %v1769
        %v1771 = vpop.f32.mrf.mxu0
        %v1772 = vadd.f32 0.0, %v1771
        %1773 = vmatmul.bf16.gmra.mxu0 %v1635
        %v1774 = vpop.f32.mrf.mxu0
        %v1775 = vadd.f32 0.0, %v1774
        %v1776 = vpop.f32.mrf.mxu0
        %v1777 = vadd.f32 0.0, %v1776
        %1778 = vmatmul.bf16.gmra.mxu0 %v1638
        %v1779 = vpop.f32.mrf.mxu0
        %v1780 = vadd.f32 0.0, %v1779
        %v1781 = vpop.f32.mrf.mxu0
        %1782 = vdwg.mxu0
        %v1783 = vadd.f32 %v1394, %v1650
        %v1784 = vadd.f32 %v1395, %v1652
        %v1785 = vadd.f32 %v1396, %v1655
        %v1786 = vadd.f32 %v1397, %v1657
        %v1787 = vadd.f32 %v1398, %v1660
        %v1788 = vadd.f32 %v1399, %v1662
        %v1789 = vadd.f32 %v1400, %v1665
        %v1790 = vadd.f32 %v1401, %v1667
        %v1791 = vadd.f32 %v1402, %v1670
        %v1792 = vadd.f32 %v1403, %v1672
        %v1793 = vadd.f32 %v1404, %v1675
        %v1794 = vadd.f32 %v1405, %v1677
        %v1795 = vadd.f32 %v1406, %v1680
        %v1796 = vadd.f32 %v1407, %v1682
        %v1797 = vadd.f32 %v1408, %v1685
        %v1798 = vadd.f32 %v1409, %v1687
        %v1799 = vadd.f32 %v1410, %v1690
        %v1800 = vadd.f32 %v1411, %v1692
        %v1801 = vadd.f32 %v1412, %v1695
        %v1802 = vadd.f32 %v1413, %v1697
        %v1803 = vadd.f32 %v1414, %v1700
        %v1804 = vadd.f32 %v1415, %v1702
        %v1805 = vadd.f32 %v1416, %v1705
        %v1806 = vadd.f32 %v1417, %v1707
        %v1807 = vadd.f32 %v1418, %v1710
        %v1808 = vadd.f32 %v1419, %v1712
        %v1809 = vadd.f32 %v1420, %v1715
        %v1810 = vadd.f32 %v1421, %v1717
        %v1811 = vadd.f32 %v1422, %v1720
        %v1812 = vadd.f32 %v1423, %v1722
        %v1813 = vadd.f32 %v1424, %v1725
        %v1814 = vadd.f32 %v1425, %v1727
        %v1815 = vadd.f32 %v1426, %v1730
        %v1816 = vadd.f32 %v1427, %v1732
        %v1817 = vadd.f32 %v1428, %v1735
        %v1818 = vadd.f32 %v1429, %v1737
        %v1819 = vadd.f32 %v1430, %v1740
        %v1820 = vadd.f32 %v1431, %v1742
        %v1821 = vadd.f32 %v1432, %v1745
        %v1822 = vadd.f32 %v1433, %v1747
        %v1823 = vadd.f32 %v1434, %v1750
        %v1824 = vadd.f32 %v1435, %v1752
        %v1825 = vadd.f32 %v1436, %v1755
        %v1826 = vadd.f32 %v1437, %v1757
        %v1827 = vadd.f32 %v1438, %v1760
        %v1828 = vadd.f32 %v1439, %v1762
        %v1829 = vadd.f32 %v1440, %v1765
        %v1830 = vadd.f32 %v1441, %v1767
        %v1831 = vadd.f32 %v1442, %v1770
        %v1832 = vadd.f32 %v1443, %v1772
        %v1833 = vadd.f32 %v1444, %v1775
        %v1834 = vadd.f32 %v1445, %v1777
        %v1835 = vadd.f32 %v1446, %v1780
        %v1836 = vld [vmem:[%s2] sm:$0x1]
        %v1838 = vperm.slane %v1836, 0
        %v1840 = vadd.f32 %v1783, %v1838
        %v1841 = vadd.f32 %v1784, %v1838
        %v1842 = vadd.f32 %v1785, %v1838
        %v1843 = vadd.f32 %v1786, %v1838
        %v1844 = vadd.f32 %v1787, %v1838
        %v1845 = vadd.f32 %v1788, %v1838
        %v1846 = vadd.f32 %v1789, %v1838
        %v1847 = vadd.f32 %v1790, %v1838
        %v1848 = vadd.f32 %v1791, %v1838
        %v1849 = vadd.f32 %v1792, %v1838
        %v1850 = vadd.f32 %v1793, %v1838
        %v1851 = vadd.f32 %v1794, %v1838
        %v1852 = vadd.f32 %v1795, %v1838
        %v1853 = vadd.f32 %v1796, %v1838
        %v1854 = vadd.f32 %v1797, %v1838
        %v1855 = vadd.f32 %v1798, %v1838
        %v1856 = vadd.f32 %v1799, %v1838
        %v1857 = vadd.f32 %v1800, %v1838
        %v1858 = vadd.f32 %v1801, %v1838
        %v1859 = vadd.f32 %v1802, %v1838
        %v1860 = vadd.f32 %v1803, %v1838
        %v1861 = vadd.f32 %v1804, %v1838
        %v1862 = vadd.f32 %v1805, %v1838
        %v1863 = vadd.f32 %v1806, %v1838
        %v1864 = vadd.f32 %v1807, %v1838
        %v1865 = vadd.f32 %v1808, %v1838
        %v1866 = vadd.f32 %v1809, %v1838
        %v1867 = vadd.f32 %v1810, %v1838
        %v1868 = vadd.f32 %v1811, %v1838
        %v1869 = vadd.f32 %v1812, %v1838
        %v1870 = vadd.f32 %v1813, %v1838
        %v1871 = vadd.f32 %v1814, %v1838
        %v1872 = vadd.f32 %v1815, %v1838
        %v1873 = vadd.f32 %v1816, %v1838
        %v1874 = vadd.f32 %v1817, %v1838
        %v1875 = vadd.f32 %v1818, %v1838
        %v1876 = vadd.f32 %v1819, %v1838
        %v1877 = vadd.f32 %v1820, %v1838
        %v1878 = vadd.f32 %v1821, %v1838
        %v1879 = vadd.f32 %v1822, %v1838
        %v1880 = vadd.f32 %v1823, %v1838
        %v1881 = vadd.f32 %v1824, %v1838
        %v1882 = vadd.f32 %v1825, %v1838
        %v1883 = vadd.f32 %v1826, %v1838
        %v1884 = vadd.f32 %v1827, %v1838
        %v1885 = vadd.f32 %v1828, %v1838
        %v1886 = vadd.f32 %v1829, %v1838
        %v1887 = vadd.f32 %v1830, %v1838
        %v1888 = vadd.f32 %v1831, %v1838
        %v1889 = vadd.f32 %v1832, %v1838
        %v1890 = vadd.f32 %v1833, %v1838
        %v1891 = vadd.f32 %v1834, %v1838
        %v1892 = vadd.f32 %v1835, %v1838
        %v1893 = vmax.f32 %v1840, 0.0
        %v1894 = vmax.f32 %v1841, 0.0
        %v1895 = vmax.f32 %v1842, 0.0
        %v1896 = vmax.f32 %v1843, 0.0
        %v1897 = vmax.f32 %v1844, 0.0
        %v1898 = vmax.f32 %v1845, 0.0
        %v1899 = vmax.f32 %v1846, 0.0
        %v1900 = vmax.f32 %v1847, 0.0
        %v1901 = vmax.f32 %v1848, 0.0
        %v1902 = vmax.f32 %v1849, 0.0
        %v1903 = vmax.f32 %v1850, 0.0
        %v1904 = vmax.f32 %v1851, 0.0
        %v1905 = vmax.f32 %v1852, 0.0
        %v1906 = vmax.f32 %v1853, 0.0
        %v1907 = vmax.f32 %v1854, 0.0
        %v1908 = vmax.f32 %v1855, 0.0
        %v1909 = vmax.f32 %v1856, 0.0
        %v1910 = vmax.f32 %v1857, 0.0
        %v1911 = vmax.f32 %v1858, 0.0
        %v1912 = vmax.f32 %v1859, 0.0
        %v1913 = vmax.f32 %v1860, 0.0
        %v1914 = vmax.f32 %v1861, 0.0
        %v1915 = vmax.f32 %v1862, 0.0
        %v1916 = vmax.f32 %v1863, 0.0
        %v1917 = vmax.f32 %v1864, 0.0
        %v1918 = vmax.f32 %v1865, 0.0
        %v1919 = vmax.f32 %v1866, 0.0
        %v1920 = vmax.f32 %v1867, 0.0
        %v1921 = vmax.f32 %v1868, 0.0
        %v1922 = vmax.f32 %v1869, 0.0
        %v1923 = vmax.f32 %v1870, 0.0
        %v1924 = vmax.f32 %v1871, 0.0
        %v1925 = vmax.f32 %v1872, 0.0
        %v1926 = vmax.f32 %v1873, 0.0
        %v1927 = vmax.f32 %v1874, 0.0
        %v1928 = vmax.f32 %v1875, 0.0
        %v1929 = vmax.f32 %v1876, 0.0
        %v1930 = vmax.f32 %v1877, 0.0
        %v1931 = vmax.f32 %v1878, 0.0
        %v1932 = vmax.f32 %v1879, 0.0
        %v1933 = vmax.f32 %v1880, 0.0
        %v1934 = vmax.f32 %v1881, 0.0
        %v1935 = vmax.f32 %v1882, 0.0
        %v1936 = vmax.f32 %v1883, 0.0
        %v1937 = vmax.f32 %v1884, 0.0
        %v1938 = vmax.f32 %v1885, 0.0
        %v1939 = vmax.f32 %v1886, 0.0
        %v1940 = vmax.f32 %v1887, 0.0
        %v1941 = vmax.f32 %v1888, 0.0
        %v1942 = vmax.f32 %v1889, 0.0
        %v1943 = vmax.f32 %v1890, 0.0
        %v1944 = vmax.f32 %v1891, 0.0
        %v1945 = vmax.f32 %v1892, 0.0
        %vm1946 = vcmask 261120
        %1947 = vst.msk [vmem:[#allocation2] sm:$0xff] %vm1946, %v1893
        %1948 = vst.msk [vmem:[#allocation2 + $0x8] sm:$0xff] %vm1946, %v1894
        %1949 = vst.msk [vmem:[#allocation2 + $0x10] sm:$0xff] %vm1946, %v1895
        %1950 = vst.msk [vmem:[#allocation2 + $0x18] sm:$0xff] %vm1946, %v1896
        %1951 = vst.msk [vmem:[#allocation2 + $0x20] sm:$0xff] %vm1946, %v1897
        %1952 = vst.msk [vmem:[#allocation2 + $0x28] sm:$0xff] %vm1946, %v1898
        %1953 = vst.msk [vmem:[#allocation2 + $0x30] sm:$0xff] %vm1946, %v1899
        %1954 = vst.msk [vmem:[#allocation2 + $0x38] sm:$0xff] %vm1946, %v1900
        %1955 = vst.msk [vmem:[#allocation2 + $0x40] sm:$0xff] %vm1946, %v1901
        %1956 = vst.msk [vmem:[#allocation2 + $0x48] sm:$0xff] %vm1946, %v1902
        %1957 = vst.msk [vmem:[#allocation2 + $0x50] sm:$0xff] %vm1946, %v1903
        %1958 = vst.msk [vmem:[#allocation2 + $0x58] sm:$0xff] %vm1946, %v1904
        %1959 = vst.msk [vmem:[#allocation2 + $0x60] sm:$0xff] %vm1946, %v1905
        %1960 = vst.msk [vmem:[#allocation2 + $0x68] sm:$0xff] %vm1946, %v1906
        %1961 = vst.msk [vmem:[#allocation2 + $0x70] sm:$0xff] %vm1946, %v1907
        %1962 = vst.msk [vmem:[#allocation2 + $0x78] sm:$0xff] %vm1946, %v1908
        %1963 = vst.msk [vmem:[#allocation2 + $0x80] sm:$0xff] %vm1946, %v1909
        %1964 = vst.msk [vmem:[#allocation2 + $0x88] sm:$0xff] %vm1946, %v1910
        %1965 = vst.msk [vmem:[#allocation2 + $0x90] sm:$0xff] %vm1946, %v1911
        %1966 = vst.msk [vmem:[#allocation2 + $0x98] sm:$0xff] %vm1946, %v1912
        %1967 = vst.msk [vmem:[#allocation2 + $0xa0] sm:$0xff] %vm1946, %v1913
        %1968 = vst.msk [vmem:[#allocation2 + $0xa8] sm:$0xff] %vm1946, %v1914
        %1969 = vst.msk [vmem:[#allocation2 + $0xb0] sm:$0xff] %vm1946, %v1915
        %1970 = vst.msk [vmem:[#allocation2 + $0xb8] sm:$0xff] %vm1946, %v1916
        %1971 = vst.msk [vmem:[#allocation2 + $0xc0] sm:$0xff] %vm1946, %v1917
        %1972 = vst.msk [vmem:[#allocation2 + $0xc8] sm:$0xff] %vm1946, %v1918
        %1973 = vst.msk [vmem:[#allocation2 + $0xd0] sm:$0xff] %vm1946, %v1919
        %1974 = vst.msk [vmem:[#allocation2 + $0xd8] sm:$0xff] %vm1946, %v1920
        %1975 = vst.msk [vmem:[#allocation2 + $0xe0] sm:$0xff] %vm1946, %v1921
        %1976 = vst.msk [vmem:[#allocation2 + $0xe8] sm:$0xff] %vm1946, %v1922
        %1977 = vst.msk [vmem:[#allocation2 + $0xf0] sm:$0xff] %vm1946, %v1923
        %1978 = vst.msk [vmem:[#allocation2 + $0xf8] sm:$0xff] %vm1946, %v1924
        %1979 = vst.msk [vmem:[#allocation2 + $0x100] sm:$0xff] %vm1946, %v1925
        %1980 = vst.msk [vmem:[#allocation2 + $0x108] sm:$0xff] %vm1946, %v1926
        %1981 = vst.msk [vmem:[#allocation2 + $0x110] sm:$0xff] %vm1946, %v1927
        %1982 = vst.msk [vmem:[#allocation2 + $0x118] sm:$0xff] %vm1946, %v1928
        %1983 = vst.msk [vmem:[#allocation2 + $0x120] sm:$0xff] %vm1946, %v1929
        %1984 = vst.msk [vmem:[#allocation2 + $0x128] sm:$0xff] %vm1946, %v1930
        %1985 = vst.msk [vmem:[#allocation2 + $0x130] sm:$0xff] %vm1946, %v1931
        %1986 = vst.msk [vmem:[#allocation2 + $0x138] sm:$0xff] %vm1946, %v1932
        %1987 = vst.msk [vmem:[#allocation2 + $0x140] sm:$0xff] %vm1946, %v1933
        %1988 = vst.msk [vmem:[#allocation2 + $0x148] sm:$0xff] %vm1946, %v1934
        %1989 = vst.msk [vmem:[#allocation2 + $0x150] sm:$0xff] %vm1946, %v1935
        %1990 = vst.msk [vmem:[#allocation2 + $0x158] sm:$0xff] %vm1946, %v1936
        %1991 = vst.msk [vmem:[#allocation2 + $0x160] sm:$0xff] %vm1946, %v1937
        %1992 = vst.msk [vmem:[#allocation2 + $0x168] sm:$0xff] %vm1946, %v1938
        %1993 = vst.msk [vmem:[#allocation2 + $0x170] sm:$0xff] %vm1946, %v1939
        %1994 = vst.msk [vmem:[#allocation2 + $0x178] sm:$0xff] %vm1946, %v1940
        %1995 = vst.msk [vmem:[#allocation2 + $0x180] sm:$0xff] %vm1946, %v1941
        %1996 = vst.msk [vmem:[#allocation2 + $0x188] sm:$0xff] %vm1946, %v1942
        %1997 = vst.msk [vmem:[#allocation2 + $0x190] sm:$0xff] %vm1946, %v1943
        %1998 = vst.msk [vmem:[#allocation2 + $0x198] sm:$0xff] %vm1946, %v1944
        %vm1999 = vcmask 256000
        %2000 = vst.msk [vmem:[#allocation2 + $0x1a0] sm:$0x7] %vm1999, %v1945
        %v2001 = vld [vmem:[#allocation2] ss:$2 sm:$0xff]
        %s2002 = scalar_lea.vmem [#allocation2], 16
        %v2003 = vld [vmem:[%s2002] ss:$2 sm:$0x3]
        %2004 = vst.msk [vmem:[#allocation3] sm:$0xff] %vm1946, %v2001
        %vm2005 = vcmask 254976
        %2006 = vst.msk [vmem:[#allocation3 + $0x8] sm:$0x3] %vm2005, %v2003
        %s2007 = scalar_lea.vmem [#allocation2], 42
        %v2008 = vld [vmem:[%s2007] ss:$2 sm:$0xff]
        %s2009 = scalar_lea.vmem [#allocation2], 58
        %v2010 = vld [vmem:[%s2009] ss:$2 sm:$0x3]
        %2011 = vst.msk [vmem:[#allocation3 + $0xa] sm:$0xff] %vm1946, %v2008
        %2012 = vst.msk [vmem:[#allocation3 + $0x12] sm:$0x3] %vm2005, %v2010
        %s2013 = scalar_lea.vmem [#allocation2], 84
        %v2014 = vld [vmem:[%s2013] ss:$2 sm:$0xff]
        %s2015 = scalar_lea.vmem [#allocation2], 100
        %v2016 = vld [vmem:[%s2015] ss:$2 sm:$0x3]
        %2017 = vst.msk [vmem:[#allocation3 + $0x14] sm:$0xff] %vm1946, %v2014
        %2018 = vst.msk [vmem:[#allocation3 + $0x1c] sm:$0x3] %vm2005, %v2016
        %s2019 = scalar_lea.vmem [#allocation2], 126
        %v2020 = vld [vmem:[%s2019] ss:$2 sm:$0xff]
        %s2021 = scalar_lea.vmem [#allocation2], 142
        %v2022 = vld [vmem:[%s2021] ss:$2 sm:$0x3]
        %2023 = vst.msk [vmem:[#allocation3 + $0x1e] sm:$0xff] %vm1946, %v2020
        %2024 = vst.msk [vmem:[#allocation3 + $0x26] sm:$0x3] %vm2005, %v2022
        %s2025 = scalar_lea.vmem [#allocation2], 168
        %v2026 = vld [vmem:[%s2025] ss:$2 sm:$0xff]
        %s2027 = scalar_lea.vmem [#allocation2], 184
        %v2028 = vld [vmem:[%s2027] ss:$2 sm:$0x3]
        %2029 = vst.msk [vmem:[#allocation3 + $0x28] sm:$0xff] %vm1946, %v2026
        %2030 = vst.msk [vmem:[#allocation3 + $0x30] sm:$0x3] %vm2005, %v2028
        %s2031 = scalar_lea.vmem [#allocation2], 210
        %v2032 = vld [vmem:[%s2031] ss:$2 sm:$0xff]
        %s2033 = scalar_lea.vmem [#allocation2], 226
        %v2034 = vld [vmem:[%s2033] ss:$2 sm:$0x3]
        %2035 = vst.msk [vmem:[#allocation3 + $0x32] sm:$0xff] %vm1946, %v2032
        %2036 = vst.msk [vmem:[#allocation3 + $0x3a] sm:$0x3] %vm2005, %v2034
        %s2037 = scalar_lea.vmem [#allocation2], 252
        %v2038 = vld [vmem:[%s2037] ss:$2 sm:$0xff]
        %s2039 = scalar_lea.vmem [#allocation2], 268
        %v2040 = vld [vmem:[%s2039] ss:$2 sm:$0x3]
        %2041 = vst.msk [vmem:[#allocation3 + $0x3c] sm:$0xff] %vm1946, %v2038
        %2042 = vst.msk [vmem:[#allocation3 + $0x44] sm:$0x3] %vm2005, %v2040
        %s2043 = scalar_lea.vmem [#allocation2], 294
        %v2044 = vld [vmem:[%s2043] ss:$2 sm:$0xff]
        %s2045 = scalar_lea.vmem [#allocation2], 310
        %v2046 = vld [vmem:[%s2045] ss:$2 sm:$0x3]
        %2047 = vst.msk [vmem:[#allocation3 + $0x46] sm:$0xff] %vm1946, %v2044
        %2048 = vst.msk [vmem:[#allocation3 + $0x4e] sm:$0x3] %vm2005, %v2046
        %s2049 = scalar_lea.vmem [#allocation2], 336
        %v2050 = vld [vmem:[%s2049] ss:$2 sm:$0xff]
        %s2051 = scalar_lea.vmem [#allocation2], 352
        %v2052 = vld [vmem:[%s2051] ss:$2 sm:$0x3]
        %2053 = vst.msk [vmem:[#allocation3 + $0x50] sm:$0xff] %vm1946, %v2050
        %2054 = vst.msk [vmem:[#allocation3 + $0x58] sm:$0x3] %vm2005, %v2052
        %s2055 = scalar_lea.vmem [#allocation2], 378
        %v2056 = vld [vmem:[%s2055] ss:$2 sm:$0xff]
        %s2057 = scalar_lea.vmem [#allocation2], 394
        %v2058 = vld [vmem:[%s2057] ss:$2 sm:$0x3]
        %2059 = vst.msk [vmem:[#allocation3 + $0x5a] sm:$0xff] %vm1946, %v2056
        %2060 = vst.msk [vmem:[#allocation3 + $0x62] sm:$0x3] %vm2005, %v2058
        %s2061 = scalar_lea.vmem [#allocation2], 1
        %v2062 = vld [vmem:[%s2061] ss:$2 sm:$0xff]
        %s2063 = scalar_lea.vmem [#allocation2], 17
        %v2064 = vld [vmem:[%s2063] ss:$2 sm:$0x3]
        %2067 = vrot.lane.b32.xlu0 %v2062, 32
        %v2068 = vpop.permute.xlu0 %2067
        %2069 = vrot.lane.b32.xlu0 %v2064, 32
        %v2070 = vpop.permute.xlu0 %2069
        %vm2073 = vcmask 523520
        %2074 = vst.msk [vmem:[#allocation3] sm:$0xff] %vm2073, %v2068
        %vm2075 = vcmask 517376
        %2076 = vst.msk [vmem:[#allocation3 + $0x8] sm:$0x3] %vm2075, %v2070
        %s2077 = scalar_lea.vmem [#allocation2], 43
        %v2078 = vld [vmem:[%s2077] ss:$2 sm:$0xff]
        %s2079 = scalar_lea.vmem [#allocation2], 59
        %v2080 = vld [vmem:[%s2079] ss:$2 sm:$0x3]
        %2083 = vrot.lane.b32.xlu0 %v2078, 32
        %v2084 = vpop.permute.xlu0 %2083
        %2085 = vrot.lane.b32.xlu0 %v2080, 32
        %v2086 = vpop.permute.xlu0 %2085
        %2089 = vst.msk [vmem:[#allocation3 + $0xa] sm:$0xff] %vm2073, %v2084
        %2090 = vst.msk [vmem:[#allocation3 + $0x12] sm:$0x3] %vm2075, %v2086
        %s2091 = scalar_lea.vmem [#allocation2], 85
        %v2092 = vld [vmem:[%s2091] ss:$2 sm:$0xff]
        %s2093 = scalar_lea.vmem [#allocation2], 101
        %v2094 = vld [vmem:[%s2093] ss:$2 sm:$0x3]
        %2097 = vrot.lane.b32.xlu0 %v2092, 32
        %v2098 = vpop.permute.xlu0 %2097
        %2099 = vrot.lane.b32.xlu0 %v2094, 32
        %v2100 = vpop.permute.xlu0 %2099
        %2103 = vst.msk [vmem:[#allocation3 + $0x14] sm:$0xff] %vm2073, %v2098
        %2104 = vst.msk [vmem:[#allocation3 + $0x1c] sm:$0x3] %vm2075, %v2100
        %s2105 = scalar_lea.vmem [#allocation2], 127
        %v2106 = vld [vmem:[%s2105] ss:$2 sm:$0xff]
        %s2107 = scalar_lea.vmem [#allocation2], 143
        %v2108 = vld [vmem:[%s2107] ss:$2 sm:$0x3]
        %2111 = vrot.lane.b32.xlu0 %v2106, 32
        %v2112 = vpop.permute.xlu0 %2111
        %2113 = vrot.lane.b32.xlu0 %v2108, 32
        %v2114 = vpop.permute.xlu0 %2113
        %2117 = vst.msk [vmem:[#allocation3 + $0x1e] sm:$0xff] %vm2073, %v2112
        %2118 = vst.msk [vmem:[#allocation3 + $0x26] sm:$0x3] %vm2075, %v2114
        %s2119 = scalar_lea.vmem [#allocation2], 169
        %v2120 = vld [vmem:[%s2119] ss:$2 sm:$0xff]
        %s2121 = scalar_lea.vmem [#allocation2], 185
        %v2122 = vld [vmem:[%s2121] ss:$2 sm:$0x3]
        %2125 = vrot.lane.b32.xlu0 %v2120, 32
        %v2126 = vpop.permute.xlu0 %2125
        %2127 = vrot.lane.b32.xlu0 %v2122, 32
        %v2128 = vpop.permute.xlu0 %2127
        %2131 = vst.msk [vmem:[#allocation3 + $0x28] sm:$0xff] %vm2073, %v2126
        %2132 = vst.msk [vmem:[#allocation3 + $0x30] sm:$0x3] %vm2075, %v2128
        %s2133 = scalar_lea.vmem [#allocation2], 211
        %v2134 = vld [vmem:[%s2133] ss:$2 sm:$0xff]
        %s2135 = scalar_lea.vmem [#allocation2], 227
        %v2136 = vld [vmem:[%s2135] ss:$2 sm:$0x3]
        %2139 = vrot.lane.b32.xlu0 %v2134, 32
        %v2140 = vpop.permute.xlu0 %2139
        %2141 = vrot.lane.b32.xlu0 %v2136, 32
        %v2142 = vpop.permute.xlu0 %2141
        %2145 = vst.msk [vmem:[#allocation3 + $0x32] sm:$0xff] %vm2073, %v2140
        %2146 = vst.msk [vmem:[#allocation3 + $0x3a] sm:$0x3] %vm2075, %v2142
        %s2147 = scalar_lea.vmem [#allocation2], 253
        %v2148 = vld [vmem:[%s2147] ss:$2 sm:$0xff]
        %s2149 = scalar_lea.vmem [#allocation2], 269
        %v2150 = vld [vmem:[%s2149] ss:$2 sm:$0x3]
        %2153 = vrot.lane.b32.xlu0 %v2148, 32
        %v2154 = vpop.permute.xlu0 %2153
        %2155 = vrot.lane.b32.xlu0 %v2150, 32
        %v2156 = vpop.permute.xlu0 %2155
        %2159 = vst.msk [vmem:[#allocation3 + $0x3c] sm:$0xff] %vm2073, %v2154
        %2160 = vst.msk [vmem:[#allocation3 + $0x44] sm:$0x3] %vm2075, %v2156
        %s2161 = scalar_lea.vmem [#allocation2], 295
        %v2162 = vld [vmem:[%s2161] ss:$2 sm:$0xff]
        %s2163 = scalar_lea.vmem [#allocation2], 311
        %v2164 = vld [vmem:[%s2163] ss:$2 sm:$0x3]
        %2167 = vrot.lane.b32.xlu0 %v2162, 32
        %v2168 = vpop.permute.xlu0 %2167
        %2169 = vrot.lane.b32.xlu0 %v2164, 32
        %v2170 = vpop.permute.xlu0 %2169
        %2173 = vst.msk [vmem:[#allocation3 + $0x46] sm:$0xff] %vm2073, %v2168
        %2174 = vst.msk [vmem:[#allocation3 + $0x4e] sm:$0x3] %vm2075, %v2170
        %s2175 = scalar_lea.vmem [#allocation2], 337
        %v2176 = vld [vmem:[%s2175] ss:$2 sm:$0xff]
        %s2177 = scalar_lea.vmem [#allocation2], 353
        %v2178 = vld [vmem:[%s2177] ss:$2 sm:$0x3]
        %2181 = vrot.lane.b32.xlu0 %v2176, 32
        %v2182 = vpop.permute.xlu0 %2181
        %2183 = vrot.lane.b32.xlu0 %v2178, 32
        %v2184 = vpop.permute.xlu0 %2183
        %2187 = vst.msk [vmem:[#allocation3 + $0x50] sm:$0xff] %vm2073, %v2182
        %2188 = vst.msk [vmem:[#allocation3 + $0x58] sm:$0x3] %vm2075, %v2184
        %s2189 = scalar_lea.vmem [#allocation2], 379
        %v2190 = vld [vmem:[%s2189] ss:$2 sm:$0xff]
        %s2191 = scalar_lea.vmem [#allocation2], 395
        %v2192 = vld [vmem:[%s2191] ss:$2 sm:$0x3]
        %2195 = vrot.lane.b32.xlu0 %v2190, 32
        %v2196 = vpop.permute.xlu0 %2195
        %2197 = vrot.lane.b32.xlu0 %v2192, 32
        %v2198 = vpop.permute.xlu0 %2197
        %2201 = vst.msk [vmem:[#allocation3 + $0x5a] sm:$0xff] %vm2073, %v2196
        %2202 = vst.msk [vmem:[#allocation3 + $0x62] sm:$0x3] %vm2075, %v2198
        %s2203 = scalar_lea.vmem [#allocation2], 21
        %v2204 = vld [vmem:[%s2203] ss:$2 sm:$0xff]
        %s2205 = scalar_lea.vmem [#allocation2], 37
        %v2206 = vld [vmem:[%s2205] ss:$2 sm:$0x3]
        %2209 = vrot.lane.b32.xlu0 %v2204, 64
        %v2210 = vpop.permute.xlu0 %2209
        %2211 = vrot.lane.b32.xlu0 %v2206, 64
        %v2212 = vpop.permute.xlu0 %2211
        %vm2215 = vcmask 785920
        %2216 = vst.msk [vmem:[#allocation3] sm:$0xff] %vm2215, %v2210
        %vm2217 = vcmask 779776
        %2218 = vst.msk [vmem:[#allocation3 + $0x8] sm:$0x3] %vm2217, %v2212
        %s2219 = scalar_lea.vmem [#allocation2], 63
        %v2220 = vld [vmem:[%s2219] ss:$2 sm:$0xff]
        %s2221 = scalar_lea.vmem [#allocation2], 79
        %v2222 = vld [vmem:[%s2221] ss:$2 sm:$0x3]
        %2225 = vrot.lane.b32.xlu0 %v2220, 64
        %v2226 = vpop.permute.xlu0 %2225
        %2227 = vrot.lane.b32.xlu0 %v2222, 64
        %v2228 = vpop.permute.xlu0 %2227
        %2231 = vst.msk [vmem:[#allocation3 + $0xa] sm:$0xff] %vm2215, %v2226
        %2232 = vst.msk [vmem:[#allocation3 + $0x12] sm:$0x3] %vm2217, %v2228
        %s2233 = scalar_lea.vmem [#allocation2], 105
        %v2234 = vld [vmem:[%s2233] ss:$2 sm:$0xff]
        %s2235 = scalar_lea.vmem [#allocation2], 121
        %v2236 = vld [vmem:[%s2235] ss:$2 sm:$0x3]
        %2239 = vrot.lane.b32.xlu0 %v2234, 64
        %v2240 = vpop.permute.xlu0 %2239
        %2241 = vrot.lane.b32.xlu0 %v2236, 64
        %v2242 = vpop.permute.xlu0 %2241
        %2245 = vst.msk [vmem:[#allocation3 + $0x14] sm:$0xff] %vm2215, %v2240
        %2246 = vst.msk [vmem:[#allocation3 + $0x1c] sm:$0x3] %vm2217, %v2242
        %s2247 = scalar_lea.vmem [#allocation2], 147
        %v2248 = vld [vmem:[%s2247] ss:$2 sm:$0xff]
        %s2249 = scalar_lea.vmem [#allocation2], 163
        %v2250 = vld [vmem:[%s2249] ss:$2 sm:$0x3]
        %2253 = vrot.lane.b32.xlu0 %v2248, 64
        %v2254 = vpop.permute.xlu0 %2253
        %2255 = vrot.lane.b32.xlu0 %v2250, 64
        %v2256 = vpop.permute.xlu0 %2255
        %2259 = vst.msk [vmem:[#allocation3 + $0x1e] sm:$0xff] %vm2215, %v2254
        %2260 = vst.msk [vmem:[#allocation3 + $0x26] sm:$0x3] %vm2217, %v2256
        %s2261 = scalar_lea.vmem [#allocation2], 189
        %v2262 = vld [vmem:[%s2261] ss:$2 sm:$0xff]
        %s2263 = scalar_lea.vmem [#allocation2], 205
        %v2264 = vld [vmem:[%s2263] ss:$2 sm:$0x3]
        %2267 = vrot.lane.b32.xlu0 %v2262, 64
        %v2268 = vpop.permute.xlu0 %2267
        %2269 = vrot.lane.b32.xlu0 %v2264, 64
        %v2270 = vpop.permute.xlu0 %2269
        %2273 = vst.msk [vmem:[#allocation3 + $0x28] sm:$0xff] %vm2215, %v2268
        %2274 = vst.msk [vmem:[#allocation3 + $0x30] sm:$0x3] %vm2217, %v2270
        %s2275 = scalar_lea.vmem [#allocation2], 231
        %v2276 = vld [vmem:[%s2275] ss:$2 sm:$0xff]
        %s2277 = scalar_lea.vmem [#allocation2], 247
        %v2278 = vld [vmem:[%s2277] ss:$2 sm:$0x3]
        %2281 = vrot.lane.b32.xlu0 %v2276, 64
        %v2282 = vpop.permute.xlu0 %2281
        %2283 = vrot.lane.b32.xlu0 %v2278, 64
        %v2284 = vpop.permute.xlu0 %2283
        %2287 = vst.msk [vmem:[#allocation3 + $0x32] sm:$0xff] %vm2215, %v2282
        %2288 = vst.msk [vmem:[#allocation3 + $0x3a] sm:$0x3] %vm2217, %v2284
        %s2289 = scalar_lea.vmem [#allocation2], 273
        %v2290 = vld [vmem:[%s2289] ss:$2 sm:$0xff]
        %s2291 = scalar_lea.vmem [#allocation2], 289
        %v2292 = vld [vmem:[%s2291] ss:$2 sm:$0x3]
        %2295 = vrot.lane.b32.xlu0 %v2290, 64
        %v2296 = vpop.permute.xlu0 %2295
        %2297 = vrot.lane.b32.xlu0 %v2292, 64
        %v2298 = vpop.permute.xlu0 %2297
        %2301 = vst.msk [vmem:[#allocation3 + $0x3c] sm:$0xff] %vm2215, %v2296
        %2302 = vst.msk [vmem:[#allocation3 + $0x44] sm:$0x3] %vm2217, %v2298
        %s2303 = scalar_lea.vmem [#allocation2], 315
        %v2304 = vld [vmem:[%s2303] ss:$2 sm:$0xff]
        %s2305 = scalar_lea.vmem [#allocation2], 331
        %v2306 = vld [vmem:[%s2305] ss:$2 sm:$0x3]
        %2309 = vrot.lane.b32.xlu0 %v2304, 64
        %v2310 = vpop.permute.xlu0 %2309
        %2311 = vrot.lane.b32.xlu0 %v2306, 64
        %v2312 = vpop.permute.xlu0 %2311
        %2315 = vst.msk [vmem:[#allocation3 + $0x46] sm:$0xff] %vm2215, %v2310
        %2316 = vst.msk [vmem:[#allocation3 + $0x4e] sm:$0x3] %vm2217, %v2312
        %s2317 = scalar_lea.vmem [#allocation2], 357
        %v2318 = vld [vmem:[%s2317] ss:$2 sm:$0xff]
        %s2319 = scalar_lea.vmem [#allocation2], 373
        %v2320 = vld [vmem:[%s2319] ss:$2 sm:$0x3]
        %2323 = vrot.lane.b32.xlu0 %v2318, 64
        %v2324 = vpop.permute.xlu0 %2323
        %2325 = vrot.lane.b32.xlu0 %v2320, 64
        %v2326 = vpop.permute.xlu0 %2325
        %2329 = vst.msk [vmem:[#allocation3 + $0x50] sm:$0xff] %vm2215, %v2324
        %2330 = vst.msk [vmem:[#allocation3 + $0x58] sm:$0x3] %vm2217, %v2326
        %s2331 = scalar_lea.vmem [#allocation2], 399
        %v2332 = vld [vmem:[%s2331] ss:$2 sm:$0xff]
        %s2333 = scalar_lea.vmem [#allocation2], 415
        %v2334 = vld [vmem:[%s2333] ss:$2 sm:$0x3]
        %2337 = vrot.lane.b32.xlu0 %v2332, 64
        %v2338 = vpop.permute.xlu0 %2337
        %2339 = vrot.lane.b32.xlu0 %v2334, 64
        %v2340 = vpop.permute.xlu0 %2339
        %2343 = vst.msk [vmem:[#allocation3 + $0x5a] sm:$0xff] %vm2215, %v2338
        %2344 = vst.msk [vmem:[#allocation3 + $0x62] sm:$0x3] %vm2217, %v2340
        %s2345 = scalar_lea.vmem [#allocation2], 22
        %v2346 = vld [vmem:[%s2345] ss:$2 sm:$0xff]
        %s2347 = scalar_lea.vmem [#allocation2], 38
        %v2348 = vld [vmem:[%s2347] ss:$2 sm:$0x3]
        %2351 = vrot.lane.b32.xlu0 %v2346, 96
        %v2352 = vpop.permute.xlu0 %2351
        %2353 = vrot.lane.b32.xlu0 %v2348, 96
        %v2354 = vpop.permute.xlu0 %2353
        %vm2357 = vcmask 1048320
        %2358 = vst.msk [vmem:[#allocation3] sm:$0xff] %vm2357, %v2352
        %vm2359 = vcmask 1042176
        %2360 = vst.msk [vmem:[#allocation3 + $0x8] sm:$0x3] %vm2359, %v2354
        %s2361 = scalar_lea.vmem [#allocation2], 64
        %v2362 = vld [vmem:[%s2361] ss:$2 sm:$0xff]
        %s2363 = scalar_lea.vmem [#allocation2], 80
        %v2364 = vld [vmem:[%s2363] ss:$2 sm:$0x3]
        %2367 = vrot.lane.b32.xlu0 %v2362, 96
        %v2368 = vpop.permute.xlu0 %2367
        %2369 = vrot.lane.b32.xlu0 %v2364, 96
        %v2370 = vpop.permute.xlu0 %2369
        %2373 = vst.msk [vmem:[#allocation3 + $0xa] sm:$0xff] %vm2357, %v2368
        %2374 = vst.msk [vmem:[#allocation3 + $0x12] sm:$0x3] %vm2359, %v2370
        %s2375 = scalar_lea.vmem [#allocation2], 106
        %v2376 = vld [vmem:[%s2375] ss:$2 sm:$0xff]
        %s2377 = scalar_lea.vmem [#allocation2], 122
        %v2378 = vld [vmem:[%s2377] ss:$2 sm:$0x3]
        %2381 = vrot.lane.b32.xlu0 %v2376, 96
        %v2382 = vpop.permute.xlu0 %2381
        %2383 = vrot.lane.b32.xlu0 %v2378, 96
        %v2384 = vpop.permute.xlu0 %2383
        %2387 = vst.msk [vmem:[#allocation3 + $0x14] sm:$0xff] %vm2357, %v2382
        %2388 = vst.msk [vmem:[#allocation3 + $0x1c] sm:$0x3] %vm2359, %v2384
        %s2389 = scalar_lea.vmem [#allocation2], 148
        %v2390 = vld [vmem:[%s2389] ss:$2 sm:$0xff]
        %s2391 = scalar_lea.vmem [#allocation2], 164
        %v2392 = vld [vmem:[%s2391] ss:$2 sm:$0x3]
        %2395 = vrot.lane.b32.xlu0 %v2390, 96
        %v2396 = vpop.permute.xlu0 %2395
        %2397 = vrot.lane.b32.xlu0 %v2392, 96
        %v2398 = vpop.permute.xlu0 %2397
        %2401 = vst.msk [vmem:[#allocation3 + $0x1e] sm:$0xff] %vm2357, %v2396
        %2402 = vst.msk [vmem:[#allocation3 + $0x26] sm:$0x3] %vm2359, %v2398
        %s2403 = scalar_lea.vmem [#allocation2], 190
        %v2404 = vld [vmem:[%s2403] ss:$2 sm:$0xff]
        %s2405 = scalar_lea.vmem [#allocation2], 206
        %v2406 = vld [vmem:[%s2405] ss:$2 sm:$0x3]
        %2409 = vrot.lane.b32.xlu0 %v2404, 96
        %v2410 = vpop.permute.xlu0 %2409
        %2411 = vrot.lane.b32.xlu0 %v2406, 96
        %v2412 = vpop.permute.xlu0 %2411
        %2415 = vst.msk [vmem:[#allocation3 + $0x28] sm:$0xff] %vm2357, %v2410
        %2416 = vst.msk [vmem:[#allocation3 + $0x30] sm:$0x3] %vm2359, %v2412
        %s2417 = scalar_lea.vmem [#allocation2], 232
        %v2418 = vld [vmem:[%s2417] ss:$2 sm:$0xff]
        %s2419 = scalar_lea.vmem [#allocation2], 248
        %v2420 = vld [vmem:[%s2419] ss:$2 sm:$0x3]
        %2423 = vrot.lane.b32.xlu0 %v2418, 96
        %v2424 = vpop.permute.xlu0 %2423
        %2425 = vrot.lane.b32.xlu0 %v2420, 96
        %v2426 = vpop.permute.xlu0 %2425
        %2429 = vst.msk [vmem:[#allocation3 + $0x32] sm:$0xff] %vm2357, %v2424
        %2430 = vst.msk [vmem:[#allocation3 + $0x3a] sm:$0x3] %vm2359, %v2426
        %s2431 = scalar_lea.vmem [#allocation2], 274
        %v2432 = vld [vmem:[%s2431] ss:$2 sm:$0xff]
        %s2433 = scalar_lea.vmem [#allocation2], 290
        %v2434 = vld [vmem:[%s2433] ss:$2 sm:$0x3]
        %2437 = vrot.lane.b32.xlu0 %v2432, 96
        %v2438 = vpop.permute.xlu0 %2437
        %2439 = vrot.lane.b32.xlu0 %v2434, 96
        %v2440 = vpop.permute.xlu0 %2439
        %2443 = vst.msk [vmem:[#allocation3 + $0x3c] sm:$0xff] %vm2357, %v2438
        %2444 = vst.msk [vmem:[#allocation3 + $0x44] sm:$0x3] %vm2359, %v2440
        %s2445 = scalar_lea.vmem [#allocation2], 316
        %v2446 = vld [vmem:[%s2445] ss:$2 sm:$0xff]
        %s2447 = scalar_lea.vmem [#allocation2], 332
        %v2448 = vld [vmem:[%s2447] ss:$2 sm:$0x3]
        %2451 = vrot.lane.b32.xlu0 %v2446, 96
        %v2452 = vpop.permute.xlu0 %2451
        %2453 = vrot.lane.b32.xlu0 %v2448, 96
        %v2454 = vpop.permute.xlu0 %2453
        %2457 = vst.msk [vmem:[#allocation3 + $0x46] sm:$0xff] %vm2357, %v2452
        %2458 = vst.msk [vmem:[#allocation3 + $0x4e] sm:$0x3] %vm2359, %v2454
        %s2459 = scalar_lea.vmem [#allocation2], 358
        %v2460 = vld [vmem:[%s2459] ss:$2 sm:$0xff]
        %s2461 = scalar_lea.vmem [#allocation2], 374
        %v2462 = vld [vmem:[%s2461] ss:$2 sm:$0x3]
        %2465 = vrot.lane.b32.xlu0 %v2460, 96
        %v2466 = vpop.permute.xlu0 %2465
        %2467 = vrot.lane.b32.xlu0 %v2462, 96
        %v2468 = vpop.permute.xlu0 %2467
        %2471 = vst.msk [vmem:[#allocation3 + $0x50] sm:$0xff] %vm2357, %v2466
        %2472 = vst.msk [vmem:[#allocation3 + $0x58] sm:$0x3] %vm2359, %v2468
        %s2473 = scalar_lea.vmem [#allocation2], 400
        %v2474 = vld [vmem:[%s2473] ss:$2 sm:$0xff]
        %s2475 = scalar_lea.vmem [#allocation2], 416
        %v2476 = vld [vmem:[%s2475] ss:$2 sm:$0x3]
        %2479 = vrot.lane.b32.xlu0 %v2474, 96
        %v2480 = vpop.permute.xlu0 %2479
        %2481 = vrot.lane.b32.xlu0 %v2476, 96
        %v2482 = vpop.permute.xlu0 %2481
        %2485 = vst.msk [vmem:[#allocation3 + $0x5a] sm:$0xff] %vm2357, %v2480
        %2486 = vst.msk [vmem:[#allocation3 + $0x62] sm:$0x3] %vm2359, %v2482
        %v2487 = vld [vmem:[#allocation3] sm:$0xff]
        %v2488 = vld [vmem:[#allocation3 + $0x8] sm:$0xff]
        %v2489 = vld [vmem:[#allocation3 + $0x10] sm:$0xff]
        %v2490 = vld [vmem:[#allocation3 + $0x18] sm:$0xff]
        %v2491 = vld [vmem:[#allocation3 + $0x20] sm:$0xff]
        %v2492 = vld [vmem:[#allocation3 + $0x28] sm:$0xff]
        %v2493 = vld [vmem:[#allocation3 + $0x30] sm:$0xff]
        %v2494 = vld [vmem:[#allocation3 + $0x38] sm:$0xff]
        %v2495 = vld [vmem:[#allocation3 + $0x40] sm:$0xff]
        %v2496 = vld [vmem:[#allocation3 + $0x48] sm:$0xff]
        %v2497 = vld [vmem:[#allocation3 + $0x50] sm:$0xff]
        %v2498 = vld [vmem:[#allocation3 + $0x58] sm:$0x1]
        %v2499 = vpack.c.bf16 %v2488, %v2487
        %v2500 = vpack.c.bf16 %v2490, %v2489
        %v2501 = vpack.c.bf16 %v2492, %v2491
        %v2502 = vpack.c.bf16 %v2494, %v2493
        %v2503 = vpack.c.bf16 %v2496, %v2495
        %v2504 = vpack.c.bf16 %v2498, %v2497
        %v2505 = vld [vmem:[%s3] sm:$0xf]
        %v2506 = vld [vmem:[%s3 + $0x4] sm:$0xf]
        %v2507 = vld [vmem:[%s3 + $0x8] sm:$0xf]
        %v2508 = vld [vmem:[%s3 + $0xc] sm:$0xf]
        %v2509 = vld [vmem:[%s3 + $0x10] sm:$0xf]
        %v2510 = vld [vmem:[%s3 + $0x14] sm:$0xf]
        %v2511 = vld [vmem:[%s3 + $0x18] sm:$0xf]
        %v2512 = vld [vmem:[%s3 + $0x1c] sm:$0xf]
        %v2513 = vld [vmem:[%s3 + $0x20] sm:$0xf]
        %v2514 = vld [vmem:[%s3 + $0x24] sm:$0xf]
        %v2515 = vld [vmem:[%s3 + $0x28] sm:$0xf]
        %v2516 = vld [vmem:[%s3 + $0x2c] sm:$0xf]
        %v2517 = vld [vmem:[%s3 + $0x30] sm:$0xf]
        %v2518 = vld [vmem:[%s3 + $0x34] sm:$0xf]
        %v2519 = vld [vmem:[%s3 + $0x38] sm:$0xf]
        %v2520 = vld [vmem:[%s3 + $0x3c] sm:$0xf]
        %v2521 = vld [vmem:[#allocation3 + $0x1] sm:$0xff]
        %v2522 = vld [vmem:[#allocation3 + $0x9] sm:$0xff]
        %v2523 = vld [vmem:[#allocation3 + $0x11] sm:$0xff]
        %v2524 = vld [vmem:[#allocation3 + $0x19] sm:$0xff]
        %v2525 = vld [vmem:[#allocation3 + $0x21] sm:$0xff]
        %v2526 = vld [vmem:[#allocation3 + $0x29] sm:$0xff]
        %v2527 = vld [vmem:[#allocation3 + $0x31] sm:$0xff]
        %v2528 = vld [vmem:[#allocation3 + $0x39] sm:$0xff]
        %v2529 = vld [vmem:[#allocation3 + $0x41] sm:$0xff]
        %v2530 = vld [vmem:[#allocation3 + $0x49] sm:$0xff]
        %v2531 = vld [vmem:[#allocation3 + $0x51] sm:$0xff]
        %v2532 = vld [vmem:[#allocation3 + $0x59] sm:$0x1]
        %v2533 = vpack.c.bf16 %v2522, %v2521
        %v2534 = vpack.c.bf16 %v2524, %v2523
        %v2535 = vpack.c.bf16 %v2526, %v2525
        %v2536 = vpack.c.bf16 %v2528, %v2527
        %v2537 = vpack.c.bf16 %v2530, %v2529
        %v2538 = vpack.c.bf16 %v2532, %v2531
        %v2539 = vld [vmem:[%s3 + $0x40] sm:$0xf]
        %v2540 = vld [vmem:[%s3 + $0x44] sm:$0xf]
        %v2541 = vld [vmem:[%s3 + $0x48] sm:$0xf]
        %v2542 = vld [vmem:[%s3 + $0x4c] sm:$0xf]
        %v2543 = vld [vmem:[%s3 + $0x50] sm:$0xf]
        %v2544 = vld [vmem:[%s3 + $0x54] sm:$0xf]
        %v2545 = vld [vmem:[%s3 + $0x58] sm:$0xf]
        %v2546 = vld [vmem:[%s3 + $0x5c] sm:$0xf]
        %v2547 = vld [vmem:[%s3 + $0x60] sm:$0xf]
        %v2548 = vld [vmem:[%s3 + $0x64] sm:$0xf]
        %v2549 = vld [vmem:[%s3 + $0x68] sm:$0xf]
        %v2550 = vld [vmem:[%s3 + $0x6c] sm:$0xf]
        %v2551 = vld [vmem:[%s3 + $0x70] sm:$0xf]
        %v2552 = vld [vmem:[%s3 + $0x74] sm:$0xf]
        %v2553 = vld [vmem:[%s3 + $0x78] sm:$0xf]
        %v2554 = vld [vmem:[%s3 + $0x7c] sm:$0xf]
        %v2571 = vunpack.c.l.b16 %v2539
        %v2572 = vunpack.c.l.b16 %v2540
        %v2573 = vunpack.c.l.b16 %v2541
        %v2574 = vunpack.c.l.b16 %v2542
        %v2575 = vunpack.c.l.b16 %v2543
        %v2576 = vunpack.c.l.b16 %v2544
        %v2577 = vunpack.c.l.b16 %v2545
        %v2578 = vunpack.c.l.b16 %v2546
        %v2579 = vunpack.c.l.b16 %v2547
        %v2580 = vunpack.c.l.b16 %v2548
        %v2581 = vunpack.c.l.b16 %v2549
        %v2582 = vunpack.c.l.b16 %v2550
        %v2583 = vunpack.c.l.b16 %v2551
        %v2584 = vunpack.c.l.b16 %v2552
        %v2585 = vunpack.c.l.b16 %v2553
        %v2586 = vunpack.c.l.b16 %v2554
        %v2587 = vpack.c.b16 %v2572, %v2571
        %v2588 = vpack.c.b16 %v2574, %v2573
        %v2589 = vpack.c.b16 %v2576, %v2575
        %v2590 = vpack.c.b16 %v2578, %v2577
        %v2591 = vpack.c.b16 %v2580, %v2579
        %v2592 = vpack.c.b16 %v2582, %v2581
        %v2593 = vpack.c.b16 %v2584, %v2583
        %v2594 = vpack.c.b16 %v2586, %v2585
        %2603 = vmatpush.bf16.msra.mxu0 %v2594
        %2604 = vmatpush.bf16.msra.mxu0 %v2593
        %2605 = vmatpush.bf16.msra.mxu0 %v2592
        %2606 = vmatpush.bf16.msra.mxu0 %v2591
        %2607 = vmatpush.bf16.msra.mxu0 %v2590
        %2608 = vmatpush.bf16.msra.mxu0 %v2589
        %2609 = vmatpush.bf16.msra.mxu0 %v2588
        %2610 = vmatpush.bf16.msra.mxu0 %v2587
        %2611 = vmatmul.bf16.gmra.mxu0 %v2533
        %v2612 = vpop.f32.mrf.mxu0
        %v2613 = vadd.f32 0.0, %v2612
        %v2614 = vpop.f32.mrf.mxu0
        %v2615 = vadd.f32 0.0, %v2614
        %2616 = vmatmul.bf16.gmra.mxu0 %v2534
        %v2617 = vpop.f32.mrf.mxu0
        %v2618 = vadd.f32 0.0, %v2617
        %v2619 = vpop.f32.mrf.mxu0
        %v2620 = vadd.f32 0.0, %v2619
        %2621 = vmatmul.bf16.gmra.mxu0 %v2535
        %v2622 = vpop.f32.mrf.mxu0
        %v2623 = vadd.f32 0.0, %v2622
        %v2624 = vpop.f32.mrf.mxu0
        %v2625 = vadd.f32 0.0, %v2624
        %2626 = vmatmul.bf16.gmra.mxu0 %v2536
        %v2627 = vpop.f32.mrf.mxu0
        %v2628 = vadd.f32 0.0, %v2627
        %v2629 = vpop.f32.mrf.mxu0
        %v2630 = vadd.f32 0.0, %v2629
        %2631 = vmatmul.bf16.gmra.mxu0 %v2537
        %v2632 = vpop.f32.mrf.mxu0
        %v2633 = vadd.f32 0.0, %v2632
        %v2634 = vpop.f32.mrf.mxu0
        %v2635 = vadd.f32 0.0, %v2634
        %2636 = vmatmul.bf16.gmra.mxu0 %v2538
        %v2637 = vpop.f32.mrf.mxu0
        %v2638 = vadd.f32 0.0, %v2637
        %v2639 = vpop.f32.mrf.mxu0
        %v2640 = vadd.f32 0.0, %v2639
        %2641 = vdwg.mxu0
        %v2658 = vunpack.c.l.b16 %v2505
        %v2659 = vunpack.c.l.b16 %v2506
        %v2660 = vunpack.c.l.b16 %v2507
        %v2661 = vunpack.c.l.b16 %v2508
        %v2662 = vunpack.c.l.b16 %v2509
        %v2663 = vunpack.c.l.b16 %v2510
        %v2664 = vunpack.c.l.b16 %v2511
        %v2665 = vunpack.c.l.b16 %v2512
        %v2666 = vunpack.c.l.b16 %v2513
        %v2667 = vunpack.c.l.b16 %v2514
        %v2668 = vunpack.c.l.b16 %v2515
        %v2669 = vunpack.c.l.b16 %v2516
        %v2670 = vunpack.c.l.b16 %v2517
        %v2671 = vunpack.c.l.b16 %v2518
        %v2672 = vunpack.c.l.b16 %v2519
        %v2673 = vunpack.c.l.b16 %v2520
        %v2674 = vpack.c.b16 %v2659, %v2658
        %v2675 = vpack.c.b16 %v2661, %v2660
        %v2676 = vpack.c.b16 %v2663, %v2662
        %v2677 = vpack.c.b16 %v2665, %v2664
        %v2678 = vpack.c.b16 %v2667, %v2666
        %v2679 = vpack.c.b16 %v2669, %v2668
        %v2680 = vpack.c.b16 %v2671, %v2670
        %v2681 = vpack.c.b16 %v2673, %v2672
        %2690 = vmatpush.bf16.msra.mxu0 %v2681
        %2691 = vmatpush.bf16.msra.mxu0 %v2680
        %2692 = vmatpush.bf16.msra.mxu0 %v2679
        %2693 = vmatpush.bf16.msra.mxu0 %v2678
        %2694 = vmatpush.bf16.msra.mxu0 %v2677
        %2695 = vmatpush.bf16.msra.mxu0 %v2676
        %2696 = vmatpush.bf16.msra.mxu0 %v2675
        %2697 = vmatpush.bf16.msra.mxu0 %v2674
        %2698 = vmatmul.bf16.gmra.mxu0 %v2499
        %v2699 = vpop.f32.mrf.mxu0
        %v2700 = vadd.f32 %v2613, %v2699
        %v2701 = vpop.f32.mrf.mxu0
        %v2702 = vadd.f32 %v2615, %v2701
        %2703 = vmatmul.bf16.gmra.mxu0 %v2500
        %v2704 = vpop.f32.mrf.mxu0
        %v2705 = vadd.f32 %v2618, %v2704
        %v2706 = vpop.f32.mrf.mxu0
        %v2707 = vadd.f32 %v2620, %v2706
        %2708 = vmatmul.bf16.gmra.mxu0 %v2501
        %v2709 = vpop.f32.mrf.mxu0
        %v2710 = vadd.f32 %v2623, %v2709
        %v2711 = vpop.f32.mrf.mxu0
        %v2712 = vadd.f32 %v2625, %v2711
        %2713 = vmatmul.bf16.gmra.mxu0 %v2502
        %v2714 = vpop.f32.mrf.mxu0
        %v2715 = vadd.f32 %v2628, %v2714
        %v2716 = vpop.f32.mrf.mxu0
        %v2717 = vadd.f32 %v2630, %v2716
        %2718 = vmatmul.bf16.gmra.mxu0 %v2503
        %v2719 = vpop.f32.mrf.mxu0
        %v2720 = vadd.f32 %v2633, %v2719
        %v2721 = vpop.f32.mrf.mxu0
        %v2722 = vadd.f32 %v2635, %v2721
        %2723 = vmatmul.bf16.gmra.mxu0 %v2504
        %v2724 = vpop.f32.mrf.mxu0
        %v2725 = vadd.f32 %v2638, %v2724
        %v2726 = vpop.f32.mrf.mxu0
        %v2727 = vadd.f32 %v2640, %v2726
        %2728 = vdwg.mxu0
        %v2729 = vld [vmem:[#allocation3 + $0xa] sm:$0xff]
        %v2730 = vld [vmem:[#allocation3 + $0x12] sm:$0xff]
        %v2731 = vld [vmem:[#allocation3 + $0x1a] sm:$0xff]
        %v2732 = vld [vmem:[#allocation3 + $0x22] sm:$0xff]
        %v2733 = vld [vmem:[#allocation3 + $0x2a] sm:$0xff]
        %v2734 = vld [vmem:[#allocation3 + $0x32] sm:$0xff]
        %v2735 = vld [vmem:[#allocation3 + $0x3a] sm:$0xff]
        %v2736 = vld [vmem:[#allocation3 + $0x42] sm:$0xff]
        %v2737 = vld [vmem:[#allocation3 + $0x4a] sm:$0xff]
        %v2738 = vld [vmem:[#allocation3 + $0x52] sm:$0xff]
        %v2739 = vld [vmem:[#allocation3 + $0x5a] sm:$0xff]
        %v2740 = vld [vmem:[#allocation3 + $0x62] sm:$0x1]
        %v2741 = vpack.c.bf16 %v2730, %v2729
        %v2742 = vpack.c.bf16 %v2732, %v2731
        %v2743 = vpack.c.bf16 %v2734, %v2733
        %v2744 = vpack.c.bf16 %v2736, %v2735
        %v2745 = vpack.c.bf16 %v2738, %v2737
        %v2746 = vpack.c.bf16 %v2740, %v2739
        %v2747 = vld [vmem:[%s3 + $0x80] sm:$0xf]
        %v2748 = vld [vmem:[%s3 + $0x84] sm:$0xf]
        %v2749 = vld [vmem:[%s3 + $0x88] sm:$0xf]
        %v2750 = vld [vmem:[%s3 + $0x8c] sm:$0xf]
        %v2751 = vld [vmem:[%s3 + $0x90] sm:$0xf]
        %v2752 = vld [vmem:[%s3 + $0x94] sm:$0xf]
        %v2753 = vld [vmem:[%s3 + $0x98] sm:$0xf]
        %v2754 = vld [vmem:[%s3 + $0x9c] sm:$0xf]
        %v2755 = vld [vmem:[%s3 + $0xa0] sm:$0xf]
        %v2756 = vld [vmem:[%s3 + $0xa4] sm:$0xf]
        %v2757 = vld [vmem:[%s3 + $0xa8] sm:$0xf]
        %v2758 = vld [vmem:[%s3 + $0xac] sm:$0xf]
        %v2759 = vld [vmem:[%s3 + $0xb0] sm:$0xf]
        %v2760 = vld [vmem:[%s3 + $0xb4] sm:$0xf]
        %v2761 = vld [vmem:[%s3 + $0xb8] sm:$0xf]
        %v2762 = vld [vmem:[%s3 + $0xbc] sm:$0xf]
        %v2779 = vunpack.c.l.b16 %v2747
        %v2780 = vunpack.c.l.b16 %v2748
        %v2781 = vunpack.c.l.b16 %v2749
        %v2782 = vunpack.c.l.b16 %v2750
        %v2783 = vunpack.c.l.b16 %v2751
        %v2784 = vunpack.c.l.b16 %v2752
        %v2785 = vunpack.c.l.b16 %v2753
        %v2786 = vunpack.c.l.b16 %v2754
        %v2787 = vunpack.c.l.b16 %v2755
        %v2788 = vunpack.c.l.b16 %v2756
        %v2789 = vunpack.c.l.b16 %v2757
        %v2790 = vunpack.c.l.b16 %v2758
        %v2791 = vunpack.c.l.b16 %v2759
        %v2792 = vunpack.c.l.b16 %v2760
        %v2793 = vunpack.c.l.b16 %v2761
        %v2794 = vunpack.c.l.b16 %v2762
        %v2795 = vpack.c.b16 %v2780, %v2779
        %v2796 = vpack.c.b16 %v2782, %v2781
        %v2797 = vpack.c.b16 %v2784, %v2783
        %v2798 = vpack.c.b16 %v2786, %v2785
        %v2799 = vpack.c.b16 %v2788, %v2787
        %v2800 = vpack.c.b16 %v2790, %v2789
        %v2801 = vpack.c.b16 %v2792, %v2791
        %v2802 = vpack.c.b16 %v2794, %v2793
        %2811 = vmatpush.bf16.msra.mxu0 %v2802
        %2812 = vmatpush.bf16.msra.mxu0 %v2801
        %2813 = vmatpush.bf16.msra.mxu0 %v2800
        %2814 = vmatpush.bf16.msra.mxu0 %v2799
        %2815 = vmatpush.bf16.msra.mxu0 %v2798
        %2816 = vmatpush.bf16.msra.mxu0 %v2797
        %2817 = vmatpush.bf16.msra.mxu0 %v2796
        %2818 = vmatpush.bf16.msra.mxu0 %v2795
        %2819 = vmatmul.bf16.gmra.mxu0 %v2741
        %v2820 = vpop.f32.mrf.mxu0
        %v2821 = vadd.f32 0.0, %v2820
        %v2822 = vpop.f32.mrf.mxu0
        %v2823 = vadd.f32 0.0, %v2822
        %2824 = vmatmul.bf16.gmra.mxu0 %v2742
        %v2825 = vpop.f32.mrf.mxu0
        %v2826 = vadd.f32 0.0, %v2825
        %v2827 = vpop.f32.mrf.mxu0
        %v2828 = vadd.f32 0.0, %v2827
        %2829 = vmatmul.bf16.gmra.mxu0 %v2743
        %v2830 = vpop.f32.mrf.mxu0
        %v2831 = vadd.f32 0.0, %v2830
        %v2832 = vpop.f32.mrf.mxu0
        %v2833 = vadd.f32 0.0, %v2832
        %2834 = vmatmul.bf16.gmra.mxu0 %v2744
        %v2835 = vpop.f32.mrf.mxu0
        %v2836 = vadd.f32 0.0, %v2835
        %v2837 = vpop.f32.mrf.mxu0
        %v2838 = vadd.f32 0.0, %v2837
        %2839 = vmatmul.bf16.gmra.mxu0 %v2745
        %v2840 = vpop.f32.mrf.mxu0
        %v2841 = vadd.f32 0.0, %v2840
        %v2842 = vpop.f32.mrf.mxu0
        %v2843 = vadd.f32 0.0, %v2842
        %2844 = vmatmul.bf16.gmra.mxu0 %v2746
        %v2845 = vpop.f32.mrf.mxu0
        %v2846 = vadd.f32 0.0, %v2845
        %v2847 = vpop.f32.mrf.mxu0
        %v2848 = vadd.f32 0.0, %v2847
        %2849 = vdwg.mxu0
        %v2850 = vadd.f32 %v2700, %v2821
        %v2851 = vadd.f32 %v2702, %v2823
        %v2852 = vadd.f32 %v2705, %v2826
        %v2853 = vadd.f32 %v2707, %v2828
        %v2854 = vadd.f32 %v2710, %v2831
        %v2855 = vadd.f32 %v2712, %v2833
        %v2856 = vadd.f32 %v2715, %v2836
        %v2857 = vadd.f32 %v2717, %v2838
        %v2858 = vadd.f32 %v2720, %v2841
        %v2859 = vadd.f32 %v2722, %v2843
        %v2860 = vadd.f32 %v2725, %v2846
        %v2861 = vadd.f32 %v2727, %v2848
        %v2862 = vld [vmem:[#allocation3 + $0xb] sm:$0xff]
        %v2863 = vld [vmem:[#allocation3 + $0x13] sm:$0xff]
        %v2864 = vld [vmem:[#allocation3 + $0x1b] sm:$0xff]
        %v2865 = vld [vmem:[#allocation3 + $0x23] sm:$0xff]
        %v2866 = vld [vmem:[#allocation3 + $0x2b] sm:$0xff]
        %v2867 = vld [vmem:[#allocation3 + $0x33] sm:$0xff]
        %v2868 = vld [vmem:[#allocation3 + $0x3b] sm:$0xff]
        %v2869 = vld [vmem:[#allocation3 + $0x43] sm:$0xff]
        %v2870 = vld [vmem:[#allocation3 + $0x4b] sm:$0xff]
        %v2871 = vld [vmem:[#allocation3 + $0x53] sm:$0xff]
        %v2872 = vld [vmem:[#allocation3 + $0x5b] sm:$0xff]
        %v2873 = vld [vmem:[#allocation3 + $0x63] sm:$0x1]
        %v2874 = vpack.c.bf16 %v2863, %v2862
        %v2875 = vpack.c.bf16 %v2865, %v2864
        %v2876 = vpack.c.bf16 %v2867, %v2866
        %v2877 = vpack.c.bf16 %v2869, %v2868
        %v2878 = vpack.c.bf16 %v2871, %v2870
        %v2879 = vpack.c.bf16 %v2873, %v2872
        %v2880 = vld [vmem:[%s3 + $0xc0] sm:$0xf]
        %v2881 = vld [vmem:[%s3 + $0xc4] sm:$0xf]
        %v2882 = vld [vmem:[%s3 + $0xc8] sm:$0xf]
        %v2883 = vld [vmem:[%s3 + $0xcc] sm:$0xf]
        %v2884 = vld [vmem:[%s3 + $0xd0] sm:$0xf]
        %v2885 = vld [vmem:[%s3 + $0xd4] sm:$0xf]
        %v2886 = vld [vmem:[%s3 + $0xd8] sm:$0xf]
        %v2887 = vld [vmem:[%s3 + $0xdc] sm:$0xf]
        %v2888 = vld [vmem:[%s3 + $0xe0] sm:$0xf]
        %v2889 = vld [vmem:[%s3 + $0xe4] sm:$0xf]
        %v2890 = vld [vmem:[%s3 + $0xe8] sm:$0xf]
        %v2891 = vld [vmem:[%s3 + $0xec] sm:$0xf]
        %v2892 = vld [vmem:[%s3 + $0xf0] sm:$0xf]
        %v2893 = vld [vmem:[%s3 + $0xf4] sm:$0xf]
        %v2894 = vld [vmem:[%s3 + $0xf8] sm:$0xf]
        %v2895 = vld [vmem:[%s3 + $0xfc] sm:$0xf]
        %v2912 = vunpack.c.l.b16 %v2880
        %v2913 = vunpack.c.l.b16 %v2881
        %v2914 = vunpack.c.l.b16 %v2882
        %v2915 = vunpack.c.l.b16 %v2883
        %v2916 = vunpack.c.l.b16 %v2884
        %v2917 = vunpack.c.l.b16 %v2885
        %v2918 = vunpack.c.l.b16 %v2886
        %v2919 = vunpack.c.l.b16 %v2887
        %v2920 = vunpack.c.l.b16 %v2888
        %v2921 = vunpack.c.l.b16 %v2889
        %v2922 = vunpack.c.l.b16 %v2890
        %v2923 = vunpack.c.l.b16 %v2891
        %v2924 = vunpack.c.l.b16 %v2892
        %v2925 = vunpack.c.l.b16 %v2893
        %v2926 = vunpack.c.l.b16 %v2894
        %v2927 = vunpack.c.l.b16 %v2895
        %v2928 = vpack.c.b16 %v2913, %v2912
        %v2929 = vpack.c.b16 %v2915, %v2914
        %v2930 = vpack.c.b16 %v2917, %v2916
        %v2931 = vpack.c.b16 %v2919, %v2918
        %v2932 = vpack.c.b16 %v2921, %v2920
        %v2933 = vpack.c.b16 %v2923, %v2922
        %v2934 = vpack.c.b16 %v2925, %v2924
        %v2935 = vpack.c.b16 %v2927, %v2926
        %2944 = vmatpush.bf16.msra.mxu0 %v2935
        %2945 = vmatpush.bf16.msra.mxu0 %v2934
        %2946 = vmatpush.bf16.msra.mxu0 %v2933
        %2947 = vmatpush.bf16.msra.mxu0 %v2932
        %2948 = vmatpush.bf16.msra.mxu0 %v2931
        %2949 = vmatpush.bf16.msra.mxu0 %v2930
        %2950 = vmatpush.bf16.msra.mxu0 %v2929
        %2951 = vmatpush.bf16.msra.mxu0 %v2928
        %2952 = vmatmul.bf16.gmra.mxu0 %v2874
        %v2953 = vpop.f32.mrf.mxu0
        %v2954 = vadd.f32 0.0, %v2953
        %v2955 = vpop.f32.mrf.mxu0
        %v2956 = vadd.f32 0.0, %v2955
        %2957 = vmatmul.bf16.gmra.mxu0 %v2875
        %v2958 = vpop.f32.mrf.mxu0
        %v2959 = vadd.f32 0.0, %v2958
        %v2960 = vpop.f32.mrf.mxu0
        %v2961 = vadd.f32 0.0, %v2960
        %2962 = vmatmul.bf16.gmra.mxu0 %v2876
        %v2963 = vpop.f32.mrf.mxu0
        %v2964 = vadd.f32 0.0, %v2963
        %v2965 = vpop.f32.mrf.mxu0
        %v2966 = vadd.f32 0.0, %v2965
        %2967 = vmatmul.bf16.gmra.mxu0 %v2877
        %v2968 = vpop.f32.mrf.mxu0
        %v2969 = vadd.f32 0.0, %v2968
        %v2970 = vpop.f32.mrf.mxu0
        %v2971 = vadd.f32 0.0, %v2970
        %2972 = vmatmul.bf16.gmra.mxu0 %v2878
        %v2973 = vpop.f32.mrf.mxu0
        %v2974 = vadd.f32 0.0, %v2973
        %v2975 = vpop.f32.mrf.mxu0
        %v2976 = vadd.f32 0.0, %v2975
        %2977 = vmatmul.bf16.gmra.mxu0 %v2879
        %v2978 = vpop.f32.mrf.mxu0
        %v2979 = vadd.f32 0.0, %v2978
        %v2980 = vpop.f32.mrf.mxu0
        %v2981 = vadd.f32 0.0, %v2980
        %2982 = vdwg.mxu0
        %v2983 = vadd.f32 %v2850, %v2954
        %v2984 = vadd.f32 %v2851, %v2956
        %v2985 = vadd.f32 %v2852, %v2959
        %v2986 = vadd.f32 %v2853, %v2961
        %v2987 = vadd.f32 %v2854, %v2964
        %v2988 = vadd.f32 %v2855, %v2966
        %v2989 = vadd.f32 %v2856, %v2969
        %v2990 = vadd.f32 %v2857, %v2971
        %v2991 = vadd.f32 %v2858, %v2974
        %v2992 = vadd.f32 %v2859, %v2976
        %v2993 = vadd.f32 %v2860, %v2979
        %v2994 = vadd.f32 %v2861, %v2981
        %v2995 = vld [vmem:[%s4] sm:$0x1]
        %v2997 = vperm.slane %v2995, 0
        %v2999 = vadd.f32 %v2983, %v2997
        %v3000 = vadd.f32 %v2984, %v2997
        %v3001 = vadd.f32 %v2985, %v2997
        %v3002 = vadd.f32 %v2986, %v2997
        %v3003 = vadd.f32 %v2987, %v2997
        %v3004 = vadd.f32 %v2988, %v2997
        %v3005 = vadd.f32 %v2989, %v2997
        %v3006 = vadd.f32 %v2990, %v2997
        %v3007 = vadd.f32 %v2991, %v2997
        %v3008 = vadd.f32 %v2992, %v2997
        %v3009 = vadd.f32 %v2993, %v2997
        %v3010 = vadd.f32 %v2994, %v2997
        %v3011 = vmax.f32 %v2999, 0.0
        %v3012 = vmax.f32 %v3000, 0.0
        %v3013 = vmax.f32 %v3001, 0.0
        %v3014 = vmax.f32 %v3002, 0.0
        %v3015 = vmax.f32 %v3003, 0.0
        %v3016 = vmax.f32 %v3004, 0.0
        %v3017 = vmax.f32 %v3005, 0.0
        %v3018 = vmax.f32 %v3006, 0.0
        %v3019 = vmax.f32 %v3007, 0.0
        %v3020 = vmax.f32 %v3008, 0.0
        %v3021 = vmax.f32 %v3009, 0.0
        %v3022 = vmax.f32 %v3010, 0.0
        %v3023 = vpack.c.bf16 %v3012, %v3011
        %v3024 = vpack.c.bf16 %v3014, %v3013
        %v3025 = vpack.c.bf16 %v3016, %v3015
        %v3026 = vpack.c.bf16 %v3018, %v3017
        %v3027 = vpack.c.bf16 %v3019, %v3019
        %v3028 = vld [vmem:[%s5] sm:$0xf]
        %v3029 = vld [vmem:[%s5 + $0x4] sm:$0xf]
        %v3030 = vld [vmem:[%s5 + $0x8] sm:$0xf]
        %v3031 = vld [vmem:[%s5 + $0xc] sm:$0xf]
        %v3032 = vld [vmem:[%s5 + $0x10] sm:$0xf]
        %v3033 = vld [vmem:[%s5 + $0x14] sm:$0xf]
        %v3034 = vld [vmem:[%s5 + $0x18] sm:$0xf]
        %v3035 = vld [vmem:[%s5 + $0x1c] sm:$0xf]
        %v3036 = vld [vmem:[%s5 + $0x20] sm:$0xf]
        %v3037 = vld [vmem:[%s5 + $0x24] sm:$0xf]
        %v3038 = vld [vmem:[%s5 + $0x28] sm:$0xf]
        %v3039 = vld [vmem:[%s5 + $0x2c] sm:$0xf]
        %v3040 = vld [vmem:[%s5 + $0x30] sm:$0xf]
        %v3041 = vld [vmem:[%s5 + $0x34] sm:$0xf]
        %v3042 = vld [vmem:[%s5 + $0x38] sm:$0xf]
        %v3043 = vld [vmem:[%s5 + $0x3c] sm:$0xf]
        %vm3044 = vsmask.f32 7424
        %v3046 = vshrl.u32 %v3023, 16
        %v3048 = vshll.u32 %v3023, 16
        %v3050 = vrot.slane %v3048, 1
        %v3051 = vor.u32 %v3046, %v3050
        %v3053 = vshll.u32 %v3024, 16
        %v3055 = vrot.slane %v3053, 1
        %v3056 = vsel %vm3044, %v3051, %v3055
        %v3057 = vshrl.u32 %v3024, 16
        %v3059 = vor.u32 %v3057, %v3055
        %v3061 = vshll.u32 %v3025, 16
        %v3063 = vrot.slane %v3061, 1
        %v3064 = vsel %vm3044, %v3059, %v3063
        %v3065 = vshrl.u32 %v3025, 16
        %v3067 = vor.u32 %v3065, %v3063
        %v3069 = vshll.u32 %v3026, 16
        %v3071 = vrot.slane %v3069, 1
        %v3072 = vsel %vm3044, %v3067, %v3071
        %v3073 = vshrl.u32 %v3026, 16
        %v3075 = vor.u32 %v3073, %v3071
        %v3077 = vshll.u32 %v3027, 16
        %v3079 = vrot.slane %v3077, 1
        %v3080 = vsel %vm3044, %v3075, %v3079
        %v3081 = vshrl.u32 %v3027, 16
        %v3083 = vor.u32 %v3081, %v3079
        %v3092 = vunpack.c.l.b16 %v3036
        %v3093 = vunpack.c.l.b16 %v3037
        %v3094 = vunpack.c.l.b16 %v3038
        %v3095 = vunpack.c.l.b16 %v3039
        %v3096 = vunpack.c.l.b16 %v3040
        %v3097 = vunpack.c.l.b16 %v3041
        %v3098 = vunpack.c.l.b16 %v3042
        %v3099 = vunpack.c.l.b16 %v3043
        %v3100 = vpack.c.b16 %v3093, %v3092
        %v3101 = vpack.c.b16 %v3095, %v3094
        %v3102 = vpack.c.b16 %v3097, %v3096
        %v3103 = vpack.c.b16 %v3099, %v3098
        %v3109 = vsel %vm585, %v3056, 0
        %v3112 = vsel %vm585, %v3064, 0
        %v3115 = vsel %vm585, %v3072, 0
        %v3118 = vsel %vm585, %v3080, 0
        %v3121 = vsel %vm585, %v3083, 0
        %3123 = vmatpush.bf16.msra.mxu0 0
        %3124 = vmatpush.bf16.msra.mxu0 0
        %3125 = vmatpush.bf16.msra.mxu0 0
        %3126 = vmatpush.bf16.msra.mxu0 0
        %3127 = vmatpush.bf16.msra.mxu0 %v3103
        %3128 = vmatpush.bf16.msra.mxu0 %v3102
        %3129 = vmatpush.bf16.msra.mxu0 %v3101
        %3130 = vmatpush.bf16.msra.mxu0 %v3100
        %3131 = vmatmul.bf16.gmra.mxu0 %v3109
        %v3132 = vpop.f32.mrf.mxu0
        %v3133 = vadd.f32 0.0, %v3132
        %v3134 = vpop.f32.mrf.mxu0
        %v3135 = vadd.f32 0.0, %v3134
        %3136 = vmatmul.bf16.gmra.mxu0 %v3112
        %v3137 = vpop.f32.mrf.mxu0
        %v3138 = vadd.f32 0.0, %v3137
        %v3139 = vpop.f32.mrf.mxu0
        %v3140 = vadd.f32 0.0, %v3139
        %3141 = vmatmul.bf16.gmra.mxu0 %v3115
        %v3142 = vpop.f32.mrf.mxu0
        %v3143 = vadd.f32 0.0, %v3142
        %v3144 = vpop.f32.mrf.mxu0
        %v3145 = vadd.f32 0.0, %v3144
        %3146 = vmatmul.bf16.gmra.mxu0 %v3118
        %v3147 = vpop.f32.mrf.mxu0
        %v3148 = vadd.f32 0.0, %v3147
        %v3149 = vpop.f32.mrf.mxu0
        %v3150 = vadd.f32 0.0, %v3149
        %3151 = vmatmul.bf16.gmra.mxu0 %v3121
        %v3152 = vpop.f32.mrf.mxu0
        %v3153 = vadd.f32 0.0, %v3152
        %v3154 = vpop.f32.mrf.mxu0
        %3155 = vdwg.mxu0
        %v3164 = vunpack.c.l.b16 %v3028
        %v3165 = vunpack.c.l.b16 %v3029
        %v3166 = vunpack.c.l.b16 %v3030
        %v3167 = vunpack.c.l.b16 %v3031
        %v3168 = vunpack.c.l.b16 %v3032
        %v3169 = vunpack.c.l.b16 %v3033
        %v3170 = vunpack.c.l.b16 %v3034
        %v3171 = vunpack.c.l.b16 %v3035
        %v3172 = vpack.c.b16 %v3165, %v3164
        %v3173 = vpack.c.b16 %v3167, %v3166
        %v3174 = vpack.c.b16 %v3169, %v3168
        %v3175 = vpack.c.b16 %v3171, %v3170
        %v3180 = vsel %vm585, %v3023, 0
        %v3182 = vsel %vm585, %v3024, 0
        %v3184 = vsel %vm585, %v3025, 0
        %v3186 = vsel %vm585, %v3026, 0
        %v3188 = vsel %vm585, %v3027, 0
        %3190 = vmatpush.bf16.msra.mxu0 0
        %3191 = vmatpush.bf16.msra.mxu0 0
        %3192 = vmatpush.bf16.msra.mxu0 0
        %3193 = vmatpush.bf16.msra.mxu0 0
        %3194 = vmatpush.bf16.msra.mxu0 %v3175
        %3195 = vmatpush.bf16.msra.mxu0 %v3174
        %3196 = vmatpush.bf16.msra.mxu0 %v3173
        %3197 = vmatpush.bf16.msra.mxu0 %v3172
        %3198 = vmatmul.bf16.gmra.mxu0 %v3180
        %v3199 = vpop.f32.mrf.mxu0
        %v3200 = vadd.f32 %v3133, %v3199
        %v3201 = vpop.f32.mrf.mxu0
        %v3202 = vadd.f32 %v3135, %v3201
        %3203 = vmatmul.bf16.gmra.mxu0 %v3182
        %v3204 = vpop.f32.mrf.mxu0
        %v3205 = vadd.f32 %v3138, %v3204
        %v3206 = vpop.f32.mrf.mxu0
        %v3207 = vadd.f32 %v3140, %v3206
        %3208 = vmatmul.bf16.gmra.mxu0 %v3184
        %v3209 = vpop.f32.mrf.mxu0
        %v3210 = vadd.f32 %v3143, %v3209
        %v3211 = vpop.f32.mrf.mxu0
        %v3212 = vadd.f32 %v3145, %v3211
        %3213 = vmatmul.bf16.gmra.mxu0 %v3186
        %v3214 = vpop.f32.mrf.mxu0
        %v3215 = vadd.f32 %v3148, %v3214
        %v3216 = vpop.f32.mrf.mxu0
        %v3217 = vadd.f32 %v3150, %v3216
        %3218 = vmatmul.bf16.gmra.mxu0 %v3188
        %v3219 = vpop.f32.mrf.mxu0
        %v3220 = vadd.f32 %v3153, %v3219
        %v3221 = vpop.f32.mrf.mxu0
        %3222 = vdwg.mxu0
        %v3223 = vld [vmem:[%s5 + $0x40] sm:$0xf]
        %v3224 = vld [vmem:[%s5 + $0x44] sm:$0xf]
        %v3225 = vld [vmem:[%s5 + $0x48] sm:$0xf]
        %v3226 = vld [vmem:[%s5 + $0x4c] sm:$0xf]
        %v3227 = vld [vmem:[%s5 + $0x50] sm:$0xf]
        %v3228 = vld [vmem:[%s5 + $0x54] sm:$0xf]
        %v3229 = vld [vmem:[%s5 + $0x58] sm:$0xf]
        %v3230 = vld [vmem:[%s5 + $0x5c] sm:$0xf]
        %vm3236 = vcmask 1046528
        %v3237 = vrot.slane %v3023, 1
        %v3238 = vrot.slane %v3024, 1
        %v3239 = vsel %vm3236, %v3237, %v3238
        %v3240 = vrot.slane %v3025, 1
        %v3241 = vsel %vm3236, %v3238, %v3240
        %v3242 = vrot.slane %v3026, 1
        %v3243 = vsel %vm3236, %v3240, %v3242
        %v3244 = vrot.slane %v3027, 1
        %v3245 = vsel %vm3236, %v3242, %v3244
        %v3254 = vunpack.c.l.b16 %v3223
        %v3255 = vunpack.c.l.b16 %v3224
        %v3256 = vunpack.c.l.b16 %v3225
        %v3257 = vunpack.c.l.b16 %v3226
        %v3258 = vunpack.c.l.b16 %v3227
        %v3259 = vunpack.c.l.b16 %v3228
        %v3260 = vunpack.c.l.b16 %v3229
        %v3261 = vunpack.c.l.b16 %v3230
        %v3262 = vpack.c.b16 %v3255, %v3254
        %v3263 = vpack.c.b16 %v3257, %v3256
        %v3264 = vpack.c.b16 %v3259, %v3258
        %v3265 = vpack.c.b16 %v3261, %v3260
        %v3271 = vsel %vm585, %v3239, 0
        %v3274 = vsel %vm585, %v3241, 0
        %v3277 = vsel %vm585, %v3243, 0
        %v3280 = vsel %vm585, %v3245, 0
        %v3283 = vsel %vm585, %v3244, 0
        %3285 = vmatpush.bf16.msra.mxu0 0
        %3286 = vmatpush.bf16.msra.mxu0 0
        %3287 = vmatpush.bf16.msra.mxu0 0
        %3288 = vmatpush.bf16.msra.mxu0 0
        %3289 = vmatpush.bf16.msra.mxu0 %v3265
        %3290 = vmatpush.bf16.msra.mxu0 %v3264
        %3291 = vmatpush.bf16.msra.mxu0 %v3263
        %3292 = vmatpush.bf16.msra.mxu0 %v3262
        %3293 = vmatmul.bf16.gmra.mxu0 %v3271
        %v3294 = vpop.f32.mrf.mxu0
        %v3295 = vadd.f32 0.0, %v3294
        %v3296 = vpop.f32.mrf.mxu0
        %v3297 = vadd.f32 0.0, %v3296
        %3298 = vmatmul.bf16.gmra.mxu0 %v3274
        %v3299 = vpop.f32.mrf.mxu0
        %v3300 = vadd.f32 0.0, %v3299
        %v3301 = vpop.f32.mrf.mxu0
        %v3302 = vadd.f32 0.0, %v3301
        %3303 = vmatmul.bf16.gmra.mxu0 %v3277
        %v3304 = vpop.f32.mrf.mxu0
        %v3305 = vadd.f32 0.0, %v3304
        %v3306 = vpop.f32.mrf.mxu0
        %v3307 = vadd.f32 0.0, %v3306
        %3308 = vmatmul.bf16.gmra.mxu0 %v3280
        %v3309 = vpop.f32.mrf.mxu0
        %v3310 = vadd.f32 0.0, %v3309
        %v3311 = vpop.f32.mrf.mxu0
        %v3312 = vadd.f32 0.0, %v3311
        %3313 = vmatmul.bf16.gmra.mxu0 %v3283
        %v3314 = vpop.f32.mrf.mxu0
        %v3315 = vadd.f32 0.0, %v3314
        %v3316 = vpop.f32.mrf.mxu0
        %3317 = vdwg.mxu0
        %v3318 = vadd.f32 %v3200, %v3295
        %v3319 = vadd.f32 %v3202, %v3297
        %v3320 = vadd.f32 %v3205, %v3300
        %v3321 = vadd.f32 %v3207, %v3302
        %v3322 = vadd.f32 %v3210, %v3305
        %v3323 = vadd.f32 %v3212, %v3307
        %v3324 = vadd.f32 %v3215, %v3310
        %v3325 = vadd.f32 %v3217, %v3312
        %v3326 = vadd.f32 %v3220, %v3315
        %v3327 = vpack.c.bf16 %v3013, %v3012
        %v3328 = vpack.c.bf16 %v3015, %v3014
        %v3329 = vpack.c.bf16 %v3017, %v3016
        %v3330 = vpack.c.bf16 %v3019, %v3018
        %v3331 = vpack.c.bf16 %v3020, %v3020
        %v3332 = vld [vmem:[%s5 + $0x60] sm:$0xf]
        %v3333 = vld [vmem:[%s5 + $0x64] sm:$0xf]
        %v3334 = vld [vmem:[%s5 + $0x68] sm:$0xf]
        %v3335 = vld [vmem:[%s5 + $0x6c] sm:$0xf]
        %v3336 = vld [vmem:[%s5 + $0x70] sm:$0xf]
        %v3337 = vld [vmem:[%s5 + $0x74] sm:$0xf]
        %v3338 = vld [vmem:[%s5 + $0x78] sm:$0xf]
        %v3339 = vld [vmem:[%s5 + $0x7c] sm:$0xf]
        %v3345 = vrot.slane %v3327, 1
        %v3346 = vrot.slane %v3328, 1
        %v3347 = vsel %vm3236, %v3345, %v3346
        %v3348 = vrot.slane %v3329, 1
        %v3349 = vsel %vm3236, %v3346, %v3348
        %v3350 = vrot.slane %v3330, 1
        %v3351 = vsel %vm3236, %v3348, %v3350
        %v3352 = vrot.slane %v3331, 1
        %v3353 = vsel %vm3236, %v3350, %v3352
        %v3362 = vunpack.c.l.b16 %v3332
        %v3363 = vunpack.c.l.b16 %v3333
        %v3364 = vunpack.c.l.b16 %v3334
        %v3365 = vunpack.c.l.b16 %v3335
        %v3366 = vunpack.c.l.b16 %v3336
        %v3367 = vunpack.c.l.b16 %v3337
        %v3368 = vunpack.c.l.b16 %v3338
        %v3369 = vunpack.c.l.b16 %v3339
        %v3370 = vpack.c.b16 %v3363, %v3362
        %v3371 = vpack.c.b16 %v3365, %v3364
        %v3372 = vpack.c.b16 %v3367, %v3366
        %v3373 = vpack.c.b16 %v3369, %v3368
        %v3379 = vsel %vm585, %v3347, 0
        %v3382 = vsel %vm585, %v3349, 0
        %v3385 = vsel %vm585, %v3351, 0
        %v3388 = vsel %vm585, %v3353, 0
        %v3391 = vsel %vm585, %v3352, 0
        %3393 = vmatpush.bf16.msra.mxu0 0
        %3394 = vmatpush.bf16.msra.mxu0 0
        %3395 = vmatpush.bf16.msra.mxu0 0
        %3396 = vmatpush.bf16.msra.mxu0 0
        %3397 = vmatpush.bf16.msra.mxu0 %v3373
        %3398 = vmatpush.bf16.msra.mxu0 %v3372
        %3399 = vmatpush.bf16.msra.mxu0 %v3371
        %3400 = vmatpush.bf16.msra.mxu0 %v3370
        %3401 = vmatmul.bf16.gmra.mxu0 %v3379
        %v3402 = vpop.f32.mrf.mxu0
        %v3403 = vadd.f32 0.0, %v3402
        %v3404 = vpop.f32.mrf.mxu0
        %v3405 = vadd.f32 0.0, %v3404
        %3406 = vmatmul.bf16.gmra.mxu0 %v3382
        %v3407 = vpop.f32.mrf.mxu0
        %v3408 = vadd.f32 0.0, %v3407
        %v3409 = vpop.f32.mrf.mxu0
        %v3410 = vadd.f32 0.0, %v3409
        %3411 = vmatmul.bf16.gmra.mxu0 %v3385
        %v3412 = vpop.f32.mrf.mxu0
        %v3413 = vadd.f32 0.0, %v3412
        %v3414 = vpop.f32.mrf.mxu0
        %v3415 = vadd.f32 0.0, %v3414
        %3416 = vmatmul.bf16.gmra.mxu0 %v3388
        %v3417 = vpop.f32.mrf.mxu0
        %v3418 = vadd.f32 0.0, %v3417
        %v3419 = vpop.f32.mrf.mxu0
        %v3420 = vadd.f32 0.0, %v3419
        %3421 = vmatmul.bf16.gmra.mxu0 %v3391
        %v3422 = vpop.f32.mrf.mxu0
        %v3423 = vadd.f32 0.0, %v3422
        %v3424 = vpop.f32.mrf.mxu0
        %3425 = vdwg.mxu0
        %v3426 = vadd.f32 %v3318, %v3403
        %v3427 = vadd.f32 %v3319, %v3405
        %v3428 = vadd.f32 %v3320, %v3408
        %v3429 = vadd.f32 %v3321, %v3410
        %v3430 = vadd.f32 %v3322, %v3413
        %v3431 = vadd.f32 %v3323, %v3415
        %v3432 = vadd.f32 %v3324, %v3418
        %v3433 = vadd.f32 %v3325, %v3420
        %v3434 = vadd.f32 %v3326, %v3423
        %v3435 = vld [vmem:[%s5 + $0x80] sm:$0xf]
        %v3436 = vld [vmem:[%s5 + $0x84] sm:$0xf]
        %v3437 = vld [vmem:[%s5 + $0x88] sm:$0xf]
        %v3438 = vld [vmem:[%s5 + $0x8c] sm:$0xf]
        %v3439 = vld [vmem:[%s5 + $0x90] sm:$0xf]
        %v3440 = vld [vmem:[%s5 + $0x94] sm:$0xf]
        %v3441 = vld [vmem:[%s5 + $0x98] sm:$0xf]
        %v3442 = vld [vmem:[%s5 + $0x9c] sm:$0xf]
        %vm3443 = vsmask.f32 6400
        %v3445 = vshrl.u32 %v3327, 16
        %v3447 = vrot.slane %v3445, 1
        %v3448 = vshll.u32 %v3327, 16
        %v3450 = vrot.slane %v3448, 2
        %v3451 = vor.u32 %v3447, %v3450
        %v3453 = vshrl.u32 %v3328, 16
        %v3455 = vrot.slane %v3453, 1
        %v3456 = vshll.u32 %v3328, 16
        %v3458 = vrot.slane %v3456, 2
        %v3459 = vor.u32 %v3455, %v3458
        %v3460 = vsel %vm3443, %v3451, %v3459
        %v3462 = vshrl.u32 %v3329, 16
        %v3464 = vrot.slane %v3462, 1
        %v3465 = vshll.u32 %v3329, 16
        %v3467 = vrot.slane %v3465, 2
        %v3468 = vor.u32 %v3464, %v3467
        %v3469 = vsel %vm3443, %v3459, %v3468
        %v3471 = vshrl.u32 %v3330, 16
        %v3473 = vrot.slane %v3471, 1
        %v3474 = vshll.u32 %v3330, 16
        %v3476 = vrot.slane %v3474, 2
        %v3477 = vor.u32 %v3473, %v3476
        %v3478 = vsel %vm3443, %v3468, %v3477
        %v3480 = vshrl.u32 %v3331, 16
        %v3482 = vrot.slane %v3480, 1
        %v3483 = vshll.u32 %v3331, 16
        %v3485 = vrot.slane %v3483, 2
        %v3486 = vor.u32 %v3482, %v3485
        %v3487 = vsel %vm3443, %v3477, %v3486
        %v3496 = vunpack.c.l.b16 %v3435
        %v3497 = vunpack.c.l.b16 %v3436
        %v3498 = vunpack.c.l.b16 %v3437
        %v3499 = vunpack.c.l.b16 %v3438
        %v3500 = vunpack.c.l.b16 %v3439
        %v3501 = vunpack.c.l.b16 %v3440
        %v3502 = vunpack.c.l.b16 %v3441
        %v3503 = vunpack.c.l.b16 %v3442
        %v3504 = vpack.c.b16 %v3497, %v3496
        %v3505 = vpack.c.b16 %v3499, %v3498
        %v3506 = vpack.c.b16 %v3501, %v3500
        %v3507 = vpack.c.b16 %v3503, %v3502
        %v3513 = vsel %vm585, %v3460, 0
        %v3516 = vsel %vm585, %v3469, 0
        %v3519 = vsel %vm585, %v3478, 0
        %v3522 = vsel %vm585, %v3487, 0
        %v3525 = vsel %vm585, %v3486, 0
        %3527 = vmatpush.bf16.msra.mxu0 0
        %3528 = vmatpush.bf16.msra.mxu0 0
        %3529 = vmatpush.bf16.msra.mxu0 0
        %3530 = vmatpush.bf16.msra.mxu0 0
        %3531 = vmatpush.bf16.msra.mxu0 %v3507
        %3532 = vmatpush.bf16.msra.mxu0 %v3506
        %3533 = vmatpush.bf16.msra.mxu0 %v3505
        %3534 = vmatpush.bf16.msra.mxu0 %v3504
        %3535 = vmatmul.bf16.gmra.mxu0 %v3513
        %v3536 = vpop.f32.mrf.mxu0
        %v3537 = vadd.f32 0.0, %v3536
        %v3538 = vpop.f32.mrf.mxu0
        %v3539 = vadd.f32 0.0, %v3538
        %3540 = vmatmul.bf16.gmra.mxu0 %v3516
        %v3541 = vpop.f32.mrf.mxu0
        %v3542 = vadd.f32 0.0, %v3541
        %v3543 = vpop.f32.mrf.mxu0
        %v3544 = vadd.f32 0.0, %v3543
        %3545 = vmatmul.bf16.gmra.mxu0 %v3519
        %v3546 = vpop.f32.mrf.mxu0
        %v3547 = vadd.f32 0.0, %v3546
        %v3548 = vpop.f32.mrf.mxu0
        %v3549 = vadd.f32 0.0, %v3548
        %3550 = vmatmul.bf16.gmra.mxu0 %v3522
        %v3551 = vpop.f32.mrf.mxu0
        %v3552 = vadd.f32 0.0, %v3551
        %v3553 = vpop.f32.mrf.mxu0
        %v3554 = vadd.f32 0.0, %v3553
        %3555 = vmatmul.bf16.gmra.mxu0 %v3525
        %v3556 = vpop.f32.mrf.mxu0
        %v3557 = vadd.f32 0.0, %v3556
        %v3558 = vpop.f32.mrf.mxu0
        %3559 = vdwg.mxu0
        %v3560 = vadd.f32 %v3426, %v3537
        %v3561 = vadd.f32 %v3427, %v3539
        %v3562 = vadd.f32 %v3428, %v3542
        %v3563 = vadd.f32 %v3429, %v3544
        %v3564 = vadd.f32 %v3430, %v3547
        %v3565 = vadd.f32 %v3431, %v3549
        %v3566 = vadd.f32 %v3432, %v3552
        %v3567 = vadd.f32 %v3433, %v3554
        %v3568 = vadd.f32 %v3434, %v3557
        %v3569 = vld [vmem:[%s5 + $0xa0] sm:$0xf]
        %v3570 = vld [vmem:[%s5 + $0xa4] sm:$0xf]
        %v3571 = vld [vmem:[%s5 + $0xa8] sm:$0xf]
        %v3572 = vld [vmem:[%s5 + $0xac] sm:$0xf]
        %v3573 = vld [vmem:[%s5 + $0xb0] sm:$0xf]
        %v3574 = vld [vmem:[%s5 + $0xb4] sm:$0xf]
        %v3575 = vld [vmem:[%s5 + $0xb8] sm:$0xf]
        %v3576 = vld [vmem:[%s5 + $0xbc] sm:$0xf]
        %vm3577 = vcmask 1045504
        %v3578 = vrot.slane %v3327, 2
        %v3579 = vrot.slane %v3328, 2
        %v3580 = vsel %vm3577, %v3578, %v3579
        %v3581 = vrot.slane %v3329, 2
        %v3582 = vsel %vm3577, %v3579, %v3581
        %v3583 = vrot.slane %v3330, 2
        %v3584 = vsel %vm3577, %v3581, %v3583
        %v3585 = vrot.slane %v3331, 2
        %v3586 = vsel %vm3577, %v3583, %v3585
        %v3595 = vunpack.c.l.b16 %v3569
        %v3596 = vunpack.c.l.b16 %v3570
        %v3597 = vunpack.c.l.b16 %v3571
        %v3598 = vunpack.c.l.b16 %v3572
        %v3599 = vunpack.c.l.b16 %v3573
        %v3600 = vunpack.c.l.b16 %v3574
        %v3601 = vunpack.c.l.b16 %v3575
        %v3602 = vunpack.c.l.b16 %v3576
        %v3603 = vpack.c.b16 %v3596, %v3595
        %v3604 = vpack.c.b16 %v3598, %v3597
        %v3605 = vpack.c.b16 %v3600, %v3599
        %v3606 = vpack.c.b16 %v3602, %v3601
        %v3612 = vsel %vm585, %v3580, 0
        %v3615 = vsel %vm585, %v3582, 0
        %v3618 = vsel %vm585, %v3584, 0
        %v3621 = vsel %vm585, %v3586, 0
        %v3624 = vsel %vm585, %v3585, 0
        %3626 = vmatpush.bf16.msra.mxu0 0
        %3627 = vmatpush.bf16.msra.mxu0 0
        %3628 = vmatpush.bf16.msra.mxu0 0
        %3629 = vmatpush.bf16.msra.mxu0 0
        %3630 = vmatpush.bf16.msra.mxu0 %v3606
        %3631 = vmatpush.bf16.msra.mxu0 %v3605
        %3632 = vmatpush.bf16.msra.mxu0 %v3604
        %3633 = vmatpush.bf16.msra.mxu0 %v3603
        %3634 = vmatmul.bf16.gmra.mxu0 %v3612
        %v3635 = vpop.f32.mrf.mxu0
        %v3636 = vadd.f32 0.0, %v3635
        %v3637 = vpop.f32.mrf.mxu0
        %v3638 = vadd.f32 0.0, %v3637
        %3639 = vmatmul.bf16.gmra.mxu0 %v3615
        %v3640 = vpop.f32.mrf.mxu0
        %v3641 = vadd.f32 0.0, %v3640
        %v3642 = vpop.f32.mrf.mxu0
        %v3643 = vadd.f32 0.0, %v3642
        %3644 = vmatmul.bf16.gmra.mxu0 %v3618
        %v3645 = vpop.f32.mrf.mxu0
        %v3646 = vadd.f32 0.0, %v3645
        %v3647 = vpop.f32.mrf.mxu0
        %v3648 = vadd.f32 0.0, %v3647
        %3649 = vmatmul.bf16.gmra.mxu0 %v3621
        %v3650 = vpop.f32.mrf.mxu0
        %v3651 = vadd.f32 0.0, %v3650
        %v3652 = vpop.f32.mrf.mxu0
        %v3653 = vadd.f32 0.0, %v3652
        %3654 = vmatmul.bf16.gmra.mxu0 %v3624
        %v3655 = vpop.f32.mrf.mxu0
        %v3656 = vadd.f32 0.0, %v3655
        %v3657 = vpop.f32.mrf.mxu0
        %3658 = vdwg.mxu0
        %v3659 = vadd.f32 %v3560, %v3636
        %v3660 = vadd.f32 %v3561, %v3638
        %v3661 = vadd.f32 %v3562, %v3641
        %v3662 = vadd.f32 %v3563, %v3643
        %v3663 = vadd.f32 %v3564, %v3646
        %v3664 = vadd.f32 %v3565, %v3648
        %v3665 = vadd.f32 %v3566, %v3651
        %v3666 = vadd.f32 %v3567, %v3653
        %v3667 = vadd.f32 %v3568, %v3656
        %v3668 = vpack.c.bf16 %v3020, %v3019
        %v3669 = vpack.c.bf16 %v3021, %v3021
        %v3670 = vld [vmem:[%s5 + $0xc0] sm:$0xf]
        %v3671 = vld [vmem:[%s5 + $0xc4] sm:$0xf]
        %v3672 = vld [vmem:[%s5 + $0xc8] sm:$0xf]
        %v3673 = vld [vmem:[%s5 + $0xcc] sm:$0xf]
        %v3674 = vld [vmem:[%s5 + $0xd0] sm:$0xf]
        %v3675 = vld [vmem:[%s5 + $0xd4] sm:$0xf]
        %v3676 = vld [vmem:[%s5 + $0xd8] sm:$0xf]
        %v3677 = vld [vmem:[%s5 + $0xdc] sm:$0xf]
        %v3680 = vrot.slane %v3024, 2
        %v3681 = vrot.slane %v3025, 2
        %v3682 = vsel %vm3577, %v3680, %v3681
        %v3683 = vrot.slane %v3026, 2
        %v3684 = vsel %vm3577, %v3681, %v3683
        %v3685 = vrot.slane %v3668, 2
        %v3686 = vsel %vm3577, %v3683, %v3685
        %v3687 = vrot.slane %v3669, 2
        %v3688 = vsel %vm3577, %v3685, %v3687
        %v3697 = vunpack.c.l.b16 %v3670
        %v3698 = vunpack.c.l.b16 %v3671
        %v3699 = vunpack.c.l.b16 %v3672
        %v3700 = vunpack.c.l.b16 %v3673
        %v3701 = vunpack.c.l.b16 %v3674
        %v3702 = vunpack.c.l.b16 %v3675
        %v3703 = vunpack.c.l.b16 %v3676
        %v3704 = vunpack.c.l.b16 %v3677
        %v3705 = vpack.c.b16 %v3698, %v3697
        %v3706 = vpack.c.b16 %v3700, %v3699
        %v3707 = vpack.c.b16 %v3702, %v3701
        %v3708 = vpack.c.b16 %v3704, %v3703
        %v3714 = vsel %vm585, %v3682, 0
        %v3717 = vsel %vm585, %v3684, 0
        %v3720 = vsel %vm585, %v3686, 0
        %v3723 = vsel %vm585, %v3688, 0
        %v3726 = vsel %vm585, %v3687, 0
        %3728 = vmatpush.bf16.msra.mxu0 0
        %3729 = vmatpush.bf16.msra.mxu0 0
        %3730 = vmatpush.bf16.msra.mxu0 0
        %3731 = vmatpush.bf16.msra.mxu0 0
        %3732 = vmatpush.bf16.msra.mxu0 %v3708
        %3733 = vmatpush.bf16.msra.mxu0 %v3707
        %3734 = vmatpush.bf16.msra.mxu0 %v3706
        %3735 = vmatpush.bf16.msra.mxu0 %v3705
        %3736 = vmatmul.bf16.gmra.mxu0 %v3714
        %v3737 = vpop.f32.mrf.mxu0
        %v3738 = vadd.f32 0.0, %v3737
        %v3739 = vpop.f32.mrf.mxu0
        %v3740 = vadd.f32 0.0, %v3739
        %3741 = vmatmul.bf16.gmra.mxu0 %v3717
        %v3742 = vpop.f32.mrf.mxu0
        %v3743 = vadd.f32 0.0, %v3742
        %v3744 = vpop.f32.mrf.mxu0
        %v3745 = vadd.f32 0.0, %v3744
        %3746 = vmatmul.bf16.gmra.mxu0 %v3720
        %v3747 = vpop.f32.mrf.mxu0
        %v3748 = vadd.f32 0.0, %v3747
        %v3749 = vpop.f32.mrf.mxu0
        %v3750 = vadd.f32 0.0, %v3749
        %3751 = vmatmul.bf16.gmra.mxu0 %v3723
        %v3752 = vpop.f32.mrf.mxu0
        %v3753 = vadd.f32 0.0, %v3752
        %v3754 = vpop.f32.mrf.mxu0
        %v3755 = vadd.f32 0.0, %v3754
        %3756 = vmatmul.bf16.gmra.mxu0 %v3726
        %v3757 = vpop.f32.mrf.mxu0
        %v3758 = vadd.f32 0.0, %v3757
        %v3759 = vpop.f32.mrf.mxu0
        %3760 = vdwg.mxu0
        %v3761 = vadd.f32 %v3659, %v3738
        %v3762 = vadd.f32 %v3660, %v3740
        %v3763 = vadd.f32 %v3661, %v3743
        %v3764 = vadd.f32 %v3662, %v3745
        %v3765 = vadd.f32 %v3663, %v3748
        %v3766 = vadd.f32 %v3664, %v3750
        %v3767 = vadd.f32 %v3665, %v3753
        %v3768 = vadd.f32 %v3666, %v3755
        %v3769 = vadd.f32 %v3667, %v3758
        %v3770 = vld [vmem:[%s5 + $0xe0] sm:$0xf]
        %v3771 = vld [vmem:[%s5 + $0xe4] sm:$0xf]
        %v3772 = vld [vmem:[%s5 + $0xe8] sm:$0xf]
        %v3773 = vld [vmem:[%s5 + $0xec] sm:$0xf]
        %v3774 = vld [vmem:[%s5 + $0xf0] sm:$0xf]
        %v3775 = vld [vmem:[%s5 + $0xf4] sm:$0xf]
        %v3776 = vld [vmem:[%s5 + $0xf8] sm:$0xf]
        %v3777 = vld [vmem:[%s5 + $0xfc] sm:$0xf]
        %vm3778 = vsmask.f32 5376
        %v3779 = vrot.slane %v3057, 2
        %v3780 = vrot.slane %v3053, 3
        %v3781 = vor.u32 %v3779, %v3780
        %v3782 = vrot.slane %v3065, 2
        %v3783 = vrot.slane %v3061, 3
        %v3784 = vor.u32 %v3782, %v3783
        %v3785 = vsel %vm3778, %v3781, %v3784
        %v3786 = vrot.slane %v3073, 2
        %v3787 = vrot.slane %v3069, 3
        %v3788 = vor.u32 %v3786, %v3787
        %v3789 = vsel %vm3778, %v3784, %v3788
        %v3791 = vshrl.u32 %v3668, 16
        %v3793 = vrot.slane %v3791, 2
        %v3794 = vshll.u32 %v3668, 16
        %v3796 = vrot.slane %v3794, 3
        %v3797 = vor.u32 %v3793, %v3796
        %v3798 = vsel %vm3778, %v3788, %v3797
        %v3800 = vshrl.u32 %v3669, 16
        %v3802 = vrot.slane %v3800, 2
        %v3803 = vshll.u32 %v3669, 16
        %v3805 = vrot.slane %v3803, 3
        %v3806 = vor.u32 %v3802, %v3805
        %v3807 = vsel %vm3778, %v3797, %v3806
        %v3816 = vunpack.c.l.b16 %v3770
        %v3817 = vunpack.c.l.b16 %v3771
        %v3818 = vunpack.c.l.b16 %v3772
        %v3819 = vunpack.c.l.b16 %v3773
        %v3820 = vunpack.c.l.b16 %v3774
        %v3821 = vunpack.c.l.b16 %v3775
        %v3822 = vunpack.c.l.b16 %v3776
        %v3823 = vunpack.c.l.b16 %v3777
        %v3824 = vpack.c.b16 %v3817, %v3816
        %v3825 = vpack.c.b16 %v3819, %v3818
        %v3826 = vpack.c.b16 %v3821, %v3820
        %v3827 = vpack.c.b16 %v3823, %v3822
        %v3833 = vsel %vm585, %v3785, 0
        %v3836 = vsel %vm585, %v3789, 0
        %v3839 = vsel %vm585, %v3798, 0
        %v3842 = vsel %vm585, %v3807, 0
        %v3845 = vsel %vm585, %v3806, 0
        %3847 = vmatpush.bf16.msra.mxu0 0
        %3848 = vmatpush.bf16.msra.mxu0 0
        %3849 = vmatpush.bf16.msra.mxu0 0
        %3850 = vmatpush.bf16.msra.mxu0 0
        %3851 = vmatpush.bf16.msra.mxu0 %v3827
        %3852 = vmatpush.bf16.msra.mxu0 %v3826
        %3853 = vmatpush.bf16.msra.mxu0 %v3825
        %3854 = vmatpush.bf16.msra.mxu0 %v3824
        %3855 = vmatmul.bf16.gmra.mxu0 %v3833
        %v3856 = vpop.f32.mrf.mxu0
        %v3857 = vadd.f32 0.0, %v3856
        %v3858 = vpop.f32.mrf.mxu0
        %v3859 = vadd.f32 0.0, %v3858
        %3860 = vmatmul.bf16.gmra.mxu0 %v3836
        %v3861 = vpop.f32.mrf.mxu0
        %v3862 = vadd.f32 0.0, %v3861
        %v3863 = vpop.f32.mrf.mxu0
        %v3864 = vadd.f32 0.0, %v3863
        %3865 = vmatmul.bf16.gmra.mxu0 %v3839
        %v3866 = vpop.f32.mrf.mxu0
        %v3867 = vadd.f32 0.0, %v3866
        %v3868 = vpop.f32.mrf.mxu0
        %v3869 = vadd.f32 0.0, %v3868
        %3870 = vmatmul.bf16.gmra.mxu0 %v3842
        %v3871 = vpop.f32.mrf.mxu0
        %v3872 = vadd.f32 0.0, %v3871
        %v3873 = vpop.f32.mrf.mxu0
        %v3874 = vadd.f32 0.0, %v3873
        %3875 = vmatmul.bf16.gmra.mxu0 %v3845
        %v3876 = vpop.f32.mrf.mxu0
        %v3877 = vadd.f32 0.0, %v3876
        %v3878 = vpop.f32.mrf.mxu0
        %3879 = vdwg.mxu0
        %v3880 = vadd.f32 %v3761, %v3857
        %v3881 = vadd.f32 %v3762, %v3859
        %v3882 = vadd.f32 %v3763, %v3862
        %v3883 = vadd.f32 %v3764, %v3864
        %v3884 = vadd.f32 %v3765, %v3867
        %v3885 = vadd.f32 %v3766, %v3869
        %v3886 = vadd.f32 %v3767, %v3872
        %v3887 = vadd.f32 %v3768, %v3874
        %v3888 = vadd.f32 %v3769, %v3877
        %v3889 = vpack.c.bf16 %v3022, %v3021
        %v3890 = vld [vmem:[%s5 + $0x100] sm:$0xf]
        %v3891 = vld [vmem:[%s5 + $0x104] sm:$0xf]
        %v3892 = vld [vmem:[%s5 + $0x108] sm:$0xf]
        %v3893 = vld [vmem:[%s5 + $0x10c] sm:$0xf]
        %v3894 = vld [vmem:[%s5 + $0x110] sm:$0xf]
        %v3895 = vld [vmem:[%s5 + $0x114] sm:$0xf]
        %v3896 = vld [vmem:[%s5 + $0x118] sm:$0xf]
        %v3897 = vld [vmem:[%s5 + $0x11c] sm:$0xf]
        %vm3899 = vcmask 1044480
        %v3900 = vrot.slane %v3024, 3
        %v3901 = vrot.slane %v3025, 3
        %v3902 = vsel %vm3899, %v3900, %v3901
        %v3903 = vrot.slane %v3026, 3
        %v3904 = vsel %vm3899, %v3901, %v3903
        %v3905 = vrot.slane %v3668, 3
        %v3906 = vsel %vm3899, %v3903, %v3905
        %v3907 = vrot.slane %v3889, 3
        %v3908 = vsel %vm3899, %v3905, %v3907
        %v3917 = vunpack.c.l.b16 %v3890
        %v3918 = vunpack.c.l.b16 %v3891
        %v3919 = vunpack.c.l.b16 %v3892
        %v3920 = vunpack.c.l.b16 %v3893
        %v3921 = vunpack.c.l.b16 %v3894
        %v3922 = vunpack.c.l.b16 %v3895
        %v3923 = vunpack.c.l.b16 %v3896
        %v3924 = vunpack.c.l.b16 %v3897
        %v3925 = vpack.c.b16 %v3918, %v3917
        %v3926 = vpack.c.b16 %v3920, %v3919
        %v3927 = vpack.c.b16 %v3922, %v3921
        %v3928 = vpack.c.b16 %v3924, %v3923
        %v3934 = vsel %vm585, %v3902, 0
        %v3937 = vsel %vm585, %v3904, 0
        %v3940 = vsel %vm585, %v3906, 0
        %v3943 = vsel %vm585, %v3908, 0
        %v3946 = vsel %vm585, %v3907, 0
        %3948 = vmatpush.bf16.msra.mxu0 0
        %3949 = vmatpush.bf16.msra.mxu0 0
        %3950 = vmatpush.bf16.msra.mxu0 0
        %3951 = vmatpush.bf16.msra.mxu0 0
        %3952 = vmatpush.bf16.msra.mxu0 %v3928
        %3953 = vmatpush.bf16.msra.mxu0 %v3927
        %3954 = vmatpush.bf16.msra.mxu0 %v3926
        %3955 = vmatpush.bf16.msra.mxu0 %v3925
        %3956 = vmatmul.bf16.gmra.mxu0 %v3934
        %v3957 = vpop.f32.mrf.mxu0
        %v3958 = vadd.f32 0.0, %v3957
        %v3959 = vpop.f32.mrf.mxu0
        %v3960 = vadd.f32 0.0, %v3959
        %3961 = vmatmul.bf16.gmra.mxu0 %v3937
        %v3962 = vpop.f32.mrf.mxu0
        %v3963 = vadd.f32 0.0, %v3962
        %v3964 = vpop.f32.mrf.mxu0
        %v3965 = vadd.f32 0.0, %v3964
        %3966 = vmatmul.bf16.gmra.mxu0 %v3940
        %v3967 = vpop.f32.mrf.mxu0
        %v3968 = vadd.f32 0.0, %v3967
        %v3969 = vpop.f32.mrf.mxu0
        %v3970 = vadd.f32 0.0, %v3969
        %3971 = vmatmul.bf16.gmra.mxu0 %v3943
        %v3972 = vpop.f32.mrf.mxu0
        %v3973 = vadd.f32 0.0, %v3972
        %v3974 = vpop.f32.mrf.mxu0
        %v3975 = vadd.f32 0.0, %v3974
        %3976 = vmatmul.bf16.gmra.mxu0 %v3946
        %v3977 = vpop.f32.mrf.mxu0
        %v3978 = vadd.f32 0.0, %v3977
        %v3979 = vpop.f32.mrf.mxu0
        %3980 = vdwg.mxu0
        %v3981 = vadd.f32 %v3880, %v3958
        %v3982 = vadd.f32 %v3881, %v3960
        %v3983 = vadd.f32 %v3882, %v3963
        %v3984 = vadd.f32 %v3883, %v3965
        %v3985 = vadd.f32 %v3884, %v3968
        %v3986 = vadd.f32 %v3885, %v3970
        %v3987 = vadd.f32 %v3886, %v3973
        %v3988 = vadd.f32 %v3887, %v3975
        %v3989 = vadd.f32 %v3888, %v3978
        %v3990 = vld [vmem:[%s6] sm:$0x1]
        %v3992 = vperm.slane %v3990, 0
        %v3994 = vadd.f32 %v3981, %v3992
        %v3995 = vadd.f32 %v3982, %v3992
        %v3996 = vadd.f32 %v3983, %v3992
        %v3997 = vadd.f32 %v3984, %v3992
        %v3998 = vadd.f32 %v3985, %v3992
        %v3999 = vadd.f32 %v3986, %v3992
        %v4000 = vadd.f32 %v3987, %v3992
        %v4001 = vadd.f32 %v3988, %v3992
        %v4002 = vadd.f32 %v3989, %v3992
        %v4003 = vmax.f32 %v3994, 0.0
        %v4004 = vmax.f32 %v3995, 0.0
        %v4005 = vmax.f32 %v3996, 0.0
        %v4006 = vmax.f32 %v3997, 0.0
        %v4007 = vmax.f32 %v3998, 0.0
        %v4008 = vmax.f32 %v3999, 0.0
        %v4009 = vmax.f32 %v4000, 0.0
        %v4010 = vmax.f32 %v4001, 0.0
        %v4011 = vmax.f32 %v4002, 0.0
        %v4012 = vlaneseq
        %vm4013 = vcmp.ge.s32.totalorder %v4012, 0
        %vm4014 = vcmp.lt.s32.totalorder %v4012, 64
        %vm4015 = vmand %vm4013, %vm4014
        %4016 = vst.msk [vmem:[#allocation4] sm:$0x1] %vm4015, %v4003
        %4018 = vst [vmem:[#allocation1] sm:$0xff] %v4003
        %s4019 = scalar_lea.vmem [#allocation1], 1
        %v4020 = vld [vmem:[%s4019] ss:$9 sm:$0xff]
        %4021 = vrot.lane.b32.xlu0 %v4020, 64
        %v4022 = vpop.permute.xlu0 %4021
        %vm4024 = vcmp.ge.s32.totalorder %v4012, 64
        %vm4025 = vcmp.lt.s32.totalorder %v4012, 128
        %vm4026 = vmand %vm4024, %vm4025
        %4027 = vst.msk [vmem:[#allocation4] sm:$0x1] %vm4026, %v4022
        %4028 = vst [vmem:[#allocation1] sm:$0xff] %v4003
        %s4029 = scalar_lea.vmem [#allocation1], 2
        %v4030 = vld [vmem:[%s4029] ss:$9 sm:$0xff]
        %4032 = vst.msk [vmem:[#allocation4 + $0x1] sm:$0x1] %vm4015, %v4030
        %4033 = vst [vmem:[#allocation1] sm:$0xff] %v4003
        %s4034 = scalar_lea.vmem [#allocation1], 3
        %v4035 = vld [vmem:[%s4034] ss:$9 sm:$0xff]
        %4036 = vrot.lane.b32.xlu0 %v4035, 64
        %v4037 = vpop.permute.xlu0 %4036
        %4039 = vst.msk [vmem:[#allocation4 + $0x1] sm:$0x1] %vm4026, %v4037
        %4040 = vst [vmem:[#allocation1] sm:$0xff] %v4003
        %s4041 = scalar_lea.vmem [#allocation1], 4
        %v4042 = vld [vmem:[%s4041] ss:$9 sm:$0xff]
        %4044 = vst.msk [vmem:[#allocation4 + $0x2] sm:$0x1] %vm4015, %v4042
        %4045 = vst [vmem:[#allocation1] sm:$0xff] %v4003
        %s4046 = scalar_lea.vmem [#allocation1], 5
        %v4047 = vld [vmem:[%s4046] ss:$9 sm:$0xff]
        %4048 = vrot.lane.b32.xlu0 %v4047, 64
        %v4049 = vpop.permute.xlu0 %4048
        %4051 = vst.msk [vmem:[#allocation4 + $0x2] sm:$0x1] %vm4026, %v4049
        %4052 = vst [vmem:[#allocation1] sm:$0xff] %v4003
        %s4053 = scalar_lea.vmem [#allocation1], 6
        %v4054 = vld [vmem:[%s4053] ss:$9 sm:$0xff]
        %4056 = vst.msk [vmem:[#allocation4 + $0x3] sm:$0x1] %vm4015, %v4054
        %4058 = vst [vmem:[#allocation1] sm:$0xff] %v4004
        %s4059 = scalar_lea.vmem [#allocation1], 2
        %v4060 = vld [vmem:[%s4059] ss:$9 sm:$0xff]
        %4061 = vrot.lane.b32.xlu0 %v4060, 64
        %v4062 = vpop.permute.xlu0 %4061
        %4064 = vst.msk [vmem:[#allocation4 + $0x3] sm:$0x1] %vm4026, %v4062
        %4065 = vst [vmem:[#allocation1] sm:$0xff] %v4004
        %s4066 = scalar_lea.vmem [#allocation1], 3
        %v4067 = vld [vmem:[%s4066] ss:$9 sm:$0xff]
        %4069 = vst.msk [vmem:[#allocation4 + $0x4] sm:$0x1] %vm4015, %v4067
        %4070 = vst [vmem:[#allocation1] sm:$0xff] %v4004
        %s4071 = scalar_lea.vmem [#allocation1], 4
        %v4072 = vld [vmem:[%s4071] ss:$9 sm:$0xff]
        %4073 = vrot.lane.b32.xlu0 %v4072, 64
        %v4074 = vpop.permute.xlu0 %4073
        %4076 = vst.msk [vmem:[#allocation4 + $0x4] sm:$0x1] %vm4026, %v4074
        %4077 = vst [vmem:[#allocation1] sm:$0xff] %v4004
        %s4078 = scalar_lea.vmem [#allocation1], 5
        %v4079 = vld [vmem:[%s4078] ss:$9 sm:$0xff]
        %4081 = vst.msk [vmem:[#allocation4 + $0x5] sm:$0x1] %vm4015, %v4079
        %4082 = vst [vmem:[#allocation1] sm:$0xff] %v4004
        %s4083 = scalar_lea.vmem [#allocation1], 6
        %v4084 = vld [vmem:[%s4083] ss:$9 sm:$0xff]
        %4085 = vrot.lane.b32.xlu0 %v4084, 64
        %v4086 = vpop.permute.xlu0 %4085
        %4088 = vst.msk [vmem:[#allocation4 + $0x5] sm:$0x1] %vm4026, %v4086
        %4089 = vst [vmem:[#allocation1] sm:$0xff] %v4004
        %s4090 = scalar_lea.vmem [#allocation1], 7
        %v4091 = vld [vmem:[%s4090] ss:$9 sm:$0xff]
        %4093 = vst.msk [vmem:[#allocation4 + $0x6] sm:$0x1] %vm4015, %v4091
        %4095 = vrot.lane.b32.xlu0 %v4005, 64
        %v4096 = vpop.permute.xlu0 %4095
        %4098 = vst.msk [vmem:[#allocation4 + $0x6] sm:$0x1] %vm4026, %v4096
        %4099 = vst [vmem:[#allocation1] sm:$0xff] %v4005
        %s4100 = scalar_lea.vmem [#allocation1], 4
        %v4101 = vld [vmem:[%s4100] ss:$9 sm:$0xff]
        %4103 = vst.msk [vmem:[#allocation4 + $0x7] sm:$0x1] %vm4015, %v4101
        %4104 = vst [vmem:[#allocation1] sm:$0xff] %v4005
        %s4105 = scalar_lea.vmem [#allocation1], 5
        %v4106 = vld [vmem:[%s4105] ss:$9 sm:$0xff]
        %4107 = vrot.lane.b32.xlu0 %v4106, 64
        %v4108 = vpop.permute.xlu0 %4107
        %4110 = vst.msk [vmem:[#allocation4 + $0x7] sm:$0x1] %vm4026, %v4108
        %4111 = vst [vmem:[#allocation1] sm:$0xff] %v4005
        %s4112 = scalar_lea.vmem [#allocation1], 6
        %v4113 = vld [vmem:[%s4112] ss:$9 sm:$0xff]
        %4115 = vst.msk [vmem:[#allocation4 + $0x8] sm:$0x1] %vm4015, %v4113
        %4116 = vst [vmem:[#allocation1] sm:$0xff] %v4005
        %s4117 = scalar_lea.vmem [#allocation1], 7
        %v4118 = vld [vmem:[%s4117] ss:$9 sm:$0xff]
        %4119 = vrot.lane.b32.xlu0 %v4118, 64
        %v4120 = vpop.permute.xlu0 %4119
        %4122 = vst.msk [vmem:[#allocation4 + $0x8] sm:$0x1] %vm4026, %v4120
        %4123 = vst.msk [vmem:[#allocation4 + $0x9] sm:$0x1] %vm4015, %v4006
        %4125 = vst [vmem:[#allocation1] sm:$0xff] %v4006
        %s4126 = scalar_lea.vmem [#allocation1], 1
        %v4127 = vld [vmem:[%s4126] ss:$9 sm:$0xff]
        %4128 = vrot.lane.b32.xlu0 %v4127, 64
        %v4129 = vpop.permute.xlu0 %4128
        %4131 = vst.msk [vmem:[#allocation4 + $0x9] sm:$0x1] %vm4026, %v4129
        %4132 = vst [vmem:[#allocation1] sm:$0xff] %v4006
        %s4133 = scalar_lea.vmem [#allocation1], 2
        %v4134 = vld [vmem:[%s4133] ss:$9 sm:$0xff]
        %4136 = vst.msk [vmem:[#allocation4 + $0xa] sm:$0x1] %vm4015, %v4134
        %4137 = vst [vmem:[#allocation1] sm:$0xff] %v4006
        %s4138 = scalar_lea.vmem [#allocation1], 6
        %v4139 = vld [vmem:[%s4138] ss:$9 sm:$0xff]
        %4140 = vrot.lane.b32.xlu0 %v4139, 64
        %v4141 = vpop.permute.xlu0 %4140
        %4143 = vst.msk [vmem:[#allocation4 + $0xa] sm:$0x1] %vm4026, %v4141
        %4144 = vst [vmem:[#allocation1] sm:$0xff] %v4006
        %s4145 = scalar_lea.vmem [#allocation1], 7
        %v4146 = vld [vmem:[%s4145] ss:$9 sm:$0xff]
        %4148 = vst.msk [vmem:[#allocation4 + $0xb] sm:$0x1] %vm4015, %v4146
        %4150 = vrot.lane.b32.xlu0 %v4007, 64
        %v4151 = vpop.permute.xlu0 %4150
        %4153 = vst.msk [vmem:[#allocation4 + $0xb] sm:$0x1] %vm4026, %v4151
        %4154 = vst [vmem:[#allocation1] sm:$0xff] %v4007
        %s4155 = scalar_lea.vmem [#allocation1], 1
        %v4156 = vld [vmem:[%s4155] ss:$9 sm:$0xff]
        %4158 = vst.msk [vmem:[#allocation4 + $0xc] sm:$0x1] %vm4015, %v4156
        %4159 = vst [vmem:[#allocation1] sm:$0xff] %v4007
        %s4160 = scalar_lea.vmem [#allocation1], 2
        %v4161 = vld [vmem:[%s4160] ss:$9 sm:$0xff]
        %4162 = vrot.lane.b32.xlu0 %v4161, 64
        %v4163 = vpop.permute.xlu0 %4162
        %4165 = vst.msk [vmem:[#allocation4 + $0xc] sm:$0x1] %vm4026, %v4163
        %4166 = vst [vmem:[#allocation1] sm:$0xff] %v4007
        %s4167 = scalar_lea.vmem [#allocation1], 3
        %v4168 = vld [vmem:[%s4167] ss:$9 sm:$0xff]
        %4170 = vst.msk [vmem:[#allocation4 + $0xd] sm:$0x1] %vm4015, %v4168
        %4171 = vst [vmem:[#allocation1] sm:$0xff] %v4007
        %s4172 = scalar_lea.vmem [#allocation1], 4
        %v4173 = vld [vmem:[%s4172] ss:$9 sm:$0xff]
        %4174 = vrot.lane.b32.xlu0 %v4173, 64
        %v4175 = vpop.permute.xlu0 %4174
        %4177 = vst.msk [vmem:[#allocation4 + $0xd] sm:$0x1] %vm4026, %v4175
        %4178 = vst.msk [vmem:[#allocation4 + $0xe] sm:$0x1] %vm4015, %v4008
        %4180 = vst [vmem:[#allocation1] sm:$0xff] %v4008
        %s4181 = scalar_lea.vmem [#allocation1], 1
        %v4182 = vld [vmem:[%s4181] ss:$9 sm:$0xff]
        %4183 = vrot.lane.b32.xlu0 %v4182, 64
        %v4184 = vpop.permute.xlu0 %4183
        %4186 = vst.msk [vmem:[#allocation4 + $0xe] sm:$0x1] %vm4026, %v4184
        %4187 = vst [vmem:[#allocation1] sm:$0xff] %v4008
        %s4188 = scalar_lea.vmem [#allocation1], 2
        %v4189 = vld [vmem:[%s4188] ss:$9 sm:$0xff]
        %4191 = vst.msk [vmem:[#allocation4 + $0xf] sm:$0x1] %vm4015, %v4189
        %4192 = vst [vmem:[#allocation1] sm:$0xff] %v4008
        %s4193 = scalar_lea.vmem [#allocation1], 3
        %v4194 = vld [vmem:[%s4193] ss:$9 sm:$0xff]
        %4195 = vrot.lane.b32.xlu0 %v4194, 64
        %v4196 = vpop.permute.xlu0 %4195
        %4198 = vst.msk [vmem:[#allocation4 + $0xf] sm:$0x1] %vm4026, %v4196
        %4199 = vst [vmem:[#allocation1] sm:$0xff] %v4008
        %s4200 = scalar_lea.vmem [#allocation1], 4
        %v4201 = vld [vmem:[%s4200] ss:$9 sm:$0xff]
        %4203 = vst.msk [vmem:[#allocation4 + $0x10] sm:$0x1] %vm4015, %v4201
        %4204 = vst [vmem:[#allocation1] sm:$0xff] %v4008
        %s4205 = scalar_lea.vmem [#allocation1], 5
        %v4206 = vld [vmem:[%s4205] ss:$9 sm:$0xff]
        %4207 = vrot.lane.b32.xlu0 %v4206, 64
        %v4208 = vpop.permute.xlu0 %4207
        %4210 = vst.msk [vmem:[#allocation4 + $0x10] sm:$0x1] %vm4026, %v4208
        %4211 = vst [vmem:[#allocation1] sm:$0xff] %v4008
        %s4212 = scalar_lea.vmem [#allocation1], 6
        %v4213 = vld [vmem:[%s4212] ss:$9 sm:$0xff]
        %4215 = vst.msk [vmem:[#allocation4 + $0x11] sm:$0x1] %vm4015, %v4213
        %4217 = vst [vmem:[#allocation1] sm:$0xff] %v4009
        %s4218 = scalar_lea.vmem [#allocation1], 2
        %v4219 = vld [vmem:[%s4218] ss:$9 sm:$0xff]
        %4220 = vrot.lane.b32.xlu0 %v4219, 64
        %v4221 = vpop.permute.xlu0 %4220
        %4223 = vst.msk [vmem:[#allocation4 + $0x11] sm:$0x1] %vm4026, %v4221
        %4224 = vst [vmem:[#allocation1] sm:$0xff] %v4009
        %s4225 = scalar_lea.vmem [#allocation1], 3
        %v4226 = vld [vmem:[%s4225] ss:$9 sm:$0xff]
        %4228 = vst.msk [vmem:[#allocation4 + $0x12] sm:$0x1] %vm4015, %v4226
        %4229 = vst [vmem:[#allocation1] sm:$0xff] %v4009
        %s4230 = scalar_lea.vmem [#allocation1], 4
        %v4231 = vld [vmem:[%s4230] ss:$9 sm:$0xff]
        %4232 = vrot.lane.b32.xlu0 %v4231, 64
        %v4233 = vpop.permute.xlu0 %4232
        %4235 = vst.msk [vmem:[#allocation4 + $0x12] sm:$0x1] %vm4026, %v4233
        %4236 = vst [vmem:[#allocation1] sm:$0xff] %v4009
        %s4237 = scalar_lea.vmem [#allocation1], 5
        %v4238 = vld [vmem:[%s4237] ss:$9 sm:$0xff]
        %4240 = vst.msk [vmem:[#allocation4 + $0x13] sm:$0x1] %vm4015, %v4238
        %4241 = vst [vmem:[#allocation1] sm:$0xff] %v4009
        %s4242 = scalar_lea.vmem [#allocation1], 6
        %v4243 = vld [vmem:[%s4242] ss:$9 sm:$0xff]
        %4244 = vrot.lane.b32.xlu0 %v4243, 64
        %v4245 = vpop.permute.xlu0 %4244
        %4247 = vst.msk [vmem:[#allocation4 + $0x13] sm:$0x1] %vm4026, %v4245
        %4248 = vst [vmem:[#allocation1] sm:$0xff] %v4009
        %s4249 = scalar_lea.vmem [#allocation1], 7
        %v4250 = vld [vmem:[%s4249] ss:$9 sm:$0xff]
        %4252 = vst.msk [vmem:[#allocation4 + $0x14] sm:$0x1] %vm4015, %v4250
        %4254 = vrot.lane.b32.xlu0 %v4010, 64
        %v4255 = vpop.permute.xlu0 %4254
        %4257 = vst.msk [vmem:[#allocation4 + $0x14] sm:$0x1] %vm4026, %v4255
        %4258 = vst [vmem:[#allocation1] sm:$0xff] %v4010
        %s4259 = scalar_lea.vmem [#allocation1], 4
        %v4260 = vld [vmem:[%s4259] ss:$9 sm:$0xff]
        %4262 = vst.msk [vmem:[#allocation4 + $0x15] sm:$0x1] %vm4015, %v4260
        %4263 = vst [vmem:[#allocation1] sm:$0xff] %v4010
        %s4264 = scalar_lea.vmem [#allocation1], 5
        %v4265 = vld [vmem:[%s4264] ss:$9 sm:$0xff]
        %4266 = vrot.lane.b32.xlu0 %v4265, 64
        %v4267 = vpop.permute.xlu0 %4266
        %4269 = vst.msk [vmem:[#allocation4 + $0x15] sm:$0x1] %vm4026, %v4267
        %4270 = vst [vmem:[#allocation1] sm:$0xff] %v4010
        %s4271 = scalar_lea.vmem [#allocation1], 6
        %v4272 = vld [vmem:[%s4271] ss:$9 sm:$0xff]
        %4274 = vst.msk [vmem:[#allocation4 + $0x16] sm:$0x1] %vm4015, %v4272
        %4275 = vst [vmem:[#allocation1] sm:$0xff] %v4010
        %s4276 = scalar_lea.vmem [#allocation1], 7
        %v4277 = vld [vmem:[%s4276] ss:$9 sm:$0xff]
        %4278 = vrot.lane.b32.xlu0 %v4277, 64
        %v4279 = vpop.permute.xlu0 %4278
        %4281 = vst.msk [vmem:[#allocation4 + $0x16] sm:$0x1] %vm4026, %v4279
        %4282 = vst.msk [vmem:[#allocation4 + $0x17] sm:$0x1] %vm4015, %v4011
        %4284 = vst [vmem:[#allocation1] sm:$0xff] %v4011
        %s4285 = scalar_lea.vmem [#allocation1], 1
        %v4286 = vld [vmem:[%s4285] ss:$9 sm:$0xff]
        %4287 = vrot.lane.b32.xlu0 %v4286, 64
        %v4288 = vpop.permute.xlu0 %4287
        %4290 = vst.msk [vmem:[#allocation4 + $0x17] sm:$0x1] %vm4026, %v4288
        %4291 = vst [vmem:[#allocation1] sm:$0xff] %v4011
        %s4292 = scalar_lea.vmem [#allocation1], 2
        %v4293 = vld [vmem:[%s4292] ss:$9 sm:$0xff]
        %4295 = vst.msk [vmem:[#allocation4 + $0x18] sm:$0x1] %vm4015, %v4293
        %v4296 = vld [vmem:[#allocation4] sm:$0xff]
        %v4297 = vld [vmem:[#allocation4 + $0x8] sm:$0xff]
        %v4298 = vld [vmem:[#allocation4 + $0x10] sm:$0xff]
        %v4299 = vld [vmem:[#allocation4 + $0x18] sm:$0x1]
        %v4304 = vperm.slane %v4296, 0
        %v4305 = vperm.slane %v4296, 1
        %v4306 = vperm.slane %v4296, 2
        %v4307 = vperm.slane %v4296, 3
        %v4308 = vperm.slane %v4296, 4
        %v4309 = vperm.slane %v4296, 5
        %v4310 = vperm.slane %v4296, 6
        %v4311 = vperm.slane %v4296, 7
        %v4312 = vperm.slane %v4297, 0
        %v4313 = vperm.slane %v4297, 1
        %v4314 = vperm.slane %v4297, 2
        %v4315 = vperm.slane %v4297, 3
        %v4316 = vperm.slane %v4297, 4
        %v4317 = vperm.slane %v4297, 5
        %v4318 = vperm.slane %v4297, 6
        %v4319 = vperm.slane %v4297, 7
        %v4320 = vperm.slane %v4298, 0
        %v4321 = vperm.slane %v4298, 1
        %v4322 = vperm.slane %v4298, 2
        %v4323 = vperm.slane %v4298, 3
        %v4324 = vperm.slane %v4298, 4
        %v4325 = vperm.slane %v4298, 5
        %v4326 = vperm.slane %v4298, 6
        %v4327 = vperm.slane %v4298, 7
        %v4328 = vperm.slane %v4299, 0
        %v4354 = vpack.c.bf16 %v4304, %v4304
        %v4355 = vpack.c.bf16 %v4305, %v4305
        %v4356 = vpack.c.bf16 %v4306, %v4306
        %v4357 = vpack.c.bf16 %v4307, %v4307
        %v4358 = vpack.c.bf16 %v4308, %v4308
        %v4359 = vpack.c.bf16 %v4309, %v4309
        %v4360 = vpack.c.bf16 %v4310, %v4310
        %v4361 = vpack.c.bf16 %v4311, %v4311
        %v4362 = vpack.c.bf16 %v4312, %v4312
        %v4363 = vpack.c.bf16 %v4313, %v4313
        %v4364 = vpack.c.bf16 %v4314, %v4314
        %v4365 = vpack.c.bf16 %v4315, %v4315
        %v4366 = vpack.c.bf16 %v4316, %v4316
        %v4367 = vpack.c.bf16 %v4317, %v4317
        %v4368 = vpack.c.bf16 %v4318, %v4318
        %v4369 = vpack.c.bf16 %v4319, %v4319
        %v4370 = vpack.c.bf16 %v4320, %v4320
        %v4371 = vpack.c.bf16 %v4321, %v4321
        %v4372 = vpack.c.bf16 %v4322, %v4322
        %v4373 = vpack.c.bf16 %v4323, %v4323
        %v4374 = vpack.c.bf16 %v4324, %v4324
        %v4375 = vpack.c.bf16 %v4325, %v4325
        %v4376 = vpack.c.bf16 %v4326, %v4326
        %v4377 = vpack.c.bf16 %v4327, %v4327
        %v4378 = vpack.c.bf16 %v4328, %v4328
        %v4379 = vld [vmem:[%s7] sm:$0xff]
        %v4380 = vld [vmem:[%s7 + $0x8] sm:$0xff]
        %v4381 = vld [vmem:[%s7 + $0x10] sm:$0xff]
        %v4382 = vld [vmem:[%s7 + $0x18] sm:$0xff]
        %v4383 = vld [vmem:[%s7 + $0x20] sm:$0xff]
        %v4384 = vld [vmem:[%s7 + $0x28] sm:$0xff]
        %v4385 = vld [vmem:[%s7 + $0x30] sm:$0xff]
        %v4386 = vld [vmem:[%s7 + $0x38] sm:$0xff]
        %v4387 = vld [vmem:[%s7 + $0x40] sm:$0xff]
        %v4388 = vld [vmem:[%s7 + $0x48] sm:$0xff]
        %v4389 = vld [vmem:[%s7 + $0x50] sm:$0xff]
        %v4390 = vld [vmem:[%s7 + $0x58] sm:$0xff]
        %v4391 = vld [vmem:[%s7 + $0x60] sm:$0xff]
        %v4392 = vld [vmem:[%s7 + $0x68] sm:$0xff]
        %v4393 = vld [vmem:[%s7 + $0x70] sm:$0xff]
        %v4394 = vld [vmem:[%s7 + $0x78] sm:$0xff]
        %v4395 = vld [vmem:[%s7 + $0x80] sm:$0xff]
        %v4396 = vld [vmem:[%s7 + $0x88] sm:$0xff]
        %v4397 = vld [vmem:[%s7 + $0x90] sm:$0xff]
        %v4398 = vld [vmem:[%s7 + $0x98] sm:$0xff]
        %v4399 = vld [vmem:[%s7 + $0xa0] sm:$0xff]
        %v4400 = vld [vmem:[%s7 + $0xa8] sm:$0xff]
        %v4401 = vld [vmem:[%s7 + $0xb0] sm:$0xff]
        %v4402 = vld [vmem:[%s7 + $0xb8] sm:$0xff]
        %v4403 = vld [vmem:[%s7 + $0xc0] sm:$0xff]
        %v4404 = vld [vmem:[%s7 + $0xc8] sm:$0xff]
        %v4405 = vld [vmem:[%s7 + $0xd0] sm:$0xff]
        %v4406 = vld [vmem:[%s7 + $0xd8] sm:$0xff]
        %v4407 = vld [vmem:[%s7 + $0xe0] sm:$0xff]
        %v4408 = vld [vmem:[%s7 + $0xe8] sm:$0xff]
        %v4409 = vld [vmem:[%s7 + $0xf0] sm:$0xff]
        %v4410 = vld [vmem:[%s7 + $0xf8] sm:$0xff]
        %v4411 = vld [vmem:[%s7 + $0x100] sm:$0xff]
        %v4412 = vld [vmem:[%s7 + $0x108] sm:$0xff]
        %v4413 = vld [vmem:[%s7 + $0x110] sm:$0xff]
        %v4414 = vld [vmem:[%s7 + $0x118] sm:$0xff]
        %v4415 = vld [vmem:[%s7 + $0x120] sm:$0xff]
        %v4416 = vld [vmem:[%s7 + $0x128] sm:$0xff]
        %v4417 = vld [vmem:[%s7 + $0x130] sm:$0xff]
        %v4418 = vld [vmem:[%s7 + $0x138] sm:$0xff]
        %v4419 = vld [vmem:[%s7 + $0x140] sm:$0xff]
        %v4420 = vld [vmem:[%s7 + $0x148] sm:$0xff]
        %v4421 = vld [vmem:[%s7 + $0x150] sm:$0xff]
        %v4422 = vld [vmem:[%s7 + $0x158] sm:$0xff]
        %v4423 = vld [vmem:[%s7 + $0x160] sm:$0xff]
        %v4424 = vld [vmem:[%s7 + $0x168] sm:$0xff]
        %v4425 = vld [vmem:[%s7 + $0x170] sm:$0xff]
        %v4426 = vld [vmem:[%s7 + $0x178] sm:$0xff]
        %v4427 = vld [vmem:[%s7 + $0x180] sm:$0xff]
        %v4428 = vld [vmem:[%s7 + $0x188] sm:$0xff]
        %v4429 = vld [vmem:[%s7 + $0x190] sm:$0xff]
        %v4430 = vld [vmem:[%s7 + $0x198] sm:$0xff]
        %v4431 = vld [vmem:[%s7 + $0x1a0] sm:$0xff]
        %v4432 = vld [vmem:[%s7 + $0x1a8] sm:$0xff]
        %v4433 = vld [vmem:[%s7 + $0x1b0] sm:$0xff]
        %v4434 = vld [vmem:[%s7 + $0x1b8] sm:$0xff]
        %v4435 = vld [vmem:[%s7 + $0x1c0] sm:$0xff]
        %v4436 = vld [vmem:[%s7 + $0x1c8] sm:$0xff]
        %v4437 = vld [vmem:[%s7 + $0x1d0] sm:$0xff]
        %v4438 = vld [vmem:[%s7 + $0x1d8] sm:$0xff]
        %v4439 = vld [vmem:[%s7 + $0x1e0] sm:$0xff]
        %v4440 = vld [vmem:[%s7 + $0x1e8] sm:$0xff]
        %v4441 = vld [vmem:[%s7 + $0x1f0] sm:$0xff]
        %v4442 = vld [vmem:[%s7 + $0x1f8] sm:$0xff]
        %v4443 = vld [vmem:[%s7 + $0x200] sm:$0xff]
        %v4444 = vld [vmem:[%s7 + $0x208] sm:$0xff]
        %v4445 = vld [vmem:[%s7 + $0x210] sm:$0xff]
        %v4446 = vld [vmem:[%s7 + $0x218] sm:$0xff]
        %v4447 = vld [vmem:[%s7 + $0x220] sm:$0xff]
        %v4448 = vld [vmem:[%s7 + $0x228] sm:$0xff]
        %v4449 = vld [vmem:[%s7 + $0x230] sm:$0xff]
        %v4450 = vld [vmem:[%s7 + $0x238] sm:$0xff]
        %v4451 = vld [vmem:[%s7 + $0x240] sm:$0xff]
        %v4452 = vld [vmem:[%s7 + $0x248] sm:$0xff]
        %v4453 = vld [vmem:[%s7 + $0x250] sm:$0xff]
        %v4454 = vld [vmem:[%s7 + $0x258] sm:$0xff]
        %v4455 = vld [vmem:[%s7 + $0x260] sm:$0xff]
        %v4456 = vld [vmem:[%s7 + $0x268] sm:$0xff]
        %v4457 = vld [vmem:[%s7 + $0x270] sm:$0xff]
        %v4458 = vld [vmem:[%s7 + $0x278] sm:$0xff]
        %v4459 = vld [vmem:[%s7 + $0x280] sm:$0xff]
        %v4460 = vld [vmem:[%s7 + $0x288] sm:$0xff]
        %v4461 = vld [vmem:[%s7 + $0x290] sm:$0xff]
        %v4462 = vld [vmem:[%s7 + $0x298] sm:$0xff]
        %v4463 = vld [vmem:[%s7 + $0x2a0] sm:$0xff]
        %v4464 = vld [vmem:[%s7 + $0x2a8] sm:$0xff]
        %v4465 = vld [vmem:[%s7 + $0x2b0] sm:$0xff]
        %v4466 = vld [vmem:[%s7 + $0x2b8] sm:$0xff]
        %v4467 = vld [vmem:[%s7 + $0x2c0] sm:$0xff]
        %v4468 = vld [vmem:[%s7 + $0x2c8] sm:$0xff]
        %v4469 = vld [vmem:[%s7 + $0x2d0] sm:$0xff]
        %v4470 = vld [vmem:[%s7 + $0x2d8] sm:$0xff]
        %v4471 = vld [vmem:[%s7 + $0x2e0] sm:$0xff]
        %v4472 = vld [vmem:[%s7 + $0x2e8] sm:$0xff]
        %v4473 = vld [vmem:[%s7 + $0x2f0] sm:$0xff]
        %v4474 = vld [vmem:[%s7 + $0x2f8] sm:$0xff]
        %v4475 = vld [vmem:[%s7 + $0x300] sm:$0xff]
        %v4476 = vld [vmem:[%s7 + $0x308] sm:$0xff]
        %v4477 = vld [vmem:[%s7 + $0x310] sm:$0xff]
        %v4478 = vld [vmem:[%s7 + $0x318] sm:$0xff]
        %v4479 = vld [vmem:[%s7 + $0x320] sm:$0xff]
        %v4480 = vld [vmem:[%s7 + $0x328] sm:$0xff]
        %v4481 = vld [vmem:[%s7 + $0x330] sm:$0xff]
        %v4482 = vld [vmem:[%s7 + $0x338] sm:$0xff]
        %v4483 = vld [vmem:[%s7 + $0x340] sm:$0xff]
        %v4484 = vld [vmem:[%s7 + $0x348] sm:$0xff]
        %v4485 = vld [vmem:[%s7 + $0x350] sm:$0xff]
        %v4486 = vld [vmem:[%s7 + $0x358] sm:$0xff]
        %v4487 = vld [vmem:[%s7 + $0x360] sm:$0xff]
        %v4488 = vld [vmem:[%s7 + $0x368] sm:$0xff]
        %v4489 = vld [vmem:[%s7 + $0x370] sm:$0xff]
        %v4490 = vld [vmem:[%s7 + $0x378] sm:$0xff]
        %v4491 = vld [vmem:[%s7 + $0x380] sm:$0xff]
        %v4492 = vld [vmem:[%s7 + $0x388] sm:$0xff]
        %v4493 = vld [vmem:[%s7 + $0x390] sm:$0xff]
        %v4494 = vld [vmem:[%s7 + $0x398] sm:$0xff]
        %v4495 = vld [vmem:[%s7 + $0x3a0] sm:$0xff]
        %v4496 = vld [vmem:[%s7 + $0x3a8] sm:$0xff]
        %v4497 = vld [vmem:[%s7 + $0x3b0] sm:$0xff]
        %v4498 = vld [vmem:[%s7 + $0x3b8] sm:$0xff]
        %v4499 = vld [vmem:[%s7 + $0x3c0] sm:$0xff]
        %v4500 = vld [vmem:[%s7 + $0x3c8] sm:$0xff]
        %v4501 = vld [vmem:[%s7 + $0x3d0] sm:$0xff]
        %v4502 = vld [vmem:[%s7 + $0x3d8] sm:$0xff]
        %v4503 = vld [vmem:[%s7 + $0x3e0] sm:$0xff]
        %v4504 = vld [vmem:[%s7 + $0x3e8] sm:$0xff]
        %v4505 = vld [vmem:[%s7 + $0x3f0] sm:$0xff]
        %v4506 = vld [vmem:[%s7 + $0x3f8] sm:$0xff]
        %v4507 = vld [vmem:[%s7 + $0x400] sm:$0xff]
        %v4508 = vld [vmem:[%s7 + $0x408] sm:$0xff]
        %v4509 = vld [vmem:[%s7 + $0x410] sm:$0xff]
        %v4510 = vld [vmem:[%s7 + $0x418] sm:$0xff]
        %v4511 = vld [vmem:[%s7 + $0x420] sm:$0xff]
        %v4512 = vld [vmem:[%s7 + $0x428] sm:$0xff]
        %v4513 = vld [vmem:[%s7 + $0x430] sm:$0xff]
        %v4514 = vld [vmem:[%s7 + $0x438] sm:$0xff]
        %v4515 = vld [vmem:[%s7 + $0x440] sm:$0xff]
        %v4516 = vld [vmem:[%s7 + $0x448] sm:$0xff]
        %v4517 = vld [vmem:[%s7 + $0x450] sm:$0xff]
        %v4518 = vld [vmem:[%s7 + $0x458] sm:$0xff]
        %v4519 = vld [vmem:[%s7 + $0x460] sm:$0xff]
        %v4520 = vld [vmem:[%s7 + $0x468] sm:$0xff]
        %v4521 = vld [vmem:[%s7 + $0x470] sm:$0xff]
        %v4522 = vld [vmem:[%s7 + $0x478] sm:$0xff]
        %v4523 = vld [vmem:[%s7 + $0x480] sm:$0xff]
        %v4524 = vld [vmem:[%s7 + $0x488] sm:$0xff]
        %v4525 = vld [vmem:[%s7 + $0x490] sm:$0xff]
        %v4526 = vld [vmem:[%s7 + $0x498] sm:$0xff]
        %v4527 = vld [vmem:[%s7 + $0x4a0] sm:$0xff]
        %v4528 = vld [vmem:[%s7 + $0x4a8] sm:$0xff]
        %v4529 = vld [vmem:[%s7 + $0x4b0] sm:$0xff]
        %v4530 = vld [vmem:[%s7 + $0x4b8] sm:$0xff]
        %v4531 = vld [vmem:[%s7 + $0x4c0] sm:$0xff]
        %v4532 = vld [vmem:[%s7 + $0x4c8] sm:$0xff]
        %v4533 = vld [vmem:[%s7 + $0x4d0] sm:$0xff]
        %v4534 = vld [vmem:[%s7 + $0x4d8] sm:$0xff]
        %v4535 = vld [vmem:[%s7 + $0x4e0] sm:$0xff]
        %v4536 = vld [vmem:[%s7 + $0x4e8] sm:$0xff]
        %v4537 = vld [vmem:[%s7 + $0x4f0] sm:$0xff]
        %v4538 = vld [vmem:[%s7 + $0x4f8] sm:$0xff]
        %v4539 = vld [vmem:[%s7 + $0x500] sm:$0xff]
        %v4540 = vld [vmem:[%s7 + $0x508] sm:$0xff]
        %v4541 = vld [vmem:[%s7 + $0x510] sm:$0xff]
        %v4542 = vld [vmem:[%s7 + $0x518] sm:$0xff]
        %v4543 = vld [vmem:[%s7 + $0x520] sm:$0xff]
        %v4544 = vld [vmem:[%s7 + $0x528] sm:$0xff]
        %v4545 = vld [vmem:[%s7 + $0x530] sm:$0xff]
        %v4546 = vld [vmem:[%s7 + $0x538] sm:$0xff]
        %v4547 = vld [vmem:[%s7 + $0x540] sm:$0xff]
        %v4548 = vld [vmem:[%s7 + $0x548] sm:$0xff]
        %v4549 = vld [vmem:[%s7 + $0x550] sm:$0xff]
        %v4550 = vld [vmem:[%s7 + $0x558] sm:$0xff]
        %v4551 = vld [vmem:[%s7 + $0x560] sm:$0xff]
        %v4552 = vld [vmem:[%s7 + $0x568] sm:$0xff]
        %v4553 = vld [vmem:[%s7 + $0x570] sm:$0xff]
        %v4554 = vld [vmem:[%s7 + $0x578] sm:$0xff]
        %v4555 = vld [vmem:[%s7 + $0x580] sm:$0xff]
        %v4556 = vld [vmem:[%s7 + $0x588] sm:$0xff]
        %v4557 = vld [vmem:[%s7 + $0x590] sm:$0xff]
        %v4558 = vld [vmem:[%s7 + $0x598] sm:$0xff]
        %v4559 = vld [vmem:[%s7 + $0x5a0] sm:$0xff]
        %v4560 = vld [vmem:[%s7 + $0x5a8] sm:$0xff]
        %v4561 = vld [vmem:[%s7 + $0x5b0] sm:$0xff]
        %v4562 = vld [vmem:[%s7 + $0x5b8] sm:$0xff]
        %v4563 = vld [vmem:[%s7 + $0x5c0] sm:$0xff]
        %v4564 = vld [vmem:[%s7 + $0x5c8] sm:$0xff]
        %v4565 = vld [vmem:[%s7 + $0x5d0] sm:$0xff]
        %v4566 = vld [vmem:[%s7 + $0x5d8] sm:$0xff]
        %v4567 = vld [vmem:[%s7 + $0x5e0] sm:$0xff]
        %v4568 = vld [vmem:[%s7 + $0x5e8] sm:$0xff]
        %v4569 = vld [vmem:[%s7 + $0x5f0] sm:$0xff]
        %v4570 = vld [vmem:[%s7 + $0x5f8] sm:$0xff]
        %v4571 = vld [vmem:[%s7 + $0x600] sm:$0xff]
        %v4572 = vld [vmem:[%s7 + $0x608] sm:$0xff]
        %v4573 = vld [vmem:[%s7 + $0x610] sm:$0xff]
        %v4574 = vld [vmem:[%s7 + $0x618] sm:$0xff]
        %v4575 = vld [vmem:[%s7 + $0x620] sm:$0xff]
        %v4576 = vld [vmem:[%s7 + $0x628] sm:$0xff]
        %v4577 = vld [vmem:[%s7 + $0x630] sm:$0xff]
        %v4578 = vld [vmem:[%s7 + $0x638] sm:$0xff]
        %v4579 = vld [vmem:[%s7 + $0x640] sm:$0xff]
        %v4580 = vld [vmem:[%s7 + $0x648] sm:$0xff]
        %v4581 = vld [vmem:[%s7 + $0x650] sm:$0xff]
        %v4582 = vld [vmem:[%s7 + $0x658] sm:$0xff]
        %v4583 = vld [vmem:[%s7 + $0x660] sm:$0xff]
        %v4584 = vld [vmem:[%s7 + $0x668] sm:$0xff]
        %v4585 = vld [vmem:[%s7 + $0x670] sm:$0xff]
        %v4586 = vld [vmem:[%s7 + $0x678] sm:$0xff]
        %v4587 = vld [vmem:[%s7 + $0x680] sm:$0xff]
        %v4588 = vld [vmem:[%s7 + $0x688] sm:$0xff]
        %v4589 = vld [vmem:[%s7 + $0x690] sm:$0xff]
        %v4590 = vld [vmem:[%s7 + $0x698] sm:$0xff]
        %v4591 = vld [vmem:[%s7 + $0x6a0] sm:$0xff]
        %v4592 = vld [vmem:[%s7 + $0x6a8] sm:$0xff]
        %v4593 = vld [vmem:[%s7 + $0x6b0] sm:$0xff]
        %v4594 = vld [vmem:[%s7 + $0x6b8] sm:$0xff]
        %v4595 = vld [vmem:[%s7 + $0x6c0] sm:$0xff]
        %v4596 = vld [vmem:[%s7 + $0x6c8] sm:$0xff]
        %v4597 = vld [vmem:[%s7 + $0x6d0] sm:$0xff]
        %v4598 = vld [vmem:[%s7 + $0x6d8] sm:$0xff]
        %v4599 = vld [vmem:[%s7 + $0x6e0] sm:$0xff]
        %v4600 = vld [vmem:[%s7 + $0x6e8] sm:$0xff]
        %v4601 = vld [vmem:[%s7 + $0x6f0] sm:$0xff]
        %v4602 = vld [vmem:[%s7 + $0x6f8] sm:$0xff]
        %v4603 = vld [vmem:[%s7 + $0x700] sm:$0xff]
        %v4604 = vld [vmem:[%s7 + $0x708] sm:$0xff]
        %v4605 = vld [vmem:[%s7 + $0x710] sm:$0xff]
        %v4606 = vld [vmem:[%s7 + $0x718] sm:$0xff]
        %v4607 = vld [vmem:[%s7 + $0x720] sm:$0xff]
        %v4608 = vld [vmem:[%s7 + $0x728] sm:$0xff]
        %v4609 = vld [vmem:[%s7 + $0x730] sm:$0xff]
        %v4610 = vld [vmem:[%s7 + $0x738] sm:$0xff]
        %v4611 = vld [vmem:[%s7 + $0x740] sm:$0xff]
        %v4612 = vld [vmem:[%s7 + $0x748] sm:$0xff]
        %v4613 = vld [vmem:[%s7 + $0x750] sm:$0xff]
        %v4614 = vld [vmem:[%s7 + $0x758] sm:$0xff]
        %v4615 = vld [vmem:[%s7 + $0x760] sm:$0xff]
        %v4616 = vld [vmem:[%s7 + $0x768] sm:$0xff]
        %v4617 = vld [vmem:[%s7 + $0x770] sm:$0xff]
        %v4618 = vld [vmem:[%s7 + $0x778] sm:$0xff]
        %v4619 = vld [vmem:[%s7 + $0x780] sm:$0xff]
        %v4620 = vld [vmem:[%s7 + $0x788] sm:$0xff]
        %v4621 = vld [vmem:[%s7 + $0x790] sm:$0xff]
        %v4622 = vld [vmem:[%s7 + $0x798] sm:$0xff]
        %v4623 = vld [vmem:[%s7 + $0x7a0] sm:$0xff]
        %v4624 = vld [vmem:[%s7 + $0x7a8] sm:$0xff]
        %v4625 = vld [vmem:[%s7 + $0x7b0] sm:$0xff]
        %v4626 = vld [vmem:[%s7 + $0x7b8] sm:$0xff]
        %v4627 = vld [vmem:[%s7 + $0x7c0] sm:$0xff]
        %v4628 = vld [vmem:[%s7 + $0x7c8] sm:$0xff]
        %v4629 = vld [vmem:[%s7 + $0x7d0] sm:$0xff]
        %v4630 = vld [vmem:[%s7 + $0x7d8] sm:$0xff]
        %v4631 = vld [vmem:[%s7 + $0x7e0] sm:$0xff]
        %v4632 = vld [vmem:[%s7 + $0x7e8] sm:$0xff]
        %v4633 = vld [vmem:[%s7 + $0x7f0] sm:$0xff]
        %v4634 = vld [vmem:[%s7 + $0x7f8] sm:$0xff]
        %v4635 = vld [vmem:[%s7 + $0x800] sm:$0xff]
        %v4636 = vld [vmem:[%s7 + $0x808] sm:$0xff]
        %v4637 = vld [vmem:[%s7 + $0x810] sm:$0xff]
        %v4638 = vld [vmem:[%s7 + $0x818] sm:$0xff]
        %v4639 = vld [vmem:[%s7 + $0x820] sm:$0xff]
        %v4640 = vld [vmem:[%s7 + $0x828] sm:$0xff]
        %v4641 = vld [vmem:[%s7 + $0x830] sm:$0xff]
        %v4642 = vld [vmem:[%s7 + $0x838] sm:$0xff]
        %v4643 = vld [vmem:[%s7 + $0x840] sm:$0xff]
        %v4644 = vld [vmem:[%s7 + $0x848] sm:$0xff]
        %v4645 = vld [vmem:[%s7 + $0x850] sm:$0xff]
        %v4646 = vld [vmem:[%s7 + $0x858] sm:$0xff]
        %v4647 = vld [vmem:[%s7 + $0x860] sm:$0xff]
        %v4648 = vld [vmem:[%s7 + $0x868] sm:$0xff]
        %v4649 = vld [vmem:[%s7 + $0x870] sm:$0xff]
        %v4650 = vld [vmem:[%s7 + $0x878] sm:$0xff]
        %v4651 = vld [vmem:[%s7 + $0x880] sm:$0xff]
        %v4652 = vld [vmem:[%s7 + $0x888] sm:$0xff]
        %v4653 = vld [vmem:[%s7 + $0x890] sm:$0xff]
        %v4654 = vld [vmem:[%s7 + $0x898] sm:$0xff]
        %v4655 = vld [vmem:[%s7 + $0x8a0] sm:$0xff]
        %v4656 = vld [vmem:[%s7 + $0x8a8] sm:$0xff]
        %v4657 = vld [vmem:[%s7 + $0x8b0] sm:$0xff]
        %v4658 = vld [vmem:[%s7 + $0x8b8] sm:$0xff]
        %v4659 = vld [vmem:[%s7 + $0x8c0] sm:$0xff]
        %v4660 = vld [vmem:[%s7 + $0x8c8] sm:$0xff]
        %v4661 = vld [vmem:[%s7 + $0x8d0] sm:$0xff]
        %v4662 = vld [vmem:[%s7 + $0x8d8] sm:$0xff]
        %v4663 = vld [vmem:[%s7 + $0x8e0] sm:$0xff]
        %v4664 = vld [vmem:[%s7 + $0x8e8] sm:$0xff]
        %v4665 = vld [vmem:[%s7 + $0x8f0] sm:$0xff]
        %v4666 = vld [vmem:[%s7 + $0x8f8] sm:$0xff]
        %v4667 = vld [vmem:[%s7 + $0x900] sm:$0xff]
        %v4668 = vld [vmem:[%s7 + $0x908] sm:$0xff]
        %v4669 = vld [vmem:[%s7 + $0x910] sm:$0xff]
        %v4670 = vld [vmem:[%s7 + $0x918] sm:$0xff]
        %v4671 = vld [vmem:[%s7 + $0x920] sm:$0xff]
        %v4672 = vld [vmem:[%s7 + $0x928] sm:$0xff]
        %v4673 = vld [vmem:[%s7 + $0x930] sm:$0xff]
        %v4674 = vld [vmem:[%s7 + $0x938] sm:$0xff]
        %v4675 = vld [vmem:[%s7 + $0x940] sm:$0xff]
        %v4676 = vld [vmem:[%s7 + $0x948] sm:$0xff]
        %v4677 = vld [vmem:[%s7 + $0x950] sm:$0xff]
        %v4678 = vld [vmem:[%s7 + $0x958] sm:$0xff]
        %v4679 = vld [vmem:[%s7 + $0x960] sm:$0xff]
        %v4680 = vld [vmem:[%s7 + $0x968] sm:$0xff]
        %v4681 = vld [vmem:[%s7 + $0x970] sm:$0xff]
        %v4682 = vld [vmem:[%s7 + $0x978] sm:$0xff]
        %v4683 = vld [vmem:[%s7 + $0x980] sm:$0xff]
        %v4684 = vld [vmem:[%s7 + $0x988] sm:$0xff]
        %v4685 = vld [vmem:[%s7 + $0x990] sm:$0xff]
        %v4686 = vld [vmem:[%s7 + $0x998] sm:$0xff]
        %v4687 = vld [vmem:[%s7 + $0x9a0] sm:$0xff]
        %v4688 = vld [vmem:[%s7 + $0x9a8] sm:$0xff]
        %v4689 = vld [vmem:[%s7 + $0x9b0] sm:$0xff]
        %v4690 = vld [vmem:[%s7 + $0x9b8] sm:$0xff]
        %v4691 = vld [vmem:[%s7 + $0x9c0] sm:$0xff]
        %v4692 = vld [vmem:[%s7 + $0x9c8] sm:$0xff]
        %v4693 = vld [vmem:[%s7 + $0x9d0] sm:$0xff]
        %v4694 = vld [vmem:[%s7 + $0x9d8] sm:$0xff]
        %v4695 = vld [vmem:[%s7 + $0x9e0] sm:$0xff]
        %v4696 = vld [vmem:[%s7 + $0x9e8] sm:$0xff]
        %v4697 = vld [vmem:[%s7 + $0x9f0] sm:$0xff]
        %v4698 = vld [vmem:[%s7 + $0x9f8] sm:$0xff]
        %v4699 = vld [vmem:[%s7 + $0xa00] sm:$0xff]
        %v4700 = vld [vmem:[%s7 + $0xa08] sm:$0xff]
        %v4701 = vld [vmem:[%s7 + $0xa10] sm:$0xff]
        %v4702 = vld [vmem:[%s7 + $0xa18] sm:$0xff]
        %v4703 = vld [vmem:[%s7 + $0xa20] sm:$0xff]
        %v4704 = vld [vmem:[%s7 + $0xa28] sm:$0xff]
        %v4705 = vld [vmem:[%s7 + $0xa30] sm:$0xff]
        %v4706 = vld [vmem:[%s7 + $0xa38] sm:$0xff]
        %v4707 = vld [vmem:[%s7 + $0xa40] sm:$0xff]
        %v4708 = vld [vmem:[%s7 + $0xa48] sm:$0xff]
        %v4709 = vld [vmem:[%s7 + $0xa50] sm:$0xff]
        %v4710 = vld [vmem:[%s7 + $0xa58] sm:$0xff]
        %v4711 = vld [vmem:[%s7 + $0xa60] sm:$0xff]
        %v4712 = vld [vmem:[%s7 + $0xa68] sm:$0xff]
        %v4713 = vld [vmem:[%s7 + $0xa70] sm:$0xff]
        %v4714 = vld [vmem:[%s7 + $0xa78] sm:$0xff]
        %v4715 = vld [vmem:[%s7 + $0xa80] sm:$0xff]
        %v4716 = vld [vmem:[%s7 + $0xa88] sm:$0xff]
        %v4717 = vld [vmem:[%s7 + $0xa90] sm:$0xff]
        %v4718 = vld [vmem:[%s7 + $0xa98] sm:$0xff]
        %v4719 = vld [vmem:[%s7 + $0xaa0] sm:$0xff]
        %v4720 = vld [vmem:[%s7 + $0xaa8] sm:$0xff]
        %v4721 = vld [vmem:[%s7 + $0xab0] sm:$0xff]
        %v4722 = vld [vmem:[%s7 + $0xab8] sm:$0xff]
        %v4723 = vld [vmem:[%s7 + $0xac0] sm:$0xff]
        %v4724 = vld [vmem:[%s7 + $0xac8] sm:$0xff]
        %v4725 = vld [vmem:[%s7 + $0xad0] sm:$0xff]
        %v4726 = vld [vmem:[%s7 + $0xad8] sm:$0xff]
        %v4727 = vld [vmem:[%s7 + $0xae0] sm:$0xff]
        %v4728 = vld [vmem:[%s7 + $0xae8] sm:$0xff]
        %v4729 = vld [vmem:[%s7 + $0xaf0] sm:$0xff]
        %v4730 = vld [vmem:[%s7 + $0xaf8] sm:$0xff]
        %v4731 = vld [vmem:[%s7 + $0xb00] sm:$0xff]
        %v4732 = vld [vmem:[%s7 + $0xb08] sm:$0xff]
        %v4733 = vld [vmem:[%s7 + $0xb10] sm:$0xff]
        %v4734 = vld [vmem:[%s7 + $0xb18] sm:$0xff]
        %v4735 = vld [vmem:[%s7 + $0xb20] sm:$0xff]
        %v4736 = vld [vmem:[%s7 + $0xb28] sm:$0xff]
        %v4737 = vld [vmem:[%s7 + $0xb30] sm:$0xff]
        %v4738 = vld [vmem:[%s7 + $0xb38] sm:$0xff]
        %v4739 = vld [vmem:[%s7 + $0xb40] sm:$0xff]
        %v4740 = vld [vmem:[%s7 + $0xb48] sm:$0xff]
        %v4741 = vld [vmem:[%s7 + $0xb50] sm:$0xff]
        %v4742 = vld [vmem:[%s7 + $0xb58] sm:$0xff]
        %v4743 = vld [vmem:[%s7 + $0xb60] sm:$0xff]
        %v4744 = vld [vmem:[%s7 + $0xb68] sm:$0xff]
        %v4745 = vld [vmem:[%s7 + $0xb70] sm:$0xff]
        %v4746 = vld [vmem:[%s7 + $0xb78] sm:$0xff]
        %v4747 = vld [vmem:[%s7 + $0xb80] sm:$0xff]
        %v4748 = vld [vmem:[%s7 + $0xb88] sm:$0xff]
        %v4749 = vld [vmem:[%s7 + $0xb90] sm:$0xff]
        %v4750 = vld [vmem:[%s7 + $0xb98] sm:$0xff]
        %v4751 = vld [vmem:[%s7 + $0xba0] sm:$0xff]
        %v4752 = vld [vmem:[%s7 + $0xba8] sm:$0xff]
        %v4753 = vld [vmem:[%s7 + $0xbb0] sm:$0xff]
        %v4754 = vld [vmem:[%s7 + $0xbb8] sm:$0xff]
        %v4755 = vld [vmem:[%s7 + $0xbc0] sm:$0xff]
        %v4756 = vld [vmem:[%s7 + $0xbc8] sm:$0xff]
        %v4757 = vld [vmem:[%s7 + $0xbd0] sm:$0xff]
        %v4758 = vld [vmem:[%s7 + $0xbd8] sm:$0xff]
        %v4759 = vld [vmem:[%s7 + $0xbe0] sm:$0xff]
        %v4760 = vld [vmem:[%s7 + $0xbe8] sm:$0xff]
        %v4761 = vld [vmem:[%s7 + $0xbf0] sm:$0xff]
        %v4762 = vld [vmem:[%s7 + $0xbf8] sm:$0xff]
        %v4763 = vld [vmem:[%s7 + $0xc00] sm:$0xff]
        %v4764 = vld [vmem:[%s7 + $0xc08] sm:$0xff]
        %v4765 = vld [vmem:[%s7 + $0xc10] sm:$0xff]
        %v4766 = vld [vmem:[%s7 + $0xc18] sm:$0xff]
        %v4767 = vld [vmem:[%s7 + $0xc20] sm:$0xff]
        %v4768 = vld [vmem:[%s7 + $0xc28] sm:$0xff]
        %v4769 = vld [vmem:[%s7 + $0xc30] sm:$0xff]
        %v4770 = vld [vmem:[%s7 + $0xc38] sm:$0xff]
        %v4771 = vld [vmem:[%s7 + $0xc40] sm:$0xff]
        %v4772 = vld [vmem:[%s7 + $0xc48] sm:$0xff]
        %v4773 = vld [vmem:[%s7 + $0xc50] sm:$0xff]
        %v4774 = vld [vmem:[%s7 + $0xc58] sm:$0xff]
        %v4775 = vld [vmem:[%s7 + $0xc60] sm:$0xff]
        %v4776 = vld [vmem:[%s7 + $0xc68] sm:$0xff]
        %v4777 = vld [vmem:[%s7 + $0xc70] sm:$0xff]
        %v4778 = vld [vmem:[%s7 + $0xc78] sm:$0xff]
        %v4779 = vld [vmem:[%s7 + $0xc80] sm:$0xff]
        %v4780 = vld [vmem:[%s7 + $0xc88] sm:$0xff]
        %v4781 = vld [vmem:[%s7 + $0xc90] sm:$0xff]
        %v4782 = vld [vmem:[%s7 + $0xc98] sm:$0xff]
        %v4783 = vld [vmem:[%s7 + $0xca0] sm:$0xff]
        %v4784 = vld [vmem:[%s7 + $0xca8] sm:$0xff]
        %v4785 = vld [vmem:[%s7 + $0xcb0] sm:$0xff]
        %v4786 = vld [vmem:[%s7 + $0xcb8] sm:$0xff]
        %v4787 = vld [vmem:[%s7 + $0xcc0] sm:$0xff]
        %v4788 = vld [vmem:[%s7 + $0xcc8] sm:$0xff]
        %v4789 = vld [vmem:[%s7 + $0xcd0] sm:$0xff]
        %v4790 = vld [vmem:[%s7 + $0xcd8] sm:$0xff]
        %v4791 = vld [vmem:[%s7 + $0xce0] sm:$0xff]
        %v4792 = vld [vmem:[%s7 + $0xce8] sm:$0xff]
        %v4793 = vld [vmem:[%s7 + $0xcf0] sm:$0xff]
        %v4794 = vld [vmem:[%s7 + $0xcf8] sm:$0xff]
        %v4795 = vld [vmem:[%s7 + $0xd00] sm:$0xff]
        %v4796 = vld [vmem:[%s7 + $0xd08] sm:$0xff]
        %v4797 = vld [vmem:[%s7 + $0xd10] sm:$0xff]
        %v4798 = vld [vmem:[%s7 + $0xd18] sm:$0xff]
        %v4799 = vld [vmem:[%s7 + $0xd20] sm:$0xff]
        %v4800 = vld [vmem:[%s7 + $0xd28] sm:$0xff]
        %v4801 = vld [vmem:[%s7 + $0xd30] sm:$0xff]
        %v4802 = vld [vmem:[%s7 + $0xd38] sm:$0xff]
        %v4803 = vld [vmem:[%s7 + $0xd40] sm:$0xff]
        %v4804 = vld [vmem:[%s7 + $0xd48] sm:$0xff]
        %v4805 = vld [vmem:[%s7 + $0xd50] sm:$0xff]
        %v4806 = vld [vmem:[%s7 + $0xd58] sm:$0xff]
        %v4807 = vld [vmem:[%s7 + $0xd60] sm:$0xff]
        %v4808 = vld [vmem:[%s7 + $0xd68] sm:$0xff]
        %v4809 = vld [vmem:[%s7 + $0xd70] sm:$0xff]
        %v4810 = vld [vmem:[%s7 + $0xd78] sm:$0xff]
        %v4811 = vld [vmem:[%s7 + $0xd80] sm:$0xff]
        %v4812 = vld [vmem:[%s7 + $0xd88] sm:$0xff]
        %v4813 = vld [vmem:[%s7 + $0xd90] sm:$0xff]
        %v4814 = vld [vmem:[%s7 + $0xd98] sm:$0xff]
        %v4815 = vld [vmem:[%s7 + $0xda0] sm:$0xff]
        %v4816 = vld [vmem:[%s7 + $0xda8] sm:$0xff]
        %v4817 = vld [vmem:[%s7 + $0xdb0] sm:$0xff]
        %v4818 = vld [vmem:[%s7 + $0xdb8] sm:$0xff]
        %v4819 = vld [vmem:[%s7 + $0xdc0] sm:$0xff]
        %v4820 = vld [vmem:[%s7 + $0xdc8] sm:$0xff]
        %v4821 = vld [vmem:[%s7 + $0xdd0] sm:$0xff]
        %v4822 = vld [vmem:[%s7 + $0xdd8] sm:$0xff]
        %v4823 = vld [vmem:[%s7 + $0xde0] sm:$0xff]
        %v4824 = vld [vmem:[%s7 + $0xde8] sm:$0xff]
        %v4825 = vld [vmem:[%s7 + $0xdf0] sm:$0xff]
        %v4826 = vld [vmem:[%s7 + $0xdf8] sm:$0xff]
        %v4827 = vld [vmem:[%s7 + $0xe00] sm:$0xff]
        %v4828 = vld [vmem:[%s7 + $0xe08] sm:$0xff]
        %v4829 = vld [vmem:[%s7 + $0xe10] sm:$0xff]
        %v4830 = vld [vmem:[%s7 + $0xe18] sm:$0xff]
        %v4831 = vld [vmem:[%s7 + $0xe20] sm:$0xff]
        %v4832 = vld [vmem:[%s7 + $0xe28] sm:$0xff]
        %v4833 = vld [vmem:[%s7 + $0xe30] sm:$0xff]
        %v4834 = vld [vmem:[%s7 + $0xe38] sm:$0xff]
        %v4835 = vld [vmem:[%s7 + $0xe40] sm:$0xff]
        %v4836 = vld [vmem:[%s7 + $0xe48] sm:$0xff]
        %v4837 = vld [vmem:[%s7 + $0xe50] sm:$0xff]
        %v4838 = vld [vmem:[%s7 + $0xe58] sm:$0xff]
        %v4839 = vld [vmem:[%s7 + $0xe60] sm:$0xff]
        %v4840 = vld [vmem:[%s7 + $0xe68] sm:$0xff]
        %v4841 = vld [vmem:[%s7 + $0xe70] sm:$0xff]
        %v4842 = vld [vmem:[%s7 + $0xe78] sm:$0xff]
        %v4843 = vld [vmem:[%s7 + $0xe80] sm:$0xff]
        %v4844 = vld [vmem:[%s7 + $0xe88] sm:$0xff]
        %v4845 = vld [vmem:[%s7 + $0xe90] sm:$0xff]
        %v4846 = vld [vmem:[%s7 + $0xe98] sm:$0xff]
        %v4847 = vld [vmem:[%s7 + $0xea0] sm:$0xff]
        %v4848 = vld [vmem:[%s7 + $0xea8] sm:$0xff]
        %v4849 = vld [vmem:[%s7 + $0xeb0] sm:$0xff]
        %v4850 = vld [vmem:[%s7 + $0xeb8] sm:$0xff]
        %v4851 = vld [vmem:[%s7 + $0xec0] sm:$0xff]
        %v4852 = vld [vmem:[%s7 + $0xec8] sm:$0xff]
        %v4853 = vld [vmem:[%s7 + $0xed0] sm:$0xff]
        %v4854 = vld [vmem:[%s7 + $0xed8] sm:$0xff]
        %v4855 = vld [vmem:[%s7 + $0xee0] sm:$0xff]
        %v4856 = vld [vmem:[%s7 + $0xee8] sm:$0xff]
        %v4857 = vld [vmem:[%s7 + $0xef0] sm:$0xff]
        %v4858 = vld [vmem:[%s7 + $0xef8] sm:$0xff]
        %v4859 = vld [vmem:[%s7 + $0xf00] sm:$0xff]
        %v4860 = vld [vmem:[%s7 + $0xf08] sm:$0xff]
        %v4861 = vld [vmem:[%s7 + $0xf10] sm:$0xff]
        %v4862 = vld [vmem:[%s7 + $0xf18] sm:$0xff]
        %v4863 = vld [vmem:[%s7 + $0xf20] sm:$0xff]
        %v4864 = vld [vmem:[%s7 + $0xf28] sm:$0xff]
        %v4865 = vld [vmem:[%s7 + $0xf30] sm:$0xff]
        %v4866 = vld [vmem:[%s7 + $0xf38] sm:$0xff]
        %v4867 = vld [vmem:[%s7 + $0xf40] sm:$0xff]
        %v4868 = vld [vmem:[%s7 + $0xf48] sm:$0xff]
        %v4869 = vld [vmem:[%s7 + $0xf50] sm:$0xff]
        %v4870 = vld [vmem:[%s7 + $0xf58] sm:$0xff]
        %v4871 = vld [vmem:[%s7 + $0xf60] sm:$0xff]
        %v4872 = vld [vmem:[%s7 + $0xf68] sm:$0xff]
        %v4873 = vld [vmem:[%s7 + $0xf70] sm:$0xff]
        %v4874 = vld [vmem:[%s7 + $0xf78] sm:$0xff]
        %v4875 = vld [vmem:[%s7 + $0xf80] sm:$0xff]
        %v4876 = vld [vmem:[%s7 + $0xf88] sm:$0xff]
        %v4877 = vld [vmem:[%s7 + $0xf90] sm:$0xff]
        %v4878 = vld [vmem:[%s7 + $0xf98] sm:$0xff]
        %v4879 = vld [vmem:[%s7 + $0xfa0] sm:$0xff]
        %v4880 = vld [vmem:[%s7 + $0xfa8] sm:$0xff]
        %v4881 = vld [vmem:[%s7 + $0xfb0] sm:$0xff]
        %v4882 = vld [vmem:[%s7 + $0xfb8] sm:$0xff]
        %v4883 = vld [vmem:[%s7 + $0xfc0] sm:$0xff]
        %v4884 = vld [vmem:[%s7 + $0xfc8] sm:$0xff]
        %v4885 = vld [vmem:[%s7 + $0xfd0] sm:$0xff]
        %v4886 = vld [vmem:[%s7 + $0xfd8] sm:$0xff]
        %v4887 = vld [vmem:[%s7 + $0xfe0] sm:$0xff]
        %v4888 = vld [vmem:[%s7 + $0xfe8] sm:$0xff]
        %v4889 = vld [vmem:[%s7 + $0xff0] sm:$0xff]
        %v4890 = vld [vmem:[%s7 + $0xff8] sm:$0xff]
        %v4891 = vld [vmem:[%s7 + $0x1000] sm:$0xff]
        %v4892 = vld [vmem:[%s7 + $0x1008] sm:$0xff]
        %v4893 = vld [vmem:[%s7 + $0x1010] sm:$0xff]
        %v4894 = vld [vmem:[%s7 + $0x1018] sm:$0xff]
        %v4895 = vld [vmem:[%s7 + $0x1020] sm:$0xff]
        %v4896 = vld [vmem:[%s7 + $0x1028] sm:$0xff]
        %v4897 = vld [vmem:[%s7 + $0x1030] sm:$0xff]
        %v4898 = vld [vmem:[%s7 + $0x1038] sm:$0xff]
        %v4899 = vld [vmem:[%s7 + $0x1040] sm:$0xff]
        %v4900 = vld [vmem:[%s7 + $0x1048] sm:$0xff]
        %v4901 = vld [vmem:[%s7 + $0x1050] sm:$0xff]
        %v4902 = vld [vmem:[%s7 + $0x1058] sm:$0xff]
        %v4903 = vld [vmem:[%s7 + $0x1060] sm:$0xff]
        %v4904 = vld [vmem:[%s7 + $0x1068] sm:$0xff]
        %v4905 = vld [vmem:[%s7 + $0x1070] sm:$0xff]
        %v4906 = vld [vmem:[%s7 + $0x1078] sm:$0xff]
        %v4907 = vld [vmem:[%s7 + $0x1080] sm:$0xff]
        %v4908 = vld [vmem:[%s7 + $0x1088] sm:$0xff]
        %v4909 = vld [vmem:[%s7 + $0x1090] sm:$0xff]
        %v4910 = vld [vmem:[%s7 + $0x1098] sm:$0xff]
        %v4911 = vld [vmem:[%s7 + $0x10a0] sm:$0xff]
        %v4912 = vld [vmem:[%s7 + $0x10a8] sm:$0xff]
        %v4913 = vld [vmem:[%s7 + $0x10b0] sm:$0xff]
        %v4914 = vld [vmem:[%s7 + $0x10b8] sm:$0xff]
        %v4915 = vld [vmem:[%s7 + $0x10c0] sm:$0xff]
        %v4916 = vld [vmem:[%s7 + $0x10c8] sm:$0xff]
        %v4917 = vld [vmem:[%s7 + $0x10d0] sm:$0xff]
        %v4918 = vld [vmem:[%s7 + $0x10d8] sm:$0xff]
        %v4919 = vld [vmem:[%s7 + $0x10e0] sm:$0xff]
        %v4920 = vld [vmem:[%s7 + $0x10e8] sm:$0xff]
        %v4921 = vld [vmem:[%s7 + $0x10f0] sm:$0xff]
        %v4922 = vld [vmem:[%s7 + $0x10f8] sm:$0xff]
        %v4923 = vld [vmem:[%s7 + $0x1100] sm:$0xff]
        %v4924 = vld [vmem:[%s7 + $0x1108] sm:$0xff]
        %v4925 = vld [vmem:[%s7 + $0x1110] sm:$0xff]
        %v4926 = vld [vmem:[%s7 + $0x1118] sm:$0xff]
        %v4927 = vld [vmem:[%s7 + $0x1120] sm:$0xff]
        %v4928 = vld [vmem:[%s7 + $0x1128] sm:$0xff]
        %v4929 = vld [vmem:[%s7 + $0x1130] sm:$0xff]
        %v4930 = vld [vmem:[%s7 + $0x1138] sm:$0xff]
        %v4931 = vld [vmem:[%s7 + $0x1140] sm:$0xff]
        %v4932 = vld [vmem:[%s7 + $0x1148] sm:$0xff]
        %v4933 = vld [vmem:[%s7 + $0x1150] sm:$0xff]
        %v4934 = vld [vmem:[%s7 + $0x1158] sm:$0xff]
        %v4935 = vld [vmem:[%s7 + $0x1160] sm:$0xff]
        %v4936 = vld [vmem:[%s7 + $0x1168] sm:$0xff]
        %v4937 = vld [vmem:[%s7 + $0x1170] sm:$0xff]
        %v4938 = vld [vmem:[%s7 + $0x1178] sm:$0xff]
        %v4939 = vld [vmem:[%s7 + $0x1180] sm:$0xff]
        %v4940 = vld [vmem:[%s7 + $0x1188] sm:$0xff]
        %v4941 = vld [vmem:[%s7 + $0x1190] sm:$0xff]
        %v4942 = vld [vmem:[%s7 + $0x1198] sm:$0xff]
        %v4943 = vld [vmem:[%s7 + $0x11a0] sm:$0xff]
        %v4944 = vld [vmem:[%s7 + $0x11a8] sm:$0xff]
        %v4945 = vld [vmem:[%s7 + $0x11b0] sm:$0xff]
        %v4946 = vld [vmem:[%s7 + $0x11b8] sm:$0xff]
        %v4947 = vld [vmem:[%s7 + $0x11c0] sm:$0xff]
        %v4948 = vld [vmem:[%s7 + $0x11c8] sm:$0xff]
        %v4949 = vld [vmem:[%s7 + $0x11d0] sm:$0xff]
        %v4950 = vld [vmem:[%s7 + $0x11d8] sm:$0xff]
        %v4951 = vld [vmem:[%s7 + $0x11e0] sm:$0xff]
        %v4952 = vld [vmem:[%s7 + $0x11e8] sm:$0xff]
        %v4953 = vld [vmem:[%s7 + $0x11f0] sm:$0xff]
        %v4954 = vld [vmem:[%s7 + $0x11f8] sm:$0xff]
        %v4955 = vld [vmem:[%s7 + $0x1200] sm:$0xff]
        %v4956 = vld [vmem:[%s7 + $0x1208] sm:$0xff]
        %v4957 = vld [vmem:[%s7 + $0x1210] sm:$0xff]
        %v4958 = vld [vmem:[%s7 + $0x1218] sm:$0xff]
        %v4959 = vld [vmem:[%s7 + $0x1220] sm:$0xff]
        %v4960 = vld [vmem:[%s7 + $0x1228] sm:$0xff]
        %v4961 = vld [vmem:[%s7 + $0x1230] sm:$0xff]
        %v4962 = vld [vmem:[%s7 + $0x1238] sm:$0xff]
        %v4963 = vld [vmem:[%s7 + $0x1240] sm:$0xff]
        %v4964 = vld [vmem:[%s7 + $0x1248] sm:$0xff]
        %v4965 = vld [vmem:[%s7 + $0x1250] sm:$0xff]
        %v4966 = vld [vmem:[%s7 + $0x1258] sm:$0xff]
        %v4967 = vld [vmem:[%s7 + $0x1260] sm:$0xff]
        %v4968 = vld [vmem:[%s7 + $0x1268] sm:$0xff]
        %v4969 = vld [vmem:[%s7 + $0x1270] sm:$0xff]
        %v4970 = vld [vmem:[%s7 + $0x1278] sm:$0xff]
        %v4971 = vld [vmem:[%s7 + $0x1280] sm:$0xff]
        %v4972 = vld [vmem:[%s7 + $0x1288] sm:$0xff]
        %v4973 = vld [vmem:[%s7 + $0x1290] sm:$0xff]
        %v4974 = vld [vmem:[%s7 + $0x1298] sm:$0xff]
        %v4975 = vld [vmem:[%s7 + $0x12a0] sm:$0xff]
        %v4976 = vld [vmem:[%s7 + $0x12a8] sm:$0xff]
        %v4977 = vld [vmem:[%s7 + $0x12b0] sm:$0xff]
        %v4978 = vld [vmem:[%s7 + $0x12b8] sm:$0xff]
        %v4979 = vld [vmem:[%s7 + $0x12c0] sm:$0xff]
        %v4980 = vld [vmem:[%s7 + $0x12c8] sm:$0xff]
        %v4981 = vld [vmem:[%s7 + $0x12d0] sm:$0xff]
        %v4982 = vld [vmem:[%s7 + $0x12d8] sm:$0xff]
        %v4983 = vld [vmem:[%s7 + $0x12e0] sm:$0xff]
        %v4984 = vld [vmem:[%s7 + $0x12e8] sm:$0xff]
        %v4985 = vld [vmem:[%s7 + $0x12f0] sm:$0xff]
        %v4986 = vld [vmem:[%s7 + $0x12f8] sm:$0xff]
        %v4987 = vld [vmem:[%s7 + $0x1300] sm:$0xff]
        %v4988 = vld [vmem:[%s7 + $0x1308] sm:$0xff]
        %v4989 = vld [vmem:[%s7 + $0x1310] sm:$0xff]
        %v4990 = vld [vmem:[%s7 + $0x1318] sm:$0xff]
        %v4991 = vld [vmem:[%s7 + $0x1320] sm:$0xff]
        %v4992 = vld [vmem:[%s7 + $0x1328] sm:$0xff]
        %v4993 = vld [vmem:[%s7 + $0x1330] sm:$0xff]
        %v4994 = vld [vmem:[%s7 + $0x1338] sm:$0xff]
        %v4995 = vld [vmem:[%s7 + $0x1340] sm:$0xff]
        %v4996 = vld [vmem:[%s7 + $0x1348] sm:$0xff]
        %v4997 = vld [vmem:[%s7 + $0x1350] sm:$0xff]
        %v4998 = vld [vmem:[%s7 + $0x1358] sm:$0xff]
        %v4999 = vld [vmem:[%s7 + $0x1360] sm:$0xff]
        %v5000 = vld [vmem:[%s7 + $0x1368] sm:$0xff]
        %v5001 = vld [vmem:[%s7 + $0x1370] sm:$0xff]
        %v5002 = vld [vmem:[%s7 + $0x1378] sm:$0xff]
        %v5003 = vld [vmem:[%s7 + $0x1380] sm:$0xff]
        %v5004 = vld [vmem:[%s7 + $0x1388] sm:$0xff]
        %v5005 = vld [vmem:[%s7 + $0x1390] sm:$0xff]
        %v5006 = vld [vmem:[%s7 + $0x1398] sm:$0xff]
        %v5007 = vld [vmem:[%s7 + $0x13a0] sm:$0xff]
        %v5008 = vld [vmem:[%s7 + $0x13a8] sm:$0xff]
        %v5009 = vld [vmem:[%s7 + $0x13b0] sm:$0xff]
        %v5010 = vld [vmem:[%s7 + $0x13b8] sm:$0xff]
        %v5011 = vld [vmem:[%s7 + $0x13c0] sm:$0xff]
        %v5012 = vld [vmem:[%s7 + $0x13c8] sm:$0xff]
        %v5013 = vld [vmem:[%s7 + $0x13d0] sm:$0xff]
        %v5014 = vld [vmem:[%s7 + $0x13d8] sm:$0xff]
        %v5015 = vld [vmem:[%s7 + $0x13e0] sm:$0xff]
        %v5016 = vld [vmem:[%s7 + $0x13e8] sm:$0xff]
        %v5017 = vld [vmem:[%s7 + $0x13f0] sm:$0xff]
        %v5018 = vld [vmem:[%s7 + $0x13f8] sm:$0xff]
        %v5019 = vld [vmem:[%s7 + $0x1400] sm:$0xff]
        %v5020 = vld [vmem:[%s7 + $0x1408] sm:$0xff]
        %v5021 = vld [vmem:[%s7 + $0x1410] sm:$0xff]
        %v5022 = vld [vmem:[%s7 + $0x1418] sm:$0xff]
        %v5023 = vld [vmem:[%s7 + $0x1420] sm:$0xff]
        %v5024 = vld [vmem:[%s7 + $0x1428] sm:$0xff]
        %v5025 = vld [vmem:[%s7 + $0x1430] sm:$0xff]
        %v5026 = vld [vmem:[%s7 + $0x1438] sm:$0xff]
        %v5027 = vld [vmem:[%s7 + $0x1440] sm:$0xff]
        %v5028 = vld [vmem:[%s7 + $0x1448] sm:$0xff]
        %v5029 = vld [vmem:[%s7 + $0x1450] sm:$0xff]
        %v5030 = vld [vmem:[%s7 + $0x1458] sm:$0xff]
        %v5031 = vld [vmem:[%s7 + $0x1460] sm:$0xff]
        %v5032 = vld [vmem:[%s7 + $0x1468] sm:$0xff]
        %v5033 = vld [vmem:[%s7 + $0x1470] sm:$0xff]
        %v5034 = vld [vmem:[%s7 + $0x1478] sm:$0xff]
        %v5035 = vld [vmem:[%s7 + $0x1480] sm:$0xff]
        %v5036 = vld [vmem:[%s7 + $0x1488] sm:$0xff]
        %v5037 = vld [vmem:[%s7 + $0x1490] sm:$0xff]
        %v5038 = vld [vmem:[%s7 + $0x1498] sm:$0xff]
        %v5039 = vld [vmem:[%s7 + $0x14a0] sm:$0xff]
        %v5040 = vld [vmem:[%s7 + $0x14a8] sm:$0xff]
        %v5041 = vld [vmem:[%s7 + $0x14b0] sm:$0xff]
        %v5042 = vld [vmem:[%s7 + $0x14b8] sm:$0xff]
        %v5043 = vld [vmem:[%s7 + $0x14c0] sm:$0xff]
        %v5044 = vld [vmem:[%s7 + $0x14c8] sm:$0xff]
        %v5045 = vld [vmem:[%s7 + $0x14d0] sm:$0xff]
        %v5046 = vld [vmem:[%s7 + $0x14d8] sm:$0xff]
        %v5047 = vld [vmem:[%s7 + $0x14e0] sm:$0xff]
        %v5048 = vld [vmem:[%s7 + $0x14e8] sm:$0xff]
        %v5049 = vld [vmem:[%s7 + $0x14f0] sm:$0xff]
        %v5050 = vld [vmem:[%s7 + $0x14f8] sm:$0xff]
        %v5051 = vld [vmem:[%s7 + $0x1500] sm:$0xff]
        %v5052 = vld [vmem:[%s7 + $0x1508] sm:$0xff]
        %v5053 = vld [vmem:[%s7 + $0x1510] sm:$0xff]
        %v5054 = vld [vmem:[%s7 + $0x1518] sm:$0xff]
        %v5055 = vld [vmem:[%s7 + $0x1520] sm:$0xff]
        %v5056 = vld [vmem:[%s7 + $0x1528] sm:$0xff]
        %v5057 = vld [vmem:[%s7 + $0x1530] sm:$0xff]
        %v5058 = vld [vmem:[%s7 + $0x1538] sm:$0xff]
        %v5059 = vld [vmem:[%s7 + $0x1540] sm:$0xff]
        %v5060 = vld [vmem:[%s7 + $0x1548] sm:$0xff]
        %v5061 = vld [vmem:[%s7 + $0x1550] sm:$0xff]
        %v5062 = vld [vmem:[%s7 + $0x1558] sm:$0xff]
        %v5063 = vld [vmem:[%s7 + $0x1560] sm:$0xff]
        %v5064 = vld [vmem:[%s7 + $0x1568] sm:$0xff]
        %v5065 = vld [vmem:[%s7 + $0x1570] sm:$0xff]
        %v5066 = vld [vmem:[%s7 + $0x1578] sm:$0xff]
        %v5067 = vld [vmem:[%s7 + $0x1580] sm:$0xff]
        %v5068 = vld [vmem:[%s7 + $0x1588] sm:$0xff]
        %v5069 = vld [vmem:[%s7 + $0x1590] sm:$0xff]
        %v5070 = vld [vmem:[%s7 + $0x1598] sm:$0xff]
        %v5071 = vld [vmem:[%s7 + $0x15a0] sm:$0xff]
        %v5072 = vld [vmem:[%s7 + $0x15a8] sm:$0xff]
        %v5073 = vld [vmem:[%s7 + $0x15b0] sm:$0xff]
        %v5074 = vld [vmem:[%s7 + $0x15b8] sm:$0xff]
        %v5075 = vld [vmem:[%s7 + $0x15c0] sm:$0xff]
        %v5076 = vld [vmem:[%s7 + $0x15c8] sm:$0xff]
        %v5077 = vld [vmem:[%s7 + $0x15d0] sm:$0xff]
        %v5078 = vld [vmem:[%s7 + $0x15d8] sm:$0xff]
        %v5079 = vld [vmem:[%s7 + $0x15e0] sm:$0xff]
        %v5080 = vld [vmem:[%s7 + $0x15e8] sm:$0xff]
        %v5081 = vld [vmem:[%s7 + $0x15f0] sm:$0xff]
        %v5082 = vld [vmem:[%s7 + $0x15f8] sm:$0xff]
        %v5083 = vld [vmem:[%s7 + $0x1600] sm:$0xff]
        %v5084 = vld [vmem:[%s7 + $0x1608] sm:$0xff]
        %v5085 = vld [vmem:[%s7 + $0x1610] sm:$0xff]
        %v5086 = vld [vmem:[%s7 + $0x1618] sm:$0xff]
        %v5087 = vld [vmem:[%s7 + $0x1620] sm:$0xff]
        %v5088 = vld [vmem:[%s7 + $0x1628] sm:$0xff]
        %v5089 = vld [vmem:[%s7 + $0x1630] sm:$0xff]
        %v5090 = vld [vmem:[%s7 + $0x1638] sm:$0xff]
        %v5091 = vld [vmem:[%s7 + $0x1640] sm:$0xff]
        %v5092 = vld [vmem:[%s7 + $0x1648] sm:$0xff]
        %v5093 = vld [vmem:[%s7 + $0x1650] sm:$0xff]
        %v5094 = vld [vmem:[%s7 + $0x1658] sm:$0xff]
        %v5095 = vld [vmem:[%s7 + $0x1660] sm:$0xff]
        %v5096 = vld [vmem:[%s7 + $0x1668] sm:$0xff]
        %v5097 = vld [vmem:[%s7 + $0x1670] sm:$0xff]
        %v5098 = vld [vmem:[%s7 + $0x1678] sm:$0xff]
        %v5099 = vld [vmem:[%s7 + $0x1680] sm:$0xff]
        %v5100 = vld [vmem:[%s7 + $0x1688] sm:$0xff]
        %v5101 = vld [vmem:[%s7 + $0x1690] sm:$0xff]
        %v5102 = vld [vmem:[%s7 + $0x1698] sm:$0xff]
        %v5103 = vld [vmem:[%s7 + $0x16a0] sm:$0xff]
        %v5104 = vld [vmem:[%s7 + $0x16a8] sm:$0xff]
        %v5105 = vld [vmem:[%s7 + $0x16b0] sm:$0xff]
        %v5106 = vld [vmem:[%s7 + $0x16b8] sm:$0xff]
        %v5107 = vld [vmem:[%s7 + $0x16c0] sm:$0xff]
        %v5108 = vld [vmem:[%s7 + $0x16c8] sm:$0xff]
        %v5109 = vld [vmem:[%s7 + $0x16d0] sm:$0xff]
        %v5110 = vld [vmem:[%s7 + $0x16d8] sm:$0xff]
        %v5111 = vld [vmem:[%s7 + $0x16e0] sm:$0xff]
        %v5112 = vld [vmem:[%s7 + $0x16e8] sm:$0xff]
        %v5113 = vld [vmem:[%s7 + $0x16f0] sm:$0xff]
        %v5114 = vld [vmem:[%s7 + $0x16f8] sm:$0xff]
        %v5115 = vld [vmem:[%s7 + $0x1700] sm:$0xff]
        %v5116 = vld [vmem:[%s7 + $0x1708] sm:$0xff]
        %v5117 = vld [vmem:[%s7 + $0x1710] sm:$0xff]
        %v5118 = vld [vmem:[%s7 + $0x1718] sm:$0xff]
        %v5119 = vld [vmem:[%s7 + $0x1720] sm:$0xff]
        %v5120 = vld [vmem:[%s7 + $0x1728] sm:$0xff]
        %v5121 = vld [vmem:[%s7 + $0x1730] sm:$0xff]
        %v5122 = vld [vmem:[%s7 + $0x1738] sm:$0xff]
        %v5123 = vld [vmem:[%s7 + $0x1740] sm:$0xff]
        %v5124 = vld [vmem:[%s7 + $0x1748] sm:$0xff]
        %v5125 = vld [vmem:[%s7 + $0x1750] sm:$0xff]
        %v5126 = vld [vmem:[%s7 + $0x1758] sm:$0xff]
        %v5127 = vld [vmem:[%s7 + $0x1760] sm:$0xff]
        %v5128 = vld [vmem:[%s7 + $0x1768] sm:$0xff]
        %v5129 = vld [vmem:[%s7 + $0x1770] sm:$0xff]
        %v5130 = vld [vmem:[%s7 + $0x1778] sm:$0xff]
        %v5131 = vld [vmem:[%s7 + $0x1780] sm:$0xff]
        %v5132 = vld [vmem:[%s7 + $0x1788] sm:$0xff]
        %v5133 = vld [vmem:[%s7 + $0x1790] sm:$0xff]
        %v5134 = vld [vmem:[%s7 + $0x1798] sm:$0xff]
        %v5135 = vld [vmem:[%s7 + $0x17a0] sm:$0xff]
        %v5136 = vld [vmem:[%s7 + $0x17a8] sm:$0xff]
        %v5137 = vld [vmem:[%s7 + $0x17b0] sm:$0xff]
        %v5138 = vld [vmem:[%s7 + $0x17b8] sm:$0xff]
        %v5139 = vld [vmem:[%s7 + $0x17c0] sm:$0xff]
        %v5140 = vld [vmem:[%s7 + $0x17c8] sm:$0xff]
        %v5141 = vld [vmem:[%s7 + $0x17d0] sm:$0xff]
        %v5142 = vld [vmem:[%s7 + $0x17d8] sm:$0xff]
        %v5143 = vld [vmem:[%s7 + $0x17e0] sm:$0xff]
        %v5144 = vld [vmem:[%s7 + $0x17e8] sm:$0xff]
        %v5145 = vld [vmem:[%s7 + $0x17f0] sm:$0xff]
        %v5146 = vld [vmem:[%s7 + $0x17f8] sm:$0xff]
        %v5147 = vld [vmem:[%s7 + $0x1800] sm:$0xff]
        %v5148 = vld [vmem:[%s7 + $0x1808] sm:$0xff]
        %v5149 = vld [vmem:[%s7 + $0x1810] sm:$0xff]
        %v5150 = vld [vmem:[%s7 + $0x1818] sm:$0xff]
        %v5151 = vld [vmem:[%s7 + $0x1820] sm:$0xff]
        %v5152 = vld [vmem:[%s7 + $0x1828] sm:$0xff]
        %v5153 = vld [vmem:[%s7 + $0x1830] sm:$0xff]
        %v5154 = vld [vmem:[%s7 + $0x1838] sm:$0xff]
        %v5155 = vld [vmem:[%s7 + $0x1840] sm:$0xff]
        %v5156 = vld [vmem:[%s7 + $0x1848] sm:$0xff]
        %v5157 = vld [vmem:[%s7 + $0x1850] sm:$0xff]
        %v5158 = vld [vmem:[%s7 + $0x1858] sm:$0xff]
        %v5159 = vld [vmem:[%s7 + $0x1860] sm:$0xff]
        %v5160 = vld [vmem:[%s7 + $0x1868] sm:$0xff]
        %v5161 = vld [vmem:[%s7 + $0x1870] sm:$0xff]
        %v5162 = vld [vmem:[%s7 + $0x1878] sm:$0xff]
        %v5163 = vld [vmem:[%s8] sm:$0xf]
        %v5948 = vunpack.c.l.b16 %v4379
        %v5949 = vunpack.c.h.b16 %v4379
        %v5950 = vunpack.c.l.b16 %v4380
        %v5951 = vunpack.c.h.b16 %v4380
        %v5952 = vunpack.c.l.b16 %v4381
        %v5953 = vunpack.c.h.b16 %v4381
        %v5954 = vunpack.c.l.b16 %v4382
        %v5955 = vunpack.c.h.b16 %v4382
        %v5956 = vunpack.c.l.b16 %v4383
        %v5957 = vunpack.c.h.b16 %v4383
        %v5958 = vunpack.c.l.b16 %v4384
        %v5959 = vunpack.c.h.b16 %v4384
        %v5960 = vunpack.c.l.b16 %v4385
        %v5961 = vunpack.c.h.b16 %v4385
        %v5962 = vunpack.c.l.b16 %v4386
        %v5963 = vunpack.c.h.b16 %v4386
        %v5964 = vunpack.c.l.b16 %v4387
        %v5965 = vunpack.c.h.b16 %v4387
        %v5966 = vunpack.c.l.b16 %v4388
        %v5967 = vunpack.c.h.b16 %v4388
        %v5968 = vunpack.c.l.b16 %v4389
        %v5969 = vunpack.c.h.b16 %v4389
        %v5970 = vunpack.c.l.b16 %v4390
        %v5971 = vunpack.c.h.b16 %v4390
        %v5972 = vunpack.c.l.b16 %v4391
        %v5973 = vunpack.c.h.b16 %v4391
        %v5974 = vunpack.c.l.b16 %v4392
        %v5975 = vunpack.c.h.b16 %v4392
        %v5976 = vunpack.c.l.b16 %v4393
        %v5977 = vunpack.c.h.b16 %v4393
        %v5978 = vunpack.c.l.b16 %v4394
        %v5979 = vunpack.c.h.b16 %v4394
        %v5980 = vunpack.c.l.b16 %v4395
        %v5981 = vunpack.c.h.b16 %v4395
        %v5982 = vunpack.c.l.b16 %v4396
        %v5983 = vunpack.c.h.b16 %v4396
        %v5984 = vunpack.c.l.b16 %v4397
        %v5985 = vunpack.c.h.b16 %v4397
        %v5986 = vunpack.c.l.b16 %v4398
        %v5987 = vunpack.c.h.b16 %v4398
        %v5988 = vunpack.c.l.b16 %v4399
        %v5989 = vunpack.c.h.b16 %v4399
        %v5990 = vunpack.c.l.b16 %v4400
        %v5991 = vunpack.c.h.b16 %v4400
        %v5992 = vunpack.c.l.b16 %v4401
        %v5993 = vunpack.c.h.b16 %v4401
        %v5994 = vunpack.c.l.b16 %v4402
        %v5995 = vunpack.c.h.b16 %v4402
        %v5996 = vunpack.c.l.b16 %v4403
        %v5997 = vunpack.c.h.b16 %v4403
        %v5998 = vunpack.c.l.b16 %v4404
        %v5999 = vunpack.c.h.b16 %v4404
        %v6000 = vunpack.c.l.b16 %v4405
        %v6001 = vunpack.c.h.b16 %v4405
        %v6002 = vunpack.c.l.b16 %v4406
        %v6003 = vunpack.c.h.b16 %v4406
        %v6004 = vunpack.c.l.b16 %v4407
        %v6005 = vunpack.c.h.b16 %v4407
        %v6006 = vunpack.c.l.b16 %v4408
        %v6007 = vunpack.c.h.b16 %v4408
        %v6008 = vunpack.c.l.b16 %v4409
        %v6009 = vunpack.c.h.b16 %v4409
        %v6010 = vunpack.c.l.b16 %v4410
        %v6011 = vunpack.c.h.b16 %v4410
        %v6012 = vunpack.c.l.b16 %v4411
        %v6013 = vunpack.c.h.b16 %v4411
        %v6014 = vunpack.c.l.b16 %v4412
        %v6015 = vunpack.c.h.b16 %v4412
        %v6016 = vunpack.c.l.b16 %v4413
        %v6017 = vunpack.c.h.b16 %v4413
        %v6018 = vunpack.c.l.b16 %v4414
        %v6019 = vunpack.c.h.b16 %v4414
        %v6020 = vunpack.c.l.b16 %v4415
        %v6021 = vunpack.c.h.b16 %v4415
        %v6022 = vunpack.c.l.b16 %v4416
        %v6023 = vunpack.c.h.b16 %v4416
        %v6024 = vunpack.c.l.b16 %v4417
        %v6025 = vunpack.c.h.b16 %v4417
        %v6026 = vunpack.c.l.b16 %v4418
        %v6027 = vunpack.c.h.b16 %v4418
        %v6028 = vunpack.c.l.b16 %v4419
        %v6029 = vunpack.c.h.b16 %v4419
        %v6030 = vunpack.c.l.b16 %v4420
        %v6031 = vunpack.c.h.b16 %v4420
        %v6032 = vunpack.c.l.b16 %v4421
        %v6033 = vunpack.c.h.b16 %v4421
        %v6034 = vunpack.c.l.b16 %v4422
        %v6035 = vunpack.c.h.b16 %v4422
        %v6036 = vunpack.c.l.b16 %v4423
        %v6037 = vunpack.c.h.b16 %v4423
        %v6038 = vunpack.c.l.b16 %v4424
        %v6039 = vunpack.c.h.b16 %v4424
        %v6040 = vunpack.c.l.b16 %v4425
        %v6041 = vunpack.c.h.b16 %v4425
        %v6042 = vunpack.c.l.b16 %v4426
        %v6043 = vunpack.c.h.b16 %v4426
        %v6044 = vunpack.c.l.b16 %v4427
        %v6045 = vunpack.c.h.b16 %v4427
        %v6046 = vunpack.c.l.b16 %v4428
        %v6047 = vunpack.c.h.b16 %v4428
        %v6048 = vunpack.c.l.b16 %v4429
        %v6049 = vunpack.c.h.b16 %v4429
        %v6050 = vunpack.c.l.b16 %v4430
        %v6051 = vunpack.c.h.b16 %v4430
        %v6052 = vunpack.c.l.b16 %v4431
        %v6053 = vunpack.c.h.b16 %v4431
        %v6054 = vunpack.c.l.b16 %v4432
        %v6055 = vunpack.c.h.b16 %v4432
        %v6056 = vunpack.c.l.b16 %v4433
        %v6057 = vunpack.c.h.b16 %v4433
        %v6058 = vunpack.c.l.b16 %v4434
        %v6059 = vunpack.c.h.b16 %v4434
        %v6060 = vunpack.c.l.b16 %v4435
        %v6061 = vunpack.c.h.b16 %v4435
        %v6062 = vunpack.c.l.b16 %v4436
        %v6063 = vunpack.c.h.b16 %v4436
        %v6064 = vunpack.c.l.b16 %v4437
        %v6065 = vunpack.c.h.b16 %v4437
        %v6066 = vunpack.c.l.b16 %v4438
        %v6067 = vunpack.c.h.b16 %v4438
        %v6068 = vunpack.c.l.b16 %v4439
        %v6069 = vunpack.c.h.b16 %v4439
        %v6070 = vunpack.c.l.b16 %v4440
        %v6071 = vunpack.c.h.b16 %v4440
        %v6072 = vunpack.c.l.b16 %v4441
        %v6073 = vunpack.c.h.b16 %v4441
        %v6074 = vunpack.c.l.b16 %v4442
        %v6075 = vunpack.c.h.b16 %v4442
        %v6076 = vunpack.c.l.b16 %v4443
        %v6077 = vunpack.c.h.b16 %v4443
        %v6078 = vunpack.c.l.b16 %v4444
        %v6079 = vunpack.c.h.b16 %v4444
        %v6080 = vunpack.c.l.b16 %v4445
        %v6081 = vunpack.c.h.b16 %v4445
        %v6082 = vunpack.c.l.b16 %v4446
        %v6083 = vunpack.c.h.b16 %v4446
        %v6084 = vunpack.c.l.b16 %v4447
        %v6085 = vunpack.c.h.b16 %v4447
        %v6086 = vunpack.c.l.b16 %v4448
        %v6087 = vunpack.c.h.b16 %v4448
        %v6088 = vunpack.c.l.b16 %v4449
        %v6089 = vunpack.c.h.b16 %v4449
        %v6090 = vunpack.c.l.b16 %v4450
        %v6091 = vunpack.c.h.b16 %v4450
        %v6092 = vunpack.c.l.b16 %v4451
        %v6093 = vunpack.c.h.b16 %v4451
        %v6094 = vunpack.c.l.b16 %v4452
        %v6095 = vunpack.c.h.b16 %v4452
        %v6096 = vunpack.c.l.b16 %v4453
        %v6097 = vunpack.c.h.b16 %v4453
        %v6098 = vunpack.c.l.b16 %v4454
        %v6099 = vunpack.c.h.b16 %v4454
        %v6100 = vunpack.c.l.b16 %v4455
        %v6101 = vunpack.c.h.b16 %v4455
        %v6102 = vunpack.c.l.b16 %v4456
        %v6103 = vunpack.c.h.b16 %v4456
        %v6104 = vunpack.c.l.b16 %v4457
        %v6105 = vunpack.c.h.b16 %v4457
        %v6106 = vunpack.c.l.b16 %v4458
        %v6107 = vunpack.c.h.b16 %v4458
        %v6108 = vunpack.c.l.b16 %v4459
        %v6109 = vunpack.c.h.b16 %v4459
        %v6110 = vunpack.c.l.b16 %v4460
        %v6111 = vunpack.c.h.b16 %v4460
        %v6112 = vunpack.c.l.b16 %v4461
        %v6113 = vunpack.c.h.b16 %v4461
        %v6114 = vunpack.c.l.b16 %v4462
        %v6115 = vunpack.c.h.b16 %v4462
        %v6116 = vunpack.c.l.b16 %v4463
        %v6117 = vunpack.c.h.b16 %v4463
        %v6118 = vunpack.c.l.b16 %v4464
        %v6119 = vunpack.c.h.b16 %v4464
        %v6120 = vunpack.c.l.b16 %v4465
        %v6121 = vunpack.c.h.b16 %v4465
        %v6122 = vunpack.c.l.b16 %v4466
        %v6123 = vunpack.c.h.b16 %v4466
        %v6124 = vunpack.c.l.b16 %v4467
        %v6125 = vunpack.c.h.b16 %v4467
        %v6126 = vunpack.c.l.b16 %v4468
        %v6127 = vunpack.c.h.b16 %v4468
        %v6128 = vunpack.c.l.b16 %v4469
        %v6129 = vunpack.c.h.b16 %v4469
        %v6130 = vunpack.c.l.b16 %v4470
        %v6131 = vunpack.c.h.b16 %v4470
        %v6132 = vunpack.c.l.b16 %v4471
        %v6133 = vunpack.c.h.b16 %v4471
        %v6134 = vunpack.c.l.b16 %v4472
        %v6135 = vunpack.c.h.b16 %v4472
        %v6136 = vunpack.c.l.b16 %v4473
        %v6137 = vunpack.c.h.b16 %v4473
        %v6138 = vunpack.c.l.b16 %v4474
        %v6139 = vunpack.c.h.b16 %v4474
        %v6140 = vunpack.c.l.b16 %v4475
        %v6141 = vunpack.c.h.b16 %v4475
        %v6142 = vunpack.c.l.b16 %v4476
        %v6143 = vunpack.c.h.b16 %v4476
        %v6144 = vunpack.c.l.b16 %v4477
        %v6145 = vunpack.c.h.b16 %v4477
        %v6146 = vunpack.c.l.b16 %v4478
        %v6147 = vunpack.c.h.b16 %v4478
        %v6148 = vunpack.c.l.b16 %v4479
        %v6149 = vunpack.c.h.b16 %v4479
        %v6150 = vunpack.c.l.b16 %v4480
        %v6151 = vunpack.c.h.b16 %v4480
        %v6152 = vunpack.c.l.b16 %v4481
        %v6153 = vunpack.c.h.b16 %v4481
        %v6154 = vunpack.c.l.b16 %v4482
        %v6155 = vunpack.c.h.b16 %v4482
        %v6156 = vunpack.c.l.b16 %v4483
        %v6157 = vunpack.c.h.b16 %v4483
        %v6158 = vunpack.c.l.b16 %v4484
        %v6159 = vunpack.c.h.b16 %v4484
        %v6160 = vunpack.c.l.b16 %v4485
        %v6161 = vunpack.c.h.b16 %v4485
        %v6162 = vunpack.c.l.b16 %v4486
        %v6163 = vunpack.c.h.b16 %v4486
        %v6164 = vunpack.c.l.b16 %v4487
        %v6165 = vunpack.c.h.b16 %v4487
        %v6166 = vunpack.c.l.b16 %v4488
        %v6167 = vunpack.c.h.b16 %v4488
        %v6168 = vunpack.c.l.b16 %v4489
        %v6169 = vunpack.c.h.b16 %v4489
        %v6170 = vunpack.c.l.b16 %v4490
        %v6171 = vunpack.c.h.b16 %v4490
        %v6172 = vunpack.c.l.b16 %v4491
        %v6173 = vunpack.c.h.b16 %v4491
        %v6174 = vunpack.c.l.b16 %v4492
        %v6175 = vunpack.c.h.b16 %v4492
        %v6176 = vunpack.c.l.b16 %v4493
        %v6177 = vunpack.c.h.b16 %v4493
        %v6178 = vunpack.c.l.b16 %v4494
        %v6179 = vunpack.c.h.b16 %v4494
        %v6180 = vunpack.c.l.b16 %v4495
        %v6181 = vunpack.c.h.b16 %v4495
        %v6182 = vunpack.c.l.b16 %v4496
        %v6183 = vunpack.c.h.b16 %v4496
        %v6184 = vunpack.c.l.b16 %v4497
        %v6185 = vunpack.c.h.b16 %v4497
        %v6186 = vunpack.c.l.b16 %v4498
        %v6187 = vunpack.c.h.b16 %v4498
        %v6188 = vunpack.c.l.b16 %v4499
        %v6189 = vunpack.c.h.b16 %v4499
        %v6190 = vunpack.c.l.b16 %v4500
        %v6191 = vunpack.c.h.b16 %v4500
        %v6192 = vunpack.c.l.b16 %v4501
        %v6193 = vunpack.c.h.b16 %v4501
        %v6194 = vunpack.c.l.b16 %v4502
        %v6195 = vunpack.c.h.b16 %v4502
        %v6196 = vunpack.c.l.b16 %v4503
        %v6197 = vunpack.c.h.b16 %v4503
        %v6198 = vunpack.c.l.b16 %v4504
        %v6199 = vunpack.c.h.b16 %v4504
        %v6200 = vunpack.c.l.b16 %v4505
        %v6201 = vunpack.c.h.b16 %v4505
        %v6202 = vunpack.c.l.b16 %v4506
        %v6203 = vunpack.c.h.b16 %v4506
        %v6204 = vunpack.c.l.b16 %v4507
        %v6205 = vunpack.c.h.b16 %v4507
        %v6206 = vunpack.c.l.b16 %v4508
        %v6207 = vunpack.c.h.b16 %v4508
        %v6208 = vunpack.c.l.b16 %v4509
        %v6209 = vunpack.c.h.b16 %v4509
        %v6210 = vunpack.c.l.b16 %v4510
        %v6211 = vunpack.c.h.b16 %v4510
        %v6212 = vunpack.c.l.b16 %v4511
        %v6213 = vunpack.c.h.b16 %v4511
        %v6214 = vunpack.c.l.b16 %v4512
        %v6215 = vunpack.c.h.b16 %v4512
        %v6216 = vunpack.c.l.b16 %v4513
        %v6217 = vunpack.c.h.b16 %v4513
        %v6218 = vunpack.c.l.b16 %v4514
        %v6219 = vunpack.c.h.b16 %v4514
        %v6220 = vunpack.c.l.b16 %v4515
        %v6221 = vunpack.c.h.b16 %v4515
        %v6222 = vunpack.c.l.b16 %v4516
        %v6223 = vunpack.c.h.b16 %v4516
        %v6224 = vunpack.c.l.b16 %v4517
        %v6225 = vunpack.c.h.b16 %v4517
        %v6226 = vunpack.c.l.b16 %v4518
        %v6227 = vunpack.c.h.b16 %v4518
        %v6228 = vunpack.c.l.b16 %v4519
        %v6229 = vunpack.c.h.b16 %v4519
        %v6230 = vunpack.c.l.b16 %v4520
        %v6231 = vunpack.c.h.b16 %v4520
        %v6232 = vunpack.c.l.b16 %v4521
        %v6233 = vunpack.c.h.b16 %v4521
        %v6234 = vunpack.c.l.b16 %v4522
        %v6235 = vunpack.c.h.b16 %v4522
        %v6236 = vunpack.c.l.b16 %v4523
        %v6237 = vunpack.c.h.b16 %v4523
        %v6238 = vunpack.c.l.b16 %v4524
        %v6239 = vunpack.c.h.b16 %v4524
        %v6240 = vunpack.c.l.b16 %v4525
        %v6241 = vunpack.c.h.b16 %v4525
        %v6242 = vunpack.c.l.b16 %v4526
        %v6243 = vunpack.c.h.b16 %v4526
        %v6244 = vunpack.c.l.b16 %v4527
        %v6245 = vunpack.c.h.b16 %v4527
        %v6246 = vunpack.c.l.b16 %v4528
        %v6247 = vunpack.c.h.b16 %v4528
        %v6248 = vunpack.c.l.b16 %v4529
        %v6249 = vunpack.c.h.b16 %v4529
        %v6250 = vunpack.c.l.b16 %v4530
        %v6251 = vunpack.c.h.b16 %v4530
        %v6252 = vunpack.c.l.b16 %v4531
        %v6253 = vunpack.c.h.b16 %v4531
        %v6254 = vunpack.c.l.b16 %v4532
        %v6255 = vunpack.c.h.b16 %v4532
        %v6256 = vunpack.c.l.b16 %v4533
        %v6257 = vunpack.c.h.b16 %v4533
        %v6258 = vunpack.c.l.b16 %v4534
        %v6259 = vunpack.c.h.b16 %v4534
        %v6260 = vunpack.c.l.b16 %v4535
        %v6261 = vunpack.c.h.b16 %v4535
        %v6262 = vunpack.c.l.b16 %v4536
        %v6263 = vunpack.c.h.b16 %v4536
        %v6264 = vunpack.c.l.b16 %v4537
        %v6265 = vunpack.c.h.b16 %v4537
        %v6266 = vunpack.c.l.b16 %v4538
        %v6267 = vunpack.c.h.b16 %v4538
        %v6268 = vunpack.c.l.b16 %v4539
        %v6269 = vunpack.c.h.b16 %v4539
        %v6270 = vunpack.c.l.b16 %v4540
        %v6271 = vunpack.c.h.b16 %v4540
        %v6272 = vunpack.c.l.b16 %v4541
        %v6273 = vunpack.c.h.b16 %v4541
        %v6274 = vunpack.c.l.b16 %v4542
        %v6275 = vunpack.c.h.b16 %v4542
        %v6276 = vunpack.c.l.b16 %v4543
        %v6277 = vunpack.c.h.b16 %v4543
        %v6278 = vunpack.c.l.b16 %v4544
        %v6279 = vunpack.c.h.b16 %v4544
        %v6280 = vunpack.c.l.b16 %v4545
        %v6281 = vunpack.c.h.b16 %v4545
        %v6282 = vunpack.c.l.b16 %v4546
        %v6283 = vunpack.c.h.b16 %v4546
        %v6284 = vunpack.c.l.b16 %v4547
        %v6285 = vunpack.c.h.b16 %v4547
        %v6286 = vunpack.c.l.b16 %v4548
        %v6287 = vunpack.c.h.b16 %v4548
        %v6288 = vunpack.c.l.b16 %v4549
        %v6289 = vunpack.c.h.b16 %v4549
        %v6290 = vunpack.c.l.b16 %v4550
        %v6291 = vunpack.c.h.b16 %v4550
        %v6292 = vunpack.c.l.b16 %v4551
        %v6293 = vunpack.c.h.b16 %v4551
        %v6294 = vunpack.c.l.b16 %v4552
        %v6295 = vunpack.c.h.b16 %v4552
        %v6296 = vunpack.c.l.b16 %v4553
        %v6297 = vunpack.c.h.b16 %v4553
        %v6298 = vunpack.c.l.b16 %v4554
        %v6299 = vunpack.c.h.b16 %v4554
        %v6300 = vunpack.c.l.b16 %v4555
        %v6301 = vunpack.c.h.b16 %v4555
        %v6302 = vunpack.c.l.b16 %v4556
        %v6303 = vunpack.c.h.b16 %v4556
        %v6304 = vunpack.c.l.b16 %v4557
        %v6305 = vunpack.c.h.b16 %v4557
        %v6306 = vunpack.c.l.b16 %v4558
        %v6307 = vunpack.c.h.b16 %v4558
        %v6308 = vunpack.c.l.b16 %v4559
        %v6309 = vunpack.c.h.b16 %v4559
        %v6310 = vunpack.c.l.b16 %v4560
        %v6311 = vunpack.c.h.b16 %v4560
        %v6312 = vunpack.c.l.b16 %v4561
        %v6313 = vunpack.c.h.b16 %v4561
        %v6314 = vunpack.c.l.b16 %v4562
        %v6315 = vunpack.c.h.b16 %v4562
        %v6316 = vunpack.c.l.b16 %v4563
        %v6317 = vunpack.c.h.b16 %v4563
        %v6318 = vunpack.c.l.b16 %v4564
        %v6319 = vunpack.c.h.b16 %v4564
        %v6320 = vunpack.c.l.b16 %v4565
        %v6321 = vunpack.c.h.b16 %v4565
        %v6322 = vunpack.c.l.b16 %v4566
        %v6323 = vunpack.c.h.b16 %v4566
        %v6324 = vunpack.c.l.b16 %v4567
        %v6325 = vunpack.c.h.b16 %v4567
        %v6326 = vunpack.c.l.b16 %v4568
        %v6327 = vunpack.c.h.b16 %v4568
        %v6328 = vunpack.c.l.b16 %v4569
        %v6329 = vunpack.c.h.b16 %v4569
        %v6330 = vunpack.c.l.b16 %v4570
        %v6331 = vunpack.c.h.b16 %v4570
        %v6332 = vunpack.c.l.b16 %v4571
        %v6333 = vunpack.c.h.b16 %v4571
        %v6334 = vunpack.c.l.b16 %v4572
        %v6335 = vunpack.c.h.b16 %v4572
        %v6336 = vunpack.c.l.b16 %v4573
        %v6337 = vunpack.c.h.b16 %v4573
        %v6338 = vunpack.c.l.b16 %v4574
        %v6339 = vunpack.c.h.b16 %v4574
        %v6340 = vunpack.c.l.b16 %v4575
        %v6341 = vunpack.c.h.b16 %v4575
        %v6342 = vunpack.c.l.b16 %v4576
        %v6343 = vunpack.c.h.b16 %v4576
        %v6344 = vunpack.c.l.b16 %v4577
        %v6345 = vunpack.c.h.b16 %v4577
        %v6346 = vunpack.c.l.b16 %v4578
        %v6347 = vunpack.c.h.b16 %v4578
        %v6348 = vunpack.c.l.b16 %v4579
        %v6349 = vunpack.c.h.b16 %v4579
        %v6350 = vunpack.c.l.b16 %v4580
        %v6351 = vunpack.c.h.b16 %v4580
        %v6352 = vunpack.c.l.b16 %v4581
        %v6353 = vunpack.c.h.b16 %v4581
        %v6354 = vunpack.c.l.b16 %v4582
        %v6355 = vunpack.c.h.b16 %v4582
        %v6356 = vunpack.c.l.b16 %v4583
        %v6357 = vunpack.c.h.b16 %v4583
        %v6358 = vunpack.c.l.b16 %v4584
        %v6359 = vunpack.c.h.b16 %v4584
        %v6360 = vunpack.c.l.b16 %v4585
        %v6361 = vunpack.c.h.b16 %v4585
        %v6362 = vunpack.c.l.b16 %v4586
        %v6363 = vunpack.c.h.b16 %v4586
        %v6364 = vunpack.c.l.b16 %v4587
        %v6365 = vunpack.c.h.b16 %v4587
        %v6366 = vunpack.c.l.b16 %v4588
        %v6367 = vunpack.c.h.b16 %v4588
        %v6368 = vunpack.c.l.b16 %v4589
        %v6369 = vunpack.c.h.b16 %v4589
        %v6370 = vunpack.c.l.b16 %v4590
        %v6371 = vunpack.c.h.b16 %v4590
        %v6372 = vunpack.c.l.b16 %v4591
        %v6373 = vunpack.c.h.b16 %v4591
        %v6374 = vunpack.c.l.b16 %v4592
        %v6375 = vunpack.c.h.b16 %v4592
        %v6376 = vunpack.c.l.b16 %v4593
        %v6377 = vunpack.c.h.b16 %v4593
        %v6378 = vunpack.c.l.b16 %v4594
        %v6379 = vunpack.c.h.b16 %v4594
        %v6380 = vunpack.c.l.b16 %v4595
        %v6381 = vunpack.c.h.b16 %v4595
        %v6382 = vunpack.c.l.b16 %v4596
        %v6383 = vunpack.c.h.b16 %v4596
        %v6384 = vunpack.c.l.b16 %v4597
        %v6385 = vunpack.c.h.b16 %v4597
        %v6386 = vunpack.c.l.b16 %v4598
        %v6387 = vunpack.c.h.b16 %v4598
        %v6388 = vunpack.c.l.b16 %v4599
        %v6389 = vunpack.c.h.b16 %v4599
        %v6390 = vunpack.c.l.b16 %v4600
        %v6391 = vunpack.c.h.b16 %v4600
        %v6392 = vunpack.c.l.b16 %v4601
        %v6393 = vunpack.c.h.b16 %v4601
        %v6394 = vunpack.c.l.b16 %v4602
        %v6395 = vunpack.c.h.b16 %v4602
        %v6396 = vunpack.c.l.b16 %v4603
        %v6397 = vunpack.c.h.b16 %v4603
        %v6398 = vunpack.c.l.b16 %v4604
        %v6399 = vunpack.c.h.b16 %v4604
        %v6400 = vunpack.c.l.b16 %v4605
        %v6401 = vunpack.c.h.b16 %v4605
        %v6402 = vunpack.c.l.b16 %v4606
        %v6403 = vunpack.c.h.b16 %v4606
        %v6404 = vunpack.c.l.b16 %v4607
        %v6405 = vunpack.c.h.b16 %v4607
        %v6406 = vunpack.c.l.b16 %v4608
        %v6407 = vunpack.c.h.b16 %v4608
        %v6408 = vunpack.c.l.b16 %v4609
        %v6409 = vunpack.c.h.b16 %v4609
        %v6410 = vunpack.c.l.b16 %v4610
        %v6411 = vunpack.c.h.b16 %v4610
        %v6412 = vunpack.c.l.b16 %v4611
        %v6413 = vunpack.c.h.b16 %v4611
        %v6414 = vunpack.c.l.b16 %v4612
        %v6415 = vunpack.c.h.b16 %v4612
        %v6416 = vunpack.c.l.b16 %v4613
        %v6417 = vunpack.c.h.b16 %v4613
        %v6418 = vunpack.c.l.b16 %v4614
        %v6419 = vunpack.c.h.b16 %v4614
        %v6420 = vunpack.c.l.b16 %v4615
        %v6421 = vunpack.c.h.b16 %v4615
        %v6422 = vunpack.c.l.b16 %v4616
        %v6423 = vunpack.c.h.b16 %v4616
        %v6424 = vunpack.c.l.b16 %v4617
        %v6425 = vunpack.c.h.b16 %v4617
        %v6426 = vunpack.c.l.b16 %v4618
        %v6427 = vunpack.c.h.b16 %v4618
        %v6428 = vunpack.c.l.b16 %v4619
        %v6429 = vunpack.c.h.b16 %v4619
        %v6430 = vunpack.c.l.b16 %v4620
        %v6431 = vunpack.c.h.b16 %v4620
        %v6432 = vunpack.c.l.b16 %v4621
        %v6433 = vunpack.c.h.b16 %v4621
        %v6434 = vunpack.c.l.b16 %v4622
        %v6435 = vunpack.c.h.b16 %v4622
        %v6436 = vunpack.c.l.b16 %v4623
        %v6437 = vunpack.c.h.b16 %v4623
        %v6438 = vunpack.c.l.b16 %v4624
        %v6439 = vunpack.c.h.b16 %v4624
        %v6440 = vunpack.c.l.b16 %v4625
        %v6441 = vunpack.c.h.b16 %v4625
        %v6442 = vunpack.c.l.b16 %v4626
        %v6443 = vunpack.c.h.b16 %v4626
        %v6444 = vunpack.c.l.b16 %v4627
        %v6445 = vunpack.c.h.b16 %v4627
        %v6446 = vunpack.c.l.b16 %v4628
        %v6447 = vunpack.c.h.b16 %v4628
        %v6448 = vunpack.c.l.b16 %v4629
        %v6449 = vunpack.c.h.b16 %v4629
        %v6450 = vunpack.c.l.b16 %v4630
        %v6451 = vunpack.c.h.b16 %v4630
        %v6452 = vunpack.c.l.b16 %v4631
        %v6453 = vunpack.c.h.b16 %v4631
        %v6454 = vunpack.c.l.b16 %v4632
        %v6455 = vunpack.c.h.b16 %v4632
        %v6456 = vunpack.c.l.b16 %v4633
        %v6457 = vunpack.c.h.b16 %v4633
        %v6458 = vunpack.c.l.b16 %v4634
        %v6459 = vunpack.c.h.b16 %v4634
        %v6460 = vunpack.c.l.b16 %v4635
        %v6461 = vunpack.c.h.b16 %v4635
        %v6462 = vunpack.c.l.b16 %v4636
        %v6463 = vunpack.c.h.b16 %v4636
        %v6464 = vunpack.c.l.b16 %v4637
        %v6465 = vunpack.c.h.b16 %v4637
        %v6466 = vunpack.c.l.b16 %v4638
        %v6467 = vunpack.c.h.b16 %v4638
        %v6468 = vunpack.c.l.b16 %v4639
        %v6469 = vunpack.c.h.b16 %v4639
        %v6470 = vunpack.c.l.b16 %v4640
        %v6471 = vunpack.c.h.b16 %v4640
        %v6472 = vunpack.c.l.b16 %v4641
        %v6473 = vunpack.c.h.b16 %v4641
        %v6474 = vunpack.c.l.b16 %v4642
        %v6475 = vunpack.c.h.b16 %v4642
        %v6476 = vunpack.c.l.b16 %v4643
        %v6477 = vunpack.c.h.b16 %v4643
        %v6478 = vunpack.c.l.b16 %v4644
        %v6479 = vunpack.c.h.b16 %v4644
        %v6480 = vunpack.c.l.b16 %v4645
        %v6481 = vunpack.c.h.b16 %v4645
        %v6482 = vunpack.c.l.b16 %v4646
        %v6483 = vunpack.c.h.b16 %v4646
        %v6484 = vunpack.c.l.b16 %v4647
        %v6485 = vunpack.c.h.b16 %v4647
        %v6486 = vunpack.c.l.b16 %v4648
        %v6487 = vunpack.c.h.b16 %v4648
        %v6488 = vunpack.c.l.b16 %v4649
        %v6489 = vunpack.c.h.b16 %v4649
        %v6490 = vunpack.c.l.b16 %v4650
        %v6491 = vunpack.c.h.b16 %v4650
        %v6492 = vunpack.c.l.b16 %v4651
        %v6493 = vunpack.c.h.b16 %v4651
        %v6494 = vunpack.c.l.b16 %v4652
        %v6495 = vunpack.c.h.b16 %v4652
        %v6496 = vunpack.c.l.b16 %v4653
        %v6497 = vunpack.c.h.b16 %v4653
        %v6498 = vunpack.c.l.b16 %v4654
        %v6499 = vunpack.c.h.b16 %v4654
        %v6500 = vunpack.c.l.b16 %v4655
        %v6501 = vunpack.c.h.b16 %v4655
        %v6502 = vunpack.c.l.b16 %v4656
        %v6503 = vunpack.c.h.b16 %v4656
        %v6504 = vunpack.c.l.b16 %v4657
        %v6505 = vunpack.c.h.b16 %v4657
        %v6506 = vunpack.c.l.b16 %v4658
        %v6507 = vunpack.c.h.b16 %v4658
        %v6508 = vunpack.c.l.b16 %v4659
        %v6509 = vunpack.c.h.b16 %v4659
        %v6510 = vunpack.c.l.b16 %v4660
        %v6511 = vunpack.c.h.b16 %v4660
        %v6512 = vunpack.c.l.b16 %v4661
        %v6513 = vunpack.c.h.b16 %v4661
        %v6514 = vunpack.c.l.b16 %v4662
        %v6515 = vunpack.c.h.b16 %v4662
        %v6516 = vunpack.c.l.b16 %v4663
        %v6517 = vunpack.c.h.b16 %v4663
        %v6518 = vunpack.c.l.b16 %v4664
        %v6519 = vunpack.c.h.b16 %v4664
        %v6520 = vunpack.c.l.b16 %v4665
        %v6521 = vunpack.c.h.b16 %v4665
        %v6522 = vunpack.c.l.b16 %v4666
        %v6523 = vunpack.c.h.b16 %v4666
        %v6524 = vunpack.c.l.b16 %v4667
        %v6525 = vunpack.c.h.b16 %v4667
        %v6526 = vunpack.c.l.b16 %v4668
        %v6527 = vunpack.c.h.b16 %v4668
        %v6528 = vunpack.c.l.b16 %v4669
        %v6529 = vunpack.c.h.b16 %v4669
        %v6530 = vunpack.c.l.b16 %v4670
        %v6531 = vunpack.c.h.b16 %v4670
        %v6532 = vunpack.c.l.b16 %v4671
        %v6533 = vunpack.c.h.b16 %v4671
        %v6534 = vunpack.c.l.b16 %v4672
        %v6535 = vunpack.c.h.b16 %v4672
        %v6536 = vunpack.c.l.b16 %v4673
        %v6537 = vunpack.c.h.b16 %v4673
        %v6538 = vunpack.c.l.b16 %v4674
        %v6539 = vunpack.c.h.b16 %v4674
        %v6540 = vunpack.c.l.b16 %v4675
        %v6541 = vunpack.c.h.b16 %v4675
        %v6542 = vunpack.c.l.b16 %v4676
        %v6543 = vunpack.c.h.b16 %v4676
        %v6544 = vunpack.c.l.b16 %v4677
        %v6545 = vunpack.c.h.b16 %v4677
        %v6546 = vunpack.c.l.b16 %v4678
        %v6547 = vunpack.c.h.b16 %v4678
        %v6548 = vunpack.c.l.b16 %v4679
        %v6549 = vunpack.c.h.b16 %v4679
        %v6550 = vunpack.c.l.b16 %v4680
        %v6551 = vunpack.c.h.b16 %v4680
        %v6552 = vunpack.c.l.b16 %v4681
        %v6553 = vunpack.c.h.b16 %v4681
        %v6554 = vunpack.c.l.b16 %v4682
        %v6555 = vunpack.c.h.b16 %v4682
        %v6556 = vunpack.c.l.b16 %v4683
        %v6557 = vunpack.c.h.b16 %v4683
        %v6558 = vunpack.c.l.b16 %v4684
        %v6559 = vunpack.c.h.b16 %v4684
        %v6560 = vunpack.c.l.b16 %v4685
        %v6561 = vunpack.c.h.b16 %v4685
        %v6562 = vunpack.c.l.b16 %v4686
        %v6563 = vunpack.c.h.b16 %v4686
        %v6564 = vunpack.c.l.b16 %v4687
        %v6565 = vunpack.c.h.b16 %v4687
        %v6566 = vunpack.c.l.b16 %v4688
        %v6567 = vunpack.c.h.b16 %v4688
        %v6568 = vunpack.c.l.b16 %v4689
        %v6569 = vunpack.c.h.b16 %v4689
        %v6570 = vunpack.c.l.b16 %v4690
        %v6571 = vunpack.c.h.b16 %v4690
        %v6572 = vunpack.c.l.b16 %v4691
        %v6573 = vunpack.c.h.b16 %v4691
        %v6574 = vunpack.c.l.b16 %v4692
        %v6575 = vunpack.c.h.b16 %v4692
        %v6576 = vunpack.c.l.b16 %v4693
        %v6577 = vunpack.c.h.b16 %v4693
        %v6578 = vunpack.c.l.b16 %v4694
        %v6579 = vunpack.c.h.b16 %v4694
        %v6580 = vunpack.c.l.b16 %v4695
        %v6581 = vunpack.c.h.b16 %v4695
        %v6582 = vunpack.c.l.b16 %v4696
        %v6583 = vunpack.c.h.b16 %v4696
        %v6584 = vunpack.c.l.b16 %v4697
        %v6585 = vunpack.c.h.b16 %v4697
        %v6586 = vunpack.c.l.b16 %v4698
        %v6587 = vunpack.c.h.b16 %v4698
        %v6588 = vunpack.c.l.b16 %v4699
        %v6589 = vunpack.c.h.b16 %v4699
        %v6590 = vunpack.c.l.b16 %v4700
        %v6591 = vunpack.c.h.b16 %v4700
        %v6592 = vunpack.c.l.b16 %v4701
        %v6593 = vunpack.c.h.b16 %v4701
        %v6594 = vunpack.c.l.b16 %v4702
        %v6595 = vunpack.c.h.b16 %v4702
        %v6596 = vunpack.c.l.b16 %v4703
        %v6597 = vunpack.c.h.b16 %v4703
        %v6598 = vunpack.c.l.b16 %v4704
        %v6599 = vunpack.c.h.b16 %v4704
        %v6600 = vunpack.c.l.b16 %v4705
        %v6601 = vunpack.c.h.b16 %v4705
        %v6602 = vunpack.c.l.b16 %v4706
        %v6603 = vunpack.c.h.b16 %v4706
        %v6604 = vunpack.c.l.b16 %v4707
        %v6605 = vunpack.c.h.b16 %v4707
        %v6606 = vunpack.c.l.b16 %v4708
        %v6607 = vunpack.c.h.b16 %v4708
        %v6608 = vunpack.c.l.b16 %v4709
        %v6609 = vunpack.c.h.b16 %v4709
        %v6610 = vunpack.c.l.b16 %v4710
        %v6611 = vunpack.c.h.b16 %v4710
        %v6612 = vunpack.c.l.b16 %v4711
        %v6613 = vunpack.c.h.b16 %v4711
        %v6614 = vunpack.c.l.b16 %v4712
        %v6615 = vunpack.c.h.b16 %v4712
        %v6616 = vunpack.c.l.b16 %v4713
        %v6617 = vunpack.c.h.b16 %v4713
        %v6618 = vunpack.c.l.b16 %v4714
        %v6619 = vunpack.c.h.b16 %v4714
        %v6620 = vunpack.c.l.b16 %v4715
        %v6621 = vunpack.c.h.b16 %v4715
        %v6622 = vunpack.c.l.b16 %v4716
        %v6623 = vunpack.c.h.b16 %v4716
        %v6624 = vunpack.c.l.b16 %v4717
        %v6625 = vunpack.c.h.b16 %v4717
        %v6626 = vunpack.c.l.b16 %v4718
        %v6627 = vunpack.c.h.b16 %v4718
        %v6628 = vunpack.c.l.b16 %v4719
        %v6629 = vunpack.c.h.b16 %v4719
        %v6630 = vunpack.c.l.b16 %v4720
        %v6631 = vunpack.c.h.b16 %v4720
        %v6632 = vunpack.c.l.b16 %v4721
        %v6633 = vunpack.c.h.b16 %v4721
        %v6634 = vunpack.c.l.b16 %v4722
        %v6635 = vunpack.c.h.b16 %v4722
        %v6636 = vunpack.c.l.b16 %v4723
        %v6637 = vunpack.c.h.b16 %v4723
        %v6638 = vunpack.c.l.b16 %v4724
        %v6639 = vunpack.c.h.b16 %v4724
        %v6640 = vunpack.c.l.b16 %v4725
        %v6641 = vunpack.c.h.b16 %v4725
        %v6642 = vunpack.c.l.b16 %v4726
        %v6643 = vunpack.c.h.b16 %v4726
        %v6644 = vunpack.c.l.b16 %v4727
        %v6645 = vunpack.c.h.b16 %v4727
        %v6646 = vunpack.c.l.b16 %v4728
        %v6647 = vunpack.c.h.b16 %v4728
        %v6648 = vunpack.c.l.b16 %v4729
        %v6649 = vunpack.c.h.b16 %v4729
        %v6650 = vunpack.c.l.b16 %v4730
        %v6651 = vunpack.c.h.b16 %v4730
        %v6652 = vunpack.c.l.b16 %v4731
        %v6653 = vunpack.c.h.b16 %v4731
        %v6654 = vunpack.c.l.b16 %v4732
        %v6655 = vunpack.c.h.b16 %v4732
        %v6656 = vunpack.c.l.b16 %v4733
        %v6657 = vunpack.c.h.b16 %v4733
        %v6658 = vunpack.c.l.b16 %v4734
        %v6659 = vunpack.c.h.b16 %v4734
        %v6660 = vunpack.c.l.b16 %v4735
        %v6661 = vunpack.c.h.b16 %v4735
        %v6662 = vunpack.c.l.b16 %v4736
        %v6663 = vunpack.c.h.b16 %v4736
        %v6664 = vunpack.c.l.b16 %v4737
        %v6665 = vunpack.c.h.b16 %v4737
        %v6666 = vunpack.c.l.b16 %v4738
        %v6667 = vunpack.c.h.b16 %v4738
        %v6668 = vunpack.c.l.b16 %v4739
        %v6669 = vunpack.c.h.b16 %v4739
        %v6670 = vunpack.c.l.b16 %v4740
        %v6671 = vunpack.c.h.b16 %v4740
        %v6672 = vunpack.c.l.b16 %v4741
        %v6673 = vunpack.c.h.b16 %v4741
        %v6674 = vunpack.c.l.b16 %v4742
        %v6675 = vunpack.c.h.b16 %v4742
        %v6676 = vunpack.c.l.b16 %v4743
        %v6677 = vunpack.c.h.b16 %v4743
        %v6678 = vunpack.c.l.b16 %v4744
        %v6679 = vunpack.c.h.b16 %v4744
        %v6680 = vunpack.c.l.b16 %v4745
        %v6681 = vunpack.c.h.b16 %v4745
        %v6682 = vunpack.c.l.b16 %v4746
        %v6683 = vunpack.c.h.b16 %v4746
        %v6684 = vunpack.c.l.b16 %v4747
        %v6685 = vunpack.c.h.b16 %v4747
        %v6686 = vunpack.c.l.b16 %v4748
        %v6687 = vunpack.c.h.b16 %v4748
        %v6688 = vunpack.c.l.b16 %v4749
        %v6689 = vunpack.c.h.b16 %v4749
        %v6690 = vunpack.c.l.b16 %v4750
        %v6691 = vunpack.c.h.b16 %v4750
        %v6692 = vunpack.c.l.b16 %v4751
        %v6693 = vunpack.c.h.b16 %v4751
        %v6694 = vunpack.c.l.b16 %v4752
        %v6695 = vunpack.c.h.b16 %v4752
        %v6696 = vunpack.c.l.b16 %v4753
        %v6697 = vunpack.c.h.b16 %v4753
        %v6698 = vunpack.c.l.b16 %v4754
        %v6699 = vunpack.c.h.b16 %v4754
        %v6700 = vunpack.c.l.b16 %v4755
        %v6701 = vunpack.c.h.b16 %v4755
        %v6702 = vunpack.c.l.b16 %v4756
        %v6703 = vunpack.c.h.b16 %v4756
        %v6704 = vunpack.c.l.b16 %v4757
        %v6705 = vunpack.c.h.b16 %v4757
        %v6706 = vunpack.c.l.b16 %v4758
        %v6707 = vunpack.c.h.b16 %v4758
        %v6708 = vunpack.c.l.b16 %v4759
        %v6709 = vunpack.c.h.b16 %v4759
        %v6710 = vunpack.c.l.b16 %v4760
        %v6711 = vunpack.c.h.b16 %v4760
        %v6712 = vunpack.c.l.b16 %v4761
        %v6713 = vunpack.c.h.b16 %v4761
        %v6714 = vunpack.c.l.b16 %v4762
        %v6715 = vunpack.c.h.b16 %v4762
        %v6716 = vunpack.c.l.b16 %v4763
        %v6717 = vunpack.c.h.b16 %v4763
        %v6718 = vunpack.c.l.b16 %v4764
        %v6719 = vunpack.c.h.b16 %v4764
        %v6720 = vunpack.c.l.b16 %v4765
        %v6721 = vunpack.c.h.b16 %v4765
        %v6722 = vunpack.c.l.b16 %v4766
        %v6723 = vunpack.c.h.b16 %v4766
        %v6724 = vunpack.c.l.b16 %v4767
        %v6725 = vunpack.c.h.b16 %v4767
        %v6726 = vunpack.c.l.b16 %v4768
        %v6727 = vunpack.c.h.b16 %v4768
        %v6728 = vunpack.c.l.b16 %v4769
        %v6729 = vunpack.c.h.b16 %v4769
        %v6730 = vunpack.c.l.b16 %v4770
        %v6731 = vunpack.c.h.b16 %v4770
        %v6732 = vunpack.c.l.b16 %v4771
        %v6733 = vunpack.c.h.b16 %v4771
        %v6734 = vunpack.c.l.b16 %v4772
        %v6735 = vunpack.c.h.b16 %v4772
        %v6736 = vunpack.c.l.b16 %v4773
        %v6737 = vunpack.c.h.b16 %v4773
        %v6738 = vunpack.c.l.b16 %v4774
        %v6739 = vunpack.c.h.b16 %v4774
        %v6740 = vunpack.c.l.b16 %v4775
        %v6741 = vunpack.c.h.b16 %v4775
        %v6742 = vunpack.c.l.b16 %v4776
        %v6743 = vunpack.c.h.b16 %v4776
        %v6744 = vunpack.c.l.b16 %v4777
        %v6745 = vunpack.c.h.b16 %v4777
        %v6746 = vunpack.c.l.b16 %v4778
        %v6747 = vunpack.c.h.b16 %v4778
        %v6748 = vunpack.c.l.b16 %v4779
        %v6749 = vunpack.c.h.b16 %v4779
        %v6750 = vunpack.c.l.b16 %v4780
        %v6751 = vunpack.c.h.b16 %v4780
        %v6752 = vunpack.c.l.b16 %v4781
        %v6753 = vunpack.c.h.b16 %v4781
        %v6754 = vunpack.c.l.b16 %v4782
        %v6755 = vunpack.c.h.b16 %v4782
        %v6756 = vunpack.c.l.b16 %v4783
        %v6757 = vunpack.c.h.b16 %v4783
        %v6758 = vunpack.c.l.b16 %v4784
        %v6759 = vunpack.c.h.b16 %v4784
        %v6760 = vunpack.c.l.b16 %v4785
        %v6761 = vunpack.c.h.b16 %v4785
        %v6762 = vunpack.c.l.b16 %v4786
        %v6763 = vunpack.c.h.b16 %v4786
        %v6764 = vunpack.c.l.b16 %v4787
        %v6765 = vunpack.c.h.b16 %v4787
        %v6766 = vunpack.c.l.b16 %v4788
        %v6767 = vunpack.c.h.b16 %v4788
        %v6768 = vunpack.c.l.b16 %v4789
        %v6769 = vunpack.c.h.b16 %v4789
        %v6770 = vunpack.c.l.b16 %v4790
        %v6771 = vunpack.c.h.b16 %v4790
        %v6772 = vunpack.c.l.b16 %v4791
        %v6773 = vunpack.c.h.b16 %v4791
        %v6774 = vunpack.c.l.b16 %v4792
        %v6775 = vunpack.c.h.b16 %v4792
        %v6776 = vunpack.c.l.b16 %v4793
        %v6777 = vunpack.c.h.b16 %v4793
        %v6778 = vunpack.c.l.b16 %v4794
        %v6779 = vunpack.c.h.b16 %v4794
        %v6780 = vunpack.c.l.b16 %v4795
        %v6781 = vunpack.c.h.b16 %v4795
        %v6782 = vunpack.c.l.b16 %v4796
        %v6783 = vunpack.c.h.b16 %v4796
        %v6784 = vunpack.c.l.b16 %v4797
        %v6785 = vunpack.c.h.b16 %v4797
        %v6786 = vunpack.c.l.b16 %v4798
        %v6787 = vunpack.c.h.b16 %v4798
        %v6788 = vunpack.c.l.b16 %v4799
        %v6789 = vunpack.c.h.b16 %v4799
        %v6790 = vunpack.c.l.b16 %v4800
        %v6791 = vunpack.c.h.b16 %v4800
        %v6792 = vunpack.c.l.b16 %v4801
        %v6793 = vunpack.c.h.b16 %v4801
        %v6794 = vunpack.c.l.b16 %v4802
        %v6795 = vunpack.c.h.b16 %v4802
        %v6796 = vunpack.c.l.b16 %v4803
        %v6797 = vunpack.c.h.b16 %v4803
        %v6798 = vunpack.c.l.b16 %v4804
        %v6799 = vunpack.c.h.b16 %v4804
        %v6800 = vunpack.c.l.b16 %v4805
        %v6801 = vunpack.c.h.b16 %v4805
        %v6802 = vunpack.c.l.b16 %v4806
        %v6803 = vunpack.c.h.b16 %v4806
        %v6804 = vunpack.c.l.b16 %v4807
        %v6805 = vunpack.c.h.b16 %v4807
        %v6806 = vunpack.c.l.b16 %v4808
        %v6807 = vunpack.c.h.b16 %v4808
        %v6808 = vunpack.c.l.b16 %v4809
        %v6809 = vunpack.c.h.b16 %v4809
        %v6810 = vunpack.c.l.b16 %v4810
        %v6811 = vunpack.c.h.b16 %v4810
        %v6812 = vunpack.c.l.b16 %v4811
        %v6813 = vunpack.c.h.b16 %v4811
        %v6814 = vunpack.c.l.b16 %v4812
        %v6815 = vunpack.c.h.b16 %v4812
        %v6816 = vunpack.c.l.b16 %v4813
        %v6817 = vunpack.c.h.b16 %v4813
        %v6818 = vunpack.c.l.b16 %v4814
        %v6819 = vunpack.c.h.b16 %v4814
        %v6820 = vunpack.c.l.b16 %v4815
        %v6821 = vunpack.c.h.b16 %v4815
        %v6822 = vunpack.c.l.b16 %v4816
        %v6823 = vunpack.c.h.b16 %v4816
        %v6824 = vunpack.c.l.b16 %v4817
        %v6825 = vunpack.c.h.b16 %v4817
        %v6826 = vunpack.c.l.b16 %v4818
        %v6827 = vunpack.c.h.b16 %v4818
        %v6828 = vunpack.c.l.b16 %v4819
        %v6829 = vunpack.c.h.b16 %v4819
        %v6830 = vunpack.c.l.b16 %v4820
        %v6831 = vunpack.c.h.b16 %v4820
        %v6832 = vunpack.c.l.b16 %v4821
        %v6833 = vunpack.c.h.b16 %v4821
        %v6834 = vunpack.c.l.b16 %v4822
        %v6835 = vunpack.c.h.b16 %v4822
        %v6836 = vunpack.c.l.b16 %v4823
        %v6837 = vunpack.c.h.b16 %v4823
        %v6838 = vunpack.c.l.b16 %v4824
        %v6839 = vunpack.c.h.b16 %v4824
        %v6840 = vunpack.c.l.b16 %v4825
        %v6841 = vunpack.c.h.b16 %v4825
        %v6842 = vunpack.c.l.b16 %v4826
        %v6843 = vunpack.c.h.b16 %v4826
        %v6844 = vunpack.c.l.b16 %v4827
        %v6845 = vunpack.c.h.b16 %v4827
        %v6846 = vunpack.c.l.b16 %v4828
        %v6847 = vunpack.c.h.b16 %v4828
        %v6848 = vunpack.c.l.b16 %v4829
        %v6849 = vunpack.c.h.b16 %v4829
        %v6850 = vunpack.c.l.b16 %v4830
        %v6851 = vunpack.c.h.b16 %v4830
        %v6852 = vunpack.c.l.b16 %v4831
        %v6853 = vunpack.c.h.b16 %v4831
        %v6854 = vunpack.c.l.b16 %v4832
        %v6855 = vunpack.c.h.b16 %v4832
        %v6856 = vunpack.c.l.b16 %v4833
        %v6857 = vunpack.c.h.b16 %v4833
        %v6858 = vunpack.c.l.b16 %v4834
        %v6859 = vunpack.c.h.b16 %v4834
        %v6860 = vunpack.c.l.b16 %v4835
        %v6861 = vunpack.c.h.b16 %v4835
        %v6862 = vunpack.c.l.b16 %v4836
        %v6863 = vunpack.c.h.b16 %v4836
        %v6864 = vunpack.c.l.b16 %v4837
        %v6865 = vunpack.c.h.b16 %v4837
        %v6866 = vunpack.c.l.b16 %v4838
        %v6867 = vunpack.c.h.b16 %v4838
        %v6868 = vunpack.c.l.b16 %v4839
        %v6869 = vunpack.c.h.b16 %v4839
        %v6870 = vunpack.c.l.b16 %v4840
        %v6871 = vunpack.c.h.b16 %v4840
        %v6872 = vunpack.c.l.b16 %v4841
        %v6873 = vunpack.c.h.b16 %v4841
        %v6874 = vunpack.c.l.b16 %v4842
        %v6875 = vunpack.c.h.b16 %v4842
        %v6876 = vunpack.c.l.b16 %v4843
        %v6877 = vunpack.c.h.b16 %v4843
        %v6878 = vunpack.c.l.b16 %v4844
        %v6879 = vunpack.c.h.b16 %v4844
        %v6880 = vunpack.c.l.b16 %v4845
        %v6881 = vunpack.c.h.b16 %v4845
        %v6882 = vunpack.c.l.b16 %v4846
        %v6883 = vunpack.c.h.b16 %v4846
        %v6884 = vunpack.c.l.b16 %v4847
        %v6885 = vunpack.c.h.b16 %v4847
        %v6886 = vunpack.c.l.b16 %v4848
        %v6887 = vunpack.c.h.b16 %v4848
        %v6888 = vunpack.c.l.b16 %v4849
        %v6889 = vunpack.c.h.b16 %v4849
        %v6890 = vunpack.c.l.b16 %v4850
        %v6891 = vunpack.c.h.b16 %v4850
        %v6892 = vunpack.c.l.b16 %v4851
        %v6893 = vunpack.c.h.b16 %v4851
        %v6894 = vunpack.c.l.b16 %v4852
        %v6895 = vunpack.c.h.b16 %v4852
        %v6896 = vunpack.c.l.b16 %v4853
        %v6897 = vunpack.c.h.b16 %v4853
        %v6898 = vunpack.c.l.b16 %v4854
        %v6899 = vunpack.c.h.b16 %v4854
        %v6900 = vunpack.c.l.b16 %v4855
        %v6901 = vunpack.c.h.b16 %v4855
        %v6902 = vunpack.c.l.b16 %v4856
        %v6903 = vunpack.c.h.b16 %v4856
        %v6904 = vunpack.c.l.b16 %v4857
        %v6905 = vunpack.c.h.b16 %v4857
        %v6906 = vunpack.c.l.b16 %v4858
        %v6907 = vunpack.c.h.b16 %v4858
        %v6908 = vunpack.c.l.b16 %v4859
        %v6909 = vunpack.c.h.b16 %v4859
        %v6910 = vunpack.c.l.b16 %v4860
        %v6911 = vunpack.c.h.b16 %v4860
        %v6912 = vunpack.c.l.b16 %v4861
        %v6913 = vunpack.c.h.b16 %v4861
        %v6914 = vunpack.c.l.b16 %v4862
        %v6915 = vunpack.c.h.b16 %v4862
        %v6916 = vunpack.c.l.b16 %v4863
        %v6917 = vunpack.c.h.b16 %v4863
        %v6918 = vunpack.c.l.b16 %v4864
        %v6919 = vunpack.c.h.b16 %v4864
        %v6920 = vunpack.c.l.b16 %v4865
        %v6921 = vunpack.c.h.b16 %v4865
        %v6922 = vunpack.c.l.b16 %v4866
        %v6923 = vunpack.c.h.b16 %v4866
        %v6924 = vunpack.c.l.b16 %v4867
        %v6925 = vunpack.c.h.b16 %v4867
        %v6926 = vunpack.c.l.b16 %v4868
        %v6927 = vunpack.c.h.b16 %v4868
        %v6928 = vunpack.c.l.b16 %v4869
        %v6929 = vunpack.c.h.b16 %v4869
        %v6930 = vunpack.c.l.b16 %v4870
        %v6931 = vunpack.c.h.b16 %v4870
        %v6932 = vunpack.c.l.b16 %v4871
        %v6933 = vunpack.c.h.b16 %v4871
        %v6934 = vunpack.c.l.b16 %v4872
        %v6935 = vunpack.c.h.b16 %v4872
        %v6936 = vunpack.c.l.b16 %v4873
        %v6937 = vunpack.c.h.b16 %v4873
        %v6938 = vunpack.c.l.b16 %v4874
        %v6939 = vunpack.c.h.b16 %v4874
        %v6940 = vunpack.c.l.b16 %v4875
        %v6941 = vunpack.c.h.b16 %v4875
        %v6942 = vunpack.c.l.b16 %v4876
        %v6943 = vunpack.c.h.b16 %v4876
        %v6944 = vunpack.c.l.b16 %v4877
        %v6945 = vunpack.c.h.b16 %v4877
        %v6946 = vunpack.c.l.b16 %v4878
        %v6947 = vunpack.c.h.b16 %v4878
        %v6948 = vunpack.c.l.b16 %v4879
        %v6949 = vunpack.c.h.b16 %v4879
        %v6950 = vunpack.c.l.b16 %v4880
        %v6951 = vunpack.c.h.b16 %v4880
        %v6952 = vunpack.c.l.b16 %v4881
        %v6953 = vunpack.c.h.b16 %v4881
        %v6954 = vunpack.c.l.b16 %v4882
        %v6955 = vunpack.c.h.b16 %v4882
        %v6956 = vunpack.c.l.b16 %v4883
        %v6957 = vunpack.c.h.b16 %v4883
        %v6958 = vunpack.c.l.b16 %v4884
        %v6959 = vunpack.c.h.b16 %v4884
        %v6960 = vunpack.c.l.b16 %v4885
        %v6961 = vunpack.c.h.b16 %v4885
        %v6962 = vunpack.c.l.b16 %v4886
        %v6963 = vunpack.c.h.b16 %v4886
        %v6964 = vunpack.c.l.b16 %v4887
        %v6965 = vunpack.c.h.b16 %v4887
        %v6966 = vunpack.c.l.b16 %v4888
        %v6967 = vunpack.c.h.b16 %v4888
        %v6968 = vunpack.c.l.b16 %v4889
        %v6969 = vunpack.c.h.b16 %v4889
        %v6970 = vunpack.c.l.b16 %v4890
        %v6971 = vunpack.c.h.b16 %v4890
        %v6972 = vunpack.c.l.b16 %v4891
        %v6973 = vunpack.c.h.b16 %v4891
        %v6974 = vunpack.c.l.b16 %v4892
        %v6975 = vunpack.c.h.b16 %v4892
        %v6976 = vunpack.c.l.b16 %v4893
        %v6977 = vunpack.c.h.b16 %v4893
        %v6978 = vunpack.c.l.b16 %v4894
        %v6979 = vunpack.c.h.b16 %v4894
        %v6980 = vunpack.c.l.b16 %v4895
        %v6981 = vunpack.c.h.b16 %v4895
        %v6982 = vunpack.c.l.b16 %v4896
        %v6983 = vunpack.c.h.b16 %v4896
        %v6984 = vunpack.c.l.b16 %v4897
        %v6985 = vunpack.c.h.b16 %v4897
        %v6986 = vunpack.c.l.b16 %v4898
        %v6987 = vunpack.c.h.b16 %v4898
        %v6988 = vunpack.c.l.b16 %v4899
        %v6989 = vunpack.c.h.b16 %v4899
        %v6990 = vunpack.c.l.b16 %v4900
        %v6991 = vunpack.c.h.b16 %v4900
        %v6992 = vunpack.c.l.b16 %v4901
        %v6993 = vunpack.c.h.b16 %v4901
        %v6994 = vunpack.c.l.b16 %v4902
        %v6995 = vunpack.c.h.b16 %v4902
        %v6996 = vunpack.c.l.b16 %v4903
        %v6997 = vunpack.c.h.b16 %v4903
        %v6998 = vunpack.c.l.b16 %v4904
        %v6999 = vunpack.c.h.b16 %v4904
        %v7000 = vunpack.c.l.b16 %v4905
        %v7001 = vunpack.c.h.b16 %v4905
        %v7002 = vunpack.c.l.b16 %v4906
        %v7003 = vunpack.c.h.b16 %v4906
        %v7004 = vunpack.c.l.b16 %v4907
        %v7005 = vunpack.c.h.b16 %v4907
        %v7006 = vunpack.c.l.b16 %v4908
        %v7007 = vunpack.c.h.b16 %v4908
        %v7008 = vunpack.c.l.b16 %v4909
        %v7009 = vunpack.c.h.b16 %v4909
        %v7010 = vunpack.c.l.b16 %v4910
        %v7011 = vunpack.c.h.b16 %v4910
        %v7012 = vunpack.c.l.b16 %v4911
        %v7013 = vunpack.c.h.b16 %v4911
        %v7014 = vunpack.c.l.b16 %v4912
        %v7015 = vunpack.c.h.b16 %v4912
        %v7016 = vunpack.c.l.b16 %v4913
        %v7017 = vunpack.c.h.b16 %v4913
        %v7018 = vunpack.c.l.b16 %v4914
        %v7019 = vunpack.c.h.b16 %v4914
        %v7020 = vunpack.c.l.b16 %v4915
        %v7021 = vunpack.c.h.b16 %v4915
        %v7022 = vunpack.c.l.b16 %v4916
        %v7023 = vunpack.c.h.b16 %v4916
        %v7024 = vunpack.c.l.b16 %v4917
        %v7025 = vunpack.c.h.b16 %v4917
        %v7026 = vunpack.c.l.b16 %v4918
        %v7027 = vunpack.c.h.b16 %v4918
        %v7028 = vunpack.c.l.b16 %v4919
        %v7029 = vunpack.c.h.b16 %v4919
        %v7030 = vunpack.c.l.b16 %v4920
        %v7031 = vunpack.c.h.b16 %v4920
        %v7032 = vunpack.c.l.b16 %v4921
        %v7033 = vunpack.c.h.b16 %v4921
        %v7034 = vunpack.c.l.b16 %v4922
        %v7035 = vunpack.c.h.b16 %v4922
        %v7036 = vunpack.c.l.b16 %v4923
        %v7037 = vunpack.c.h.b16 %v4923
        %v7038 = vunpack.c.l.b16 %v4924
        %v7039 = vunpack.c.h.b16 %v4924
        %v7040 = vunpack.c.l.b16 %v4925
        %v7041 = vunpack.c.h.b16 %v4925
        %v7042 = vunpack.c.l.b16 %v4926
        %v7043 = vunpack.c.h.b16 %v4926
        %v7044 = vunpack.c.l.b16 %v4927
        %v7045 = vunpack.c.h.b16 %v4927
        %v7046 = vunpack.c.l.b16 %v4928
        %v7047 = vunpack.c.h.b16 %v4928
        %v7048 = vunpack.c.l.b16 %v4929
        %v7049 = vunpack.c.h.b16 %v4929
        %v7050 = vunpack.c.l.b16 %v4930
        %v7051 = vunpack.c.h.b16 %v4930
        %v7052 = vunpack.c.l.b16 %v4931
        %v7053 = vunpack.c.h.b16 %v4931
        %v7054 = vunpack.c.l.b16 %v4932
        %v7055 = vunpack.c.h.b16 %v4932
        %v7056 = vunpack.c.l.b16 %v4933
        %v7057 = vunpack.c.h.b16 %v4933
        %v7058 = vunpack.c.l.b16 %v4934
        %v7059 = vunpack.c.h.b16 %v4934
        %v7060 = vunpack.c.l.b16 %v4935
        %v7061 = vunpack.c.h.b16 %v4935
        %v7062 = vunpack.c.l.b16 %v4936
        %v7063 = vunpack.c.h.b16 %v4936
        %v7064 = vunpack.c.l.b16 %v4937
        %v7065 = vunpack.c.h.b16 %v4937
        %v7066 = vunpack.c.l.b16 %v4938
        %v7067 = vunpack.c.h.b16 %v4938
        %v7068 = vunpack.c.l.b16 %v4939
        %v7069 = vunpack.c.h.b16 %v4939
        %v7070 = vunpack.c.l.b16 %v4940
        %v7071 = vunpack.c.h.b16 %v4940
        %v7072 = vunpack.c.l.b16 %v4941
        %v7073 = vunpack.c.h.b16 %v4941
        %v7074 = vunpack.c.l.b16 %v4942
        %v7075 = vunpack.c.h.b16 %v4942
        %v7076 = vunpack.c.l.b16 %v4943
        %v7077 = vunpack.c.h.b16 %v4943
        %v7078 = vunpack.c.l.b16 %v4944
        %v7079 = vunpack.c.h.b16 %v4944
        %v7080 = vunpack.c.l.b16 %v4945
        %v7081 = vunpack.c.h.b16 %v4945
        %v7082 = vunpack.c.l.b16 %v4946
        %v7083 = vunpack.c.h.b16 %v4946
        %v7084 = vunpack.c.l.b16 %v4947
        %v7085 = vunpack.c.h.b16 %v4947
        %v7086 = vunpack.c.l.b16 %v4948
        %v7087 = vunpack.c.h.b16 %v4948
        %v7088 = vunpack.c.l.b16 %v4949
        %v7089 = vunpack.c.h.b16 %v4949
        %v7090 = vunpack.c.l.b16 %v4950
        %v7091 = vunpack.c.h.b16 %v4950
        %v7092 = vunpack.c.l.b16 %v4951
        %v7093 = vunpack.c.h.b16 %v4951
        %v7094 = vunpack.c.l.b16 %v4952
        %v7095 = vunpack.c.h.b16 %v4952
        %v7096 = vunpack.c.l.b16 %v4953
        %v7097 = vunpack.c.h.b16 %v4953
        %v7098 = vunpack.c.l.b16 %v4954
        %v7099 = vunpack.c.h.b16 %v4954
        %v7100 = vunpack.c.l.b16 %v4955
        %v7101 = vunpack.c.h.b16 %v4955
        %v7102 = vunpack.c.l.b16 %v4956
        %v7103 = vunpack.c.h.b16 %v4956
        %v7104 = vunpack.c.l.b16 %v4957
        %v7105 = vunpack.c.h.b16 %v4957
        %v7106 = vunpack.c.l.b16 %v4958
        %v7107 = vunpack.c.h.b16 %v4958
        %v7108 = vunpack.c.l.b16 %v4959
        %v7109 = vunpack.c.h.b16 %v4959
        %v7110 = vunpack.c.l.b16 %v4960
        %v7111 = vunpack.c.h.b16 %v4960
        %v7112 = vunpack.c.l.b16 %v4961
        %v7113 = vunpack.c.h.b16 %v4961
        %v7114 = vunpack.c.l.b16 %v4962
        %v7115 = vunpack.c.h.b16 %v4962
        %v7116 = vunpack.c.l.b16 %v4963
        %v7117 = vunpack.c.h.b16 %v4963
        %v7118 = vunpack.c.l.b16 %v4964
        %v7119 = vunpack.c.h.b16 %v4964
        %v7120 = vunpack.c.l.b16 %v4965
        %v7121 = vunpack.c.h.b16 %v4965
        %v7122 = vunpack.c.l.b16 %v4966
        %v7123 = vunpack.c.h.b16 %v4966
        %v7124 = vunpack.c.l.b16 %v4967
        %v7125 = vunpack.c.h.b16 %v4967
        %v7126 = vunpack.c.l.b16 %v4968
        %v7127 = vunpack.c.h.b16 %v4968
        %v7128 = vunpack.c.l.b16 %v4969
        %v7129 = vunpack.c.h.b16 %v4969
        %v7130 = vunpack.c.l.b16 %v4970
        %v7131 = vunpack.c.h.b16 %v4970
        %v7132 = vunpack.c.l.b16 %v4971
        %v7133 = vunpack.c.h.b16 %v4971
        %v7134 = vunpack.c.l.b16 %v4972
        %v7135 = vunpack.c.h.b16 %v4972
        %v7136 = vunpack.c.l.b16 %v4973
        %v7137 = vunpack.c.h.b16 %v4973
        %v7138 = vunpack.c.l.b16 %v4974
        %v7139 = vunpack.c.h.b16 %v4974
        %v7140 = vunpack.c.l.b16 %v4975
        %v7141 = vunpack.c.h.b16 %v4975
        %v7142 = vunpack.c.l.b16 %v4976
        %v7143 = vunpack.c.h.b16 %v4976
        %v7144 = vunpack.c.l.b16 %v4977
        %v7145 = vunpack.c.h.b16 %v4977
        %v7146 = vunpack.c.l.b16 %v4978
        %v7147 = vunpack.c.h.b16 %v4978
        %v7148 = vunpack.c.l.b16 %v4979
        %v7149 = vunpack.c.h.b16 %v4979
        %v7150 = vunpack.c.l.b16 %v4980
        %v7151 = vunpack.c.h.b16 %v4980
        %v7152 = vunpack.c.l.b16 %v4981
        %v7153 = vunpack.c.h.b16 %v4981
        %v7154 = vunpack.c.l.b16 %v4982
        %v7155 = vunpack.c.h.b16 %v4982
        %v7156 = vunpack.c.l.b16 %v4983
        %v7157 = vunpack.c.h.b16 %v4983
        %v7158 = vunpack.c.l.b16 %v4984
        %v7159 = vunpack.c.h.b16 %v4984
        %v7160 = vunpack.c.l.b16 %v4985
        %v7161 = vunpack.c.h.b16 %v4985
        %v7162 = vunpack.c.l.b16 %v4986
        %v7163 = vunpack.c.h.b16 %v4986
        %v7164 = vunpack.c.l.b16 %v4987
        %v7165 = vunpack.c.h.b16 %v4987
        %v7166 = vunpack.c.l.b16 %v4988
        %v7167 = vunpack.c.h.b16 %v4988
        %v7168 = vunpack.c.l.b16 %v4989
        %v7169 = vunpack.c.h.b16 %v4989
        %v7170 = vunpack.c.l.b16 %v4990
        %v7171 = vunpack.c.h.b16 %v4990
        %v7172 = vunpack.c.l.b16 %v4991
        %v7173 = vunpack.c.h.b16 %v4991
        %v7174 = vunpack.c.l.b16 %v4992
        %v7175 = vunpack.c.h.b16 %v4992
        %v7176 = vunpack.c.l.b16 %v4993
        %v7177 = vunpack.c.h.b16 %v4993
        %v7178 = vunpack.c.l.b16 %v4994
        %v7179 = vunpack.c.h.b16 %v4994
        %v7180 = vunpack.c.l.b16 %v4995
        %v7181 = vunpack.c.h.b16 %v4995
        %v7182 = vunpack.c.l.b16 %v4996
        %v7183 = vunpack.c.h.b16 %v4996
        %v7184 = vunpack.c.l.b16 %v4997
        %v7185 = vunpack.c.h.b16 %v4997
        %v7186 = vunpack.c.l.b16 %v4998
        %v7187 = vunpack.c.h.b16 %v4998
        %v7188 = vunpack.c.l.b16 %v4999
        %v7189 = vunpack.c.h.b16 %v4999
        %v7190 = vunpack.c.l.b16 %v5000
        %v7191 = vunpack.c.h.b16 %v5000
        %v7192 = vunpack.c.l.b16 %v5001
        %v7193 = vunpack.c.h.b16 %v5001
        %v7194 = vunpack.c.l.b16 %v5002
        %v7195 = vunpack.c.h.b16 %v5002
        %v7196 = vunpack.c.l.b16 %v5003
        %v7197 = vunpack.c.h.b16 %v5003
        %v7198 = vunpack.c.l.b16 %v5004
        %v7199 = vunpack.c.h.b16 %v5004
        %v7200 = vunpack.c.l.b16 %v5005
        %v7201 = vunpack.c.h.b16 %v5005
        %v7202 = vunpack.c.l.b16 %v5006
        %v7203 = vunpack.c.h.b16 %v5006
        %v7204 = vunpack.c.l.b16 %v5007
        %v7205 = vunpack.c.h.b16 %v5007
        %v7206 = vunpack.c.l.b16 %v5008
        %v7207 = vunpack.c.h.b16 %v5008
        %v7208 = vunpack.c.l.b16 %v5009
        %v7209 = vunpack.c.h.b16 %v5009
        %v7210 = vunpack.c.l.b16 %v5010
        %v7211 = vunpack.c.h.b16 %v5010
        %v7212 = vunpack.c.l.b16 %v5011
        %v7213 = vunpack.c.h.b16 %v5011
        %v7214 = vunpack.c.l.b16 %v5012
        %v7215 = vunpack.c.h.b16 %v5012
        %v7216 = vunpack.c.l.b16 %v5013
        %v7217 = vunpack.c.h.b16 %v5013
        %v7218 = vunpack.c.l.b16 %v5014
        %v7219 = vunpack.c.h.b16 %v5014
        %v7220 = vunpack.c.l.b16 %v5015
        %v7221 = vunpack.c.h.b16 %v5015
        %v7222 = vunpack.c.l.b16 %v5016
        %v7223 = vunpack.c.h.b16 %v5016
        %v7224 = vunpack.c.l.b16 %v5017
        %v7225 = vunpack.c.h.b16 %v5017
        %v7226 = vunpack.c.l.b16 %v5018
        %v7227 = vunpack.c.h.b16 %v5018
        %v7228 = vunpack.c.l.b16 %v5019
        %v7229 = vunpack.c.h.b16 %v5019
        %v7230 = vunpack.c.l.b16 %v5020
        %v7231 = vunpack.c.h.b16 %v5020
        %v7232 = vunpack.c.l.b16 %v5021
        %v7233 = vunpack.c.h.b16 %v5021
        %v7234 = vunpack.c.l.b16 %v5022
        %v7235 = vunpack.c.h.b16 %v5022
        %v7236 = vunpack.c.l.b16 %v5023
        %v7237 = vunpack.c.h.b16 %v5023
        %v7238 = vunpack.c.l.b16 %v5024
        %v7239 = vunpack.c.h.b16 %v5024
        %v7240 = vunpack.c.l.b16 %v5025
        %v7241 = vunpack.c.h.b16 %v5025
        %v7242 = vunpack.c.l.b16 %v5026
        %v7243 = vunpack.c.h.b16 %v5026
        %v7244 = vunpack.c.l.b16 %v5027
        %v7245 = vunpack.c.h.b16 %v5027
        %v7246 = vunpack.c.l.b16 %v5028
        %v7247 = vunpack.c.h.b16 %v5028
        %v7248 = vunpack.c.l.b16 %v5029
        %v7249 = vunpack.c.h.b16 %v5029
        %v7250 = vunpack.c.l.b16 %v5030
        %v7251 = vunpack.c.h.b16 %v5030
        %v7252 = vunpack.c.l.b16 %v5031
        %v7253 = vunpack.c.h.b16 %v5031
        %v7254 = vunpack.c.l.b16 %v5032
        %v7255 = vunpack.c.h.b16 %v5032
        %v7256 = vunpack.c.l.b16 %v5033
        %v7257 = vunpack.c.h.b16 %v5033
        %v7258 = vunpack.c.l.b16 %v5034
        %v7259 = vunpack.c.h.b16 %v5034
        %v7260 = vunpack.c.l.b16 %v5035
        %v7261 = vunpack.c.h.b16 %v5035
        %v7262 = vunpack.c.l.b16 %v5036
        %v7263 = vunpack.c.h.b16 %v5036
        %v7264 = vunpack.c.l.b16 %v5037
        %v7265 = vunpack.c.h.b16 %v5037
        %v7266 = vunpack.c.l.b16 %v5038
        %v7267 = vunpack.c.h.b16 %v5038
        %v7268 = vunpack.c.l.b16 %v5039
        %v7269 = vunpack.c.h.b16 %v5039
        %v7270 = vunpack.c.l.b16 %v5040
        %v7271 = vunpack.c.h.b16 %v5040
        %v7272 = vunpack.c.l.b16 %v5041
        %v7273 = vunpack.c.h.b16 %v5041
        %v7274 = vunpack.c.l.b16 %v5042
        %v7275 = vunpack.c.h.b16 %v5042
        %v7276 = vunpack.c.l.b16 %v5043
        %v7277 = vunpack.c.h.b16 %v5043
        %v7278 = vunpack.c.l.b16 %v5044
        %v7279 = vunpack.c.h.b16 %v5044
        %v7280 = vunpack.c.l.b16 %v5045
        %v7281 = vunpack.c.h.b16 %v5045
        %v7282 = vunpack.c.l.b16 %v5046
        %v7283 = vunpack.c.h.b16 %v5046
        %v7284 = vunpack.c.l.b16 %v5047
        %v7285 = vunpack.c.h.b16 %v5047
        %v7286 = vunpack.c.l.b16 %v5048
        %v7287 = vunpack.c.h.b16 %v5048
        %v7288 = vunpack.c.l.b16 %v5049
        %v7289 = vunpack.c.h.b16 %v5049
        %v7290 = vunpack.c.l.b16 %v5050
        %v7291 = vunpack.c.h.b16 %v5050
        %v7292 = vunpack.c.l.b16 %v5051
        %v7293 = vunpack.c.h.b16 %v5051
        %v7294 = vunpack.c.l.b16 %v5052
        %v7295 = vunpack.c.h.b16 %v5052
        %v7296 = vunpack.c.l.b16 %v5053
        %v7297 = vunpack.c.h.b16 %v5053
        %v7298 = vunpack.c.l.b16 %v5054
        %v7299 = vunpack.c.h.b16 %v5054
        %v7300 = vunpack.c.l.b16 %v5055
        %v7301 = vunpack.c.h.b16 %v5055
        %v7302 = vunpack.c.l.b16 %v5056
        %v7303 = vunpack.c.h.b16 %v5056
        %v7304 = vunpack.c.l.b16 %v5057
        %v7305 = vunpack.c.h.b16 %v5057
        %v7306 = vunpack.c.l.b16 %v5058
        %v7307 = vunpack.c.h.b16 %v5058
        %v7308 = vunpack.c.l.b16 %v5059
        %v7309 = vunpack.c.h.b16 %v5059
        %v7310 = vunpack.c.l.b16 %v5060
        %v7311 = vunpack.c.h.b16 %v5060
        %v7312 = vunpack.c.l.b16 %v5061
        %v7313 = vunpack.c.h.b16 %v5061
        %v7314 = vunpack.c.l.b16 %v5062
        %v7315 = vunpack.c.h.b16 %v5062
        %v7316 = vunpack.c.l.b16 %v5063
        %v7317 = vunpack.c.h.b16 %v5063
        %v7318 = vunpack.c.l.b16 %v5064
        %v7319 = vunpack.c.h.b16 %v5064
        %v7320 = vunpack.c.l.b16 %v5065
        %v7321 = vunpack.c.h.b16 %v5065
        %v7322 = vunpack.c.l.b16 %v5066
        %v7323 = vunpack.c.h.b16 %v5066
        %v7324 = vunpack.c.l.b16 %v5067
        %v7325 = vunpack.c.h.b16 %v5067
        %v7326 = vunpack.c.l.b16 %v5068
        %v7327 = vunpack.c.h.b16 %v5068
        %v7328 = vunpack.c.l.b16 %v5069
        %v7329 = vunpack.c.h.b16 %v5069
        %v7330 = vunpack.c.l.b16 %v5070
        %v7331 = vunpack.c.h.b16 %v5070
        %v7332 = vunpack.c.l.b16 %v5071
        %v7333 = vunpack.c.h.b16 %v5071
        %v7334 = vunpack.c.l.b16 %v5072
        %v7335 = vunpack.c.h.b16 %v5072
        %v7336 = vunpack.c.l.b16 %v5073
        %v7337 = vunpack.c.h.b16 %v5073
        %v7338 = vunpack.c.l.b16 %v5074
        %v7339 = vunpack.c.h.b16 %v5074
        %v7340 = vunpack.c.l.b16 %v5075
        %v7341 = vunpack.c.h.b16 %v5075
        %v7342 = vunpack.c.l.b16 %v5076
        %v7343 = vunpack.c.h.b16 %v5076
        %v7344 = vunpack.c.l.b16 %v5077
        %v7345 = vunpack.c.h.b16 %v5077
        %v7346 = vunpack.c.l.b16 %v5078
        %v7347 = vunpack.c.h.b16 %v5078
        %v7348 = vunpack.c.l.b16 %v5079
        %v7349 = vunpack.c.h.b16 %v5079
        %v7350 = vunpack.c.l.b16 %v5080
        %v7351 = vunpack.c.h.b16 %v5080
        %v7352 = vunpack.c.l.b16 %v5081
        %v7353 = vunpack.c.h.b16 %v5081
        %v7354 = vunpack.c.l.b16 %v5082
        %v7355 = vunpack.c.h.b16 %v5082
        %v7356 = vunpack.c.l.b16 %v5083
        %v7357 = vunpack.c.h.b16 %v5083
        %v7358 = vunpack.c.l.b16 %v5084
        %v7359 = vunpack.c.h.b16 %v5084
        %v7360 = vunpack.c.l.b16 %v5085
        %v7361 = vunpack.c.h.b16 %v5085
        %v7362 = vunpack.c.l.b16 %v5086
        %v7363 = vunpack.c.h.b16 %v5086
        %v7364 = vunpack.c.l.b16 %v5087
        %v7365 = vunpack.c.h.b16 %v5087
        %v7366 = vunpack.c.l.b16 %v5088
        %v7367 = vunpack.c.h.b16 %v5088
        %v7368 = vunpack.c.l.b16 %v5089
        %v7369 = vunpack.c.h.b16 %v5089
        %v7370 = vunpack.c.l.b16 %v5090
        %v7371 = vunpack.c.h.b16 %v5090
        %v7372 = vunpack.c.l.b16 %v5091
        %v7373 = vunpack.c.h.b16 %v5091
        %v7374 = vunpack.c.l.b16 %v5092
        %v7375 = vunpack.c.h.b16 %v5092
        %v7376 = vunpack.c.l.b16 %v5093
        %v7377 = vunpack.c.h.b16 %v5093
        %v7378 = vunpack.c.l.b16 %v5094
        %v7379 = vunpack.c.h.b16 %v5094
        %v7380 = vunpack.c.l.b16 %v5095
        %v7381 = vunpack.c.h.b16 %v5095
        %v7382 = vunpack.c.l.b16 %v5096
        %v7383 = vunpack.c.h.b16 %v5096
        %v7384 = vunpack.c.l.b16 %v5097
        %v7385 = vunpack.c.h.b16 %v5097
        %v7386 = vunpack.c.l.b16 %v5098
        %v7387 = vunpack.c.h.b16 %v5098
        %v7388 = vunpack.c.l.b16 %v5099
        %v7389 = vunpack.c.h.b16 %v5099
        %v7390 = vunpack.c.l.b16 %v5100
        %v7391 = vunpack.c.h.b16 %v5100
        %v7392 = vunpack.c.l.b16 %v5101
        %v7393 = vunpack.c.h.b16 %v5101
        %v7394 = vunpack.c.l.b16 %v5102
        %v7395 = vunpack.c.h.b16 %v5102
        %v7396 = vunpack.c.l.b16 %v5103
        %v7397 = vunpack.c.h.b16 %v5103
        %v7398 = vunpack.c.l.b16 %v5104
        %v7399 = vunpack.c.h.b16 %v5104
        %v7400 = vunpack.c.l.b16 %v5105
        %v7401 = vunpack.c.h.b16 %v5105
        %v7402 = vunpack.c.l.b16 %v5106
        %v7403 = vunpack.c.h.b16 %v5106
        %v7404 = vunpack.c.l.b16 %v5107
        %v7405 = vunpack.c.h.b16 %v5107
        %v7406 = vunpack.c.l.b16 %v5108
        %v7407 = vunpack.c.h.b16 %v5108
        %v7408 = vunpack.c.l.b16 %v5109
        %v7409 = vunpack.c.h.b16 %v5109
        %v7410 = vunpack.c.l.b16 %v5110
        %v7411 = vunpack.c.h.b16 %v5110
        %v7412 = vunpack.c.l.b16 %v5111
        %v7413 = vunpack.c.h.b16 %v5111
        %v7414 = vunpack.c.l.b16 %v5112
        %v7415 = vunpack.c.h.b16 %v5112
        %v7416 = vunpack.c.l.b16 %v5113
        %v7417 = vunpack.c.h.b16 %v5113
        %v7418 = vunpack.c.l.b16 %v5114
        %v7419 = vunpack.c.h.b16 %v5114
        %v7420 = vunpack.c.l.b16 %v5115
        %v7421 = vunpack.c.h.b16 %v5115
        %v7422 = vunpack.c.l.b16 %v5116
        %v7423 = vunpack.c.h.b16 %v5116
        %v7424 = vunpack.c.l.b16 %v5117
        %v7425 = vunpack.c.h.b16 %v5117
        %v7426 = vunpack.c.l.b16 %v5118
        %v7427 = vunpack.c.h.b16 %v5118
        %v7428 = vunpack.c.l.b16 %v5119
        %v7429 = vunpack.c.h.b16 %v5119
        %v7430 = vunpack.c.l.b16 %v5120
        %v7431 = vunpack.c.h.b16 %v5120
        %v7432 = vunpack.c.l.b16 %v5121
        %v7433 = vunpack.c.h.b16 %v5121
        %v7434 = vunpack.c.l.b16 %v5122
        %v7435 = vunpack.c.h.b16 %v5122
        %v7436 = vunpack.c.l.b16 %v5123
        %v7437 = vunpack.c.h.b16 %v5123
        %v7438 = vunpack.c.l.b16 %v5124
        %v7439 = vunpack.c.h.b16 %v5124
        %v7440 = vunpack.c.l.b16 %v5125
        %v7441 = vunpack.c.h.b16 %v5125
        %v7442 = vunpack.c.l.b16 %v5126
        %v7443 = vunpack.c.h.b16 %v5126
        %v7444 = vunpack.c.l.b16 %v5127
        %v7445 = vunpack.c.h.b16 %v5127
        %v7446 = vunpack.c.l.b16 %v5128
        %v7447 = vunpack.c.h.b16 %v5128
        %v7448 = vunpack.c.l.b16 %v5129
        %v7449 = vunpack.c.h.b16 %v5129
        %v7450 = vunpack.c.l.b16 %v5130
        %v7451 = vunpack.c.h.b16 %v5130
        %v7452 = vunpack.c.l.b16 %v5131
        %v7453 = vunpack.c.h.b16 %v5131
        %v7454 = vunpack.c.l.b16 %v5132
        %v7455 = vunpack.c.h.b16 %v5132
        %v7456 = vunpack.c.l.b16 %v5133
        %v7457 = vunpack.c.h.b16 %v5133
        %v7458 = vunpack.c.l.b16 %v5134
        %v7459 = vunpack.c.h.b16 %v5134
        %v7460 = vunpack.c.l.b16 %v5135
        %v7461 = vunpack.c.h.b16 %v5135
        %v7462 = vunpack.c.l.b16 %v5136
        %v7463 = vunpack.c.h.b16 %v5136
        %v7464 = vunpack.c.l.b16 %v5137
        %v7465 = vunpack.c.h.b16 %v5137
        %v7466 = vunpack.c.l.b16 %v5138
        %v7467 = vunpack.c.h.b16 %v5138
        %v7468 = vunpack.c.l.b16 %v5139
        %v7469 = vunpack.c.h.b16 %v5139
        %v7470 = vunpack.c.l.b16 %v5140
        %v7471 = vunpack.c.h.b16 %v5140
        %v7472 = vunpack.c.l.b16 %v5141
        %v7473 = vunpack.c.h.b16 %v5141
        %v7474 = vunpack.c.l.b16 %v5142
        %v7475 = vunpack.c.h.b16 %v5142
        %v7476 = vunpack.c.l.b16 %v5143
        %v7477 = vunpack.c.h.b16 %v5143
        %v7478 = vunpack.c.l.b16 %v5144
        %v7479 = vunpack.c.h.b16 %v5144
        %v7480 = vunpack.c.l.b16 %v5145
        %v7481 = vunpack.c.h.b16 %v5145
        %v7482 = vunpack.c.l.b16 %v5146
        %v7483 = vunpack.c.h.b16 %v5146
        %v7484 = vunpack.c.l.b16 %v5147
        %v7485 = vunpack.c.h.b16 %v5147
        %v7486 = vunpack.c.l.b16 %v5148
        %v7487 = vunpack.c.h.b16 %v5148
        %v7488 = vunpack.c.l.b16 %v5149
        %v7489 = vunpack.c.h.b16 %v5149
        %v7490 = vunpack.c.l.b16 %v5150
        %v7491 = vunpack.c.h.b16 %v5150
        %v7492 = vunpack.c.l.b16 %v5151
        %v7493 = vunpack.c.h.b16 %v5151
        %v7494 = vunpack.c.l.b16 %v5152
        %v7495 = vunpack.c.h.b16 %v5152
        %v7496 = vunpack.c.l.b16 %v5153
        %v7497 = vunpack.c.h.b16 %v5153
        %v7498 = vunpack.c.l.b16 %v5154
        %v7499 = vunpack.c.h.b16 %v5154
        %v7500 = vunpack.c.l.b16 %v5155
        %v7501 = vunpack.c.h.b16 %v5155
        %v7502 = vunpack.c.l.b16 %v5156
        %v7503 = vunpack.c.h.b16 %v5156
        %v7504 = vunpack.c.l.b16 %v5157
        %v7505 = vunpack.c.h.b16 %v5157
        %v7506 = vunpack.c.l.b16 %v5158
        %v7507 = vunpack.c.h.b16 %v5158
        %v7508 = vunpack.c.l.b16 %v5159
        %v7509 = vunpack.c.h.b16 %v5159
        %v7510 = vunpack.c.l.b16 %v5160
        %v7511 = vunpack.c.h.b16 %v5160
        %v7512 = vunpack.c.l.b16 %v5161
        %v7513 = vunpack.c.h.b16 %v5161
        %v7514 = vunpack.c.l.b16 %v5162
        %v7515 = vunpack.c.h.b16 %v5162
        %v7516 = vpack.c.b16 %v5952, %v5948
        %v7517 = vpack.c.b16 %v5953, %v5949
        %v7518 = vpack.c.b16 %v5954, %v5950
        %v7519 = vpack.c.b16 %v5955, %v5951
        %v7520 = vpack.c.b16 %v5960, %v5956
        %v7521 = vpack.c.b16 %v5961, %v5957
        %v7522 = vpack.c.b16 %v5962, %v5958
        %v7523 = vpack.c.b16 %v5963, %v5959
        %v7524 = vpack.c.b16 %v5968, %v5964
        %v7525 = vpack.c.b16 %v5969, %v5965
        %v7526 = vpack.c.b16 %v5970, %v5966
        %v7527 = vpack.c.b16 %v5971, %v5967
        %v7528 = vpack.c.b16 %v5976, %v5972
        %v7529 = vpack.c.b16 %v5977, %v5973
        %v7530 = vpack.c.b16 %v5978, %v5974
        %v7531 = vpack.c.b16 %v5979, %v5975
        %v7532 = vpack.c.b16 %v5984, %v5980
        %v7533 = vpack.c.b16 %v5985, %v5981
        %v7534 = vpack.c.b16 %v5986, %v5982
        %v7535 = vpack.c.b16 %v5987, %v5983
        %v7536 = vpack.c.b16 %v5992, %v5988
        %v7537 = vpack.c.b16 %v5993, %v5989
        %v7538 = vpack.c.b16 %v5994, %v5990
        %v7539 = vpack.c.b16 %v5995, %v5991
        %v7540 = vpack.c.b16 %v6000, %v5996
        %v7541 = vpack.c.b16 %v6001, %v5997
        %v7542 = vpack.c.b16 %v6002, %v5998
        %v7543 = vpack.c.b16 %v6003, %v5999
        %v7544 = vpack.c.b16 %v6008, %v6004
        %v7545 = vpack.c.b16 %v6009, %v6005
        %v7546 = vpack.c.b16 %v6010, %v6006
        %v7547 = vpack.c.b16 %v6011, %v6007
        %v7548 = vpack.c.b16 %v6016, %v6012
        %v7549 = vpack.c.b16 %v6017, %v6013
        %v7550 = vpack.c.b16 %v6018, %v6014
        %v7551 = vpack.c.b16 %v6019, %v6015
        %v7552 = vpack.c.b16 %v6024, %v6020
        %v7553 = vpack.c.b16 %v6025, %v6021
        %v7554 = vpack.c.b16 %v6026, %v6022
        %v7555 = vpack.c.b16 %v6027, %v6023
        %v7556 = vpack.c.b16 %v6032, %v6028
        %v7557 = vpack.c.b16 %v6033, %v6029
        %v7558 = vpack.c.b16 %v6034, %v6030
        %v7559 = vpack.c.b16 %v6035, %v6031
        %v7560 = vpack.c.b16 %v6040, %v6036
        %v7561 = vpack.c.b16 %v6041, %v6037
        %v7562 = vpack.c.b16 %v6042, %v6038
        %v7563 = vpack.c.b16 %v6043, %v6039
        %v7564 = vpack.c.b16 %v6048, %v6044
        %v7565 = vpack.c.b16 %v6049, %v6045
        %v7566 = vpack.c.b16 %v6050, %v6046
        %v7567 = vpack.c.b16 %v6051, %v6047
        %v7568 = vpack.c.b16 %v6056, %v6052
        %v7569 = vpack.c.b16 %v6057, %v6053
        %v7570 = vpack.c.b16 %v6058, %v6054
        %v7571 = vpack.c.b16 %v6059, %v6055
        %v7572 = vpack.c.b16 %v6064, %v6060
        %v7573 = vpack.c.b16 %v6065, %v6061
        %v7574 = vpack.c.b16 %v6066, %v6062
        %v7575 = vpack.c.b16 %v6067, %v6063
        %v7576 = vpack.c.b16 %v6072, %v6068
        %v7577 = vpack.c.b16 %v6073, %v6069
        %v7578 = vpack.c.b16 %v6074, %v6070
        %v7579 = vpack.c.b16 %v6075, %v6071
        %v7580 = vpack.c.b16 %v6080, %v6076
        %v7581 = vpack.c.b16 %v6081, %v6077
        %v7582 = vpack.c.b16 %v6082, %v6078
        %v7583 = vpack.c.b16 %v6083, %v6079
        %v7584 = vpack.c.b16 %v6088, %v6084
        %v7585 = vpack.c.b16 %v6089, %v6085
        %v7586 = vpack.c.b16 %v6090, %v6086
        %v7587 = vpack.c.b16 %v6091, %v6087
        %v7588 = vpack.c.b16 %v6096, %v6092
        %v7589 = vpack.c.b16 %v6097, %v6093
        %v7590 = vpack.c.b16 %v6098, %v6094
        %v7591 = vpack.c.b16 %v6099, %v6095
        %v7592 = vpack.c.b16 %v6104, %v6100
        %v7593 = vpack.c.b16 %v6105, %v6101
        %v7594 = vpack.c.b16 %v6106, %v6102
        %v7595 = vpack.c.b16 %v6107, %v6103
        %v7596 = vpack.c.b16 %v6112, %v6108
        %v7597 = vpack.c.b16 %v6113, %v6109
        %v7598 = vpack.c.b16 %v6114, %v6110
        %v7599 = vpack.c.b16 %v6115, %v6111
        %v7600 = vpack.c.b16 %v6120, %v6116
        %v7601 = vpack.c.b16 %v6121, %v6117
        %v7602 = vpack.c.b16 %v6122, %v6118
        %v7603 = vpack.c.b16 %v6123, %v6119
        %v7604 = vpack.c.b16 %v6128, %v6124
        %v7605 = vpack.c.b16 %v6129, %v6125
        %v7606 = vpack.c.b16 %v6130, %v6126
        %v7607 = vpack.c.b16 %v6131, %v6127
        %v7608 = vpack.c.b16 %v6136, %v6132
        %v7609 = vpack.c.b16 %v6137, %v6133
        %v7610 = vpack.c.b16 %v6138, %v6134
        %v7611 = vpack.c.b16 %v6139, %v6135
        %v7612 = vpack.c.b16 %v6144, %v6140
        %v7613 = vpack.c.b16 %v6145, %v6141
        %v7614 = vpack.c.b16 %v6146, %v6142
        %v7615 = vpack.c.b16 %v6147, %v6143
        %v7616 = vpack.c.b16 %v6152, %v6148
        %v7617 = vpack.c.b16 %v6153, %v6149
        %v7618 = vpack.c.b16 %v6154, %v6150
        %v7619 = vpack.c.b16 %v6155, %v6151
        %v7620 = vpack.c.b16 %v6160, %v6156
        %v7621 = vpack.c.b16 %v6161, %v6157
        %v7622 = vpack.c.b16 %v6162, %v6158
        %v7623 = vpack.c.b16 %v6163, %v6159
        %v7624 = vpack.c.b16 %v6168, %v6164
        %v7625 = vpack.c.b16 %v6169, %v6165
        %v7626 = vpack.c.b16 %v6170, %v6166
        %v7627 = vpack.c.b16 %v6171, %v6167
        %v7628 = vpack.c.b16 %v6176, %v6172
        %v7629 = vpack.c.b16 %v6177, %v6173
        %v7630 = vpack.c.b16 %v6178, %v6174
        %v7631 = vpack.c.b16 %v6179, %v6175
        %v7632 = vpack.c.b16 %v6184, %v6180
        %v7633 = vpack.c.b16 %v6185, %v6181
        %v7634 = vpack.c.b16 %v6186, %v6182
        %v7635 = vpack.c.b16 %v6187, %v6183
        %v7636 = vpack.c.b16 %v6192, %v6188
        %v7637 = vpack.c.b16 %v6193, %v6189
        %v7638 = vpack.c.b16 %v6194, %v6190
        %v7639 = vpack.c.b16 %v6195, %v6191
        %v7640 = vpack.c.b16 %v6200, %v6196
        %v7641 = vpack.c.b16 %v6201, %v6197
        %v7642 = vpack.c.b16 %v6202, %v6198
        %v7643 = vpack.c.b16 %v6203, %v6199
        %v7644 = vpack.c.b16 %v6208, %v6204
        %v7645 = vpack.c.b16 %v6209, %v6205
        %v7646 = vpack.c.b16 %v6210, %v6206
        %v7647 = vpack.c.b16 %v6211, %v6207
        %v7648 = vpack.c.b16 %v6216, %v6212
        %v7649 = vpack.c.b16 %v6217, %v6213
        %v7650 = vpack.c.b16 %v6218, %v6214
        %v7651 = vpack.c.b16 %v6219, %v6215
        %v7652 = vpack.c.b16 %v6224, %v6220
        %v7653 = vpack.c.b16 %v6225, %v6221
        %v7654 = vpack.c.b16 %v6226, %v6222
        %v7655 = vpack.c.b16 %v6227, %v6223
        %v7656 = vpack.c.b16 %v6232, %v6228
        %v7657 = vpack.c.b16 %v6233, %v6229
        %v7658 = vpack.c.b16 %v6234, %v6230
        %v7659 = vpack.c.b16 %v6235, %v6231
        %v7660 = vpack.c.b16 %v6240, %v6236
        %v7661 = vpack.c.b16 %v6241, %v6237
        %v7662 = vpack.c.b16 %v6242, %v6238
        %v7663 = vpack.c.b16 %v6243, %v6239
        %v7664 = vpack.c.b16 %v6248, %v6244
        %v7665 = vpack.c.b16 %v6249, %v6245
        %v7666 = vpack.c.b16 %v6250, %v6246
        %v7667 = vpack.c.b16 %v6251, %v6247
        %v7668 = vpack.c.b16 %v6256, %v6252
        %v7669 = vpack.c.b16 %v6257, %v6253
        %v7670 = vpack.c.b16 %v6258, %v6254
        %v7671 = vpack.c.b16 %v6259, %v6255
        %v7672 = vpack.c.b16 %v6264, %v6260
        %v7673 = vpack.c.b16 %v6265, %v6261
        %v7674 = vpack.c.b16 %v6266, %v6262
        %v7675 = vpack.c.b16 %v6267, %v6263
        %v7676 = vpack.c.b16 %v6272, %v6268
        %v7677 = vpack.c.b16 %v6273, %v6269
        %v7678 = vpack.c.b16 %v6274, %v6270
        %v7679 = vpack.c.b16 %v6275, %v6271
        %v7680 = vpack.c.b16 %v6280, %v6276
        %v7681 = vpack.c.b16 %v6281, %v6277
        %v7682 = vpack.c.b16 %v6282, %v6278
        %v7683 = vpack.c.b16 %v6283, %v6279
        %v7684 = vpack.c.b16 %v6288, %v6284
        %v7685 = vpack.c.b16 %v6289, %v6285
        %v7686 = vpack.c.b16 %v6290, %v6286
        %v7687 = vpack.c.b16 %v6291, %v6287
        %v7688 = vpack.c.b16 %v6296, %v6292
        %v7689 = vpack.c.b16 %v6297, %v6293
        %v7690 = vpack.c.b16 %v6298, %v6294
        %v7691 = vpack.c.b16 %v6299, %v6295
        %v7692 = vpack.c.b16 %v6304, %v6300
        %v7693 = vpack.c.b16 %v6305, %v6301
        %v7694 = vpack.c.b16 %v6306, %v6302
        %v7695 = vpack.c.b16 %v6307, %v6303
        %v7696 = vpack.c.b16 %v6312, %v6308
        %v7697 = vpack.c.b16 %v6313, %v6309
        %v7698 = vpack.c.b16 %v6314, %v6310
        %v7699 = vpack.c.b16 %v6315, %v6311
        %v7700 = vpack.c.b16 %v6320, %v6316
        %v7701 = vpack.c.b16 %v6321, %v6317
        %v7702 = vpack.c.b16 %v6322, %v6318
        %v7703 = vpack.c.b16 %v6323, %v6319
        %v7704 = vpack.c.b16 %v6328, %v6324
        %v7705 = vpack.c.b16 %v6329, %v6325
        %v7706 = vpack.c.b16 %v6330, %v6326
        %v7707 = vpack.c.b16 %v6331, %v6327
        %v7708 = vpack.c.b16 %v6336, %v6332
        %v7709 = vpack.c.b16 %v6337, %v6333
        %v7710 = vpack.c.b16 %v6338, %v6334
        %v7711 = vpack.c.b16 %v6339, %v6335
        %v7712 = vpack.c.b16 %v6344, %v6340
        %v7713 = vpack.c.b16 %v6345, %v6341
        %v7714 = vpack.c.b16 %v6346, %v6342
        %v7715 = vpack.c.b16 %v6347, %v6343
        %v7716 = vpack.c.b16 %v6352, %v6348
        %v7717 = vpack.c.b16 %v6353, %v6349
        %v7718 = vpack.c.b16 %v6354, %v6350
        %v7719 = vpack.c.b16 %v6355, %v6351
        %v7720 = vpack.c.b16 %v6360, %v6356
        %v7721 = vpack.c.b16 %v6361, %v6357
        %v7722 = vpack.c.b16 %v6362, %v6358
        %v7723 = vpack.c.b16 %v6363, %v6359
        %v7724 = vpack.c.b16 %v6368, %v6364
        %v7725 = vpack.c.b16 %v6369, %v6365
        %v7726 = vpack.c.b16 %v6370, %v6366
        %v7727 = vpack.c.b16 %v6371, %v6367
        %v7728 = vpack.c.b16 %v6376, %v6372
        %v7729 = vpack.c.b16 %v6377, %v6373
        %v7730 = vpack.c.b16 %v6378, %v6374
        %v7731 = vpack.c.b16 %v6379, %v6375
        %v7732 = vpack.c.b16 %v6384, %v6380
        %v7733 = vpack.c.b16 %v6385, %v6381
        %v7734 = vpack.c.b16 %v6386, %v6382
        %v7735 = vpack.c.b16 %v6387, %v6383
        %v7736 = vpack.c.b16 %v6392, %v6388
        %v7737 = vpack.c.b16 %v6393, %v6389
        %v7738 = vpack.c.b16 %v6394, %v6390
        %v7739 = vpack.c.b16 %v6395, %v6391
        %v7740 = vpack.c.b16 %v6400, %v6396
        %v7741 = vpack.c.b16 %v6401, %v6397
        %v7742 = vpack.c.b16 %v6402, %v6398
        %v7743 = vpack.c.b16 %v6403, %v6399
        %v7744 = vpack.c.b16 %v6408, %v6404
        %v7745 = vpack.c.b16 %v6409, %v6405
        %v7746 = vpack.c.b16 %v6410, %v6406
        %v7747 = vpack.c.b16 %v6411, %v6407
        %v7748 = vpack.c.b16 %v6416, %v6412
        %v7749 = vpack.c.b16 %v6417, %v6413
        %v7750 = vpack.c.b16 %v6418, %v6414
        %v7751 = vpack.c.b16 %v6419, %v6415
        %v7752 = vpack.c.b16 %v6424, %v6420
        %v7753 = vpack.c.b16 %v6425, %v6421
        %v7754 = vpack.c.b16 %v6426, %v6422
        %v7755 = vpack.c.b16 %v6427, %v6423
        %v7756 = vpack.c.b16 %v6432, %v6428
        %v7757 = vpack.c.b16 %v6433, %v6429
        %v7758 = vpack.c.b16 %v6434, %v6430
        %v7759 = vpack.c.b16 %v6435, %v6431
        %v7760 = vpack.c.b16 %v6440, %v6436
        %v7761 = vpack.c.b16 %v6441, %v6437
        %v7762 = vpack.c.b16 %v6442, %v6438
        %v7763 = vpack.c.b16 %v6443, %v6439
        %v7764 = vpack.c.b16 %v6448, %v6444
        %v7765 = vpack.c.b16 %v6449, %v6445
        %v7766 = vpack.c.b16 %v6450, %v6446
        %v7767 = vpack.c.b16 %v6451, %v6447
        %v7768 = vpack.c.b16 %v6456, %v6452
        %v7769 = vpack.c.b16 %v6457, %v6453
        %v7770 = vpack.c.b16 %v6458, %v6454
        %v7771 = vpack.c.b16 %v6459, %v6455
        %v7772 = vpack.c.b16 %v6464, %v6460
        %v7773 = vpack.c.b16 %v6465, %v6461
        %v7774 = vpack.c.b16 %v6466, %v6462
        %v7775 = vpack.c.b16 %v6467, %v6463
        %v7776 = vpack.c.b16 %v6472, %v6468
        %v7777 = vpack.c.b16 %v6473, %v6469
        %v7778 = vpack.c.b16 %v6474, %v6470
        %v7779 = vpack.c.b16 %v6475, %v6471
        %v7780 = vpack.c.b16 %v6480, %v6476
        %v7781 = vpack.c.b16 %v6481, %v6477
        %v7782 = vpack.c.b16 %v6482, %v6478
        %v7783 = vpack.c.b16 %v6483, %v6479
        %v7784 = vpack.c.b16 %v6488, %v6484
        %v7785 = vpack.c.b16 %v6489, %v6485
        %v7786 = vpack.c.b16 %v6490, %v6486
        %v7787 = vpack.c.b16 %v6491, %v6487
        %v7788 = vpack.c.b16 %v6496, %v6492
        %v7789 = vpack.c.b16 %v6497, %v6493
        %v7790 = vpack.c.b16 %v6498, %v6494
        %v7791 = vpack.c.b16 %v6499, %v6495
        %v7792 = vpack.c.b16 %v6504, %v6500
        %v7793 = vpack.c.b16 %v6505, %v6501
        %v7794 = vpack.c.b16 %v6506, %v6502
        %v7795 = vpack.c.b16 %v6507, %v6503
        %v7796 = vpack.c.b16 %v6512, %v6508
        %v7797 = vpack.c.b16 %v6513, %v6509
        %v7798 = vpack.c.b16 %v6514, %v6510
        %v7799 = vpack.c.b16 %v6515, %v6511
        %v7800 = vpack.c.b16 %v6520, %v6516
        %v7801 = vpack.c.b16 %v6521, %v6517
        %v7802 = vpack.c.b16 %v6522, %v6518
        %v7803 = vpack.c.b16 %v6523, %v6519
        %v7804 = vpack.c.b16 %v6528, %v6524
        %v7805 = vpack.c.b16 %v6529, %v6525
        %v7806 = vpack.c.b16 %v6530, %v6526
        %v7807 = vpack.c.b16 %v6531, %v6527
        %v7808 = vpack.c.b16 %v6536, %v6532
        %v7809 = vpack.c.b16 %v6537, %v6533
        %v7810 = vpack.c.b16 %v6538, %v6534
        %v7811 = vpack.c.b16 %v6539, %v6535
        %v7812 = vpack.c.b16 %v6544, %v6540
        %v7813 = vpack.c.b16 %v6545, %v6541
        %v7814 = vpack.c.b16 %v6546, %v6542
        %v7815 = vpack.c.b16 %v6547, %v6543
        %v7816 = vpack.c.b16 %v6552, %v6548
        %v7817 = vpack.c.b16 %v6553, %v6549
        %v7818 = vpack.c.b16 %v6554, %v6550
        %v7819 = vpack.c.b16 %v6555, %v6551
        %v7820 = vpack.c.b16 %v6560, %v6556
        %v7821 = vpack.c.b16 %v6561, %v6557
        %v7822 = vpack.c.b16 %v6562, %v6558
        %v7823 = vpack.c.b16 %v6563, %v6559
        %v7824 = vpack.c.b16 %v6568, %v6564
        %v7825 = vpack.c.b16 %v6569, %v6565
        %v7826 = vpack.c.b16 %v6570, %v6566
        %v7827 = vpack.c.b16 %v6571, %v6567
        %v7828 = vpack.c.b16 %v6576, %v6572
        %v7829 = vpack.c.b16 %v6577, %v6573
        %v7830 = vpack.c.b16 %v6578, %v6574
        %v7831 = vpack.c.b16 %v6579, %v6575
        %v7832 = vpack.c.b16 %v6584, %v6580
        %v7833 = vpack.c.b16 %v6585, %v6581
        %v7834 = vpack.c.b16 %v6586, %v6582
        %v7835 = vpack.c.b16 %v6587, %v6583
        %v7836 = vpack.c.b16 %v6592, %v6588
        %v7837 = vpack.c.b16 %v6593, %v6589
        %v7838 = vpack.c.b16 %v6594, %v6590
        %v7839 = vpack.c.b16 %v6595, %v6591
        %v7840 = vpack.c.b16 %v6600, %v6596
        %v7841 = vpack.c.b16 %v6601, %v6597
        %v7842 = vpack.c.b16 %v6602, %v6598
        %v7843 = vpack.c.b16 %v6603, %v6599
        %v7844 = vpack.c.b16 %v6608, %v6604
        %v7845 = vpack.c.b16 %v6609, %v6605
        %v7846 = vpack.c.b16 %v6610, %v6606
        %v7847 = vpack.c.b16 %v6611, %v6607
        %v7848 = vpack.c.b16 %v6616, %v6612
        %v7849 = vpack.c.b16 %v6617, %v6613
        %v7850 = vpack.c.b16 %v6618, %v6614
        %v7851 = vpack.c.b16 %v6619, %v6615
        %v7852 = vpack.c.b16 %v6624, %v6620
        %v7853 = vpack.c.b16 %v6625, %v6621
        %v7854 = vpack.c.b16 %v6626, %v6622
        %v7855 = vpack.c.b16 %v6627, %v6623
        %v7856 = vpack.c.b16 %v6632, %v6628
        %v7857 = vpack.c.b16 %v6633, %v6629
        %v7858 = vpack.c.b16 %v6634, %v6630
        %v7859 = vpack.c.b16 %v6635, %v6631
        %v7860 = vpack.c.b16 %v6640, %v6636
        %v7861 = vpack.c.b16 %v6641, %v6637
        %v7862 = vpack.c.b16 %v6642, %v6638
        %v7863 = vpack.c.b16 %v6643, %v6639
        %v7864 = vpack.c.b16 %v6648, %v6644
        %v7865 = vpack.c.b16 %v6649, %v6645
        %v7866 = vpack.c.b16 %v6650, %v6646
        %v7867 = vpack.c.b16 %v6651, %v6647
        %v7868 = vpack.c.b16 %v6656, %v6652
        %v7869 = vpack.c.b16 %v6657, %v6653
        %v7870 = vpack.c.b16 %v6658, %v6654
        %v7871 = vpack.c.b16 %v6659, %v6655
        %v7872 = vpack.c.b16 %v6664, %v6660
        %v7873 = vpack.c.b16 %v6665, %v6661
        %v7874 = vpack.c.b16 %v6666, %v6662
        %v7875 = vpack.c.b16 %v6667, %v6663
        %v7876 = vpack.c.b16 %v6672, %v6668
        %v7877 = vpack.c.b16 %v6673, %v6669
        %v7878 = vpack.c.b16 %v6674, %v6670
        %v7879 = vpack.c.b16 %v6675, %v6671
        %v7880 = vpack.c.b16 %v6680, %v6676
        %v7881 = vpack.c.b16 %v6681, %v6677
        %v7882 = vpack.c.b16 %v6682, %v6678
        %v7883 = vpack.c.b16 %v6683, %v6679
        %v7884 = vpack.c.b16 %v6688, %v6684
        %v7885 = vpack.c.b16 %v6689, %v6685
        %v7886 = vpack.c.b16 %v6690, %v6686
        %v7887 = vpack.c.b16 %v6691, %v6687
        %v7888 = vpack.c.b16 %v6696, %v6692
        %v7889 = vpack.c.b16 %v6697, %v6693
        %v7890 = vpack.c.b16 %v6698, %v6694
        %v7891 = vpack.c.b16 %v6699, %v6695
        %v7892 = vpack.c.b16 %v6704, %v6700
        %v7893 = vpack.c.b16 %v6705, %v6701
        %v7894 = vpack.c.b16 %v6706, %v6702
        %v7895 = vpack.c.b16 %v6707, %v6703
        %v7896 = vpack.c.b16 %v6712, %v6708
        %v7897 = vpack.c.b16 %v6713, %v6709
        %v7898 = vpack.c.b16 %v6714, %v6710
        %v7899 = vpack.c.b16 %v6715, %v6711
        %v7900 = vpack.c.b16 %v6720, %v6716
        %v7901 = vpack.c.b16 %v6721, %v6717
        %v7902 = vpack.c.b16 %v6722, %v6718
        %v7903 = vpack.c.b16 %v6723, %v6719
        %v7904 = vpack.c.b16 %v6728, %v6724
        %v7905 = vpack.c.b16 %v6729, %v6725
        %v7906 = vpack.c.b16 %v6730, %v6726
        %v7907 = vpack.c.b16 %v6731, %v6727
        %v7908 = vpack.c.b16 %v6736, %v6732
        %v7909 = vpack.c.b16 %v6737, %v6733
        %v7910 = vpack.c.b16 %v6738, %v6734
        %v7911 = vpack.c.b16 %v6739, %v6735
        %v7912 = vpack.c.b16 %v6744, %v6740
        %v7913 = vpack.c.b16 %v6745, %v6741
        %v7914 = vpack.c.b16 %v6746, %v6742
        %v7915 = vpack.c.b16 %v6747, %v6743
        %v7916 = vpack.c.b16 %v6752, %v6748
        %v7917 = vpack.c.b16 %v6753, %v6749
        %v7918 = vpack.c.b16 %v6754, %v6750
        %v7919 = vpack.c.b16 %v6755, %v6751
        %v7920 = vpack.c.b16 %v6760, %v6756
        %v7921 = vpack.c.b16 %v6761, %v6757
        %v7922 = vpack.c.b16 %v6762, %v6758
        %v7923 = vpack.c.b16 %v6763, %v6759
        %v7924 = vpack.c.b16 %v6768, %v6764
        %v7925 = vpack.c.b16 %v6769, %v6765
        %v7926 = vpack.c.b16 %v6770, %v6766
        %v7927 = vpack.c.b16 %v6771, %v6767
        %v7928 = vpack.c.b16 %v6776, %v6772
        %v7929 = vpack.c.b16 %v6777, %v6773
        %v7930 = vpack.c.b16 %v6778, %v6774
        %v7931 = vpack.c.b16 %v6779, %v6775
        %v7932 = vpack.c.b16 %v6784, %v6780
        %v7933 = vpack.c.b16 %v6785, %v6781
        %v7934 = vpack.c.b16 %v6786, %v6782
        %v7935 = vpack.c.b16 %v6787, %v6783
        %v7936 = vpack.c.b16 %v6792, %v6788
        %v7937 = vpack.c.b16 %v6793, %v6789
        %v7938 = vpack.c.b16 %v6794, %v6790
        %v7939 = vpack.c.b16 %v6795, %v6791
        %v7940 = vpack.c.b16 %v6800, %v6796
        %v7941 = vpack.c.b16 %v6801, %v6797
        %v7942 = vpack.c.b16 %v6802, %v6798
        %v7943 = vpack.c.b16 %v6803, %v6799
        %v7944 = vpack.c.b16 %v6808, %v6804
        %v7945 = vpack.c.b16 %v6809, %v6805
        %v7946 = vpack.c.b16 %v6810, %v6806
        %v7947 = vpack.c.b16 %v6811, %v6807
        %v7948 = vpack.c.b16 %v6816, %v6812
        %v7949 = vpack.c.b16 %v6817, %v6813
        %v7950 = vpack.c.b16 %v6818, %v6814
        %v7951 = vpack.c.b16 %v6819, %v6815
        %v7952 = vpack.c.b16 %v6824, %v6820
        %v7953 = vpack.c.b16 %v6825, %v6821
        %v7954 = vpack.c.b16 %v6826, %v6822
        %v7955 = vpack.c.b16 %v6827, %v6823
        %v7956 = vpack.c.b16 %v6832, %v6828
        %v7957 = vpack.c.b16 %v6833, %v6829
        %v7958 = vpack.c.b16 %v6834, %v6830
        %v7959 = vpack.c.b16 %v6835, %v6831
        %v7960 = vpack.c.b16 %v6840, %v6836
        %v7961 = vpack.c.b16 %v6841, %v6837
        %v7962 = vpack.c.b16 %v6842, %v6838
        %v7963 = vpack.c.b16 %v6843, %v6839
        %v7964 = vpack.c.b16 %v6848, %v6844
        %v7965 = vpack.c.b16 %v6849, %v6845
        %v7966 = vpack.c.b16 %v6850, %v6846
        %v7967 = vpack.c.b16 %v6851, %v6847
        %v7968 = vpack.c.b16 %v6856, %v6852
        %v7969 = vpack.c.b16 %v6857, %v6853
        %v7970 = vpack.c.b16 %v6858, %v6854
        %v7971 = vpack.c.b16 %v6859, %v6855
        %v7972 = vpack.c.b16 %v6864, %v6860
        %v7973 = vpack.c.b16 %v6865, %v6861
        %v7974 = vpack.c.b16 %v6866, %v6862
        %v7975 = vpack.c.b16 %v6867, %v6863
        %v7976 = vpack.c.b16 %v6872, %v6868
        %v7977 = vpack.c.b16 %v6873, %v6869
        %v7978 = vpack.c.b16 %v6874, %v6870
        %v7979 = vpack.c.b16 %v6875, %v6871
        %v7980 = vpack.c.b16 %v6880, %v6876
        %v7981 = vpack.c.b16 %v6881, %v6877
        %v7982 = vpack.c.b16 %v6882, %v6878
        %v7983 = vpack.c.b16 %v6883, %v6879
        %v7984 = vpack.c.b16 %v6888, %v6884
        %v7985 = vpack.c.b16 %v6889, %v6885
        %v7986 = vpack.c.b16 %v6890, %v6886
        %v7987 = vpack.c.b16 %v6891, %v6887
        %v7988 = vpack.c.b16 %v6896, %v6892
        %v7989 = vpack.c.b16 %v6897, %v6893
        %v7990 = vpack.c.b16 %v6898, %v6894
        %v7991 = vpack.c.b16 %v6899, %v6895
        %v7992 = vpack.c.b16 %v6904, %v6900
        %v7993 = vpack.c.b16 %v6905, %v6901
        %v7994 = vpack.c.b16 %v6906, %v6902
        %v7995 = vpack.c.b16 %v6907, %v6903
        %v7996 = vpack.c.b16 %v6912, %v6908
        %v7997 = vpack.c.b16 %v6913, %v6909
        %v7998 = vpack.c.b16 %v6914, %v6910
        %v7999 = vpack.c.b16 %v6915, %v6911
        %v8000 = vpack.c.b16 %v6920, %v6916
        %v8001 = vpack.c.b16 %v6921, %v6917
        %v8002 = vpack.c.b16 %v6922, %v6918
        %v8003 = vpack.c.b16 %v6923, %v6919
        %v8004 = vpack.c.b16 %v6928, %v6924
        %v8005 = vpack.c.b16 %v6929, %v6925
        %v8006 = vpack.c.b16 %v6930, %v6926
        %v8007 = vpack.c.b16 %v6931, %v6927
        %v8008 = vpack.c.b16 %v6936, %v6932
        %v8009 = vpack.c.b16 %v6937, %v6933
        %v8010 = vpack.c.b16 %v6938, %v6934
        %v8011 = vpack.c.b16 %v6939, %v6935
        %v8012 = vpack.c.b16 %v6944, %v6940
        %v8013 = vpack.c.b16 %v6945, %v6941
        %v8014 = vpack.c.b16 %v6946, %v6942
        %v8015 = vpack.c.b16 %v6947, %v6943
        %v8016 = vpack.c.b16 %v6952, %v6948
        %v8017 = vpack.c.b16 %v6953, %v6949
        %v8018 = vpack.c.b16 %v6954, %v6950
        %v8019 = vpack.c.b16 %v6955, %v6951
        %v8020 = vpack.c.b16 %v6960, %v6956
        %v8021 = vpack.c.b16 %v6961, %v6957
        %v8022 = vpack.c.b16 %v6962, %v6958
        %v8023 = vpack.c.b16 %v6963, %v6959
        %v8024 = vpack.c.b16 %v6968, %v6964
        %v8025 = vpack.c.b16 %v6969, %v6965
        %v8026 = vpack.c.b16 %v6970, %v6966
        %v8027 = vpack.c.b16 %v6971, %v6967
        %v8028 = vpack.c.b16 %v6976, %v6972
        %v8029 = vpack.c.b16 %v6977, %v6973
        %v8030 = vpack.c.b16 %v6978, %v6974
        %v8031 = vpack.c.b16 %v6979, %v6975
        %v8032 = vpack.c.b16 %v6984, %v6980
        %v8033 = vpack.c.b16 %v6985, %v6981
        %v8034 = vpack.c.b16 %v6986, %v6982
        %v8035 = vpack.c.b16 %v6987, %v6983
        %v8036 = vpack.c.b16 %v6992, %v6988
        %v8037 = vpack.c.b16 %v6993, %v6989
        %v8038 = vpack.c.b16 %v6994, %v6990
        %v8039 = vpack.c.b16 %v6995, %v6991
        %v8040 = vpack.c.b16 %v7000, %v6996
        %v8041 = vpack.c.b16 %v7001, %v6997
        %v8042 = vpack.c.b16 %v7002, %v6998
        %v8043 = vpack.c.b16 %v7003, %v6999
        %v8044 = vpack.c.b16 %v7008, %v7004
        %v8045 = vpack.c.b16 %v7009, %v7005
        %v8046 = vpack.c.b16 %v7010, %v7006
        %v8047 = vpack.c.b16 %v7011, %v7007
        %v8048 = vpack.c.b16 %v7016, %v7012
        %v8049 = vpack.c.b16 %v7017, %v7013
        %v8050 = vpack.c.b16 %v7018, %v7014
        %v8051 = vpack.c.b16 %v7019, %v7015
        %v8052 = vpack.c.b16 %v7024, %v7020
        %v8053 = vpack.c.b16 %v7025, %v7021
        %v8054 = vpack.c.b16 %v7026, %v7022
        %v8055 = vpack.c.b16 %v7027, %v7023
        %v8056 = vpack.c.b16 %v7032, %v7028
        %v8057 = vpack.c.b16 %v7033, %v7029
        %v8058 = vpack.c.b16 %v7034, %v7030
        %v8059 = vpack.c.b16 %v7035, %v7031
        %v8060 = vpack.c.b16 %v7040, %v7036
        %v8061 = vpack.c.b16 %v7041, %v7037
        %v8062 = vpack.c.b16 %v7042, %v7038
        %v8063 = vpack.c.b16 %v7043, %v7039
        %v8064 = vpack.c.b16 %v7048, %v7044
        %v8065 = vpack.c.b16 %v7049, %v7045
        %v8066 = vpack.c.b16 %v7050, %v7046
        %v8067 = vpack.c.b16 %v7051, %v7047
        %v8068 = vpack.c.b16 %v7056, %v7052
        %v8069 = vpack.c.b16 %v7057, %v7053
        %v8070 = vpack.c.b16 %v7058, %v7054
        %v8071 = vpack.c.b16 %v7059, %v7055
        %v8072 = vpack.c.b16 %v7064, %v7060
        %v8073 = vpack.c.b16 %v7065, %v7061
        %v8074 = vpack.c.b16 %v7066, %v7062
        %v8075 = vpack.c.b16 %v7067, %v7063
        %v8076 = vpack.c.b16 %v7072, %v7068
        %v8077 = vpack.c.b16 %v7073, %v7069
        %v8078 = vpack.c.b16 %v7074, %v7070
        %v8079 = vpack.c.b16 %v7075, %v7071
        %v8080 = vpack.c.b16 %v7080, %v7076
        %v8081 = vpack.c.b16 %v7081, %v7077
        %v8082 = vpack.c.b16 %v7082, %v7078
        %v8083 = vpack.c.b16 %v7083, %v7079
        %v8084 = vpack.c.b16 %v7088, %v7084
        %v8085 = vpack.c.b16 %v7089, %v7085
        %v8086 = vpack.c.b16 %v7090, %v7086
        %v8087 = vpack.c.b16 %v7091, %v7087
        %v8088 = vpack.c.b16 %v7096, %v7092
        %v8089 = vpack.c.b16 %v7097, %v7093
        %v8090 = vpack.c.b16 %v7098, %v7094
        %v8091 = vpack.c.b16 %v7099, %v7095
        %v8092 = vpack.c.b16 %v7104, %v7100
        %v8093 = vpack.c.b16 %v7105, %v7101
        %v8094 = vpack.c.b16 %v7106, %v7102
        %v8095 = vpack.c.b16 %v7107, %v7103
        %v8096 = vpack.c.b16 %v7112, %v7108
        %v8097 = vpack.c.b16 %v7113, %v7109
        %v8098 = vpack.c.b16 %v7114, %v7110
        %v8099 = vpack.c.b16 %v7115, %v7111
        %v8100 = vpack.c.b16 %v7120, %v7116
        %v8101 = vpack.c.b16 %v7121, %v7117
        %v8102 = vpack.c.b16 %v7122, %v7118
        %v8103 = vpack.c.b16 %v7123, %v7119
        %v8104 = vpack.c.b16 %v7128, %v7124
        %v8105 = vpack.c.b16 %v7129, %v7125
        %v8106 = vpack.c.b16 %v7130, %v7126
        %v8107 = vpack.c.b16 %v7131, %v7127
        %v8108 = vpack.c.b16 %v7136, %v7132
        %v8109 = vpack.c.b16 %v7137, %v7133
        %v8110 = vpack.c.b16 %v7138, %v7134
        %v8111 = vpack.c.b16 %v7139, %v7135
        %v8112 = vpack.c.b16 %v7144, %v7140
        %v8113 = vpack.c.b16 %v7145, %v7141
        %v8114 = vpack.c.b16 %v7146, %v7142
        %v8115 = vpack.c.b16 %v7147, %v7143
        %v8116 = vpack.c.b16 %v7152, %v7148
        %v8117 = vpack.c.b16 %v7153, %v7149
        %v8118 = vpack.c.b16 %v7154, %v7150
        %v8119 = vpack.c.b16 %v7155, %v7151
        %v8120 = vpack.c.b16 %v7160, %v7156
        %v8121 = vpack.c.b16 %v7161, %v7157
        %v8122 = vpack.c.b16 %v7162, %v7158
        %v8123 = vpack.c.b16 %v7163, %v7159
        %v8124 = vpack.c.b16 %v7168, %v7164
        %v8125 = vpack.c.b16 %v7169, %v7165
        %v8126 = vpack.c.b16 %v7170, %v7166
        %v8127 = vpack.c.b16 %v7171, %v7167
        %v8128 = vpack.c.b16 %v7176, %v7172
        %v8129 = vpack.c.b16 %v7177, %v7173
        %v8130 = vpack.c.b16 %v7178, %v7174
        %v8131 = vpack.c.b16 %v7179, %v7175
        %v8132 = vpack.c.b16 %v7184, %v7180
        %v8133 = vpack.c.b16 %v7185, %v7181
        %v8134 = vpack.c.b16 %v7186, %v7182
        %v8135 = vpack.c.b16 %v7187, %v7183
        %v8136 = vpack.c.b16 %v7192, %v7188
        %v8137 = vpack.c.b16 %v7193, %v7189
        %v8138 = vpack.c.b16 %v7194, %v7190
        %v8139 = vpack.c.b16 %v7195, %v7191
        %v8140 = vpack.c.b16 %v7200, %v7196
        %v8141 = vpack.c.b16 %v7201, %v7197
        %v8142 = vpack.c.b16 %v7202, %v7198
        %v8143 = vpack.c.b16 %v7203, %v7199
        %v8144 = vpack.c.b16 %v7208, %v7204
        %v8145 = vpack.c.b16 %v7209, %v7205
        %v8146 = vpack.c.b16 %v7210, %v7206
        %v8147 = vpack.c.b16 %v7211, %v7207
        %v8148 = vpack.c.b16 %v7216, %v7212
        %v8149 = vpack.c.b16 %v7217, %v7213
        %v8150 = vpack.c.b16 %v7218, %v7214
        %v8151 = vpack.c.b16 %v7219, %v7215
        %v8152 = vpack.c.b16 %v7224, %v7220
        %v8153 = vpack.c.b16 %v7225, %v7221
        %v8154 = vpack.c.b16 %v7226, %v7222
        %v8155 = vpack.c.b16 %v7227, %v7223
        %v8156 = vpack.c.b16 %v7232, %v7228
        %v8157 = vpack.c.b16 %v7233, %v7229
        %v8158 = vpack.c.b16 %v7234, %v7230
        %v8159 = vpack.c.b16 %v7235, %v7231
        %v8160 = vpack.c.b16 %v7240, %v7236
        %v8161 = vpack.c.b16 %v7241, %v7237
        %v8162 = vpack.c.b16 %v7242, %v7238
        %v8163 = vpack.c.b16 %v7243, %v7239
        %v8164 = vpack.c.b16 %v7248, %v7244
        %v8165 = vpack.c.b16 %v7249, %v7245
        %v8166 = vpack.c.b16 %v7250, %v7246
        %v8167 = vpack.c.b16 %v7251, %v7247
        %v8168 = vpack.c.b16 %v7256, %v7252
        %v8169 = vpack.c.b16 %v7257, %v7253
        %v8170 = vpack.c.b16 %v7258, %v7254
        %v8171 = vpack.c.b16 %v7259, %v7255
        %v8172 = vpack.c.b16 %v7264, %v7260
        %v8173 = vpack.c.b16 %v7265, %v7261
        %v8174 = vpack.c.b16 %v7266, %v7262
        %v8175 = vpack.c.b16 %v7267, %v7263
        %v8176 = vpack.c.b16 %v7272, %v7268
        %v8177 = vpack.c.b16 %v7273, %v7269
        %v8178 = vpack.c.b16 %v7274, %v7270
        %v8179 = vpack.c.b16 %v7275, %v7271
        %v8180 = vpack.c.b16 %v7280, %v7276
        %v8181 = vpack.c.b16 %v7281, %v7277
        %v8182 = vpack.c.b16 %v7282, %v7278
        %v8183 = vpack.c.b16 %v7283, %v7279
        %v8184 = vpack.c.b16 %v7288, %v7284
        %v8185 = vpack.c.b16 %v7289, %v7285
        %v8186 = vpack.c.b16 %v7290, %v7286
        %v8187 = vpack.c.b16 %v7291, %v7287
        %v8188 = vpack.c.b16 %v7296, %v7292
        %v8189 = vpack.c.b16 %v7297, %v7293
        %v8190 = vpack.c.b16 %v7298, %v7294
        %v8191 = vpack.c.b16 %v7299, %v7295
        %v8192 = vpack.c.b16 %v7304, %v7300
        %v8193 = vpack.c.b16 %v7305, %v7301
        %v8194 = vpack.c.b16 %v7306, %v7302
        %v8195 = vpack.c.b16 %v7307, %v7303
        %v8196 = vpack.c.b16 %v7312, %v7308
        %v8197 = vpack.c.b16 %v7313, %v7309
        %v8198 = vpack.c.b16 %v7314, %v7310
        %v8199 = vpack.c.b16 %v7315, %v7311
        %v8200 = vpack.c.b16 %v7320, %v7316
        %v8201 = vpack.c.b16 %v7321, %v7317
        %v8202 = vpack.c.b16 %v7322, %v7318
        %v8203 = vpack.c.b16 %v7323, %v7319
        %v8204 = vpack.c.b16 %v7328, %v7324
        %v8205 = vpack.c.b16 %v7329, %v7325
        %v8206 = vpack.c.b16 %v7330, %v7326
        %v8207 = vpack.c.b16 %v7331, %v7327
        %v8208 = vpack.c.b16 %v7336, %v7332
        %v8209 = vpack.c.b16 %v7337, %v7333
        %v8210 = vpack.c.b16 %v7338, %v7334
        %v8211 = vpack.c.b16 %v7339, %v7335
        %v8212 = vpack.c.b16 %v7344, %v7340
        %v8213 = vpack.c.b16 %v7345, %v7341
        %v8214 = vpack.c.b16 %v7346, %v7342
        %v8215 = vpack.c.b16 %v7347, %v7343
        %v8216 = vpack.c.b16 %v7352, %v7348
        %v8217 = vpack.c.b16 %v7353, %v7349
        %v8218 = vpack.c.b16 %v7354, %v7350
        %v8219 = vpack.c.b16 %v7355, %v7351
        %v8220 = vpack.c.b16 %v7360, %v7356
        %v8221 = vpack.c.b16 %v7361, %v7357
        %v8222 = vpack.c.b16 %v7362, %v7358
        %v8223 = vpack.c.b16 %v7363, %v7359
        %v8224 = vpack.c.b16 %v7368, %v7364
        %v8225 = vpack.c.b16 %v7369, %v7365
        %v8226 = vpack.c.b16 %v7370, %v7366
        %v8227 = vpack.c.b16 %v7371, %v7367
        %v8228 = vpack.c.b16 %v7376, %v7372
        %v8229 = vpack.c.b16 %v7377, %v7373
        %v8230 = vpack.c.b16 %v7378, %v7374
        %v8231 = vpack.c.b16 %v7379, %v7375
        %v8232 = vpack.c.b16 %v7384, %v7380
        %v8233 = vpack.c.b16 %v7385, %v7381
        %v8234 = vpack.c.b16 %v7386, %v7382
        %v8235 = vpack.c.b16 %v7387, %v7383
        %v8236 = vpack.c.b16 %v7392, %v7388
        %v8237 = vpack.c.b16 %v7393, %v7389
        %v8238 = vpack.c.b16 %v7394, %v7390
        %v8239 = vpack.c.b16 %v7395, %v7391
        %v8240 = vpack.c.b16 %v7400, %v7396
        %v8241 = vpack.c.b16 %v7401, %v7397
        %v8242 = vpack.c.b16 %v7402, %v7398
        %v8243 = vpack.c.b16 %v7403, %v7399
        %v8244 = vpack.c.b16 %v7408, %v7404
        %v8245 = vpack.c.b16 %v7409, %v7405
        %v8246 = vpack.c.b16 %v7410, %v7406
        %v8247 = vpack.c.b16 %v7411, %v7407
        %v8248 = vpack.c.b16 %v7416, %v7412
        %v8249 = vpack.c.b16 %v7417, %v7413
        %v8250 = vpack.c.b16 %v7418, %v7414
        %v8251 = vpack.c.b16 %v7419, %v7415
        %v8252 = vpack.c.b16 %v7424, %v7420
        %v8253 = vpack.c.b16 %v7425, %v7421
        %v8254 = vpack.c.b16 %v7426, %v7422
        %v8255 = vpack.c.b16 %v7427, %v7423
        %v8256 = vpack.c.b16 %v7432, %v7428
        %v8257 = vpack.c.b16 %v7433, %v7429
        %v8258 = vpack.c.b16 %v7434, %v7430
        %v8259 = vpack.c.b16 %v7435, %v7431
        %v8260 = vpack.c.b16 %v7440, %v7436
        %v8261 = vpack.c.b16 %v7441, %v7437
        %v8262 = vpack.c.b16 %v7442, %v7438
        %v8263 = vpack.c.b16 %v7443, %v7439
        %v8264 = vpack.c.b16 %v7448, %v7444
        %v8265 = vpack.c.b16 %v7449, %v7445
        %v8266 = vpack.c.b16 %v7450, %v7446
        %v8267 = vpack.c.b16 %v7451, %v7447
        %v8268 = vpack.c.b16 %v7456, %v7452
        %v8269 = vpack.c.b16 %v7457, %v7453
        %v8270 = vpack.c.b16 %v7458, %v7454
        %v8271 = vpack.c.b16 %v7459, %v7455
        %v8272 = vpack.c.b16 %v7464, %v7460
        %v8273 = vpack.c.b16 %v7465, %v7461
        %v8274 = vpack.c.b16 %v7466, %v7462
        %v8275 = vpack.c.b16 %v7467, %v7463
        %v8276 = vpack.c.b16 %v7472, %v7468
        %v8277 = vpack.c.b16 %v7473, %v7469
        %v8278 = vpack.c.b16 %v7474, %v7470
        %v8279 = vpack.c.b16 %v7475, %v7471
        %v8280 = vpack.c.b16 %v7480, %v7476
        %v8281 = vpack.c.b16 %v7481, %v7477
        %v8282 = vpack.c.b16 %v7482, %v7478
        %v8283 = vpack.c.b16 %v7483, %v7479
        %v8284 = vpack.c.b16 %v7488, %v7484
        %v8285 = vpack.c.b16 %v7489, %v7485
        %v8286 = vpack.c.b16 %v7490, %v7486
        %v8287 = vpack.c.b16 %v7491, %v7487
        %v8288 = vpack.c.b16 %v7496, %v7492
        %v8289 = vpack.c.b16 %v7497, %v7493
        %v8290 = vpack.c.b16 %v7498, %v7494
        %v8291 = vpack.c.b16 %v7499, %v7495
        %v8292 = vpack.c.b16 %v7504, %v7500
        %v8293 = vpack.c.b16 %v7505, %v7501
        %v8294 = vpack.c.b16 %v7506, %v7502
        %v8295 = vpack.c.b16 %v7507, %v7503
        %v8296 = vpack.c.b16 %v7512, %v7508
        %v8297 = vpack.c.b16 %v7513, %v7509
        %v8298 = vpack.c.b16 %v7514, %v7510
        %v8299 = vpack.c.b16 %v7515, %v7511
        %v9085 = vperm.slane %v5163, 0
        %v9086 = vperm.slane %v5163, 1
        %v9087 = vperm.slane %v5163, 2
        %v9088 = vperm.slane %v5163, 3
        %v9094 = vsel %vm585, %v4378, 0
        %9096 = vmatpush.bf16.msra.mxu0 %v7544
        %9097 = vmatpush.bf16.msra.mxu0 %v7540
        %9098 = vmatpush.bf16.msra.mxu0 %v7536
        %9099 = vmatpush.bf16.msra.mxu0 %v7532
        %9100 = vmatpush.bf16.msra.mxu0 %v7528
        %9101 = vmatpush.bf16.msra.mxu0 %v7524
        %9102 = vmatpush.bf16.msra.mxu0 %v7520
        %9103 = vmatpush.bf16.msra.mxu0 %v7516
        %9104 = vmatmul.bf16.gmra.mxu0 %v4354
        %v9105 = vpop.f32.mrf.mxu0
        %v9106 = vadd.f32 %v9085, %v9105
        %v9107 = vpop.f32.mrf.mxu0
        %9108 = vdwg.mxu0
        %9109 = vmatpush.bf16.msra.mxu0 %v7576
        %9110 = vmatpush.bf16.msra.mxu0 %v7572
        %9111 = vmatpush.bf16.msra.mxu0 %v7568
        %9112 = vmatpush.bf16.msra.mxu0 %v7564
        %9113 = vmatpush.bf16.msra.mxu0 %v7560
        %9114 = vmatpush.bf16.msra.mxu0 %v7556
        %9115 = vmatpush.bf16.msra.mxu0 %v7552
        %9116 = vmatpush.bf16.msra.mxu0 %v7548
        %9117 = vmatmul.bf16.gmra.mxu0 %v4355
        %v9118 = vpop.f32.mrf.mxu0
        %v9119 = vadd.f32 %v9106, %v9118
        %v9120 = vpop.f32.mrf.mxu0
        %9121 = vdwg.mxu0
        %9122 = vmatpush.bf16.msra.mxu0 %v7608
        %9123 = vmatpush.bf16.msra.mxu0 %v7604
        %9124 = vmatpush.bf16.msra.mxu0 %v7600
        %9125 = vmatpush.bf16.msra.mxu0 %v7596
        %9126 = vmatpush.bf16.msra.mxu0 %v7592
        %9127 = vmatpush.bf16.msra.mxu0 %v7588
        %9128 = vmatpush.bf16.msra.mxu0 %v7584
        %9129 = vmatpush.bf16.msra.mxu0 %v7580
        %9130 = vmatmul.bf16.gmra.mxu0 %v4356
        %v9131 = vpop.f32.mrf.mxu0
        %v9132 = vadd.f32 %v9119, %v9131
        %v9133 = vpop.f32.mrf.mxu0
        %9134 = vdwg.mxu0
        %9135 = vmatpush.bf16.msra.mxu0 %v7640
        %9136 = vmatpush.bf16.msra.mxu0 %v7636
        %9137 = vmatpush.bf16.msra.mxu0 %v7632
        %9138 = vmatpush.bf16.msra.mxu0 %v7628
        %9139 = vmatpush.bf16.msra.mxu0 %v7624
        %9140 = vmatpush.bf16.msra.mxu0 %v7620
        %9141 = vmatpush.bf16.msra.mxu0 %v7616
        %9142 = vmatpush.bf16.msra.mxu0 %v7612
        %9143 = vmatmul.bf16.gmra.mxu0 %v4357
        %v9144 = vpop.f32.mrf.mxu0
        %v9145 = vadd.f32 %v9132, %v9144
        %v9146 = vpop.f32.mrf.mxu0
        %9147 = vdwg.mxu0
        %9148 = vmatpush.bf16.msra.mxu0 %v7672
        %9149 = vmatpush.bf16.msra.mxu0 %v7668
        %9150 = vmatpush.bf16.msra.mxu0 %v7664
        %9151 = vmatpush.bf16.msra.mxu0 %v7660
        %9152 = vmatpush.bf16.msra.mxu0 %v7656
        %9153 = vmatpush.bf16.msra.mxu0 %v7652
        %9154 = vmatpush.bf16.msra.mxu0 %v7648
        %9155 = vmatpush.bf16.msra.mxu0 %v7644
        %9156 = vmatmul.bf16.gmra.mxu0 %v4358
        %v9157 = vpop.f32.mrf.mxu0
        %v9158 = vadd.f32 %v9145, %v9157
        %v9159 = vpop.f32.mrf.mxu0
        %9160 = vdwg.mxu0
        %9161 = vmatpush.bf16.msra.mxu0 %v7704
        %9162 = vmatpush.bf16.msra.mxu0 %v7700
        %9163 = vmatpush.bf16.msra.mxu0 %v7696
        %9164 = vmatpush.bf16.msra.mxu0 %v7692
        %9165 = vmatpush.bf16.msra.mxu0 %v7688
        %9166 = vmatpush.bf16.msra.mxu0 %v7684
        %9167 = vmatpush.bf16.msra.mxu0 %v7680
        %9168 = vmatpush.bf16.msra.mxu0 %v7676
        %9169 = vmatmul.bf16.gmra.mxu0 %v4359
        %v9170 = vpop.f32.mrf.mxu0
        %v9171 = vadd.f32 %v9158, %v9170
        %v9172 = vpop.f32.mrf.mxu0
        %9173 = vdwg.mxu0
        %9174 = vmatpush.bf16.msra.mxu0 %v7736
        %9175 = vmatpush.bf16.msra.mxu0 %v7732
        %9176 = vmatpush.bf16.msra.mxu0 %v7728
        %9177 = vmatpush.bf16.msra.mxu0 %v7724
        %9178 = vmatpush.bf16.msra.mxu0 %v7720
        %9179 = vmatpush.bf16.msra.mxu0 %v7716
        %9180 = vmatpush.bf16.msra.mxu0 %v7712
        %9181 = vmatpush.bf16.msra.mxu0 %v7708
        %9182 = vmatmul.bf16.gmra.mxu0 %v4360
        %v9183 = vpop.f32.mrf.mxu0
        %v9184 = vadd.f32 %v9171, %v9183
        %v9185 = vpop.f32.mrf.mxu0
        %9186 = vdwg.mxu0
        %9187 = vmatpush.bf16.msra.mxu0 %v7768
        %9188 = vmatpush.bf16.msra.mxu0 %v7764
        %9189 = vmatpush.bf16.msra.mxu0 %v7760
        %9190 = vmatpush.bf16.msra.mxu0 %v7756
        %9191 = vmatpush.bf16.msra.mxu0 %v7752
        %9192 = vmatpush.bf16.msra.mxu0 %v7748
        %9193 = vmatpush.bf16.msra.mxu0 %v7744
        %9194 = vmatpush.bf16.msra.mxu0 %v7740
        %9195 = vmatmul.bf16.gmra.mxu0 %v4361
        %v9196 = vpop.f32.mrf.mxu0
        %v9197 = vadd.f32 %v9184, %v9196
        %v9198 = vpop.f32.mrf.mxu0
        %9199 = vdwg.mxu0
        %9200 = vmatpush.bf16.msra.mxu0 %v7800
        %9201 = vmatpush.bf16.msra.mxu0 %v7796
        %9202 = vmatpush.bf16.msra.mxu0 %v7792
        %9203 = vmatpush.bf16.msra.mxu0 %v7788
        %9204 = vmatpush.bf16.msra.mxu0 %v7784
        %9205 = vmatpush.bf16.msra.mxu0 %v7780
        %9206 = vmatpush.bf16.msra.mxu0 %v7776
        %9207 = vmatpush.bf16.msra.mxu0 %v7772
        %9208 = vmatmul.bf16.gmra.mxu0 %v4362
        %v9209 = vpop.f32.mrf.mxu0
        %v9210 = vadd.f32 %v9197, %v9209
        %v9211 = vpop.f32.mrf.mxu0
        %9212 = vdwg.mxu0
        %9213 = vmatpush.bf16.msra.mxu0 %v7832
        %9214 = vmatpush.bf16.msra.mxu0 %v7828
        %9215 = vmatpush.bf16.msra.mxu0 %v7824
        %9216 = vmatpush.bf16.msra.mxu0 %v7820
        %9217 = vmatpush.bf16.msra.mxu0 %v7816
        %9218 = vmatpush.bf16.msra.mxu0 %v7812
        %9219 = vmatpush.bf16.msra.mxu0 %v7808
        %9220 = vmatpush.bf16.msra.mxu0 %v7804
        %9221 = vmatmul.bf16.gmra.mxu0 %v4363
        %v9222 = vpop.f32.mrf.mxu0
        %v9223 = vadd.f32 %v9210, %v9222
        %v9224 = vpop.f32.mrf.mxu0
        %9225 = vdwg.mxu0
        %9226 = vmatpush.bf16.msra.mxu0 %v7864
        %9227 = vmatpush.bf16.msra.mxu0 %v7860
        %9228 = vmatpush.bf16.msra.mxu0 %v7856
        %9229 = vmatpush.bf16.msra.mxu0 %v7852
        %9230 = vmatpush.bf16.msra.mxu0 %v7848
        %9231 = vmatpush.bf16.msra.mxu0 %v7844
        %9232 = vmatpush.bf16.msra.mxu0 %v7840
        %9233 = vmatpush.bf16.msra.mxu0 %v7836
        %9234 = vmatmul.bf16.gmra.mxu0 %v4364
        %v9235 = vpop.f32.mrf.mxu0
        %v9236 = vadd.f32 %v9223, %v9235
        %v9237 = vpop.f32.mrf.mxu0
        %9238 = vdwg.mxu0
        %9239 = vmatpush.bf16.msra.mxu0 %v7896
        %9240 = vmatpush.bf16.msra.mxu0 %v7892
        %9241 = vmatpush.bf16.msra.mxu0 %v7888
        %9242 = vmatpush.bf16.msra.mxu0 %v7884
        %9243 = vmatpush.bf16.msra.mxu0 %v7880
        %9244 = vmatpush.bf16.msra.mxu0 %v7876
        %9245 = vmatpush.bf16.msra.mxu0 %v7872
        %9246 = vmatpush.bf16.msra.mxu0 %v7868
        %9247 = vmatmul.bf16.gmra.mxu0 %v4365
        %v9248 = vpop.f32.mrf.mxu0
        %v9249 = vadd.f32 %v9236, %v9248
        %v9250 = vpop.f32.mrf.mxu0
        %9251 = vdwg.mxu0
        %9252 = vmatpush.bf16.msra.mxu0 %v7928
        %9253 = vmatpush.bf16.msra.mxu0 %v7924
        %9254 = vmatpush.bf16.msra.mxu0 %v7920
        %9255 = vmatpush.bf16.msra.mxu0 %v7916
        %9256 = vmatpush.bf16.msra.mxu0 %v7912
        %9257 = vmatpush.bf16.msra.mxu0 %v7908
        %9258 = vmatpush.bf16.msra.mxu0 %v7904
        %9259 = vmatpush.bf16.msra.mxu0 %v7900
        %9260 = vmatmul.bf16.gmra.mxu0 %v4366
        %v9261 = vpop.f32.mrf.mxu0
        %v9262 = vadd.f32 %v9249, %v9261
        %v9263 = vpop.f32.mrf.mxu0
        %9264 = vdwg.mxu0
        %9265 = vmatpush.bf16.msra.mxu0 %v7960
        %9266 = vmatpush.bf16.msra.mxu0 %v7956
        %9267 = vmatpush.bf16.msra.mxu0 %v7952
        %9268 = vmatpush.bf16.msra.mxu0 %v7948
        %9269 = vmatpush.bf16.msra.mxu0 %v7944
        %9270 = vmatpush.bf16.msra.mxu0 %v7940
        %9271 = vmatpush.bf16.msra.mxu0 %v7936
        %9272 = vmatpush.bf16.msra.mxu0 %v7932
        %9273 = vmatmul.bf16.gmra.mxu0 %v4367
        %v9274 = vpop.f32.mrf.mxu0
        %v9275 = vadd.f32 %v9262, %v9274
        %v9276 = vpop.f32.mrf.mxu0
        %9277 = vdwg.mxu0
        %9278 = vmatpush.bf16.msra.mxu0 %v7992
        %9279 = vmatpush.bf16.msra.mxu0 %v7988
        %9280 = vmatpush.bf16.msra.mxu0 %v7984
        %9281 = vmatpush.bf16.msra.mxu0 %v7980
        %9282 = vmatpush.bf16.msra.mxu0 %v7976
        %9283 = vmatpush.bf16.msra.mxu0 %v7972
        %9284 = vmatpush.bf16.msra.mxu0 %v7968
        %9285 = vmatpush.bf16.msra.mxu0 %v7964
        %9286 = vmatmul.bf16.gmra.mxu0 %v4368
        %v9287 = vpop.f32.mrf.mxu0
        %v9288 = vadd.f32 %v9275, %v9287
        %v9289 = vpop.f32.mrf.mxu0
        %9290 = vdwg.mxu0
        %9291 = vmatpush.bf16.msra.mxu0 %v8024
        %9292 = vmatpush.bf16.msra.mxu0 %v8020
        %9293 = vmatpush.bf16.msra.mxu0 %v8016
        %9294 = vmatpush.bf16.msra.mxu0 %v8012
        %9295 = vmatpush.bf16.msra.mxu0 %v8008
        %9296 = vmatpush.bf16.msra.mxu0 %v8004
        %9297 = vmatpush.bf16.msra.mxu0 %v8000
        %9298 = vmatpush.bf16.msra.mxu0 %v7996
        %9299 = vmatmul.bf16.gmra.mxu0 %v4369
        %v9300 = vpop.f32.mrf.mxu0
        %v9301 = vadd.f32 %v9288, %v9300
        %v9302 = vpop.f32.mrf.mxu0
        %9303 = vdwg.mxu0
        %9304 = vmatpush.bf16.msra.mxu0 %v8056
        %9305 = vmatpush.bf16.msra.mxu0 %v8052
        %9306 = vmatpush.bf16.msra.mxu0 %v8048
        %9307 = vmatpush.bf16.msra.mxu0 %v8044
        %9308 = vmatpush.bf16.msra.mxu0 %v8040
        %9309 = vmatpush.bf16.msra.mxu0 %v8036
        %9310 = vmatpush.bf16.msra.mxu0 %v8032
        %9311 = vmatpush.bf16.msra.mxu0 %v8028
        %9312 = vmatmul.bf16.gmra.mxu0 %v4370
        %v9313 = vpop.f32.mrf.mxu0
        %v9314 = vadd.f32 %v9301, %v9313
        %v9315 = vpop.f32.mrf.mxu0
        %9316 = vdwg.mxu0
        %9317 = vmatpush.bf16.msra.mxu0 %v8088
        %9318 = vmatpush.bf16.msra.mxu0 %v8084
        %9319 = vmatpush.bf16.msra.mxu0 %v8080
        %9320 = vmatpush.bf16.msra.mxu0 %v8076
        %9321 = vmatpush.bf16.msra.mxu0 %v8072
        %9322 = vmatpush.bf16.msra.mxu0 %v8068
        %9323 = vmatpush.bf16.msra.mxu0 %v8064
        %9324 = vmatpush.bf16.msra.mxu0 %v8060
        %9325 = vmatmul.bf16.gmra.mxu0 %v4371
        %v9326 = vpop.f32.mrf.mxu0
        %v9327 = vadd.f32 %v9314, %v9326
        %v9328 = vpop.f32.mrf.mxu0
        %9329 = vdwg.mxu0
        %9330 = vmatpush.bf16.msra.mxu0 %v8120
        %9331 = vmatpush.bf16.msra.mxu0 %v8116
        %9332 = vmatpush.bf16.msra.mxu0 %v8112
        %9333 = vmatpush.bf16.msra.mxu0 %v8108
        %9334 = vmatpush.bf16.msra.mxu0 %v8104
        %9335 = vmatpush.bf16.msra.mxu0 %v8100
        %9336 = vmatpush.bf16.msra.mxu0 %v8096
        %9337 = vmatpush.bf16.msra.mxu0 %v8092
        %9338 = vmatmul.bf16.gmra.mxu0 %v4372
        %v9339 = vpop.f32.mrf.mxu0
        %v9340 = vadd.f32 %v9327, %v9339
        %v9341 = vpop.f32.mrf.mxu0
        %9342 = vdwg.mxu0
        %9343 = vmatpush.bf16.msra.mxu0 %v8152
        %9344 = vmatpush.bf16.msra.mxu0 %v8148
        %9345 = vmatpush.bf16.msra.mxu0 %v8144
        %9346 = vmatpush.bf16.msra.mxu0 %v8140
        %9347 = vmatpush.bf16.msra.mxu0 %v8136
        %9348 = vmatpush.bf16.msra.mxu0 %v8132
        %9349 = vmatpush.bf16.msra.mxu0 %v8128
        %9350 = vmatpush.bf16.msra.mxu0 %v8124
        %9351 = vmatmul.bf16.gmra.mxu0 %v4373
        %v9352 = vpop.f32.mrf.mxu0
        %v9353 = vadd.f32 %v9340, %v9352
        %v9354 = vpop.f32.mrf.mxu0
        %9355 = vdwg.mxu0
        %9356 = vmatpush.bf16.msra.mxu0 %v8184
        %9357 = vmatpush.bf16.msra.mxu0 %v8180
        %9358 = vmatpush.bf16.msra.mxu0 %v8176
        %9359 = vmatpush.bf16.msra.mxu0 %v8172
        %9360 = vmatpush.bf16.msra.mxu0 %v8168
        %9361 = vmatpush.bf16.msra.mxu0 %v8164
        %9362 = vmatpush.bf16.msra.mxu0 %v8160
        %9363 = vmatpush.bf16.msra.mxu0 %v8156
        %9364 = vmatmul.bf16.gmra.mxu0 %v4374
        %v9365 = vpop.f32.mrf.mxu0
        %v9366 = vadd.f32 %v9353, %v9365
        %v9367 = vpop.f32.mrf.mxu0
        %9368 = vdwg.mxu0
        %9369 = vmatpush.bf16.msra.mxu0 %v8216
        %9370 = vmatpush.bf16.msra.mxu0 %v8212
        %9371 = vmatpush.bf16.msra.mxu0 %v8208
        %9372 = vmatpush.bf16.msra.mxu0 %v8204
        %9373 = vmatpush.bf16.msra.mxu0 %v8200
        %9374 = vmatpush.bf16.msra.mxu0 %v8196
        %9375 = vmatpush.bf16.msra.mxu0 %v8192
        %9376 = vmatpush.bf16.msra.mxu0 %v8188
        %9377 = vmatmul.bf16.gmra.mxu0 %v4375
        %v9378 = vpop.f32.mrf.mxu0
        %v9379 = vadd.f32 %v9366, %v9378
        %v9380 = vpop.f32.mrf.mxu0
        %9381 = vdwg.mxu0
        %9382 = vmatpush.bf16.msra.mxu0 %v8248
        %9383 = vmatpush.bf16.msra.mxu0 %v8244
        %9384 = vmatpush.bf16.msra.mxu0 %v8240
        %9385 = vmatpush.bf16.msra.mxu0 %v8236
        %9386 = vmatpush.bf16.msra.mxu0 %v8232
        %9387 = vmatpush.bf16.msra.mxu0 %v8228
        %9388 = vmatpush.bf16.msra.mxu0 %v8224
        %9389 = vmatpush.bf16.msra.mxu0 %v8220
        %9390 = vmatmul.bf16.gmra.mxu0 %v4376
        %v9391 = vpop.f32.mrf.mxu0
        %v9392 = vadd.f32 %v9379, %v9391
        %v9393 = vpop.f32.mrf.mxu0
        %9394 = vdwg.mxu0
        %9395 = vmatpush.bf16.msra.mxu0 %v8280
        %9396 = vmatpush.bf16.msra.mxu0 %v8276
        %9397 = vmatpush.bf16.msra.mxu0 %v8272
        %9398 = vmatpush.bf16.msra.mxu0 %v8268
        %9399 = vmatpush.bf16.msra.mxu0 %v8264
        %9400 = vmatpush.bf16.msra.mxu0 %v8260
        %9401 = vmatpush.bf16.msra.mxu0 %v8256
        %9402 = vmatpush.bf16.msra.mxu0 %v8252
        %9403 = vmatmul.bf16.gmra.mxu0 %v4377
        %v9404 = vpop.f32.mrf.mxu0
        %v9405 = vadd.f32 %v9392, %v9404
        %v9406 = vpop.f32.mrf.mxu0
        %9407 = vdwg.mxu0
        %9408 = vmatpush.bf16.msra.mxu0 0
        %9409 = vmatpush.bf16.msra.mxu0 0
        %9410 = vmatpush.bf16.msra.mxu0 0
        %9411 = vmatpush.bf16.msra.mxu0 0
        %9412 = vmatpush.bf16.msra.mxu0 %v8296
        %9413 = vmatpush.bf16.msra.mxu0 %v8292
        %9414 = vmatpush.bf16.msra.mxu0 %v8288
        %9415 = vmatpush.bf16.msra.mxu0 %v8284
        %9416 = vmatmul.bf16.gmra.mxu0 %v9094
        %v9417 = vpop.f32.mrf.mxu0
        %v9418 = vadd.f32 %v9405, %v9417
        %v9419 = vpop.f32.mrf.mxu0
        %9420 = vdwg.mxu0
        %9421 = vmatpush.bf16.msra.mxu0 %v7545
        %9422 = vmatpush.bf16.msra.mxu0 %v7541
        %9423 = vmatpush.bf16.msra.mxu0 %v7537
        %9424 = vmatpush.bf16.msra.mxu0 %v7533
        %9425 = vmatpush.bf16.msra.mxu0 %v7529
        %9426 = vmatpush.bf16.msra.mxu0 %v7525
        %9427 = vmatpush.bf16.msra.mxu0 %v7521
        %9428 = vmatpush.bf16.msra.mxu0 %v7517
        %9429 = vmatmul.bf16.gmra.mxu0 %v4354
        %v9430 = vpop.f32.mrf.mxu0
        %v9431 = vadd.f32 %v9086, %v9430
        %v9432 = vpop.f32.mrf.mxu0
        %9433 = vdwg.mxu0
        %9434 = vmatpush.bf16.msra.mxu0 %v7577
        %9435 = vmatpush.bf16.msra.mxu0 %v7573
        %9436 = vmatpush.bf16.msra.mxu0 %v7569
        %9437 = vmatpush.bf16.msra.mxu0 %v7565
        %9438 = vmatpush.bf16.msra.mxu0 %v7561
        %9439 = vmatpush.bf16.msra.mxu0 %v7557
        %9440 = vmatpush.bf16.msra.mxu0 %v7553
        %9441 = vmatpush.bf16.msra.mxu0 %v7549
        %9442 = vmatmul.bf16.gmra.mxu0 %v4355
        %v9443 = vpop.f32.mrf.mxu0
        %v9444 = vadd.f32 %v9431, %v9443
        %v9445 = vpop.f32.mrf.mxu0
        %9446 = vdwg.mxu0
        %9447 = vmatpush.bf16.msra.mxu0 %v7609
        %9448 = vmatpush.bf16.msra.mxu0 %v7605
        %9449 = vmatpush.bf16.msra.mxu0 %v7601
        %9450 = vmatpush.bf16.msra.mxu0 %v7597
        %9451 = vmatpush.bf16.msra.mxu0 %v7593
        %9452 = vmatpush.bf16.msra.mxu0 %v7589
        %9453 = vmatpush.bf16.msra.mxu0 %v7585
        %9454 = vmatpush.bf16.msra.mxu0 %v7581
        %9455 = vmatmul.bf16.gmra.mxu0 %v4356
        %v9456 = vpop.f32.mrf.mxu0
        %v9457 = vadd.f32 %v9444, %v9456
        %v9458 = vpop.f32.mrf.mxu0
        %9459 = vdwg.mxu0
        %9460 = vmatpush.bf16.msra.mxu0 %v7641
        %9461 = vmatpush.bf16.msra.mxu0 %v7637
        %9462 = vmatpush.bf16.msra.mxu0 %v7633
        %9463 = vmatpush.bf16.msra.mxu0 %v7629
        %9464 = vmatpush.bf16.msra.mxu0 %v7625
        %9465 = vmatpush.bf16.msra.mxu0 %v7621
        %9466 = vmatpush.bf16.msra.mxu0 %v7617
        %9467 = vmatpush.bf16.msra.mxu0 %v7613
        %9468 = vmatmul.bf16.gmra.mxu0 %v4357
        %v9469 = vpop.f32.mrf.mxu0
        %v9470 = vadd.f32 %v9457, %v9469
        %v9471 = vpop.f32.mrf.mxu0
        %9472 = vdwg.mxu0
        %9473 = vmatpush.bf16.msra.mxu0 %v7673
        %9474 = vmatpush.bf16.msra.mxu0 %v7669
        %9475 = vmatpush.bf16.msra.mxu0 %v7665
        %9476 = vmatpush.bf16.msra.mxu0 %v7661
        %9477 = vmatpush.bf16.msra.mxu0 %v7657
        %9478 = vmatpush.bf16.msra.mxu0 %v7653
        %9479 = vmatpush.bf16.msra.mxu0 %v7649
        %9480 = vmatpush.bf16.msra.mxu0 %v7645
        %9481 = vmatmul.bf16.gmra.mxu0 %v4358
        %v9482 = vpop.f32.mrf.mxu0
        %v9483 = vadd.f32 %v9470, %v9482
        %v9484 = vpop.f32.mrf.mxu0
        %9485 = vdwg.mxu0
        %9486 = vmatpush.bf16.msra.mxu0 %v7705
        %9487 = vmatpush.bf16.msra.mxu0 %v7701
        %9488 = vmatpush.bf16.msra.mxu0 %v7697
        %9489 = vmatpush.bf16.msra.mxu0 %v7693
        %9490 = vmatpush.bf16.msra.mxu0 %v7689
        %9491 = vmatpush.bf16.msra.mxu0 %v7685
        %9492 = vmatpush.bf16.msra.mxu0 %v7681
        %9493 = vmatpush.bf16.msra.mxu0 %v7677
        %9494 = vmatmul.bf16.gmra.mxu0 %v4359
        %v9495 = vpop.f32.mrf.mxu0
        %v9496 = vadd.f32 %v9483, %v9495
        %v9497 = vpop.f32.mrf.mxu0
        %9498 = vdwg.mxu0
        %9499 = vmatpush.bf16.msra.mxu0 %v7737
        %9500 = vmatpush.bf16.msra.mxu0 %v7733
        %9501 = vmatpush.bf16.msra.mxu0 %v7729
        %9502 = vmatpush.bf16.msra.mxu0 %v7725
        %9503 = vmatpush.bf16.msra.mxu0 %v7721
        %9504 = vmatpush.bf16.msra.mxu0 %v7717
        %9505 = vmatpush.bf16.msra.mxu0 %v7713
        %9506 = vmatpush.bf16.msra.mxu0 %v7709
        %9507 = vmatmul.bf16.gmra.mxu0 %v4360
        %v9508 = vpop.f32.mrf.mxu0
        %v9509 = vadd.f32 %v9496, %v9508
        %v9510 = vpop.f32.mrf.mxu0
        %9511 = vdwg.mxu0
        %9512 = vmatpush.bf16.msra.mxu0 %v7769
        %9513 = vmatpush.bf16.msra.mxu0 %v7765
        %9514 = vmatpush.bf16.msra.mxu0 %v7761
        %9515 = vmatpush.bf16.msra.mxu0 %v7757
        %9516 = vmatpush.bf16.msra.mxu0 %v7753
        %9517 = vmatpush.bf16.msra.mxu0 %v7749
        %9518 = vmatpush.bf16.msra.mxu0 %v7745
        %9519 = vmatpush.bf16.msra.mxu0 %v7741
        %9520 = vmatmul.bf16.gmra.mxu0 %v4361
        %v9521 = vpop.f32.mrf.mxu0
        %v9522 = vadd.f32 %v9509, %v9521
        %v9523 = vpop.f32.mrf.mxu0
        %9524 = vdwg.mxu0
        %9525 = vmatpush.bf16.msra.mxu0 %v7801
        %9526 = vmatpush.bf16.msra.mxu0 %v7797
        %9527 = vmatpush.bf16.msra.mxu0 %v7793
        %9528 = vmatpush.bf16.msra.mxu0 %v7789
        %9529 = vmatpush.bf16.msra.mxu0 %v7785
        %9530 = vmatpush.bf16.msra.mxu0 %v7781
        %9531 = vmatpush.bf16.msra.mxu0 %v7777
        %9532 = vmatpush.bf16.msra.mxu0 %v7773
        %9533 = vmatmul.bf16.gmra.mxu0 %v4362
        %v9534 = vpop.f32.mrf.mxu0
        %v9535 = vadd.f32 %v9522, %v9534
        %v9536 = vpop.f32.mrf.mxu0
        %9537 = vdwg.mxu0
        %9538 = vmatpush.bf16.msra.mxu0 %v7833
        %9539 = vmatpush.bf16.msra.mxu0 %v7829
        %9540 = vmatpush.bf16.msra.mxu0 %v7825
        %9541 = vmatpush.bf16.msra.mxu0 %v7821
        %9542 = vmatpush.bf16.msra.mxu0 %v7817
        %9543 = vmatpush.bf16.msra.mxu0 %v7813
        %9544 = vmatpush.bf16.msra.mxu0 %v7809
        %9545 = vmatpush.bf16.msra.mxu0 %v7805
        %9546 = vmatmul.bf16.gmra.mxu0 %v4363
        %v9547 = vpop.f32.mrf.mxu0
        %v9548 = vadd.f32 %v9535, %v9547
        %v9549 = vpop.f32.mrf.mxu0
        %9550 = vdwg.mxu0
        %9551 = vmatpush.bf16.msra.mxu0 %v7865
        %9552 = vmatpush.bf16.msra.mxu0 %v7861
        %9553 = vmatpush.bf16.msra.mxu0 %v7857
        %9554 = vmatpush.bf16.msra.mxu0 %v7853
        %9555 = vmatpush.bf16.msra.mxu0 %v7849
        %9556 = vmatpush.bf16.msra.mxu0 %v7845
        %9557 = vmatpush.bf16.msra.mxu0 %v7841
        %9558 = vmatpush.bf16.msra.mxu0 %v7837
        %9559 = vmatmul.bf16.gmra.mxu0 %v4364
        %v9560 = vpop.f32.mrf.mxu0
        %v9561 = vadd.f32 %v9548, %v9560
        %v9562 = vpop.f32.mrf.mxu0
        %9563 = vdwg.mxu0
        %9564 = vmatpush.bf16.msra.mxu0 %v7897
        %9565 = vmatpush.bf16.msra.mxu0 %v7893
        %9566 = vmatpush.bf16.msra.mxu0 %v7889
        %9567 = vmatpush.bf16.msra.mxu0 %v7885
        %9568 = vmatpush.bf16.msra.mxu0 %v7881
        %9569 = vmatpush.bf16.msra.mxu0 %v7877
        %9570 = vmatpush.bf16.msra.mxu0 %v7873
        %9571 = vmatpush.bf16.msra.mxu0 %v7869
        %9572 = vmatmul.bf16.gmra.mxu0 %v4365
        %v9573 = vpop.f32.mrf.mxu0
        %v9574 = vadd.f32 %v9561, %v9573
        %v9575 = vpop.f32.mrf.mxu0
        %9576 = vdwg.mxu0
        %9577 = vmatpush.bf16.msra.mxu0 %v7929
        %9578 = vmatpush.bf16.msra.mxu0 %v7925
        %9579 = vmatpush.bf16.msra.mxu0 %v7921
        %9580 = vmatpush.bf16.msra.mxu0 %v7917
        %9581 = vmatpush.bf16.msra.mxu0 %v7913
        %9582 = vmatpush.bf16.msra.mxu0 %v7909
        %9583 = vmatpush.bf16.msra.mxu0 %v7905
        %9584 = vmatpush.bf16.msra.mxu0 %v7901
        %9585 = vmatmul.bf16.gmra.mxu0 %v4366
        %v9586 = vpop.f32.mrf.mxu0
        %v9587 = vadd.f32 %v9574, %v9586
        %v9588 = vpop.f32.mrf.mxu0
        %9589 = vdwg.mxu0
        %9590 = vmatpush.bf16.msra.mxu0 %v7961
        %9591 = vmatpush.bf16.msra.mxu0 %v7957
        %9592 = vmatpush.bf16.msra.mxu0 %v7953
        %9593 = vmatpush.bf16.msra.mxu0 %v7949
        %9594 = vmatpush.bf16.msra.mxu0 %v7945
        %9595 = vmatpush.bf16.msra.mxu0 %v7941
        %9596 = vmatpush.bf16.msra.mxu0 %v7937
        %9597 = vmatpush.bf16.msra.mxu0 %v7933
        %9598 = vmatmul.bf16.gmra.mxu0 %v4367
        %v9599 = vpop.f32.mrf.mxu0
        %v9600 = vadd.f32 %v9587, %v9599
        %v9601 = vpop.f32.mrf.mxu0
        %9602 = vdwg.mxu0
        %9603 = vmatpush.bf16.msra.mxu0 %v7993
        %9604 = vmatpush.bf16.msra.mxu0 %v7989
        %9605 = vmatpush.bf16.msra.mxu0 %v7985
        %9606 = vmatpush.bf16.msra.mxu0 %v7981
        %9607 = vmatpush.bf16.msra.mxu0 %v7977
        %9608 = vmatpush.bf16.msra.mxu0 %v7973
        %9609 = vmatpush.bf16.msra.mxu0 %v7969
        %9610 = vmatpush.bf16.msra.mxu0 %v7965
        %9611 = vmatmul.bf16.gmra.mxu0 %v4368
        %v9612 = vpop.f32.mrf.mxu0
        %v9613 = vadd.f32 %v9600, %v9612
        %v9614 = vpop.f32.mrf.mxu0
        %9615 = vdwg.mxu0
        %9616 = vmatpush.bf16.msra.mxu0 %v8025
        %9617 = vmatpush.bf16.msra.mxu0 %v8021
        %9618 = vmatpush.bf16.msra.mxu0 %v8017
        %9619 = vmatpush.bf16.msra.mxu0 %v8013
        %9620 = vmatpush.bf16.msra.mxu0 %v8009
        %9621 = vmatpush.bf16.msra.mxu0 %v8005
        %9622 = vmatpush.bf16.msra.mxu0 %v8001
        %9623 = vmatpush.bf16.msra.mxu0 %v7997
        %9624 = vmatmul.bf16.gmra.mxu0 %v4369
        %v9625 = vpop.f32.mrf.mxu0
        %v9626 = vadd.f32 %v9613, %v9625
        %v9627 = vpop.f32.mrf.mxu0
        %9628 = vdwg.mxu0
        %9629 = vmatpush.bf16.msra.mxu0 %v8057
        %9630 = vmatpush.bf16.msra.mxu0 %v8053
        %9631 = vmatpush.bf16.msra.mxu0 %v8049
        %9632 = vmatpush.bf16.msra.mxu0 %v8045
        %9633 = vmatpush.bf16.msra.mxu0 %v8041
        %9634 = vmatpush.bf16.msra.mxu0 %v8037
        %9635 = vmatpush.bf16.msra.mxu0 %v8033
        %9636 = vmatpush.bf16.msra.mxu0 %v8029
        %9637 = vmatmul.bf16.gmra.mxu0 %v4370
        %v9638 = vpop.f32.mrf.mxu0
        %v9639 = vadd.f32 %v9626, %v9638
        %v9640 = vpop.f32.mrf.mxu0
        %9641 = vdwg.mxu0
        %9642 = vmatpush.bf16.msra.mxu0 %v8089
        %9643 = vmatpush.bf16.msra.mxu0 %v8085
        %9644 = vmatpush.bf16.msra.mxu0 %v8081
        %9645 = vmatpush.bf16.msra.mxu0 %v8077
        %9646 = vmatpush.bf16.msra.mxu0 %v8073
        %9647 = vmatpush.bf16.msra.mxu0 %v8069
        %9648 = vmatpush.bf16.msra.mxu0 %v8065
        %9649 = vmatpush.bf16.msra.mxu0 %v8061
        %9650 = vmatmul.bf16.gmra.mxu0 %v4371
        %v9651 = vpop.f32.mrf.mxu0
        %v9652 = vadd.f32 %v9639, %v9651
        %v9653 = vpop.f32.mrf.mxu0
        %9654 = vdwg.mxu0
        %9655 = vmatpush.bf16.msra.mxu0 %v8121
        %9656 = vmatpush.bf16.msra.mxu0 %v8117
        %9657 = vmatpush.bf16.msra.mxu0 %v8113
        %9658 = vmatpush.bf16.msra.mxu0 %v8109
        %9659 = vmatpush.bf16.msra.mxu0 %v8105
        %9660 = vmatpush.bf16.msra.mxu0 %v8101
        %9661 = vmatpush.bf16.msra.mxu0 %v8097
        %9662 = vmatpush.bf16.msra.mxu0 %v8093
        %9663 = vmatmul.bf16.gmra.mxu0 %v4372
        %v9664 = vpop.f32.mrf.mxu0
        %v9665 = vadd.f32 %v9652, %v9664
        %v9666 = vpop.f32.mrf.mxu0
        %9667 = vdwg.mxu0
        %9668 = vmatpush.bf16.msra.mxu0 %v8153
        %9669 = vmatpush.bf16.msra.mxu0 %v8149
        %9670 = vmatpush.bf16.msra.mxu0 %v8145
        %9671 = vmatpush.bf16.msra.mxu0 %v8141
        %9672 = vmatpush.bf16.msra.mxu0 %v8137
        %9673 = vmatpush.bf16.msra.mxu0 %v8133
        %9674 = vmatpush.bf16.msra.mxu0 %v8129
        %9675 = vmatpush.bf16.msra.mxu0 %v8125
        %9676 = vmatmul.bf16.gmra.mxu0 %v4373
        %v9677 = vpop.f32.mrf.mxu0
        %v9678 = vadd.f32 %v9665, %v9677
        %v9679 = vpop.f32.mrf.mxu0
        %9680 = vdwg.mxu0
        %9681 = vmatpush.bf16.msra.mxu0 %v8185
        %9682 = vmatpush.bf16.msra.mxu0 %v8181
        %9683 = vmatpush.bf16.msra.mxu0 %v8177
        %9684 = vmatpush.bf16.msra.mxu0 %v8173
        %9685 = vmatpush.bf16.msra.mxu0 %v8169
        %9686 = vmatpush.bf16.msra.mxu0 %v8165
        %9687 = vmatpush.bf16.msra.mxu0 %v8161
        %9688 = vmatpush.bf16.msra.mxu0 %v8157
        %9689 = vmatmul.bf16.gmra.mxu0 %v4374
        %v9690 = vpop.f32.mrf.mxu0
        %v9691 = vadd.f32 %v9678, %v9690
        %v9692 = vpop.f32.mrf.mxu0
        %9693 = vdwg.mxu0
        %9694 = vmatpush.bf16.msra.mxu0 %v8217
        %9695 = vmatpush.bf16.msra.mxu0 %v8213
        %9696 = vmatpush.bf16.msra.mxu0 %v8209
        %9697 = vmatpush.bf16.msra.mxu0 %v8205
        %9698 = vmatpush.bf16.msra.mxu0 %v8201
        %9699 = vmatpush.bf16.msra.mxu0 %v8197
        %9700 = vmatpush.bf16.msra.mxu0 %v8193
        %9701 = vmatpush.bf16.msra.mxu0 %v8189
        %9702 = vmatmul.bf16.gmra.mxu0 %v4375
        %v9703 = vpop.f32.mrf.mxu0
        %v9704 = vadd.f32 %v9691, %v9703
        %v9705 = vpop.f32.mrf.mxu0
        %9706 = vdwg.mxu0
        %9707 = vmatpush.bf16.msra.mxu0 %v8249
        %9708 = vmatpush.bf16.msra.mxu0 %v8245
        %9709 = vmatpush.bf16.msra.mxu0 %v8241
        %9710 = vmatpush.bf16.msra.mxu0 %v8237
        %9711 = vmatpush.bf16.msra.mxu0 %v8233
        %9712 = vmatpush.bf16.msra.mxu0 %v8229
        %9713 = vmatpush.bf16.msra.mxu0 %v8225
        %9714 = vmatpush.bf16.msra.mxu0 %v8221
        %9715 = vmatmul.bf16.gmra.mxu0 %v4376
        %v9716 = vpop.f32.mrf.mxu0
        %v9717 = vadd.f32 %v9704, %v9716
        %v9718 = vpop.f32.mrf.mxu0
        %9719 = vdwg.mxu0
        %9720 = vmatpush.bf16.msra.mxu0 %v8281
        %9721 = vmatpush.bf16.msra.mxu0 %v8277
        %9722 = vmatpush.bf16.msra.mxu0 %v8273
        %9723 = vmatpush.bf16.msra.mxu0 %v8269
        %9724 = vmatpush.bf16.msra.mxu0 %v8265
        %9725 = vmatpush.bf16.msra.mxu0 %v8261
        %9726 = vmatpush.bf16.msra.mxu0 %v8257
        %9727 = vmatpush.bf16.msra.mxu0 %v8253
        %9728 = vmatmul.bf16.gmra.mxu0 %v4377
        %v9729 = vpop.f32.mrf.mxu0
        %v9730 = vadd.f32 %v9717, %v9729
        %v9731 = vpop.f32.mrf.mxu0
        %9732 = vdwg.mxu0
        %9733 = vmatpush.bf16.msra.mxu0 0
        %9734 = vmatpush.bf16.msra.mxu0 0
        %9735 = vmatpush.bf16.msra.mxu0 0
        %9736 = vmatpush.bf16.msra.mxu0 0
        %9737 = vmatpush.bf16.msra.mxu0 %v8297
        %9738 = vmatpush.bf16.msra.mxu0 %v8293
        %9739 = vmatpush.bf16.msra.mxu0 %v8289
        %9740 = vmatpush.bf16.msra.mxu0 %v8285
        %9741 = vmatmul.bf16.gmra.mxu0 %v9094
        %v9742 = vpop.f32.mrf.mxu0
        %v9743 = vadd.f32 %v9730, %v9742
        %v9744 = vpop.f32.mrf.mxu0
        %9745 = vdwg.mxu0
        %9746 = vmatpush.bf16.msra.mxu0 %v7546
        %9747 = vmatpush.bf16.msra.mxu0 %v7542
        %9748 = vmatpush.bf16.msra.mxu0 %v7538
        %9749 = vmatpush.bf16.msra.mxu0 %v7534
        %9750 = vmatpush.bf16.msra.mxu0 %v7530
        %9751 = vmatpush.bf16.msra.mxu0 %v7526
        %9752 = vmatpush.bf16.msra.mxu0 %v7522
        %9753 = vmatpush.bf16.msra.mxu0 %v7518
        %9754 = vmatmul.bf16.gmra.mxu0 %v4354
        %v9755 = vpop.f32.mrf.mxu0
        %v9756 = vadd.f32 %v9087, %v9755
        %v9757 = vpop.f32.mrf.mxu0
        %9758 = vdwg.mxu0
        %9759 = vmatpush.bf16.msra.mxu0 %v7578
        %9760 = vmatpush.bf16.msra.mxu0 %v7574
        %9761 = vmatpush.bf16.msra.mxu0 %v7570
        %9762 = vmatpush.bf16.msra.mxu0 %v7566
        %9763 = vmatpush.bf16.msra.mxu0 %v7562
        %9764 = vmatpush.bf16.msra.mxu0 %v7558
        %9765 = vmatpush.bf16.msra.mxu0 %v7554
        %9766 = vmatpush.bf16.msra.mxu0 %v7550
        %9767 = vmatmul.bf16.gmra.mxu0 %v4355
        %v9768 = vpop.f32.mrf.mxu0
        %v9769 = vadd.f32 %v9756, %v9768
        %v9770 = vpop.f32.mrf.mxu0
        %9771 = vdwg.mxu0
        %9772 = vmatpush.bf16.msra.mxu0 %v7610
        %9773 = vmatpush.bf16.msra.mxu0 %v7606
        %9774 = vmatpush.bf16.msra.mxu0 %v7602
        %9775 = vmatpush.bf16.msra.mxu0 %v7598
        %9776 = vmatpush.bf16.msra.mxu0 %v7594
        %9777 = vmatpush.bf16.msra.mxu0 %v7590
        %9778 = vmatpush.bf16.msra.mxu0 %v7586
        %9779 = vmatpush.bf16.msra.mxu0 %v7582
        %9780 = vmatmul.bf16.gmra.mxu0 %v4356
        %v9781 = vpop.f32.mrf.mxu0
        %v9782 = vadd.f32 %v9769, %v9781
        %v9783 = vpop.f32.mrf.mxu0
        %9784 = vdwg.mxu0
        %9785 = vmatpush.bf16.msra.mxu0 %v7642
        %9786 = vmatpush.bf16.msra.mxu0 %v7638
        %9787 = vmatpush.bf16.msra.mxu0 %v7634
        %9788 = vmatpush.bf16.msra.mxu0 %v7630
        %9789 = vmatpush.bf16.msra.mxu0 %v7626
        %9790 = vmatpush.bf16.msra.mxu0 %v7622
        %9791 = vmatpush.bf16.msra.mxu0 %v7618
        %9792 = vmatpush.bf16.msra.mxu0 %v7614
        %9793 = vmatmul.bf16.gmra.mxu0 %v4357
        %v9794 = vpop.f32.mrf.mxu0
        %v9795 = vadd.f32 %v9782, %v9794
        %v9796 = vpop.f32.mrf.mxu0
        %9797 = vdwg.mxu0
        %9798 = vmatpush.bf16.msra.mxu0 %v7674
        %9799 = vmatpush.bf16.msra.mxu0 %v7670
        %9800 = vmatpush.bf16.msra.mxu0 %v7666
        %9801 = vmatpush.bf16.msra.mxu0 %v7662
        %9802 = vmatpush.bf16.msra.mxu0 %v7658
        %9803 = vmatpush.bf16.msra.mxu0 %v7654
        %9804 = vmatpush.bf16.msra.mxu0 %v7650
        %9805 = vmatpush.bf16.msra.mxu0 %v7646
        %9806 = vmatmul.bf16.gmra.mxu0 %v4358
        %v9807 = vpop.f32.mrf.mxu0
        %v9808 = vadd.f32 %v9795, %v9807
        %v9809 = vpop.f32.mrf.mxu0
        %9810 = vdwg.mxu0
        %9811 = vmatpush.bf16.msra.mxu0 %v7706
        %9812 = vmatpush.bf16.msra.mxu0 %v7702
        %9813 = vmatpush.bf16.msra.mxu0 %v7698
        %9814 = vmatpush.bf16.msra.mxu0 %v7694
        %9815 = vmatpush.bf16.msra.mxu0 %v7690
        %9816 = vmatpush.bf16.msra.mxu0 %v7686
        %9817 = vmatpush.bf16.msra.mxu0 %v7682
        %9818 = vmatpush.bf16.msra.mxu0 %v7678
        %9819 = vmatmul.bf16.gmra.mxu0 %v4359
        %v9820 = vpop.f32.mrf.mxu0
        %v9821 = vadd.f32 %v9808, %v9820
        %v9822 = vpop.f32.mrf.mxu0
        %9823 = vdwg.mxu0
        %9824 = vmatpush.bf16.msra.mxu0 %v7738
        %9825 = vmatpush.bf16.msra.mxu0 %v7734
        %9826 = vmatpush.bf16.msra.mxu0 %v7730
        %9827 = vmatpush.bf16.msra.mxu0 %v7726
        %9828 = vmatpush.bf16.msra.mxu0 %v7722
        %9829 = vmatpush.bf16.msra.mxu0 %v7718
        %9830 = vmatpush.bf16.msra.mxu0 %v7714
        %9831 = vmatpush.bf16.msra.mxu0 %v7710
        %9832 = vmatmul.bf16.gmra.mxu0 %v4360
        %v9833 = vpop.f32.mrf.mxu0
        %v9834 = vadd.f32 %v9821, %v9833
        %v9835 = vpop.f32.mrf.mxu0
        %9836 = vdwg.mxu0
        %9837 = vmatpush.bf16.msra.mxu0 %v7770
        %9838 = vmatpush.bf16.msra.mxu0 %v7766
        %9839 = vmatpush.bf16.msra.mxu0 %v7762
        %9840 = vmatpush.bf16.msra.mxu0 %v7758
        %9841 = vmatpush.bf16.msra.mxu0 %v7754
        %9842 = vmatpush.bf16.msra.mxu0 %v7750
        %9843 = vmatpush.bf16.msra.mxu0 %v7746
        %9844 = vmatpush.bf16.msra.mxu0 %v7742
        %9845 = vmatmul.bf16.gmra.mxu0 %v4361
        %v9846 = vpop.f32.mrf.mxu0
        %v9847 = vadd.f32 %v9834, %v9846
        %v9848 = vpop.f32.mrf.mxu0
        %9849 = vdwg.mxu0
        %9850 = vmatpush.bf16.msra.mxu0 %v7802
        %9851 = vmatpush.bf16.msra.mxu0 %v7798
        %9852 = vmatpush.bf16.msra.mxu0 %v7794
        %9853 = vmatpush.bf16.msra.mxu0 %v7790
        %9854 = vmatpush.bf16.msra.mxu0 %v7786
        %9855 = vmatpush.bf16.msra.mxu0 %v7782
        %9856 = vmatpush.bf16.msra.mxu0 %v7778
        %9857 = vmatpush.bf16.msra.mxu0 %v7774
        %9858 = vmatmul.bf16.gmra.mxu0 %v4362
        %v9859 = vpop.f32.mrf.mxu0
        %v9860 = vadd.f32 %v9847, %v9859
        %v9861 = vpop.f32.mrf.mxu0
        %9862 = vdwg.mxu0
        %9863 = vmatpush.bf16.msra.mxu0 %v7834
        %9864 = vmatpush.bf16.msra.mxu0 %v7830
        %9865 = vmatpush.bf16.msra.mxu0 %v7826
        %9866 = vmatpush.bf16.msra.mxu0 %v7822
        %9867 = vmatpush.bf16.msra.mxu0 %v7818
        %9868 = vmatpush.bf16.msra.mxu0 %v7814
        %9869 = vmatpush.bf16.msra.mxu0 %v7810
        %9870 = vmatpush.bf16.msra.mxu0 %v7806
        %9871 = vmatmul.bf16.gmra.mxu0 %v4363
        %v9872 = vpop.f32.mrf.mxu0
        %v9873 = vadd.f32 %v9860, %v9872
        %v9874 = vpop.f32.mrf.mxu0
        %9875 = vdwg.mxu0
        %9876 = vmatpush.bf16.msra.mxu0 %v7866
        %9877 = vmatpush.bf16.msra.mxu0 %v7862
        %9878 = vmatpush.bf16.msra.mxu0 %v7858
        %9879 = vmatpush.bf16.msra.mxu0 %v7854
        %9880 = vmatpush.bf16.msra.mxu0 %v7850
        %9881 = vmatpush.bf16.msra.mxu0 %v7846
        %9882 = vmatpush.bf16.msra.mxu0 %v7842
        %9883 = vmatpush.bf16.msra.mxu0 %v7838
        %9884 = vmatmul.bf16.gmra.mxu0 %v4364
        %v9885 = vpop.f32.mrf.mxu0
        %v9886 = vadd.f32 %v9873, %v9885
        %v9887 = vpop.f32.mrf.mxu0
        %9888 = vdwg.mxu0
        %9889 = vmatpush.bf16.msra.mxu0 %v7898
        %9890 = vmatpush.bf16.msra.mxu0 %v7894
        %9891 = vmatpush.bf16.msra.mxu0 %v7890
        %9892 = vmatpush.bf16.msra.mxu0 %v7886
        %9893 = vmatpush.bf16.msra.mxu0 %v7882
        %9894 = vmatpush.bf16.msra.mxu0 %v7878
        %9895 = vmatpush.bf16.msra.mxu0 %v7874
        %9896 = vmatpush.bf16.msra.mxu0 %v7870
        %9897 = vmatmul.bf16.gmra.mxu0 %v4365
        %v9898 = vpop.f32.mrf.mxu0
        %v9899 = vadd.f32 %v9886, %v9898
        %v9900 = vpop.f32.mrf.mxu0
        %9901 = vdwg.mxu0
        %9902 = vmatpush.bf16.msra.mxu0 %v7930
        %9903 = vmatpush.bf16.msra.mxu0 %v7926
        %9904 = vmatpush.bf16.msra.mxu0 %v7922
        %9905 = vmatpush.bf16.msra.mxu0 %v7918
        %9906 = vmatpush.bf16.msra.mxu0 %v7914
        %9907 = vmatpush.bf16.msra.mxu0 %v7910
        %9908 = vmatpush.bf16.msra.mxu0 %v7906
        %9909 = vmatpush.bf16.msra.mxu0 %v7902
        %9910 = vmatmul.bf16.gmra.mxu0 %v4366
        %v9911 = vpop.f32.mrf.mxu0
        %v9912 = vadd.f32 %v9899, %v9911
        %v9913 = vpop.f32.mrf.mxu0
        %9914 = vdwg.mxu0
        %9915 = vmatpush.bf16.msra.mxu0 %v7962
        %9916 = vmatpush.bf16.msra.mxu0 %v7958
        %9917 = vmatpush.bf16.msra.mxu0 %v7954
        %9918 = vmatpush.bf16.msra.mxu0 %v7950
        %9919 = vmatpush.bf16.msra.mxu0 %v7946
        %9920 = vmatpush.bf16.msra.mxu0 %v7942
        %9921 = vmatpush.bf16.msra.mxu0 %v7938
        %9922 = vmatpush.bf16.msra.mxu0 %v7934
        %9923 = vmatmul.bf16.gmra.mxu0 %v4367
        %v9924 = vpop.f32.mrf.mxu0
        %v9925 = vadd.f32 %v9912, %v9924
        %v9926 = vpop.f32.mrf.mxu0
        %9927 = vdwg.mxu0
        %9928 = vmatpush.bf16.msra.mxu0 %v7994
        %9929 = vmatpush.bf16.msra.mxu0 %v7990
        %9930 = vmatpush.bf16.msra.mxu0 %v7986
        %9931 = vmatpush.bf16.msra.mxu0 %v7982
        %9932 = vmatpush.bf16.msra.mxu0 %v7978
        %9933 = vmatpush.bf16.msra.mxu0 %v7974
        %9934 = vmatpush.bf16.msra.mxu0 %v7970
        %9935 = vmatpush.bf16.msra.mxu0 %v7966
        %9936 = vmatmul.bf16.gmra.mxu0 %v4368
        %v9937 = vpop.f32.mrf.mxu0
        %v9938 = vadd.f32 %v9925, %v9937
        %v9939 = vpop.f32.mrf.mxu0
        %9940 = vdwg.mxu0
        %9941 = vmatpush.bf16.msra.mxu0 %v8026
        %9942 = vmatpush.bf16.msra.mxu0 %v8022
        %9943 = vmatpush.bf16.msra.mxu0 %v8018
        %9944 = vmatpush.bf16.msra.mxu0 %v8014
        %9945 = vmatpush.bf16.msra.mxu0 %v8010
        %9946 = vmatpush.bf16.msra.mxu0 %v8006
        %9947 = vmatpush.bf16.msra.mxu0 %v8002
        %9948 = vmatpush.bf16.msra.mxu0 %v7998
        %9949 = vmatmul.bf16.gmra.mxu0 %v4369
        %v9950 = vpop.f32.mrf.mxu0
        %v9951 = vadd.f32 %v9938, %v9950
        %v9952 = vpop.f32.mrf.mxu0
        %9953 = vdwg.mxu0
        %9954 = vmatpush.bf16.msra.mxu0 %v8058
        %9955 = vmatpush.bf16.msra.mxu0 %v8054
        %9956 = vmatpush.bf16.msra.mxu0 %v8050
        %9957 = vmatpush.bf16.msra.mxu0 %v8046
        %9958 = vmatpush.bf16.msra.mxu0 %v8042
        %9959 = vmatpush.bf16.msra.mxu0 %v8038
        %9960 = vmatpush.bf16.msra.mxu0 %v8034
        %9961 = vmatpush.bf16.msra.mxu0 %v8030
        %9962 = vmatmul.bf16.gmra.mxu0 %v4370
        %v9963 = vpop.f32.mrf.mxu0
        %v9964 = vadd.f32 %v9951, %v9963
        %v9965 = vpop.f32.mrf.mxu0
        %9966 = vdwg.mxu0
        %9967 = vmatpush.bf16.msra.mxu0 %v8090
        %9968 = vmatpush.bf16.msra.mxu0 %v8086
        %9969 = vmatpush.bf16.msra.mxu0 %v8082
        %9970 = vmatpush.bf16.msra.mxu0 %v8078
        %9971 = vmatpush.bf16.msra.mxu0 %v8074
        %9972 = vmatpush.bf16.msra.mxu0 %v8070
        %9973 = vmatpush.bf16.msra.mxu0 %v8066
        %9974 = vmatpush.bf16.msra.mxu0 %v8062
        %9975 = vmatmul.bf16.gmra.mxu0 %v4371
        %v9976 = vpop.f32.mrf.mxu0
        %v9977 = vadd.f32 %v9964, %v9976
        %v9978 = vpop.f32.mrf.mxu0
        %9979 = vdwg.mxu0
        %9980 = vmatpush.bf16.msra.mxu0 %v8122
        %9981 = vmatpush.bf16.msra.mxu0 %v8118
        %9982 = vmatpush.bf16.msra.mxu0 %v8114
        %9983 = vmatpush.bf16.msra.mxu0 %v8110
        %9984 = vmatpush.bf16.msra.mxu0 %v8106
        %9985 = vmatpush.bf16.msra.mxu0 %v8102
        %9986 = vmatpush.bf16.msra.mxu0 %v8098
        %9987 = vmatpush.bf16.msra.mxu0 %v8094
        %9988 = vmatmul.bf16.gmra.mxu0 %v4372
        %v9989 = vpop.f32.mrf.mxu0
        %v9990 = vadd.f32 %v9977, %v9989
        %v9991 = vpop.f32.mrf.mxu0
        %9992 = vdwg.mxu0
        %9993 = vmatpush.bf16.msra.mxu0 %v8154
        %9994 = vmatpush.bf16.msra.mxu0 %v8150
        %9995 = vmatpush.bf16.msra.mxu0 %v8146
        %9996 = vmatpush.bf16.msra.mxu0 %v8142
        %9997 = vmatpush.bf16.msra.mxu0 %v8138
        %9998 = vmatpush.bf16.msra.mxu0 %v8134
        %9999 = vmatpush.bf16.msra.mxu0 %v8130
        %10000 = vmatpush.bf16.msra.mxu0 %v8126
        %10001 = vmatmul.bf16.gmra.mxu0 %v4373
        %v10002 = vpop.f32.mrf.mxu0
        %v10003 = vadd.f32 %v9990, %v10002
        %v10004 = vpop.f32.mrf.mxu0
        %10005 = vdwg.mxu0
        %10006 = vmatpush.bf16.msra.mxu0 %v8186
        %10007 = vmatpush.bf16.msra.mxu0 %v8182
        %10008 = vmatpush.bf16.msra.mxu0 %v8178
        %10009 = vmatpush.bf16.msra.mxu0 %v8174
        %10010 = vmatpush.bf16.msra.mxu0 %v8170
        %10011 = vmatpush.bf16.msra.mxu0 %v8166
        %10012 = vmatpush.bf16.msra.mxu0 %v8162
        %10013 = vmatpush.bf16.msra.mxu0 %v8158
        %10014 = vmatmul.bf16.gmra.mxu0 %v4374
        %v10015 = vpop.f32.mrf.mxu0
        %v10016 = vadd.f32 %v10003, %v10015
        %v10017 = vpop.f32.mrf.mxu0
        %10018 = vdwg.mxu0
        %10019 = vmatpush.bf16.msra.mxu0 %v8218
        %10020 = vmatpush.bf16.msra.mxu0 %v8214
        %10021 = vmatpush.bf16.msra.mxu0 %v8210
        %10022 = vmatpush.bf16.msra.mxu0 %v8206
        %10023 = vmatpush.bf16.msra.mxu0 %v8202
        %10024 = vmatpush.bf16.msra.mxu0 %v8198
        %10025 = vmatpush.bf16.msra.mxu0 %v8194
        %10026 = vmatpush.bf16.msra.mxu0 %v8190
        %10027 = vmatmul.bf16.gmra.mxu0 %v4375
        %v10028 = vpop.f32.mrf.mxu0
        %v10029 = vadd.f32 %v10016, %v10028
        %v10030 = vpop.f32.mrf.mxu0
        %10031 = vdwg.mxu0
        %10032 = vmatpush.bf16.msra.mxu0 %v8250
        %10033 = vmatpush.bf16.msra.mxu0 %v8246
        %10034 = vmatpush.bf16.msra.mxu0 %v8242
        %10035 = vmatpush.bf16.msra.mxu0 %v8238
        %10036 = vmatpush.bf16.msra.mxu0 %v8234
        %10037 = vmatpush.bf16.msra.mxu0 %v8230
        %10038 = vmatpush.bf16.msra.mxu0 %v8226
        %10039 = vmatpush.bf16.msra.mxu0 %v8222
        %10040 = vmatmul.bf16.gmra.mxu0 %v4376
        %v10041 = vpop.f32.mrf.mxu0
        %v10042 = vadd.f32 %v10029, %v10041
        %v10043 = vpop.f32.mrf.mxu0
        %10044 = vdwg.mxu0
        %10045 = vmatpush.bf16.msra.mxu0 %v8282
        %10046 = vmatpush.bf16.msra.mxu0 %v8278
        %10047 = vmatpush.bf16.msra.mxu0 %v8274
        %10048 = vmatpush.bf16.msra.mxu0 %v8270
        %10049 = vmatpush.bf16.msra.mxu0 %v8266
        %10050 = vmatpush.bf16.msra.mxu0 %v8262
        %10051 = vmatpush.bf16.msra.mxu0 %v8258
        %10052 = vmatpush.bf16.msra.mxu0 %v8254
        %10053 = vmatmul.bf16.gmra.mxu0 %v4377
        %v10054 = vpop.f32.mrf.mxu0
        %v10055 = vadd.f32 %v10042, %v10054
        %v10056 = vpop.f32.mrf.mxu0
        %10057 = vdwg.mxu0
        %10058 = vmatpush.bf16.msra.mxu0 0
        %10059 = vmatpush.bf16.msra.mxu0 0
        %10060 = vmatpush.bf16.msra.mxu0 0
        %10061 = vmatpush.bf16.msra.mxu0 0
        %10062 = vmatpush.bf16.msra.mxu0 %v8298
        %10063 = vmatpush.bf16.msra.mxu0 %v8294
        %10064 = vmatpush.bf16.msra.mxu0 %v8290
        %10065 = vmatpush.bf16.msra.mxu0 %v8286
        %10066 = vmatmul.bf16.gmra.mxu0 %v9094
        %v10067 = vpop.f32.mrf.mxu0
        %v10068 = vadd.f32 %v10055, %v10067
        %v10069 = vpop.f32.mrf.mxu0
        %10070 = vdwg.mxu0
        %10071 = vmatpush.bf16.msra.mxu0 %v7547
        %10072 = vmatpush.bf16.msra.mxu0 %v7543
        %10073 = vmatpush.bf16.msra.mxu0 %v7539
        %10074 = vmatpush.bf16.msra.mxu0 %v7535
        %10075 = vmatpush.bf16.msra.mxu0 %v7531
        %10076 = vmatpush.bf16.msra.mxu0 %v7527
        %10077 = vmatpush.bf16.msra.mxu0 %v7523
        %10078 = vmatpush.bf16.msra.mxu0 %v7519
        %10079 = vmatmul.bf16.gmra.mxu0 %v4354
        %v10080 = vpop.f32.mrf.mxu0
        %v10081 = vadd.f32 %v9088, %v10080
        %v10082 = vpop.f32.mrf.mxu0
        %10083 = vdwg.mxu0
        %10084 = vmatpush.bf16.msra.mxu0 %v7579
        %10085 = vmatpush.bf16.msra.mxu0 %v7575
        %10086 = vmatpush.bf16.msra.mxu0 %v7571
        %10087 = vmatpush.bf16.msra.mxu0 %v7567
        %10088 = vmatpush.bf16.msra.mxu0 %v7563
        %10089 = vmatpush.bf16.msra.mxu0 %v7559
        %10090 = vmatpush.bf16.msra.mxu0 %v7555
        %10091 = vmatpush.bf16.msra.mxu0 %v7551
        %10092 = vmatmul.bf16.gmra.mxu0 %v4355
        %v10093 = vpop.f32.mrf.mxu0
        %v10094 = vadd.f32 %v10081, %v10093
        %v10095 = vpop.f32.mrf.mxu0
        %10096 = vdwg.mxu0
        %10097 = vmatpush.bf16.msra.mxu0 %v7611
        %10098 = vmatpush.bf16.msra.mxu0 %v7607
        %10099 = vmatpush.bf16.msra.mxu0 %v7603
        %10100 = vmatpush.bf16.msra.mxu0 %v7599
        %10101 = vmatpush.bf16.msra.mxu0 %v7595
        %10102 = vmatpush.bf16.msra.mxu0 %v7591
        %10103 = vmatpush.bf16.msra.mxu0 %v7587
        %10104 = vmatpush.bf16.msra.mxu0 %v7583
        %10105 = vmatmul.bf16.gmra.mxu0 %v4356
        %v10106 = vpop.f32.mrf.mxu0
        %v10107 = vadd.f32 %v10094, %v10106
        %v10108 = vpop.f32.mrf.mxu0
        %10109 = vdwg.mxu0
        %10110 = vmatpush.bf16.msra.mxu0 %v7643
        %10111 = vmatpush.bf16.msra.mxu0 %v7639
        %10112 = vmatpush.bf16.msra.mxu0 %v7635
        %10113 = vmatpush.bf16.msra.mxu0 %v7631
        %10114 = vmatpush.bf16.msra.mxu0 %v7627
        %10115 = vmatpush.bf16.msra.mxu0 %v7623
        %10116 = vmatpush.bf16.msra.mxu0 %v7619
        %10117 = vmatpush.bf16.msra.mxu0 %v7615
        %10118 = vmatmul.bf16.gmra.mxu0 %v4357
        %v10119 = vpop.f32.mrf.mxu0
        %v10120 = vadd.f32 %v10107, %v10119
        %v10121 = vpop.f32.mrf.mxu0
        %10122 = vdwg.mxu0
        %10123 = vmatpush.bf16.msra.mxu0 %v7675
        %10124 = vmatpush.bf16.msra.mxu0 %v7671
        %10125 = vmatpush.bf16.msra.mxu0 %v7667
        %10126 = vmatpush.bf16.msra.mxu0 %v7663
        %10127 = vmatpush.bf16.msra.mxu0 %v7659
        %10128 = vmatpush.bf16.msra.mxu0 %v7655
        %10129 = vmatpush.bf16.msra.mxu0 %v7651
        %10130 = vmatpush.bf16.msra.mxu0 %v7647
        %10131 = vmatmul.bf16.gmra.mxu0 %v4358
        %v10132 = vpop.f32.mrf.mxu0
        %v10133 = vadd.f32 %v10120, %v10132
        %v10134 = vpop.f32.mrf.mxu0
        %10135 = vdwg.mxu0
        %10136 = vmatpush.bf16.msra.mxu0 %v7707
        %10137 = vmatpush.bf16.msra.mxu0 %v7703
        %10138 = vmatpush.bf16.msra.mxu0 %v7699
        %10139 = vmatpush.bf16.msra.mxu0 %v7695
        %10140 = vmatpush.bf16.msra.mxu0 %v7691
        %10141 = vmatpush.bf16.msra.mxu0 %v7687
        %10142 = vmatpush.bf16.msra.mxu0 %v7683
        %10143 = vmatpush.bf16.msra.mxu0 %v7679
        %10144 = vmatmul.bf16.gmra.mxu0 %v4359
        %v10145 = vpop.f32.mrf.mxu0
        %v10146 = vadd.f32 %v10133, %v10145
        %v10147 = vpop.f32.mrf.mxu0
        %10148 = vdwg.mxu0
        %10149 = vmatpush.bf16.msra.mxu0 %v7739
        %10150 = vmatpush.bf16.msra.mxu0 %v7735
        %10151 = vmatpush.bf16.msra.mxu0 %v7731
        %10152 = vmatpush.bf16.msra.mxu0 %v7727
        %10153 = vmatpush.bf16.msra.mxu0 %v7723
        %10154 = vmatpush.bf16.msra.mxu0 %v7719
        %10155 = vmatpush.bf16.msra.mxu0 %v7715
        %10156 = vmatpush.bf16.msra.mxu0 %v7711
        %10157 = vmatmul.bf16.gmra.mxu0 %v4360
        %v10158 = vpop.f32.mrf.mxu0
        %v10159 = vadd.f32 %v10146, %v10158
        %v10160 = vpop.f32.mrf.mxu0
        %10161 = vdwg.mxu0
        %10162 = vmatpush.bf16.msra.mxu0 %v7771
        %10163 = vmatpush.bf16.msra.mxu0 %v7767
        %10164 = vmatpush.bf16.msra.mxu0 %v7763
        %10165 = vmatpush.bf16.msra.mxu0 %v7759
        %10166 = vmatpush.bf16.msra.mxu0 %v7755
        %10167 = vmatpush.bf16.msra.mxu0 %v7751
        %10168 = vmatpush.bf16.msra.mxu0 %v7747
        %10169 = vmatpush.bf16.msra.mxu0 %v7743
        %10170 = vmatmul.bf16.gmra.mxu0 %v4361
        %v10171 = vpop.f32.mrf.mxu0
        %v10172 = vadd.f32 %v10159, %v10171
        %v10173 = vpop.f32.mrf.mxu0
        %10174 = vdwg.mxu0
        %10175 = vmatpush.bf16.msra.mxu0 %v7803
        %10176 = vmatpush.bf16.msra.mxu0 %v7799
        %10177 = vmatpush.bf16.msra.mxu0 %v7795
        %10178 = vmatpush.bf16.msra.mxu0 %v7791
        %10179 = vmatpush.bf16.msra.mxu0 %v7787
        %10180 = vmatpush.bf16.msra.mxu0 %v7783
        %10181 = vmatpush.bf16.msra.mxu0 %v7779
        %10182 = vmatpush.bf16.msra.mxu0 %v7775
        %10183 = vmatmul.bf16.gmra.mxu0 %v4362
        %v10184 = vpop.f32.mrf.mxu0
        %v10185 = vadd.f32 %v10172, %v10184
        %v10186 = vpop.f32.mrf.mxu0
        %10187 = vdwg.mxu0
        %10188 = vmatpush.bf16.msra.mxu0 %v7835
        %10189 = vmatpush.bf16.msra.mxu0 %v7831
        %10190 = vmatpush.bf16.msra.mxu0 %v7827
        %10191 = vmatpush.bf16.msra.mxu0 %v7823
        %10192 = vmatpush.bf16.msra.mxu0 %v7819
        %10193 = vmatpush.bf16.msra.mxu0 %v7815
        %10194 = vmatpush.bf16.msra.mxu0 %v7811
        %10195 = vmatpush.bf16.msra.mxu0 %v7807
        %10196 = vmatmul.bf16.gmra.mxu0 %v4363
        %v10197 = vpop.f32.mrf.mxu0
        %v10198 = vadd.f32 %v10185, %v10197
        %v10199 = vpop.f32.mrf.mxu0
        %10200 = vdwg.mxu0
        %10201 = vmatpush.bf16.msra.mxu0 %v7867
        %10202 = vmatpush.bf16.msra.mxu0 %v7863
        %10203 = vmatpush.bf16.msra.mxu0 %v7859
        %10204 = vmatpush.bf16.msra.mxu0 %v7855
        %10205 = vmatpush.bf16.msra.mxu0 %v7851
        %10206 = vmatpush.bf16.msra.mxu0 %v7847
        %10207 = vmatpush.bf16.msra.mxu0 %v7843
        %10208 = vmatpush.bf16.msra.mxu0 %v7839
        %10209 = vmatmul.bf16.gmra.mxu0 %v4364
        %v10210 = vpop.f32.mrf.mxu0
        %v10211 = vadd.f32 %v10198, %v10210
        %v10212 = vpop.f32.mrf.mxu0
        %10213 = vdwg.mxu0
        %10214 = vmatpush.bf16.msra.mxu0 %v7899
        %10215 = vmatpush.bf16.msra.mxu0 %v7895
        %10216 = vmatpush.bf16.msra.mxu0 %v7891
        %10217 = vmatpush.bf16.msra.mxu0 %v7887
        %10218 = vmatpush.bf16.msra.mxu0 %v7883
        %10219 = vmatpush.bf16.msra.mxu0 %v7879
        %10220 = vmatpush.bf16.msra.mxu0 %v7875
        %10221 = vmatpush.bf16.msra.mxu0 %v7871
        %10222 = vmatmul.bf16.gmra.mxu0 %v4365
        %v10223 = vpop.f32.mrf.mxu0
        %v10224 = vadd.f32 %v10211, %v10223
        %v10225 = vpop.f32.mrf.mxu0
        %10226 = vdwg.mxu0
        %10227 = vmatpush.bf16.msra.mxu0 %v7931
        %10228 = vmatpush.bf16.msra.mxu0 %v7927
        %10229 = vmatpush.bf16.msra.mxu0 %v7923
        %10230 = vmatpush.bf16.msra.mxu0 %v7919
        %10231 = vmatpush.bf16.msra.mxu0 %v7915
        %10232 = vmatpush.bf16.msra.mxu0 %v7911
        %10233 = vmatpush.bf16.msra.mxu0 %v7907
        %10234 = vmatpush.bf16.msra.mxu0 %v7903
        %10235 = vmatmul.bf16.gmra.mxu0 %v4366
        %v10236 = vpop.f32.mrf.mxu0
        %v10237 = vadd.f32 %v10224, %v10236
        %v10238 = vpop.f32.mrf.mxu0
        %10239 = vdwg.mxu0
        %10240 = vmatpush.bf16.msra.mxu0 %v7963
        %10241 = vmatpush.bf16.msra.mxu0 %v7959
        %10242 = vmatpush.bf16.msra.mxu0 %v7955
        %10243 = vmatpush.bf16.msra.mxu0 %v7951
        %10244 = vmatpush.bf16.msra.mxu0 %v7947
        %10245 = vmatpush.bf16.msra.mxu0 %v7943
        %10246 = vmatpush.bf16.msra.mxu0 %v7939
        %10247 = vmatpush.bf16.msra.mxu0 %v7935
        %10248 = vmatmul.bf16.gmra.mxu0 %v4367
        %v10249 = vpop.f32.mrf.mxu0
        %v10250 = vadd.f32 %v10237, %v10249
        %v10251 = vpop.f32.mrf.mxu0
        %10252 = vdwg.mxu0
        %10253 = vmatpush.bf16.msra.mxu0 %v7995
        %10254 = vmatpush.bf16.msra.mxu0 %v7991
        %10255 = vmatpush.bf16.msra.mxu0 %v7987
        %10256 = vmatpush.bf16.msra.mxu0 %v7983
        %10257 = vmatpush.bf16.msra.mxu0 %v7979
        %10258 = vmatpush.bf16.msra.mxu0 %v7975
        %10259 = vmatpush.bf16.msra.mxu0 %v7971
        %10260 = vmatpush.bf16.msra.mxu0 %v7967
        %10261 = vmatmul.bf16.gmra.mxu0 %v4368
        %v10262 = vpop.f32.mrf.mxu0
        %v10263 = vadd.f32 %v10250, %v10262
        %v10264 = vpop.f32.mrf.mxu0
        %10265 = vdwg.mxu0
        %10266 = vmatpush.bf16.msra.mxu0 %v8027
        %10267 = vmatpush.bf16.msra.mxu0 %v8023
        %10268 = vmatpush.bf16.msra.mxu0 %v8019
        %10269 = vmatpush.bf16.msra.mxu0 %v8015
        %10270 = vmatpush.bf16.msra.mxu0 %v8011
        %10271 = vmatpush.bf16.msra.mxu0 %v8007
        %10272 = vmatpush.bf16.msra.mxu0 %v8003
        %10273 = vmatpush.bf16.msra.mxu0 %v7999
        %10274 = vmatmul.bf16.gmra.mxu0 %v4369
        %v10275 = vpop.f32.mrf.mxu0
        %v10276 = vadd.f32 %v10263, %v10275
        %v10277 = vpop.f32.mrf.mxu0
        %10278 = vdwg.mxu0
        %10279 = vmatpush.bf16.msra.mxu0 %v8059
        %10280 = vmatpush.bf16.msra.mxu0 %v8055
        %10281 = vmatpush.bf16.msra.mxu0 %v8051
        %10282 = vmatpush.bf16.msra.mxu0 %v8047
        %10283 = vmatpush.bf16.msra.mxu0 %v8043
        %10284 = vmatpush.bf16.msra.mxu0 %v8039
        %10285 = vmatpush.bf16.msra.mxu0 %v8035
        %10286 = vmatpush.bf16.msra.mxu0 %v8031
        %10287 = vmatmul.bf16.gmra.mxu0 %v4370
        %v10288 = vpop.f32.mrf.mxu0
        %v10289 = vadd.f32 %v10276, %v10288
        %v10290 = vpop.f32.mrf.mxu0
        %10291 = vdwg.mxu0
        %10292 = vmatpush.bf16.msra.mxu0 %v8091
        %10293 = vmatpush.bf16.msra.mxu0 %v8087
        %10294 = vmatpush.bf16.msra.mxu0 %v8083
        %10295 = vmatpush.bf16.msra.mxu0 %v8079
        %10296 = vmatpush.bf16.msra.mxu0 %v8075
        %10297 = vmatpush.bf16.msra.mxu0 %v8071
        %10298 = vmatpush.bf16.msra.mxu0 %v8067
        %10299 = vmatpush.bf16.msra.mxu0 %v8063
        %10300 = vmatmul.bf16.gmra.mxu0 %v4371
        %v10301 = vpop.f32.mrf.mxu0
        %v10302 = vadd.f32 %v10289, %v10301
        %v10303 = vpop.f32.mrf.mxu0
        %10304 = vdwg.mxu0
        %10305 = vmatpush.bf16.msra.mxu0 %v8123
        %10306 = vmatpush.bf16.msra.mxu0 %v8119
        %10307 = vmatpush.bf16.msra.mxu0 %v8115
        %10308 = vmatpush.bf16.msra.mxu0 %v8111
        %10309 = vmatpush.bf16.msra.mxu0 %v8107
        %10310 = vmatpush.bf16.msra.mxu0 %v8103
        %10311 = vmatpush.bf16.msra.mxu0 %v8099
        %10312 = vmatpush.bf16.msra.mxu0 %v8095
        %10313 = vmatmul.bf16.gmra.mxu0 %v4372
        %v10314 = vpop.f32.mrf.mxu0
        %v10315 = vadd.f32 %v10302, %v10314
        %v10316 = vpop.f32.mrf.mxu0
        %10317 = vdwg.mxu0
        %10318 = vmatpush.bf16.msra.mxu0 %v8155
        %10319 = vmatpush.bf16.msra.mxu0 %v8151
        %10320 = vmatpush.bf16.msra.mxu0 %v8147
        %10321 = vmatpush.bf16.msra.mxu0 %v8143
        %10322 = vmatpush.bf16.msra.mxu0 %v8139
        %10323 = vmatpush.bf16.msra.mxu0 %v8135
        %10324 = vmatpush.bf16.msra.mxu0 %v8131
        %10325 = vmatpush.bf16.msra.mxu0 %v8127
        %10326 = vmatmul.bf16.gmra.mxu0 %v4373
        %v10327 = vpop.f32.mrf.mxu0
        %v10328 = vadd.f32 %v10315, %v10327
        %v10329 = vpop.f32.mrf.mxu0
        %10330 = vdwg.mxu0
        %10331 = vmatpush.bf16.msra.mxu0 %v8187
        %10332 = vmatpush.bf16.msra.mxu0 %v8183
        %10333 = vmatpush.bf16.msra.mxu0 %v8179
        %10334 = vmatpush.bf16.msra.mxu0 %v8175
        %10335 = vmatpush.bf16.msra.mxu0 %v8171
        %10336 = vmatpush.bf16.msra.mxu0 %v8167
        %10337 = vmatpush.bf16.msra.mxu0 %v8163
        %10338 = vmatpush.bf16.msra.mxu0 %v8159
        %10339 = vmatmul.bf16.gmra.mxu0 %v4374
        %v10340 = vpop.f32.mrf.mxu0
        %v10341 = vadd.f32 %v10328, %v10340
        %v10342 = vpop.f32.mrf.mxu0
        %10343 = vdwg.mxu0
        %10344 = vmatpush.bf16.msra.mxu0 %v8219
        %10345 = vmatpush.bf16.msra.mxu0 %v8215
        %10346 = vmatpush.bf16.msra.mxu0 %v8211
        %10347 = vmatpush.bf16.msra.mxu0 %v8207
        %10348 = vmatpush.bf16.msra.mxu0 %v8203
        %10349 = vmatpush.bf16.msra.mxu0 %v8199
        %10350 = vmatpush.bf16.msra.mxu0 %v8195
        %10351 = vmatpush.bf16.msra.mxu0 %v8191
        %10352 = vmatmul.bf16.gmra.mxu0 %v4375
        %v10353 = vpop.f32.mrf.mxu0
        %v10354 = vadd.f32 %v10341, %v10353
        %v10355 = vpop.f32.mrf.mxu0
        %10356 = vdwg.mxu0
        %10357 = vmatpush.bf16.msra.mxu0 %v8251
        %10358 = vmatpush.bf16.msra.mxu0 %v8247
        %10359 = vmatpush.bf16.msra.mxu0 %v8243
        %10360 = vmatpush.bf16.msra.mxu0 %v8239
        %10361 = vmatpush.bf16.msra.mxu0 %v8235
        %10362 = vmatpush.bf16.msra.mxu0 %v8231
        %10363 = vmatpush.bf16.msra.mxu0 %v8227
        %10364 = vmatpush.bf16.msra.mxu0 %v8223
        %10365 = vmatmul.bf16.gmra.mxu0 %v4376
        %v10366 = vpop.f32.mrf.mxu0
        %v10367 = vadd.f32 %v10354, %v10366
        %v10368 = vpop.f32.mrf.mxu0
        %10369 = vdwg.mxu0
        %10370 = vmatpush.bf16.msra.mxu0 %v8283
        %10371 = vmatpush.bf16.msra.mxu0 %v8279
        %10372 = vmatpush.bf16.msra.mxu0 %v8275
        %10373 = vmatpush.bf16.msra.mxu0 %v8271
        %10374 = vmatpush.bf16.msra.mxu0 %v8267
        %10375 = vmatpush.bf16.msra.mxu0 %v8263
        %10376 = vmatpush.bf16.msra.mxu0 %v8259
        %10377 = vmatpush.bf16.msra.mxu0 %v8255
        %10378 = vmatmul.bf16.gmra.mxu0 %v4377
        %v10379 = vpop.f32.mrf.mxu0
        %v10380 = vadd.f32 %v10367, %v10379
        %v10381 = vpop.f32.mrf.mxu0
        %10382 = vdwg.mxu0
        %10383 = vmatpush.bf16.msra.mxu0 0
        %10384 = vmatpush.bf16.msra.mxu0 0
        %10385 = vmatpush.bf16.msra.mxu0 0
        %10386 = vmatpush.bf16.msra.mxu0 0
        %10387 = vmatpush.bf16.msra.mxu0 %v8299
        %10388 = vmatpush.bf16.msra.mxu0 %v8295
        %10389 = vmatpush.bf16.msra.mxu0 %v8291
        %10390 = vmatpush.bf16.msra.mxu0 %v8287
        %10391 = vmatmul.bf16.gmra.mxu0 %v9094
        %v10392 = vpop.f32.mrf.mxu0
        %v10393 = vadd.f32 %v10380, %v10392
        %v10394 = vpop.f32.mrf.mxu0
        %10395 = vdwg.mxu0
        %v10396 = vmax.f32 %v9418, 0.0
        %v10397 = vmax.f32 %v9743, 0.0
        %v10398 = vmax.f32 %v10068, 0.0
        %v10399 = vmax.f32 %v10393, 0.0
        %v10400 = vpack.c.bf16 %v10396, %v10396
        %v10401 = vpack.c.bf16 %v10397, %v10397
        %v10402 = vpack.c.bf16 %v10398, %v10398
        %v10403 = vpack.c.bf16 %v10399, %v10399
        %v10404 = vld [vmem:[%s9] sm:$0xf]
        %v10405 = vld [vmem:[%s9 + $0x4] sm:$0xf]
        %v10406 = vld [vmem:[%s9 + $0x8] sm:$0xf]
        %v10407 = vld [vmem:[%s9 + $0xc] sm:$0xf]
        %v10408 = vld [vmem:[%s9 + $0x10] sm:$0xf]
        %v10409 = vld [vmem:[%s9 + $0x14] sm:$0xf]
        %v10410 = vld [vmem:[%s9 + $0x18] sm:$0xf]
        %v10411 = vld [vmem:[%s9 + $0x1c] sm:$0xf]
        %v10412 = vld [vmem:[%s9 + $0x20] sm:$0xf]
        %v10413 = vld [vmem:[%s9 + $0x24] sm:$0xf]
        %v10414 = vld [vmem:[%s9 + $0x28] sm:$0xf]
        %v10415 = vld [vmem:[%s9 + $0x2c] sm:$0xf]
        %v10416 = vld [vmem:[%s9 + $0x30] sm:$0xf]
        %v10417 = vld [vmem:[%s9 + $0x34] sm:$0xf]
        %v10418 = vld [vmem:[%s9 + $0x38] sm:$0xf]
        %v10419 = vld [vmem:[%s9 + $0x3c] sm:$0xf]
        %v10420 = vld [vmem:[%s9 + $0x40] sm:$0xf]
        %v10421 = vld [vmem:[%s9 + $0x44] sm:$0xf]
        %v10422 = vld [vmem:[%s9 + $0x48] sm:$0xf]
        %v10423 = vld [vmem:[%s9 + $0x4c] sm:$0xf]
        %v10424 = vld [vmem:[%s9 + $0x50] sm:$0xf]
        %v10425 = vld [vmem:[%s9 + $0x54] sm:$0xf]
        %v10426 = vld [vmem:[%s9 + $0x58] sm:$0xf]
        %v10427 = vld [vmem:[%s9 + $0x5c] sm:$0xf]
        %v10428 = vld [vmem:[%s9 + $0x60] sm:$0xf]
        %v10429 = vld [vmem:[%s9 + $0x64] sm:$0xf]
        %v10430 = vld [vmem:[%s9 + $0x68] sm:$0xf]
        %v10431 = vld [vmem:[%s9 + $0x6c] sm:$0xf]
        %v10432 = vld [vmem:[%s9 + $0x70] sm:$0xf]
        %v10433 = vld [vmem:[%s9 + $0x74] sm:$0xf]
        %v10434 = vld [vmem:[%s9 + $0x78] sm:$0xf]
        %v10435 = vld [vmem:[%s9 + $0x7c] sm:$0xf]
        %v10436 = vld [vmem:[%s9 + $0x80] sm:$0xf]
        %v10437 = vld [vmem:[%s9 + $0x84] sm:$0xf]
        %v10438 = vld [vmem:[%s9 + $0x88] sm:$0xf]
        %v10439 = vld [vmem:[%s9 + $0x8c] sm:$0xf]
        %v10440 = vld [vmem:[%s9 + $0x90] sm:$0xf]
        %v10441 = vld [vmem:[%s9 + $0x94] sm:$0xf]
        %v10442 = vld [vmem:[%s9 + $0x98] sm:$0xf]
        %v10443 = vld [vmem:[%s9 + $0x9c] sm:$0xf]
        %v10444 = vld [vmem:[%s9 + $0xa0] sm:$0xf]
        %v10445 = vld [vmem:[%s9 + $0xa4] sm:$0xf]
        %v10446 = vld [vmem:[%s9 + $0xa8] sm:$0xf]
        %v10447 = vld [vmem:[%s9 + $0xac] sm:$0xf]
        %v10448 = vld [vmem:[%s9 + $0xb0] sm:$0xf]
        %v10449 = vld [vmem:[%s9 + $0xb4] sm:$0xf]
        %v10450 = vld [vmem:[%s9 + $0xb8] sm:$0xf]
        %v10451 = vld [vmem:[%s9 + $0xbc] sm:$0xf]
        %v10452 = vld [vmem:[%s9 + $0xc0] sm:$0xf]
        %v10453 = vld [vmem:[%s9 + $0xc4] sm:$0xf]
        %v10454 = vld [vmem:[%s9 + $0xc8] sm:$0xf]
        %v10455 = vld [vmem:[%s9 + $0xcc] sm:$0xf]
        %v10456 = vld [vmem:[%s9 + $0xd0] sm:$0xf]
        %v10457 = vld [vmem:[%s9 + $0xd4] sm:$0xf]
        %v10458 = vld [vmem:[%s9 + $0xd8] sm:$0xf]
        %v10459 = vld [vmem:[%s9 + $0xdc] sm:$0xf]
        %v10460 = vld [vmem:[%s9 + $0xe0] sm:$0xf]
        %v10461 = vld [vmem:[%s9 + $0xe4] sm:$0xf]
        %v10462 = vld [vmem:[%s9 + $0xe8] sm:$0xf]
        %v10463 = vld [vmem:[%s9 + $0xec] sm:$0xf]
        %v10464 = vld [vmem:[%s9 + $0xf0] sm:$0xf]
        %v10465 = vld [vmem:[%s9 + $0xf4] sm:$0xf]
        %v10466 = vld [vmem:[%s9 + $0xf8] sm:$0xf]
        %v10467 = vld [vmem:[%s9 + $0xfc] sm:$0xf]
        %v10468 = vld [vmem:[%s10] sm:$0x1]
        %v10533 = vunpack.c.l.b16 %v10404
        %v10534 = vunpack.c.l.b16 %v10405
        %v10535 = vunpack.c.l.b16 %v10406
        %v10536 = vunpack.c.l.b16 %v10407
        %v10537 = vunpack.c.l.b16 %v10408
        %v10538 = vunpack.c.l.b16 %v10409
        %v10539 = vunpack.c.l.b16 %v10410
        %v10540 = vunpack.c.l.b16 %v10411
        %v10541 = vunpack.c.l.b16 %v10412
        %v10542 = vunpack.c.l.b16 %v10413
        %v10543 = vunpack.c.l.b16 %v10414
        %v10544 = vunpack.c.l.b16 %v10415
        %v10545 = vunpack.c.l.b16 %v10416
        %v10546 = vunpack.c.l.b16 %v10417
        %v10547 = vunpack.c.l.b16 %v10418
        %v10548 = vunpack.c.l.b16 %v10419
        %v10549 = vunpack.c.l.b16 %v10420
        %v10550 = vunpack.c.l.b16 %v10421
        %v10551 = vunpack.c.l.b16 %v10422
        %v10552 = vunpack.c.l.b16 %v10423
        %v10553 = vunpack.c.l.b16 %v10424
        %v10554 = vunpack.c.l.b16 %v10425
        %v10555 = vunpack.c.l.b16 %v10426
        %v10556 = vunpack.c.l.b16 %v10427
        %v10557 = vunpack.c.l.b16 %v10428
        %v10558 = vunpack.c.l.b16 %v10429
        %v10559 = vunpack.c.l.b16 %v10430
        %v10560 = vunpack.c.l.b16 %v10431
        %v10561 = vunpack.c.l.b16 %v10432
        %v10562 = vunpack.c.l.b16 %v10433
        %v10563 = vunpack.c.l.b16 %v10434
        %v10564 = vunpack.c.l.b16 %v10435
        %v10565 = vunpack.c.l.b16 %v10436
        %v10566 = vunpack.c.l.b16 %v10437
        %v10567 = vunpack.c.l.b16 %v10438
        %v10568 = vunpack.c.l.b16 %v10439
        %v10569 = vunpack.c.l.b16 %v10440
        %v10570 = vunpack.c.l.b16 %v10441
        %v10571 = vunpack.c.l.b16 %v10442
        %v10572 = vunpack.c.l.b16 %v10443
        %v10573 = vunpack.c.l.b16 %v10444
        %v10574 = vunpack.c.l.b16 %v10445
        %v10575 = vunpack.c.l.b16 %v10446
        %v10576 = vunpack.c.l.b16 %v10447
        %v10577 = vunpack.c.l.b16 %v10448
        %v10578 = vunpack.c.l.b16 %v10449
        %v10579 = vunpack.c.l.b16 %v10450
        %v10580 = vunpack.c.l.b16 %v10451
        %v10581 = vunpack.c.l.b16 %v10452
        %v10582 = vunpack.c.l.b16 %v10453
        %v10583 = vunpack.c.l.b16 %v10454
        %v10584 = vunpack.c.l.b16 %v10455
        %v10585 = vunpack.c.l.b16 %v10456
        %v10586 = vunpack.c.l.b16 %v10457
        %v10587 = vunpack.c.l.b16 %v10458
        %v10588 = vunpack.c.l.b16 %v10459
        %v10589 = vunpack.c.l.b16 %v10460
        %v10590 = vunpack.c.l.b16 %v10461
        %v10591 = vunpack.c.l.b16 %v10462
        %v10592 = vunpack.c.l.b16 %v10463
        %v10593 = vunpack.c.l.b16 %v10464
        %v10594 = vunpack.c.l.b16 %v10465
        %v10595 = vunpack.c.l.b16 %v10466
        %v10596 = vunpack.c.l.b16 %v10467
        %v10597 = vpack.c.b16 %v10534, %v10533
        %v10598 = vpack.c.b16 %v10536, %v10535
        %v10599 = vpack.c.b16 %v10538, %v10537
        %v10600 = vpack.c.b16 %v10540, %v10539
        %v10601 = vpack.c.b16 %v10542, %v10541
        %v10602 = vpack.c.b16 %v10544, %v10543
        %v10603 = vpack.c.b16 %v10546, %v10545
        %v10604 = vpack.c.b16 %v10548, %v10547
        %v10605 = vpack.c.b16 %v10550, %v10549
        %v10606 = vpack.c.b16 %v10552, %v10551
        %v10607 = vpack.c.b16 %v10554, %v10553
        %v10608 = vpack.c.b16 %v10556, %v10555
        %v10609 = vpack.c.b16 %v10558, %v10557
        %v10610 = vpack.c.b16 %v10560, %v10559
        %v10611 = vpack.c.b16 %v10562, %v10561
        %v10612 = vpack.c.b16 %v10564, %v10563
        %v10613 = vpack.c.b16 %v10566, %v10565
        %v10614 = vpack.c.b16 %v10568, %v10567
        %v10615 = vpack.c.b16 %v10570, %v10569
        %v10616 = vpack.c.b16 %v10572, %v10571
        %v10617 = vpack.c.b16 %v10574, %v10573
        %v10618 = vpack.c.b16 %v10576, %v10575
        %v10619 = vpack.c.b16 %v10578, %v10577
        %v10620 = vpack.c.b16 %v10580, %v10579
        %v10621 = vpack.c.b16 %v10582, %v10581
        %v10622 = vpack.c.b16 %v10584, %v10583
        %v10623 = vpack.c.b16 %v10586, %v10585
        %v10624 = vpack.c.b16 %v10588, %v10587
        %v10625 = vpack.c.b16 %v10590, %v10589
        %v10626 = vpack.c.b16 %v10592, %v10591
        %v10627 = vpack.c.b16 %v10594, %v10593
        %v10628 = vpack.c.b16 %v10596, %v10595
        %10661 = vmatpush.bf16.msra.mxu0 %v10604
        %10662 = vmatpush.bf16.msra.mxu0 %v10603
        %10663 = vmatpush.bf16.msra.mxu0 %v10602
        %10664 = vmatpush.bf16.msra.mxu0 %v10601
        %10665 = vmatpush.bf16.msra.mxu0 %v10600
        %10666 = vmatpush.bf16.msra.mxu0 %v10599
        %10667 = vmatpush.bf16.msra.mxu0 %v10598
        %10668 = vmatpush.bf16.msra.mxu0 %v10597
        %10669 = vmatmul.bf16.gmra.mxu0 %v10400
        %v10670 = vpop.f32.mrf.mxu0
        %v10671 = vadd.f32 %v10468, %v10670
        %v10672 = vpop.f32.mrf.mxu0
        %10673 = vdwg.mxu0
        %10674 = vmatpush.bf16.msra.mxu0 %v10612
        %10675 = vmatpush.bf16.msra.mxu0 %v10611
        %10676 = vmatpush.bf16.msra.mxu0 %v10610
        %10677 = vmatpush.bf16.msra.mxu0 %v10609
        %10678 = vmatpush.bf16.msra.mxu0 %v10608
        %10679 = vmatpush.bf16.msra.mxu0 %v10607
        %10680 = vmatpush.bf16.msra.mxu0 %v10606
        %10681 = vmatpush.bf16.msra.mxu0 %v10605
        %10682 = vmatmul.bf16.gmra.mxu0 %v10401
        %v10683 = vpop.f32.mrf.mxu0
        %v10684 = vadd.f32 %v10671, %v10683
        %v10685 = vpop.f32.mrf.mxu0
        %10686 = vdwg.mxu0
        %10687 = vmatpush.bf16.msra.mxu0 %v10620
        %10688 = vmatpush.bf16.msra.mxu0 %v10619
        %10689 = vmatpush.bf16.msra.mxu0 %v10618
        %10690 = vmatpush.bf16.msra.mxu0 %v10617
        %10691 = vmatpush.bf16.msra.mxu0 %v10616
        %10692 = vmatpush.bf16.msra.mxu0 %v10615
        %10693 = vmatpush.bf16.msra.mxu0 %v10614
        %10694 = vmatpush.bf16.msra.mxu0 %v10613
        %10695 = vmatmul.bf16.gmra.mxu0 %v10402
        %v10696 = vpop.f32.mrf.mxu0
        %v10697 = vadd.f32 %v10684, %v10696
        %v10698 = vpop.f32.mrf.mxu0
        %10699 = vdwg.mxu0
        %10700 = vmatpush.bf16.msra.mxu0 %v10628
        %10701 = vmatpush.bf16.msra.mxu0 %v10627
        %10702 = vmatpush.bf16.msra.mxu0 %v10626
        %10703 = vmatpush.bf16.msra.mxu0 %v10625
        %10704 = vmatpush.bf16.msra.mxu0 %v10624
        %10705 = vmatpush.bf16.msra.mxu0 %v10623
        %10706 = vmatpush.bf16.msra.mxu0 %v10622
        %10707 = vmatpush.bf16.msra.mxu0 %v10621
        %10708 = vmatmul.bf16.gmra.mxu0 %v10403
        %v10709 = vpop.f32.mrf.mxu0
        %v10710 = vadd.f32 %v10697, %v10709
        %v10711 = vpop.f32.mrf.mxu0
        %10712 = vdwg.mxu0
        %vm10713 = vcmask 40960
        %10714 = vst.msk [vmem:[%s378] sm:$0x1] %vm10713, %v10710
        %s10715 = sand.u32 %s269, 1
        %s10716 = scalar_lea.sflag [#allocation6], %s10715
        %s10717 = sand.u32 %s269, 1
        %s10718 = scalar_lea.vmem [#allocation5], %s10717
        // Predicated region
        $region65: #{qnetwork_forward.1} parent=63 // pred_check
          %p10719 = pneg %p279
        $region66: #{qnetwork_forward.1} parent=63 // pred_check_branch
          %10721 = sbr.rel (%p10719) target = $region68
        $region67: #{qnetwork_forward.1} parent=63 // pred_region
          %10723 = vsyncadd %s10716, 0
          %s10724 = scalar_lea.hbm %s11, %s25
          %s10726 = sshll.u32 %s10718, 4
          %s10727 = int_to_ptr.vmem [resolvable:$true] %s10726
          %s10728 = sshll.u32 %s10724, 4
          %s10729 = int_to_ptr.hbm [resolvable:$true] %s10728
          %10731 = dma.vmem_to_hbm [thread:$0]  %s10727, 16, %s10729, %s10716
        $region68: #{qnetwork_forward.1} parent=63 // pred_fallthru
          _
      $region64: #{qnetwork_forward.1} parent=5 // pred_fallthru
        _
      %p10732 = scmp.le.s32.totalorder 2, %s20
      // Predicated region
      $region69: #{qnetwork_forward.1} parent=5 // pred_check
        %p10733 = pneg %p10732
      $region70: #{qnetwork_forward.1} parent=5 // pred_check_branch
        %10735 = sbr.rel (%p10733) target = $region72
      $region71: #{qnetwork_forward.1} parent=5 // pred_region
        %s10736 = ssub.s32 %s20, 2
        // Predicated region
        $region73: #{qnetwork_forward.1} parent=71 // pred_check
          %p10737 = pneg %p285
        $region74: #{qnetwork_forward.1} parent=71 // pred_check_branch
          %10739 = sbr.rel (%p10737) target = $region76
        $region75: #{qnetwork_forward.1} parent=71 // pred_region
          %s10740 = sand.u32 %s270, 1
          %s10741 = scalar_lea.sflag [#allocation6], %s10740
          %s10742 = sand.u32 %s270, 1
          %s10743 = scalar_lea.vmem [#allocation5], %s10742
          %10745 = dma.done %s10741, 16
        $region76: #{qnetwork_forward.1} parent=71 // pred_fallthru
          _
      $region72: #{qnetwork_forward.1} parent=5 // pred_fallthru
        _
    $region6: #{qnetwork_forward.1} parent=1 // loop_footer
      %s24 = sadd.s32 1, %s20
    $region7: #{qnetwork_forward.1} parent=1 // loop_footer_branch
      %19 = sbr.rel target = $region3
    $region8: #{qnetwork_forward.1} parent=1 // loop_exit
      _
    %10746 = vsyncpa [#allocation6], 1
    %s10747 = scalar_lea.sflag [#allocation6], 1
    %10748 = vsyncpa %s10747, 1

</llo_original>
